<compile_context>
chip_gen: v5e
topology: v5e:2x2
jax: 0.10.0
libtpu: 0.0.40
codegen_flags: <defaults>
</compile_context>

<pallas_src>
import functools

import jax
import jax.numpy as jnp
from jax.experimental import pallas as pl
from jax.experimental.pallas import tpu as pltpu


HEAD_PAD = 128   # lane-dense padded width of the fused prediction-head output
BOX_OFF = 64     # lane offset of the 4 sigmoid box coordinates
VMEM_LIMIT_BYTES = 48 * 1024 * 1024   # explicit scoped-VMEM budget (< v7x 64 MiB)


# ----------------------------------------------------------------------------
# Small helpers
# ----------------------------------------------------------------------------

def _rep(shape):
    """BlockSpec for an operand that is identical for every grid step."""
    n = len(shape)
    return pl.BlockSpec(shape, lambda *args: (0,) * n)


def _cparams(n_axes):
    return pltpu.CompilerParams(
        dimension_semantics=("parallel",) * n_axes,
        vmem_limit_bytes=VMEM_LIMIT_BYTES)


def _row_tile(m, max_tile=512):
    """Largest row tile <= max_tile dividing m (m itself when small)."""
    if m <= max_tile:
        return m
    t = max_tile - (max_tile % 8)
    while t > 8 and m % t != 0:
        t -= 8
    return t if m % t == 0 else m


def _ln(x, g, b, eps):
    """LayerNorm over the last axis, f32 math."""
    mean = jnp.mean(x, axis=-1, keepdims=True)
    var = jnp.mean(jnp.square(x - mean), axis=-1, keepdims=True)
    return (x - mean) * jax.lax.rsqrt(var + eps) * g + b


def _mha(q, k, v, wo_ref, bo, nheads, dh, scale):
    """Multi-head attention core: per-head softmax(qk^T)v -> concat -> Wo.

    q:[Lq,D], k,v:[Lk,D] f32 (projection biases already added).  All MXU
    matmuls take bf16 operands with f32 accumulation; softmax stats stay f32.
    The per-head outputs are concatenated and projected through Wo with a
    single deep-K (K=D) matmul.
    """
    qb = (q * scale).astype(jnp.bfloat16)
    kb = k.astype(jnp.bfloat16)
    vb = v.astype(jnp.bfloat16)
    heads = []
    # TODO(synk): at production L switch to fori_loop / flash kv-streaming so
    # only one head's [Lq,Lk] scores are live at a time.
    for h in range(nheads):
        lo, hi = h * dh, (h + 1) * dh
        s = jax.lax.dot_general(qb[:, lo:hi], kb[:, lo:hi],
                                (((1,), (1,)), ((), ())),
                                preferred_element_type=jnp.float32)
        s = s - jnp.max(s, axis=-1, keepdims=True)
        p = jnp.exp(s)
        p = p * pl.reciprocal(jnp.sum(p, axis=-1, keepdims=True), approx=True)
        heads.append(jnp.dot(p.astype(jnp.bfloat16), vb[:, lo:hi],
                             preferred_element_type=jnp.float32))
    concat = jnp.concatenate(heads, axis=-1).astype(jnp.bfloat16)   # [Lq, D]
    return jnp.dot(concat, wo_ref[...],
                   preferred_element_type=jnp.float32) + bo


def _ffn(x, w1_ref, b1_ref, w2_ref, b2_ref):
    """lin2(relu(lin1(x))); the [L, F] intermediate never leaves VMEM."""
    h = jnp.maximum(
        jnp.dot(x.astype(jnp.bfloat16), w1_ref[...],
                preferred_element_type=jnp.float32) + b1_ref[...], 0.0)
    return jnp.dot(h.astype(jnp.bfloat16), w2_ref[...],
                   preferred_element_type=jnp.float32) + b2_ref[...]


# ----------------------------------------------------------------------------
# Pallas kernels
# ----------------------------------------------------------------------------

def _encoder_layer_kernel(x_ref, qkv_bias_ref, wqkv_ref, wo_ref, bo_ref,
                          g1_ref, b1_ref,
                          w1_ref, fb1_ref, w2_ref, fb2_ref, g2_ref, b2_ref,
                          o_ref, *, nheads, scale, eps):
    """Full encoder layer (self-attn + LN + FFN + LN) for one batch element.

    qkv_bias = [pos@Wq + bq | pos@Wk + bk | bv] is precomputed, so the fused
    Q|K|V projection is a single x@[D,3D] matmul.
    """
    x = x_ref[0].astype(jnp.float32)                    # [L, D]
    D = x.shape[-1]
    dh = D // nheads
    qkv = jnp.dot(x.astype(jnp.bfloat16), wqkv_ref[...],
                  preferred_element_type=jnp.float32) + qkv_bias_ref[...]
    q, k, v = qkv[:, :D], qkv[:, D:2 * D], qkv[:, 2 * D:]
    attn = _mha(q, k, v, wo_ref, bo_ref[...], nheads, dh, scale)
    y = _ln(x + attn, g1_ref[...], b1_ref[...], eps)
    f = _ffn(y, w1_ref, fb1_ref, w2_ref, fb2_ref)
    o_ref[0] = _ln(y + f, g2_ref[...], b2_ref[...], eps).astype(o_ref.dtype)


def _decoder_layer_kernel(tgt_ref, mem_ref,
                          sa_bias_ref, sa_wqkv_ref, sa_wo_ref, sa_bo_ref,
                          sa_g_ref, sa_b_ref,
                          ca_qbias_ref, ca_wq_ref, ca_kvbias_ref, ca_wkv_ref,
                          ca_wo_ref, ca_bo_ref, ca_g_ref, ca_b_ref,
                          w1_ref, fb1_ref, w2_ref, fb2_ref, g3_ref, b3_ref,
                          gn_ref, bn_ref,
                          tgt_out_ref, norm_out_ref, *, nheads, scale, eps):
    """Full decoder layer (self-attn + cross-attn + FFN, all LNs, plus the
    return_intermediate final norm) for one batch element."""
    t = tgt_ref[0].astype(jnp.float32)                  # [Q, D]
    m = mem_ref[0].astype(jnp.float32)                  # [L, D]
    D = t.shape[-1]
    dh = D // nheads

    # --- self-attention: q=k=tgt+query_pos, v=tgt (pos term hoisted) -------
    qkv = jnp.dot(t.astype(jnp.bfloat16), sa_wqkv_ref[...],
                  preferred_element_type=jnp.float32) + sa_bias_ref[...]
    q, k, v = qkv[:, :D], qkv[:, D:2 * D], qkv[:, 2 * D:]
    attn = _mha(q, k, v, sa_wo_ref, sa_bo_ref[...], nheads, dh, scale)
    t = _ln(t + attn, sa_g_ref[...], sa_b_ref[...], eps)

    # --- cross-attention: q=tgt+query_pos, k=mem+pos, v=mem ----------------
    q = jnp.dot(t.astype(jnp.bfloat16), ca_wq_ref[...],
                preferred_element_type=jnp.float32) + ca_qbias_ref[...]
    kv = jnp.dot(m.astype(jnp.bfloat16), ca_wkv_ref[...],
                 preferred_element_type=jnp.float32) + ca_kvbias_ref[...]
    k, v = kv[:, :D], kv[:, D:]
    attn = _mha(q, k, v, ca_wo_ref, ca_bo_ref[...], nheads, dh, scale)
    t = _ln(t + attn, ca_g_ref[...], ca_b_ref[...], eps)

    # --- FFN + LN -----------------------------------------------------------
    f = _ffn(t, w1_ref, fb1_ref, w2_ref, fb2_ref)
    t = _ln(t + f, g3_ref[...], b3_ref[...], eps)
    tgt_out_ref[0] = t.astype(tgt_out_ref.dtype)
    norm_out_ref[0] = _ln(t, gn_ref[...], bn_ref[...], eps).astype(
        norm_out_ref.dtype)


def _head_kernel(x_ref, w1_ref, b1_ref, w2_ref, b2_ref, wstack_ref, bh_ref,
                 o_ref, *, box_lo, box_hi):
    """Fused class head + 3-layer bbox MLP with a lane-dense padded output.

    [x | h2] lane-concat hits the MXU once against the stacked [2D, HEAD_PAD]
    weight (class columns filled from rows [0,D), box columns from [D,2D)).
    """
    xb = x_ref[...].astype(jnp.bfloat16)
    h1 = jnp.maximum(jnp.dot(xb, w1_ref[...],
                             preferred_element_type=jnp.float32) + b1_ref[...],
                     0.0)
    h2 = jnp.maximum(jnp.dot(h1.astype(jnp.bfloat16), w2_ref[...],
                             preferred_element_type=jnp.float32) + b2_ref[...],
                     0.0)
    cat = jnp.concatenate([xb, h2.astype(jnp.bfloat16)], axis=-1)   # [tm, 2D]
    raw = jnp.dot(cat, wstack_ref[...],
                  preferred_element_type=jnp.float32) + bh_ref[...]
    lane = jax.lax.broadcasted_iota(jnp.int32, raw.shape, 1)
    is_box = jnp.logical_and(lane >= box_lo, lane < box_hi)
    o_ref[...] = jnp.where(is_box, jax.nn.sigmoid(raw), raw).astype(o_ref.dtype)


def _linear_kernel(x_ref, w_ref, b_ref, o_ref):
    """o = x @ w + b (bf16 MXU operands, f32 accumulation)."""
    acc = jnp.dot(x_ref[...].astype(jnp.bfloat16), w_ref[...],
                  preferred_element_type=jnp.float32) + b_ref[...]
    o_ref[...] = acc.astype(o_ref.dtype)


# ----------------------------------------------------------------------------
# Pallas-call wrappers
# ----------------------------------------------------------------------------

def linear(x, w, b):
    """x:[M,K] @ w:[K,N] + b:[1,N], tiled over rows (512-row tiles)."""
    M, K = x.shape
    N = w.shape[1]
    tm = _row_tile(M)
    return pl.pallas_call(
        _linear_kernel,
        out_shape=jax.ShapeDtypeStruct((M, N), jnp.float32),
        grid=(M // tm,),
        in_specs=[
            pl.BlockSpec((tm, K), lambda i: (i, 0)),
            _rep((K, N)),
            _rep((1, N)),
        ],
        out_specs=pl.BlockSpec((tm, N), lambda i: (i, 0)),
        compiler_params=_cparams(1),
    )(x, w, b)


def encoder_layer(x, qkv_bias, attn, ffn, nheads, eps=1e-5):
    """x:[B,L,D]; one pallas_call per encoder layer (grid over batch)."""
    B, L, D = x.shape
    Fdim = ffn["w1"].shape[1]
    scale = 1.0 / float(D // nheads) ** 0.5
    kernel = functools.partial(_encoder_layer_kernel, nheads=nheads,
                               scale=scale, eps=eps)
    return pl.pallas_call(
        kernel,
        out_shape=jax.ShapeDtypeStruct((B, L, D), x.dtype),
        grid=(B,),
        in_specs=[
            pl.BlockSpec((1, L, D), lambda b: (b, 0, 0)),
            _rep((L, 3 * D)),
            _rep((D, 3 * D)),
            _rep((D, D)), _rep((1, D)),
            _rep((1, D)), _rep((1, D)),
            _rep((D, Fdim)), _rep((1, Fdim)),
            _rep((Fdim, D)), _rep((1, D)),
            _rep((1, D)), _rep((1, D)),
        ],
        out_specs=pl.BlockSpec((1, L, D), lambda b: (b, 0, 0)),
        compiler_params=_cparams(1),
    )(x, qkv_bias, attn["wqkv"], attn["wo"], attn["bo"], attn["g"], attn["b"],
      ffn["w1"], ffn["b1"], ffn["w2"], ffn["b2"], ffn["g"], ffn["b"])


def decoder_layer(tgt, memory, sa_bias, sa, ca_qbias, ca_kvbias, ca, ffn,
                  dec_norm, nheads, eps=1e-5):
    """tgt:[B,Q,D], memory:[B,L,D]; one pallas_call per decoder layer."""
    B, Q, D = tgt.shape
    L = memory.shape[1]
    Fdim = ffn["w1"].shape[1]
    scale = 1.0 / float(D // nheads) ** 0.5
    gn, bn = dec_norm
    kernel = functools.partial(_decoder_layer_kernel, nheads=nheads,
                               scale=scale, eps=eps)
    out_shape = (jax.ShapeDtypeStruct((B, Q, D), tgt.dtype),
                 jax.ShapeDtypeStruct((B, Q, D), tgt.dtype))
    return pl.pallas_call(
        kernel,
        out_shape=out_shape,
        grid=(B,),
        in_specs=[
            pl.BlockSpec((1, Q, D), lambda b: (b, 0, 0)),
            pl.BlockSpec((1, L, D), lambda b: (b, 0, 0)),
            _rep((Q, 3 * D)), _rep((D, 3 * D)),
            _rep((D, D)), _rep((1, D)), _rep((1, D)), _rep((1, D)),
            _rep((Q, D)), _rep((D, D)), _rep((L, 2 * D)), _rep((D, 2 * D)),
            _rep((D, D)), _rep((1, D)), _rep((1, D)), _rep((1, D)),
            _rep((D, Fdim)), _rep((1, Fdim)),
            _rep((Fdim, D)), _rep((1, D)), _rep((1, D)), _rep((1, D)),
            _rep((1, D)), _rep((1, D)),
        ],
        out_specs=(pl.BlockSpec((1, Q, D), lambda b: (b, 0, 0)),
                   pl.BlockSpec((1, Q, D), lambda b: (b, 0, 0))),
        compiler_params=_cparams(1),
    )(tgt, memory,
      sa_bias, sa["wqkv"], sa["wo"], sa["bo"], sa["g"], sa["b"],
      ca_qbias, ca["wq"], ca_kvbias, ca["wkv"], ca["wo"], ca["bo"],
      ca["g"], ca["b"],
      ffn["w1"], ffn["b1"], ffn["w2"], ffn["b2"], ffn["g"], ffn["b"],
      gn, bn)


def prediction_heads(x, p):
    """x:[M,D] -> [M, HEAD_PAD] lane-dense padded logits|boxes."""
    M, D = x.shape
    tm = _row_tile(M)
    HP = p["wstack"].shape[1]
    kernel = functools.partial(_head_kernel, box_lo=BOX_OFF, box_hi=BOX_OFF + 4)
    return pl.pallas_call(
        kernel,
        out_shape=jax.ShapeDtypeStruct((M, HP), jnp.float32),
        grid=(M // tm,),
        in_specs=[
            pl.BlockSpec((tm, D), lambda i: (i, 0)),
            _rep((D, D)), _rep((1, D)),
            _rep((D, D)), _rep((1, D)),
            _rep((2 * D, HP)), _rep((1, HP)),
        ],
        out_specs=pl.BlockSpec((tm, HP), lambda i: (i, 0)),
        compiler_params=_cparams(1),
    )(x, p["w1"], p["b1"], p["w2"], p["b2"], p["wstack"], p["bhead"])


# ----------------------------------------------------------------------------
# Positional-encoding hoisting (plain-JAX glue, computed once per forward)
# ----------------------------------------------------------------------------

def sine_pos_embed(h, w, d, temperature=10000.0):
    """DETR sine positional embedding for an h x w feature map -> [h*w, d]."""
    num_pos_feats = d // 2
    eps = 1e-6
    scale = 2.0 * jnp.pi
    ys = jnp.arange(1, h + 1, dtype=jnp.float32)
    xs = jnp.arange(1, w + 1, dtype=jnp.float32)
    y_embed = jnp.tile(ys[:, None], (1, w)) / (h + eps) * scale
    x_embed = jnp.tile(xs[None, :], (h, 1)) / (w + eps) * scale
    dim_t = temperature ** (
        2.0 * (jnp.arange(num_pos_feats, dtype=jnp.float32) // 2) / num_pos_feats
    )
    pos_x = x_embed[:, :, None] / dim_t
    pos_y = y_embed[:, :, None] / dim_t
    pos_x = jnp.stack(
        [jnp.sin(pos_x[:, :, 0::2]), jnp.cos(pos_x[:, :, 1::2])], axis=3
    ).reshape(h, w, num_pos_feats)
    pos_y = jnp.stack(
        [jnp.sin(pos_y[:, :, 0::2]), jnp.cos(pos_y[:, :, 1::2])], axis=3
    ).reshape(h, w, num_pos_feats)
    return jnp.concatenate([pos_y, pos_x], axis=-1).reshape(h * w, d)


def _qkv_pos_bias(pos, attn):
    """[pos@Wq + bq | pos@Wk + bk | bv]: additive bias that lets the kernel
    project raw x through one fused [D,3D] matmul ((x+pos)@W = x@W + pos@W)."""
    D = pos.shape[-1]
    pqk = jnp.dot(pos, attn["wqkv"][:, :2 * D].astype(jnp.float32))
    return jnp.concatenate(
        [pqk[:, :D] + attn["bq"], pqk[:, D:] + attn["bk"],
         jnp.broadcast_to(attn["bv"], (pos.shape[0], D))], axis=-1)


def _kv_pos_bias(pos, ca):
    """[pos@Wk + bk | bv] for the fused cross-attention K|V projection."""
    D = pos.shape[-1]
    return jnp.concatenate(
        [jnp.dot(pos, ca["wkv"][:, :D].astype(jnp.float32)) + ca["bk"],
         jnp.broadcast_to(ca["bv"], (pos.shape[0], D))], axis=-1)


# ----------------------------------------------------------------------------
# RF-DETR forward
# ----------------------------------------------------------------------------

def rfdetr_forward(images, params, cfg):
    """images: [B, 3, H, W] float32 (NCHW).  Returns DETR-style outputs."""
    B, C, H, W = images.shape
    P = cfg["patch"]
    D = cfg["hidden_dim"]
    nheads = cfg["nheads"]
    Hf, Wf = H // P, W // P
    tokens = Hf * Wf

    # TODO(synk): real ResNet50 + FPN backbone replaced by a non-overlapping
    # strided-conv patch projection; the im2col gather should eventually move
    # into the Pallas kernel via an index_map over (b, hf, wf).  For now the
    # f32->bf16 cast is fused into this copy so its HBM traffic is halved.
    x = (
        images.reshape(B, C, Hf, P, Wf, P)
        .transpose(0, 2, 4, 1, 3, 5)
        .reshape(B * tokens, C * P * P)
        .astype(jnp.bfloat16)
    )
    src = linear(x, params["backbone_w"], params["backbone_b"]).reshape(
        B, tokens, D)

    pos = sine_pos_embed(Hf, Wf, D)               # [tokens, D]

    # Transformer encoder: ONE fused pallas_call per layer.
    memory = src
    for lp in params["enc_layers"]:
        qkv_bias = _qkv_pos_bias(pos, lp["attn"])
        memory = encoder_layer(memory, qkv_bias, lp["attn"], lp["ffn"], nheads)

    # Transformer decoder (return_intermediate_dec=True): ONE call per layer.
    Q = cfg["num_queries"]
    query_pos = params["query_embed"]             # [Q, D]
    tgt = jnp.zeros((B, Q, D), jnp.float32)
    dec_norm = (params["dec_norm_g"], params["dec_norm_b"])
    intermediates = []
    for lp in params["dec_layers"]:
        sa, ca = lp["self_attn"], lp["cross_attn"]
        sa_bias = _qkv_pos_bias(query_pos, sa)                      # [Q, 3D]
        ca_qbias = jnp.dot(query_pos, ca["wq"].astype(jnp.float32)) + ca["bq"]
        ca_kvbias = _kv_pos_bias(pos, ca)                           # [L, 2D]
        tgt, normed = decoder_layer(tgt, memory, sa_bias, sa, ca_qbias,
                                    ca_kvbias, ca, lp["ffn"], dec_norm, nheads)
        intermediates.append(normed)
    hs = jnp.stack(intermediates, axis=0)          # [Ld, B, Q, D]

    # Fused, lane-dense prediction heads.
    Ld = hs.shape[0]
    Cp1 = cfg["num_classes"] + 1
    head_out = prediction_heads(hs.reshape(Ld * B * Q, D), params["head"])
    logits = head_out[:, :Cp1].reshape(Ld, B, Q, Cp1)
    boxes = head_out[:, BOX_OFF:BOX_OFF + 4].reshape(Ld, B, Q, 4)

    # TODO(synk): DETRHead loss (targets != None) and score/label postprocess
    # are not defined in the reference snippet; returning raw DETR outputs.
    return {
        "pred_logits": logits[-1],
        "pred_boxes": boxes[-1],
        "aux_outputs": [
            {"pred_logits": logits[i], "pred_boxes": boxes[i]}
            for i in range(Ld - 1)
        ],
    }


# ----------------------------------------------------------------------------
# Deterministic synthetic parameter init (shapes follow the module's __init__)
# ----------------------------------------------------------------------------

def init_params(key, cfg):
    D = cfg["hidden_dim"]
    Fdim = cfg["ffn_dim"]
    Cp1 = cfg["num_classes"] + 1
    assert Cp1 <= BOX_OFF, "class logits must fit below the box lane offset"
    in_dim = cfg["in_channels"] * cfg["patch"] ** 2
    keys = iter(jax.random.split(key, 512))

    def w(shape, scale=0.05, dtype=jnp.bfloat16):
        return (scale * jax.random.normal(next(keys), shape)).astype(dtype)

    def zeros(*shape):
        return jnp.zeros(shape, jnp.float32)

    def ones(*shape):
        return jnp.ones(shape, jnp.float32)

    def self_attn():
        # Fused Q|K|V weight; wo is bf16 now that the output projection is a
        # single deep-K matmul (no per-head sublane-alignment constraint).
        return dict(wqkv=w((D, 3 * D)),
                    bq=zeros(1, D), bk=zeros(1, D), bv=zeros(1, D),
                    wo=w((D, D)), bo=zeros(1, D),
                    g=ones(1, D), b=zeros(1, D))

    def cross_attn():
        return dict(wq=w((D, D)), bq=zeros(1, D),
                    wkv=w((D, 2 * D)), bk=zeros(1, D), bv=zeros(1, D),
                    wo=w((D, D)), bo=zeros(1, D),
                    g=ones(1, D), b=zeros(1, D))

    def ffn():
        return dict(w1=w((D, Fdim)), b1=zeros(1, Fdim),
                    w2=w((Fdim, D)), b2=zeros(1, D),
                    g=ones(1, D), b=zeros(1, D))

    # Stacked lane-dense prediction-head weight: rows [0,D) are the class
    # head (lanes [0, Cp1)), rows [D,2D) are the bbox head (lanes
    # [BOX_OFF, BOX_OFF+4)), so [x|h2] @ wstack does both heads in one matmul.
    wstack = jnp.zeros((2 * D, HEAD_PAD), jnp.float32)
    wstack = wstack.at[:D, :Cp1].set(
        0.05 * jax.random.normal(next(keys), (D, Cp1)))
    wstack = wstack.at[D:, BOX_OFF:BOX_OFF + 4].set(
        0.05 * jax.random.normal(next(keys), (D, 4)))

    return dict(
        backbone_w=w((in_dim, D)), backbone_b=zeros(1, D),
        query_embed=w((cfg["num_queries"], D), scale=1.0, dtype=jnp.float32),
        enc_layers=[dict(attn=self_attn(), ffn=ffn())
                    for _ in range(cfg["num_encoder_layers"])],
        dec_layers=[dict(self_attn=self_attn(), cross_attn=cross_attn(),
                         ffn=ffn())
                    for _ in range(cfg["num_decoder_layers"])],
        dec_norm_g=ones(1, D), dec_norm_b=zeros(1, D),
        head=dict(w1=w((D, D)), b1=zeros(1, D),
                  w2=w((D, D)), b2=zeros(1, D),
                  wstack=wstack.astype(jnp.bfloat16),
                  bhead=zeros(1, HEAD_PAD)),
    )


# ----------------------------------------------------------------------------

if __name__ == "__main__":
    cfg = dict(
        num_classes=7,
        num_queries=8,
        hidden_dim=32,
        nheads=4,
        num_encoder_layers=2,
        num_decoder_layers=2,
        ffn_dim=32 * 4,
        in_channels=3,
        patch=4,
    )

    key = jax.random.PRNGKey(0)
    k_img, k_par = jax.random.split(key)
    images = jax.random.normal(k_img, (2, 3, 16, 16), dtype=jnp.float32)
    params = init_params(k_par, cfg)

    fwd = jax.jit(functools.partial(rfdetr_forward, cfg=cfg))
    out = fwd(images, params)
    jax.block_until_ready(out["pred_logits"])
    jax.block_until_ready(out["pred_boxes"])

    assert out["pred_logits"].shape == (2, cfg["num_queries"], cfg["num_classes"] + 1)
    assert out["pred_boxes"].shape == (2, cfg["num_queries"], 4)
    assert len(out["aux_outputs"]) == cfg["num_decoder_layers"] - 1
    assert bool(jnp.all(jnp.isfinite(out["pred_logits"])))
    assert bool(jnp.all((out["pred_boxes"] >= 0.0) & (out["pred_boxes"] <= 1.0)))

    print("KERNEL_OK")
</pallas_src>

<mosaic_0001>
module attributes {stable_mosaic.version = 11 : i64} {
  func.func @_linear_kernel(%arg0: i32, %arg1: memref<32x48xbf16, #tpu.memory_space<vmem>>, %arg2: memref<48x32xbf16, #tpu.memory_space<vmem>>, %arg3: memref<1x32xf32, #tpu.memory_space<vmem>>, %arg4: memref<32x32xf32, #tpu.memory_space<vmem>>) attributes {dimension_semantics = [#tpu.dimension_semantics<parallel>], iteration_bounds = array<i64: 1>, scalar_prefetch = 0 : i64, scratch_operands = 0 : i64, tpu.core_type = #tpu.core_type<tc>, window_params = [{transform_indices = @transform_0, window_bounds = array<i64: 32, 48>}, {pipeline_mode = #tpu.pipeline_mode<synchronous>, transform_indices = @transform_1, window_bounds = array<i64: 48, 32>}, {pipeline_mode = #tpu.pipeline_mode<synchronous>, transform_indices = @transform_2, window_bounds = array<i64: 1, 32>}, {transform_indices = @transform_3, window_bounds = array<i64: 32, 32>}]} {
    %c0 = arith.constant 0 : index
    %c0_0 = arith.constant 0 : index
    %0 = vector.load %arg1[%c0, %c0_0] : memref<32x48xbf16, #tpu.memory_space<vmem>>, vector<32x48xbf16>
    %c0_1 = arith.constant 0 : index
    %c0_2 = arith.constant 0 : index
    %1 = vector.load %arg2[%c0_1, %c0_2] : memref<48x32xbf16, #tpu.memory_space<vmem>>, vector<48x32xbf16>
    %cst = arith.constant dense<0.000000e+00> : vector<32x32xf32>
    %2 = tpu.matmul %0, %1, %cst {dimension_numbers = #tpu.dot_dimension_numbers<[1], [0], [0], [1], [0, 0, 1, 1], [], []>} : vector<32x48xbf16>, vector<48x32xbf16>, vector<32x32xf32> -> vector<32x32xf32>
    %c0_3 = arith.constant 0 : index
    %c0_4 = arith.constant 0 : index
    %3 = vector.load %arg3[%c0_3, %c0_4] : memref<1x32xf32, #tpu.memory_space<vmem>>, vector<1x32xf32>
    %4 = vector.broadcast %3 : vector<1x32xf32> to vector<32x32xf32>
    %5 = arith.addf %2, %4 : vector<32x32xf32>
    %c0_5 = arith.constant 0 : index
    %c0_6 = arith.constant 0 : index
    %6 = vector.load %arg4[%c0_5, %c0_6] : memref<32x32xf32, #tpu.memory_space<vmem>>, vector<32x32xf32>
    tpu.vector_store %arg4[%c0_5, %c0_6], %5 {strides = array<i32>} : memref<32x32xf32, #tpu.memory_space<vmem>>, vector<32x32xf32>,
    return
  }
  func.func @transform_0(%arg0: i32) -> (i32, i32) {
    %c0_i32 = arith.constant 0 : i32
    %c0_i32_0 = arith.constant 0 : i32
    return %arg0, %c0_i32 : i32, i32
  }
  func.func @transform_1(%arg0: i32) -> (i32, i32) {
    %c0_i32 = arith.constant 0 : i32
    %c0_i32_0 = arith.constant 0 : i32
    %c0_i32_1 = arith.constant 0 : i32
    return %c0_i32, %c0_i32_0 : i32, i32
  }
  func.func @transform_2(%arg0: i32) -> (i32, i32) {
    %c0_i32 = arith.constant 0 : i32
    %c0_i32_0 = arith.constant 0 : i32
    %c0_i32_1 = arith.constant 0 : i32
    return %c0_i32, %c0_i32_0 : i32, i32
  }
  func.func @transform_3(%arg0: i32) -> (i32, i32) {
    %c0_i32 = arith.constant 0 : i32
    %c0_i32_0 = arith.constant 0 : i32
    return %arg0, %c0_i32 : i32, i32
  }
}

module attributes {stable_mosaic.version = 11 : i64} {
  func.func @_encoder_layer_kernel(%arg0: i32, %arg1: memref<1x16x32xf32, #tpu.memory_space<vmem>>, %arg2: memref<16x96xf32, #tpu.memory_space<vmem>>, %arg3: memref<32x96xbf16, #tpu.memory_space<vmem>>, %arg4: memref<32x32xbf16, #tpu.memory_space<vmem>>, %arg5: memref<1x32xf32, #tpu.memory_space<vmem>>, %arg6: memref<1x32xf32, #tpu.memory_space<vmem>>, %arg7: memref<1x32xf32, #tpu.memory_space<vmem>>, %arg8: memref<32x128xbf16, #tpu.memory_space<vmem>>, %arg9: memref<1x128xf32, #tpu.memory_space<vmem>>, %arg10: memref<128x32xbf16, #tpu.memory_space<vmem>>, %arg11: memref<1x32xf32, #tpu.memory_space<vmem>>, %arg12: memref<1x32xf32, #tpu.memory_space<vmem>>, %arg13: memref<1x32xf32, #tpu.memory_space<vmem>>, %arg14: memref<1x16x32xf32, #tpu.memory_space<vmem>>) attributes {dimension_semantics = [#tpu.dimension_semantics<parallel>], iteration_bounds = array<i64: 2>, scalar_prefetch = 0 : i64, scratch_operands = 0 : i64, tpu.core_type = #tpu.core_type<tc>, window_params = [{transform_indices = @transform_0, window_bounds = array<i64: 1, 16, 32>}, {pipeline_mode = #tpu.pipeline_mode<synchronous>, transform_indices = @transform_1, window_bounds = array<i64: 16, 96>}, {pipeline_mode = #tpu.pipeline_mode<synchronous>, transform_indices = @transform_2, window_bounds = array<i64: 32, 96>}, {pipeline_mode = #tpu.pipeline_mode<synchronous>, transform_indices = @transform_3, window_bounds = array<i64: 32, 32>}, {pipeline_mode = #tpu.pipeline_mode<synchronous>, transform_indices = @transform_4, window_bounds = array<i64: 1, 32>}, {pipeline_mode = #tpu.pipeline_mode<synchronous>, transform_indices = @transform_5, window_bounds = array<i64: 1, 32>}, {pipeline_mode = #tpu.pipeline_mode<synchronous>, transform_indices = @transform_6, window_bounds = array<i64: 1, 32>}, {pipeline_mode = #tpu.pipeline_mode<synchronous>, transform_indices = @transform_7, window_bounds = array<i64: 32, 128>}, {pipeline_mode = #tpu.pipeline_mode<synchronous>, transform_indices = @transform_8, window_bounds = array<i64: 1, 128>}, {pipeline_mode = #tpu.pipeline_mode<synchronous>, transform_indices = @transform_9, window_bounds = array<i64: 128, 32>}, {pipeline_mode = #tpu.pipeline_mode<synchronous>, transform_indices = @transform_10, window_bounds = array<i64: 1, 32>}, {pipeline_mode = #tpu.pipeline_mode<synchronous>, transform_indices = @transform_11, window_bounds = array<i64: 1, 32>}, {pipeline_mode = #tpu.pipeline_mode<synchronous>, transform_indices = @transform_12, window_bounds = array<i64: 1, 32>}, {transform_indices = @transform_13, window_bounds = array<i64: 1, 16, 32>}]} {
    %c0 = arith.constant 0 : index
    %c0_0 = arith.constant 0 : index
    %c0_1 = arith.constant 0 : index
    %0 = vector.load %arg1[%c0, %c0_0, %c0_1] : memref<1x16x32xf32, #tpu.memory_space<vmem>>, vector<1x16x32xf32>
    %1 = vector.shape_cast %0 : vector<1x16x32xf32> to vector<16x32xf32>
    %2 = arith.truncf %1 : vector<16x32xf32> to vector<16x32xbf16>
    %c0_2 = arith.constant 0 : index
    %c0_3 = arith.constant 0 : index
    %3 = vector.load %arg3[%c0_2, %c0_3] : memref<32x96xbf16, #tpu.memory_space<vmem>>, vector<32x96xbf16>
    %cst = arith.constant dense<0.000000e+00> : vector<16x96xf32>
    %4 = tpu.matmul %2, %3, %cst {dimension_numbers = #tpu.dot_dimension_numbers<[1], [0], [0], [1], [0, 0, 1, 1], [], []>} : vector<16x32xbf16>, vector<32x96xbf16>, vector<16x96xf32> -> vector<16x96xf32>
    %c0_4 = arith.constant 0 : index
    %c0_5 = arith.constant 0 : index
    %5 = vector.load %arg2[%c0_4, %c0_5] : memref<16x96xf32, #tpu.memory_space<vmem>>, vector<16x96xf32>
    %6 = arith.addf %4, %5 : vector<16x96xf32>
    %7 = vector.extract_strided_slice %6 {offsets = [0, 0], sizes = [16, 32], strides = [1, 1]} : vector<16x96xf32> to vector<16x32xf32>
    %8 = vector.extract_strided_slice %6 {offsets = [0, 32], sizes = [16, 32], strides = [1, 1]} : vector<16x96xf32> to vector<16x32xf32>
    %9 = vector.extract_strided_slice %6 {offsets = [0, 64], sizes = [16, 32], strides = [1, 1]} : vector<16x96xf32> to vector<16x32xf32>
    %c0_6 = arith.constant 0 : index
    %c0_7 = arith.constant 0 : index
    %10 = vector.load %arg5[%c0_6, %c0_7] : memref<1x32xf32, #tpu.memory_space<vmem>>, vector<1x32xf32>
    %cst_8 = arith.constant 0.353553385 : f32
    %11 = vector.broadcast %cst_8 : f32 to vector<16x32xf32>
    %12 = arith.mulf %7, %11 : vector<16x32xf32>
    %13 = arith.truncf %12 : vector<16x32xf32> to vector<16x32xbf16>
    %14 = arith.truncf %8 : vector<16x32xf32> to vector<16x32xbf16>
    %15 = arith.truncf %9 : vector<16x32xf32> to vector<16x32xbf16>
    %16 = vector.extract_strided_slice %13 {offsets = [0, 0], sizes = [16, 8], strides = [1, 1]} : vector<16x32xbf16> to vector<16x8xbf16>
    %17 = vector.extract_strided_slice %14 {offsets = [0, 0], sizes = [16, 8], strides = [1, 1]} : vector<16x32xbf16> to vector<16x8xbf16>
    %cst_9 = arith.constant dense<0.000000e+00> : vector<16x16xf32>
    %18 = tpu.matmul %16, %17, %cst_9 {dimension_numbers = #tpu.dot_dimension_numbers<[1], [1], [0], [0], [0, 0, 1, 0], [], []>} : vector<16x8xbf16>, vector<16x8xbf16>, vector<16x16xf32> -> vector<16x16xf32>
    %cst_10 = arith.constant dense<0xFF800000> : vector<16xf32>
    %19 = vector.multi_reduction <maximumf>, %18, %cst_10 [1] : vector<16x16xf32> to vector<16xf32>
    %20 = vector.shape_cast %19 : vector<16xf32> to vector<16x1xf32>
    %21 = vector.broadcast %20 : vector<16x1xf32> to vector<16x16xf32>
    %22 = arith.subf %18, %21 : vector<16x16xf32>
    %23 = math.exp %22 : vector<16x16xf32>
    %cst_11 = arith.constant dense<0.000000e+00> : vector<16xf32>
    %24 = vector.multi_reduction <add>, %23, %cst_11 [1] : vector<16x16xf32> to vector<16xf32>
    %25 = vector.shape_cast %24 : vector<16xf32> to vector<16x1xf32>
    %26 = tpu.reciprocal %25 {approx = true} : vector<16x1xf32> -> vector<16x1xf32>
    %27 = vector.broadcast %26 : vector<16x1xf32> to vector<16x16xf32>
    %28 = arith.mulf %23, %27 : vector<16x16xf32>
    %29 = arith.truncf %28 : vector<16x16xf32> to vector<16x16xbf16>
    %30 = vector.extract_strided_slice %15 {offsets = [0, 0], sizes = [16, 8], strides = [1, 1]} : vector<16x32xbf16> to vector<16x8xbf16>
    %cst_12 = arith.constant dense<0.000000e+00> : vector<16x8xf32>
    %31 = tpu.matmul %29, %30, %cst_12 {dimension_numbers = #tpu.dot_dimension_numbers<[1], [0], [0], [1], [0, 0, 1, 1], [], []>} : vector<16x16xbf16>, vector<16x8xbf16>, vector<16x8xf32> -> vector<16x8xf32>
    %32 = vector.extract_strided_slice %13 {offsets = [0, 8], sizes = [16, 8], strides = [1, 1]} : vector<16x32xbf16> to vector<16x8xbf16>
    %33 = vector.extract_strided_slice %14 {offsets = [0, 8], sizes = [16, 8], strides = [1, 1]} : vector<16x32xbf16> to vector<16x8xbf16>
    %cst_13 = arith.constant dense<0.000000e+00> : vector<16x16xf32>
    %34 = tpu.matmul %32, %33, %cst_13 {dimension_numbers = #tpu.dot_dimension_numbers<[1], [1], [0], [0], [0, 0, 1, 0], [], []>} : vector<16x8xbf16>, vector<16x8xbf16>, vector<16x16xf32> -> vector<16x16xf32>
    %cst_14 = arith.constant dense<0xFF800000> : vector<16xf32>
    %35 = vector.multi_reduction <maximumf>, %34, %cst_14 [1] : vector<16x16xf32> to vector<16xf32>
    %36 = vector.shape_cast %35 : vector<16xf32> to vector<16x1xf32>
    %37 = vector.broadcast %36 : vector<16x1xf32> to vector<16x16xf32>
    %38 = arith.subf %34, %37 : vector<16x16xf32>
    %39 = math.exp %38 : vector<16x16xf32>
    %cst_15 = arith.constant dense<0.000000e+00> : vector<16xf32>
    %40 = vector.multi_reduction <add>, %39, %cst_15 [1] : vector<16x16xf32> to vector<16xf32>
    %41 = vector.shape_cast %40 : vector<16xf32> to vector<16x1xf32>
    %42 = tpu.reciprocal %41 {approx = true} : vector<16x1xf32> -> vector<16x1xf32>
    %43 = vector.broadcast %42 : vector<16x1xf32> to vector<16x16xf32>
    %44 = arith.mulf %39, %43 : vector<16x16xf32>
    %45 = arith.truncf %44 : vector<16x16xf32> to vector<16x16xbf16>
    %46 = vector.extract_strided_slice %15 {offsets = [0, 8], sizes = [16, 8], strides = [1, 1]} : vector<16x32xbf16> to vector<16x8xbf16>
    %cst_16 = arith.constant dense<0.000000e+00> : vector<16x8xf32>
    %47 = tpu.matmul %45, %46, %cst_16 {dimension_numbers = #tpu.dot_dimension_numbers<[1], [0], [0], [1], [0, 0, 1, 1], [], []>} : vector<16x16xbf16>, vector<16x8xbf16>, vector<16x8xf32> -> vector<16x8xf32>
    %48 = vector.extract_strided_slice %13 {offsets = [0, 16], sizes = [16, 8], strides = [1, 1]} : vector<16x32xbf16> to vector<16x8xbf16>
    %49 = vector.extract_strided_slice %14 {offsets = [0, 16], sizes = [16, 8], strides = [1, 1]} : vector<16x32xbf16> to vector<16x8xbf16>
    %cst_17 = arith.constant dense<0.000000e+00> : vector<16x16xf32>
    %50 = tpu.matmul %48, %49, %cst_17 {dimension_numbers = #tpu.dot_dimension_numbers<[1], [1], [0], [0], [0, 0, 1, 0], [], []>} : vector<16x8xbf16>, vector<16x8xbf16>, vector<16x16xf32> -> vector<16x16xf32>
    %cst_18 = arith.constant dense<0xFF800000> : vector<16xf32>
    %51 = vector.multi_reduction <maximumf>, %50, %cst_18 [1] : vector<16x16xf32> to vector<16xf32>
    %52 = vector.shape_cast %51 : vector<16xf32> to vector<16x1xf32>
    %53 = vector.broadcast %52 : vector<16x1xf32> to vector<16x16xf32>
    %54 = arith.subf %50, %53 : vector<16x16xf32>
    %55 = math.exp %54 : vector<16x16xf32>
    %cst_19 = arith.constant dense<0.000000e+00> : vector<16xf32>
    %56 = vector.multi_reduction <add>, %55, %cst_19 [1] : vector<16x16xf32> to vector<16xf32>
    %57 = vector.shape_cast %56 : vector<16xf32> to vector<16x1xf32>
    %58 = tpu.reciprocal %57 {approx = true} : vector<16x1xf32> -> vector<16x1xf32>
    %59 = vector.broadcast %58 : vector<16x1xf32> to vector<16x16xf32>
    %60 = arith.mulf %55, %59 : vector<16x16xf32>
    %61 = arith.truncf %60 : vector<16x16xf32> to vector<16x16xbf16>
    %62 = vector.extract_strided_slice %15 {offsets = [0, 16], sizes = [16, 8], strides = [1, 1]} : vector<16x32xbf16> to vector<16x8xbf16>
    %cst_20 = arith.constant dense<0.000000e+00> : vector<16x8xf32>
    %63 = tpu.matmul %61, %62, %cst_20 {dimension_numbers = #tpu.dot_dimension_numbers<[1], [0], [0], [1], [0, 0, 1, 1], [], []>} : vector<16x16xbf16>, vector<16x8xbf16>, vector<16x8xf32> -> vector<16x8xf32>
    %64 = vector.extract_strided_slice %13 {offsets = [0, 24], sizes = [16, 8], strides = [1, 1]} : vector<16x32xbf16> to vector<16x8xbf16>
    %65 = vector.extract_strided_slice %14 {offsets = [0, 24], sizes = [16, 8], strides = [1, 1]} : vector<16x32xbf16> to vector<16x8xbf16>
    %cst_21 = arith.constant dense<0.000000e+00> : vector<16x16xf32>
    %66 = tpu.matmul %64, %65, %cst_21 {dimension_numbers = #tpu.dot_dimension_numbers<[1], [1], [0], [0], [0, 0, 1, 0], [], []>} : vector<16x8xbf16>, vector<16x8xbf16>, vector<16x16xf32> -> vector<16x16xf32>
    %cst_22 = arith.constant dense<0xFF800000> : vector<16xf32>
    %67 = vector.multi_reduction <maximumf>, %66, %cst_22 [1] : vector<16x16xf32> to vector<16xf32>
    %68 = vector.shape_cast %67 : vector<16xf32> to vector<16x1xf32>
    %69 = vector.broadcast %68 : vector<16x1xf32> to vector<16x16xf32>
    %70 = arith.subf %66, %69 : vector<16x16xf32>
    %71 = math.exp %70 : vector<16x16xf32>
    %cst_23 = arith.constant dense<0.000000e+00> : vector<16xf32>
    %72 = vector.multi_reduction <add>, %71, %cst_23 [1] : vector<16x16xf32> to vector<16xf32>
    %73 = vector.shape_cast %72 : vector<16xf32> to vector<16x1xf32>
    %74 = tpu.reciprocal %73 {approx = true} : vector<16x1xf32> -> vector<16x1xf32>
    %75 = vector.broadcast %74 : vector<16x1xf32> to vector<16x16xf32>
    %76 = arith.mulf %71, %75 : vector<16x16xf32>
    %77 = arith.truncf %76 : vector<16x16xf32> to vector<16x16xbf16>
    %78 = vector.extract_strided_slice %15 {offsets = [0, 24], sizes = [16, 8], strides = [1, 1]} : vector<16x32xbf16> to vector<16x8xbf16>
    %cst_24 = arith.constant dense<0.000000e+00> : vector<16x8xf32>
    %79 = tpu.matmul %77, %78, %cst_24 {dimension_numbers = #tpu.dot_dimension_numbers<[1], [0], [0], [1], [0, 0, 1, 1], [], []>} : vector<16x16xbf16>, vector<16x8xbf16>, vector<16x8xf32> -> vector<16x8xf32>
    %80 = tpu.concatenate %31, %47, %63, %79 in 1 : vector<16x8xf32>, vector<16x8xf32>, vector<16x8xf32>, vector<16x8xf32> -> vector<16x32xf32>
    %81 = arith.truncf %80 : vector<16x32xf32> to vector<16x32xbf16>
    %c0_25 = arith.constant 0 : index
    %c0_26 = arith.constant 0 : index
    %82 = vector.load %arg4[%c0_25, %c0_26] : memref<32x32xbf16, #tpu.memory_space<vmem>>, vector<32x32xbf16>
    %cst_27 = arith.constant dense<0.000000e+00> : vector<16x32xf32>
    %83 = tpu.matmul %81, %82, %cst_27 {dimension_numbers = #tpu.dot_dimension_numbers<[1], [0], [0], [1], [0, 0, 1, 1], [], []>} : vector<16x32xbf16>, vector<32x32xbf16>, vector<16x32xf32> -> vector<16x32xf32>
    %84 = vector.broadcast %10 : vector<1x32xf32> to vector<16x32xf32>
    %85 = arith.addf %83, %84 : vector<16x32xf32>
    %86 = arith.addf %1, %85 : vector<16x32xf32>
    %c0_28 = arith.constant 0 : index
    %c0_29 = arith.constant 0 : index
    %87 = vector.load %arg6[%c0_28, %c0_29] : memref<1x32xf32, #tpu.memory_space<vmem>>, vector<1x32xf32>
    %c0_30 = arith.constant 0 : index
    %c0_31 = arith.constant 0 : index
    %88 = vector.load %arg7[%c0_30, %c0_31] : memref<1x32xf32, #tpu.memory_space<vmem>>, vector<1x32xf32>
    %cst_32 = arith.constant dense<0.000000e+00> : vector<16xf32>
    %89 = vector.multi_reduction <add>, %86, %cst_32 [1] : vector<16x32xf32> to vector<16xf32>
    %90 = vector.shape_cast %89 : vector<16xf32> to vector<16x1xf32>
    %cst_33 = arith.constant 3.200000e+01 : f32
    %91 = vector.broadcast %cst_33 : f32 to vector<16x1xf32>
    %92 = arith.divf %90, %91 : vector<16x1xf32>
    %93 = vector.broadcast %92 : vector<16x1xf32> to vector<16x32xf32>
    %94 = arith.subf %86, %93 : vector<16x32xf32>
    %95 = arith.mulf %94, %94 : vector<16x32xf32>
    %cst_34 = arith.constant dense<0.000000e+00> : vector<16xf32>
    %96 = vector.multi_reduction <add>, %95, %cst_34 [1] : vector<16x32xf32> to vector<16xf32>
    %97 = vector.shape_cast %96 : vector<16xf32> to vector<16x1xf32>
    %cst_35 = arith.constant 3.200000e+01 : f32
    %98 = vector.broadcast %cst_35 : f32 to vector<16x1xf32>
    %99 = arith.divf %97, %98 : vector<16x1xf32>
    %100 = vector.broadcast %92 : vector<16x1xf32> to vector<16x32xf32>
    %101 = arith.subf %86, %100 : vector<16x32xf32>
    %cst_36 = arith.constant 9.99999974E-6 : f32
    %102 = vector.broadcast %cst_36 : f32 to vector<16x1xf32>
    %103 = arith.addf %99, %102 : vector<16x1xf32>
    %104 = math.rsqrt %103 : vector<16x1xf32>
    %105 = vector.broadcast %104 : vector<16x1xf32> to vector<16x32xf32>
    %106 = arith.mulf %101, %105 : vector<16x32xf32>
    %107 = vector.broadcast %87 : vector<1x32xf32> to vector<16x32xf32>
    %108 = arith.mulf %106, %107 : vector<16x32xf32>
    %109 = vector.broadcast %88 : vector<1x32xf32> to vector<16x32xf32>
    %110 = arith.addf %108, %109 : vector<16x32xf32>
    %111 = arith.truncf %110 : vector<16x32xf32> to vector<16x32xbf16>
    %c0_37 = arith.constant 0 : index
    %c0_38 = arith.constant 0 : index
    %112 = vector.load %arg8[%c0_37, %c0_38] : memref<32x128xbf16, #tpu.memory_space<vmem>>, vector<32x128xbf16>
    %cst_39 = arith.constant dense<0.000000e+00> : vector<16x128xf32>
    %113 = tpu.matmul %111, %112, %cst_39 {dimension_numbers = #tpu.dot_dimension_numbers<[1], [0], [0], [1], [0, 0, 1, 1], [], []>} : vector<16x32xbf16>, vector<32x128xbf16>, vector<16x128xf32> -> vector<16x128xf32>
    %c0_40 = arith.constant 0 : index
    %c0_41 = arith.constant 0 : index
    %114 = vector.load %arg9[%c0_40, %c0_41] : memref<1x128xf32, #tpu.memory_space<vmem>>, vector<1x128xf32>
    %115 = vector.broadcast %114 : vector<1x128xf32> to vector<16x128xf32>
    %116 = arith.addf %113, %115 : vector<16x128xf32>
    %cst_42 = arith.constant 0.000000e+00 : f32
    %117 = vector.broadcast %cst_42 : f32 to vector<16x128xf32>
    %118 = arith.maximumf %116, %117 : vector<16x128xf32>
    %119 = arith.truncf %118 : vector<16x128xf32> to vector<16x128xbf16>
    %c0_43 = arith.constant 0 : index
    %c0_44 = arith.constant 0 : index
    %120 = vector.load %arg10[%c0_43, %c0_44] : memref<128x32xbf16, #tpu.memory_space<vmem>>, vector<128x32xbf16>
    %cst_45 = arith.constant dense<0.000000e+00> : vector<16x32xf32>
    %121 = tpu.matmul %119, %120, %cst_45 {dimension_numbers = #tpu.dot_dimension_numbers<[1], [0], [0], [1], [0, 0, 1, 1], [], []>} : vector<16x128xbf16>, vector<128x32xbf16>, vector<16x32xf32> -> vector<16x32xf32>
    %c0_46 = arith.constant 0 : index
    %c0_47 = arith.constant 0 : index
    %122 = vector.load %arg11[%c0_46, %c0_47] : memref<1x32xf32, #tpu.memory_space<vmem>>, vector<1x32xf32>
    %123 = vector.broadcast %122 : vector<1x32xf32> to vector<16x32xf32>
    %124 = arith.addf %121, %123 : vector<16x32xf32>
    %125 = arith.addf %110, %124 : vector<16x32xf32>
    %c0_48 = arith.constant 0 : index
    %c0_49 = arith.constant 0 : index
    %126 = vector.load %arg12[%c0_48, %c0_49] : memref<1x32xf32, #tpu.memory_space<vmem>>, vector<1x32xf32>
    %c0_50 = arith.constant 0 : index
    %c0_51 = arith.constant 0 : index
    %127 = vector.load %arg13[%c0_50, %c0_51] : memref<1x32xf32, #tpu.memory_space<vmem>>, vector<1x32xf32>
    %cst_52 = arith.constant dense<0.000000e+00> : vector<16xf32>
    %128 = vector.multi_reduction <add>, %125, %cst_52 [1] : vector<16x32xf32> to vector<16xf32>
    %129 = vector.shape_cast %128 : vector<16xf32> to vector<16x1xf32>
    %cst_53 = arith.constant 3.200000e+01 : f32
    %130 = vector.broadcast %cst_53 : f32 to vector<16x1xf32>
    %131 = arith.divf %129, %130 : vector<16x1xf32>
    %132 = vector.broadcast %131 : vector<16x1xf32> to vector<16x32xf32>
    %133 = arith.subf %125, %132 : vector<16x32xf32>
    %134 = arith.mulf %133, %133 : vector<16x32xf32>
    %cst_54 = arith.constant dense<0.000000e+00> : vector<16xf32>
    %135 = vector.multi_reduction <add>, %134, %cst_54 [1] : vector<16x32xf32> to vector<16xf32>
    %136 = vector.shape_cast %135 : vector<16xf32> to vector<16x1xf32>
    %cst_55 = arith.constant 3.200000e+01 : f32
    %137 = vector.broadcast %cst_55 : f32 to vector<16x1xf32>
    %138 = arith.divf %136, %137 : vector<16x1xf32>
    %139 = vector.broadcast %131 : vector<16x1xf32> to vector<16x32xf32>
    %140 = arith.subf %125, %139 : vector<16x32xf32>
    %cst_56 = arith.constant 9.99999974E-6 : f32
    %141 = vector.broadcast %cst_56 : f32 to vector<16x1xf32>
    %142 = arith.addf %138, %141 : vector<16x1xf32>
    %143 = math.rsqrt %142 : vector<16x1xf32>
    %144 = vector.broadcast %143 : vector<16x1xf32> to vector<16x32xf32>
    %145 = arith.mulf %140, %144 : vector<16x32xf32>
    %146 = vector.broadcast %126 : vector<1x32xf32> to vector<16x32xf32>
    %147 = arith.mulf %145, %146 : vector<16x32xf32>
    %148 = vector.broadcast %127 : vector<1x32xf32> to vector<16x32xf32>
    %149 = arith.addf %147, %148 : vector<16x32xf32>
    %c0_57 = arith.constant 0 : index
    %c0_58 = arith.constant 0 : index
    %c0_59 = arith.constant 0 : index
    %150 = vector.load %arg14[%c0_57, %c0_58, %c0_59] : memref<1x16x32xf32, #tpu.memory_space<vmem>>, vector<1x16x32xf32>
    %151 = vector.shape_cast %150 : vector<1x16x32xf32> to vector<16x32xf32>
    %152 = vector.shape_cast %149 : vector<16x32xf32> to vector<1x16x32xf32>
    tpu.vector_store %arg14[%c0_57, %c0_58, %c0_59], %152 {strides = array<i32>} : memref<1x16x32xf32, #tpu.memory_space<vmem>>, vector<1x16x32xf32>,
    return
  }
  func.func @transform_0(%arg0: i32) -> (i32, i32, i32) {
    %c0_i32 = arith.constant 0 : i32
    %c0_i32_0 = arith.constant 0 : i32
    %c0_i32_1 = arith.constant 0 : i32
    return %arg0, %c0_i32, %c0_i32_0 : i32, i32, i32
  }
  func.func @transform_1(%arg0: i32) -> (i32, i32) {
    %c0_i32 = arith.constant 0 : i32
    %c0_i32_0 = arith.constant 0 : i32
    %c0_i32_1 = arith.constant 0 : i32
    return %c0_i32, %c0_i32_0 : i32, i32
  }
  func.func @transform_2(%arg0: i32) -> (i32, i32) {
    %c0_i32 = arith.constant 0 : i32
    %c0_i32_0 = arith.constant 0 : i32
    %c0_i32_1 = arith.constant 0 : i32
    return %c0_i32, %c0_i32_0 : i32, i32
  }
  func.func @transform_3(%arg0: i32) -> (i32, i32) {
    %c0_i32 = arith.constant 0 : i32
    %c0_i32_0 = arith.constant 0 : i32
    %c0_i32_1 = arith.constant 0 : i32
    return %c0_i32, %c0_i32_0 : i32, i32
  }
  func.func @transform_4(%arg0: i32) -> (i32, i32) {
    %c0_i32 = arith.constant 0 : i32
    %c0_i32_0 = arith.constant 0 : i32
    %c0_i32_1 = arith.constant 0 : i32
    return %c0_i32, %c0_i32_0 : i32, i32
  }
  func.func @transform_5(%arg0: i32) -> (i32, i32) {
    %c0_i32 = arith.constant 0 : i32
    %c0_i32_0 = arith.constant 0 : i32
    %c0_i32_1 = arith.constant 0 : i32
    return %c0_i32, %c0_i32_0 : i32, i32
  }
  func.func @transform_6(%arg0: i32) -> (i32, i32) {
    %c0_i32 = arith.constant 0 : i32
    %c0_i32_0 = arith.constant 0 : i32
    %c0_i32_1 = arith.constant 0 : i32
    return %c0_i32, %c0_i32_0 : i32, i32
  }
  func.func @transform_7(%arg0: i32) -> (i32, i32) {
    %c0_i32 = arith.constant 0 : i32
    %c0_i32_0 = arith.constant 0 : i32
    %c0_i32_1 = arith.constant 0 : i32
    return %c0_i32, %c0_i32_0 : i32, i32
  }
  func.func @transform_8(%arg0: i32) -> (i32, i32) {
    %c0_i32 = arith.constant 0 : i32
    %c0_i32_0 = arith.constant 0 : i32
    %c0_i32_1 = arith.constant 0 : i32
    return %c0_i32, %c0_i32_0 : i32, i32
  }
  func.func @transform_9(%arg0: i32) -> (i32, i32) {
    %c0_i32 = arith.constant 0 : i32
    %c0_i32_0 = arith.constant 0 : i32
    %c0_i32_1 = arith.constant 0 : i32
    return %c0_i32, %c0_i32_0 : i32, i32
  }
  func.func @transform_10(%arg0: i32) -> (i32, i32) {
    %c0_i32 = arith.constant 0 : i32
    %c0_i32_0 = arith.constant 0 : i32
    %c0_i32_1 = arith.constant 0 : i32
    return %c0_i32, %c0_i32_0 : i32, i32
  }
  func.func @transform_11(%arg0: i32) -> (i32, i32) {
    %c0_i32 = arith.constant 0 : i32
    %c0_i32_0 = arith.constant 0 : i32
    %c0_i32_1 = arith.constant 0 : i32
    return %c0_i32, %c0_i32_0 : i32, i32
  }
  func.func @transform_12(%arg0: i32) -> (i32, i32) {
    %c0_i32 = arith.constant 0 : i32
    %c0_i32_0 = arith.constant 0 : i32
    %c0_i32_1 = arith.constant 0 : i32
    return %c0_i32, %c0_i32_0 : i32, i32
  }
  func.func @transform_13(%arg0: i32) -> (i32, i32, i32) {
    %c0_i32 = arith.constant 0 : i32
    %c0_i32_0 = arith.constant 0 : i32
    %c0_i32_1 = arith.constant 0 : i32
    return %arg0, %c0_i32, %c0_i32_0 : i32, i32, i32
  }
}

module attributes {stable_mosaic.version = 11 : i64} {
  func.func @_decoder_layer_kernel(%arg0: i32, %arg1: memref<1x8x32xf32, #tpu.memory_space<vmem>>, %arg2: memref<1x16x32xf32, #tpu.memory_space<vmem>>, %arg3: memref<8x96xf32, #tpu.memory_space<vmem>>, %arg4: memref<32x96xbf16, #tpu.memory_space<vmem>>, %arg5: memref<32x32xbf16, #tpu.memory_space<vmem>>, %arg6: memref<1x32xf32, #tpu.memory_space<vmem>>, %arg7: memref<1x32xf32, #tpu.memory_space<vmem>>, %arg8: memref<1x32xf32, #tpu.memory_space<vmem>>, %arg9: memref<8x32xf32, #tpu.memory_space<vmem>>, %arg10: memref<32x32xbf16, #tpu.memory_space<vmem>>, %arg11: memref<16x64xf32, #tpu.memory_space<vmem>>, %arg12: memref<32x64xbf16, #tpu.memory_space<vmem>>, %arg13: memref<32x32xbf16, #tpu.memory_space<vmem>>, %arg14: memref<1x32xf32, #tpu.memory_space<vmem>>, %arg15: memref<1x32xf32, #tpu.memory_space<vmem>>, %arg16: memref<1x32xf32, #tpu.memory_space<vmem>>, %arg17: memref<32x128xbf16, #tpu.memory_space<vmem>>, %arg18: memref<1x128xf32, #tpu.memory_space<vmem>>, %arg19: memref<128x32xbf16, #tpu.memory_space<vmem>>, %arg20: memref<1x32xf32, #tpu.memory_space<vmem>>, %arg21: memref<1x32xf32, #tpu.memory_space<vmem>>, %arg22: memref<1x32xf32, #tpu.memory_space<vmem>>, %arg23: memref<1x32xf32, #tpu.memory_space<vmem>>, %arg24: memref<1x32xf32, #tpu.memory_space<vmem>>, %arg25: memref<1x8x32xf32, #tpu.memory_space<vmem>>, %arg26: memref<1x8x32xf32, #tpu.memory_space<vmem>>) attributes {dimension_semantics = [#tpu.dimension_semantics<parallel>], iteration_bounds = array<i64: 2>, scalar_prefetch = 0 : i64, scratch_operands = 0 : i64, tpu.core_type = #tpu.core_type<tc>, window_params = [{transform_indices = @transform_0, window_bounds = array<i64: 1, 8, 32>}, {transform_indices = @transform_1, window_bounds = array<i64: 1, 16, 32>}, {pipeline_mode = #tpu.pipeline_mode<synchronous>, transform_indices = @transform_2, window_bounds = array<i64: 8, 96>}, {pipeline_mode = #tpu.pipeline_mode<synchronous>, transform_indices = @transform_3, window_bounds = array<i64: 32, 96>}, {pipeline_mode = #tpu.pipeline_mode<synchronous>, transform_indices = @transform_4, window_bounds = array<i64: 32, 32>}, {pipeline_mode = #tpu.pipeline_mode<synchronous>, transform_indices = @transform_5, window_bounds = array<i64: 1, 32>}, {pipeline_mode = #tpu.pipeline_mode<synchronous>, transform_indices = @transform_6, window_bounds = array<i64: 1, 32>}, {pipeline_mode = #tpu.pipeline_mode<synchronous>, transform_indices = @transform_7, window_bounds = array<i64: 1, 32>}, {pipeline_mode = #tpu.pipeline_mode<synchronous>, transform_indices = @transform_8, window_bounds = array<i64: 8, 32>}, {pipeline_mode = #tpu.pipeline_mode<synchronous>, transform_indices = @transform_9, window_bounds = array<i64: 32, 32>}, {pipeline_mode = #tpu.pipeline_mode<synchronous>, transform_indices = @transform_10, window_bounds = array<i64: 16, 64>}, {pipeline_mode = #tpu.pipeline_mode<synchronous>, transform_indices = @transform_11, window_bounds = array<i64: 32, 64>}, {pipeline_mode = #tpu.pipeline_mode<synchronous>, transform_indices = @transform_12, window_bounds = array<i64: 32, 32>}, {pipeline_mode = #tpu.pipeline_mode<synchronous>, transform_indices = @transform_13, window_bounds = array<i64: 1, 32>}, {pipeline_mode = #tpu.pipeline_mode<synchronous>, transform_indices = @transform_14, window_bounds = array<i64: 1, 32>}, {pipeline_mode = #tpu.pipeline_mode<synchronous>, transform_indices = @transform_15, window_bounds = array<i64: 1, 32>}, {pipeline_mode = #tpu.pipeline_mode<synchronous>, transform_indices = @transform_16, window_bounds = array<i64: 32, 128>}, {pipeline_mode = #tpu.pipeline_mode<synchronous>, transform_indices = @transform_17, window_bounds = array<i64: 1, 128>}, {pipeline_mode = #tpu.pipeline_mode<synchronous>, transform_indices = @transform_18, window_bounds = array<i64: 128, 32>}, {pipeline_mode = #tpu.pipeline_mode<synchronous>, transform_indices = @transform_19, window_bounds = array<i64: 1, 32>}, {pipeline_mode = #tpu.pipeline_mode<synchronous>, transform_indices = @transform_20, window_bounds = array<i64: 1, 32>}, {pipeline_mode = #tpu.pipeline_mode<synchronous>, transform_indices = @transform_21, window_bounds = array<i64: 1, 32>}, {pipeline_mode = #tpu.pipeline_mode<synchronous>, transform_indices = @transform_22, window_bounds = array<i64: 1, 32>}, {pipeline_mode = #tpu.pipeline_mode<synchronous>, transform_indices = @transform_23, window_bounds = array<i64: 1, 32>}, {transform_indices = @transform_24, window_bounds = array<i64: 1, 8, 32>}, {transform_indices = @transform_25, window_bounds = array<i64: 1, 8, 32>}]} {
    %c0 = arith.constant 0 : index
    %c0_0 = arith.constant 0 : index
    %c0_1 = arith.constant 0 : index
    %0 = vector.load %arg1[%c0, %c0_0, %c0_1] : memref<1x8x32xf32, #tpu.memory_space<vmem>>, vector<1x8x32xf32>
    %1 = vector.shape_cast %0 : vector<1x8x32xf32> to vector<8x32xf32>
    %c0_2 = arith.constant 0 : index
    %c0_3 = arith.constant 0 : index
    %c0_4 = arith.constant 0 : index
    %2 = vector.load %arg2[%c0_2, %c0_3, %c0_4] : memref<1x16x32xf32, #tpu.memory_space<vmem>>, vector<1x16x32xf32>
    %3 = vector.shape_cast %2 : vector<1x16x32xf32> to vector<16x32xf32>
    %4 = arith.truncf %1 : vector<8x32xf32> to vector<8x32xbf16>
    %c0_5 = arith.constant 0 : index
    %c0_6 = arith.constant 0 : index
    %5 = vector.load %arg4[%c0_5, %c0_6] : memref<32x96xbf16, #tpu.memory_space<vmem>>, vector<32x96xbf16>
    %cst = arith.constant dense<0.000000e+00> : vector<8x96xf32>
    %6 = tpu.matmul %4, %5, %cst {dimension_numbers = #tpu.dot_dimension_numbers<[1], [0], [0], [1], [0, 0, 1, 1], [], []>} : vector<8x32xbf16>, vector<32x96xbf16>, vector<8x96xf32> -> vector<8x96xf32>
    %c0_7 = arith.constant 0 : index
    %c0_8 = arith.constant 0 : index
    %7 = vector.load %arg3[%c0_7, %c0_8] : memref<8x96xf32, #tpu.memory_space<vmem>>, vector<8x96xf32>
    %8 = arith.addf %6, %7 : vector<8x96xf32>
    %9 = vector.extract_strided_slice %8 {offsets = [0, 0], sizes = [8, 32], strides = [1, 1]} : vector<8x96xf32> to vector<8x32xf32>
    %10 = vector.extract_strided_slice %8 {offsets = [0, 32], sizes = [8, 32], strides = [1, 1]} : vector<8x96xf32> to vector<8x32xf32>
    %11 = vector.extract_strided_slice %8 {offsets = [0, 64], sizes = [8, 32], strides = [1, 1]} : vector<8x96xf32> to vector<8x32xf32>
    %c0_9 = arith.constant 0 : index
    %c0_10 = arith.constant 0 : index
    %12 = vector.load %arg6[%c0_9, %c0_10] : memref<1x32xf32, #tpu.memory_space<vmem>>, vector<1x32xf32>
    %cst_11 = arith.constant 0.353553385 : f32
    %13 = vector.broadcast %cst_11 : f32 to vector<8x32xf32>
    %14 = arith.mulf %9, %13 : vector<8x32xf32>
    %15 = arith.truncf %14 : vector<8x32xf32> to vector<8x32xbf16>
    %16 = arith.truncf %10 : vector<8x32xf32> to vector<8x32xbf16>
    %17 = arith.truncf %11 : vector<8x32xf32> to vector<8x32xbf16>
    %18 = vector.extract_strided_slice %15 {offsets = [0, 0], sizes = [8, 8], strides = [1, 1]} : vector<8x32xbf16> to vector<8x8xbf16>
    %19 = vector.extract_strided_slice %16 {offsets = [0, 0], sizes = [8, 8], strides = [1, 1]} : vector<8x32xbf16> to vector<8x8xbf16>
    %cst_12 = arith.constant dense<0.000000e+00> : vector<8x8xf32>
    %20 = tpu.matmul %18, %19, %cst_12 {dimension_numbers = #tpu.dot_dimension_numbers<[1], [1], [0], [0], [0, 0, 1, 0], [], []>} : vector<8x8xbf16>, vector<8x8xbf16>, vector<8x8xf32> -> vector<8x8xf32>
    %cst_13 = arith.constant dense<0xFF800000> : vector<8xf32>
    %21 = vector.multi_reduction <maximumf>, %20, %cst_13 [1] : vector<8x8xf32> to vector<8xf32>
    %22 = vector.shape_cast %21 : vector<8xf32> to vector<8x1xf32>
    %23 = vector.broadcast %22 : vector<8x1xf32> to vector<8x8xf32>
    %24 = arith.subf %20, %23 : vector<8x8xf32>
    %25 = math.exp %24 : vector<8x8xf32>
    %cst_14 = arith.constant dense<0.000000e+00> : vector<8xf32>
    %26 = vector.multi_reduction <add>, %25, %cst_14 [1] : vector<8x8xf32> to vector<8xf32>
    %27 = vector.shape_cast %26 : vector<8xf32> to vector<8x1xf32>
    %28 = tpu.reciprocal %27 {approx = true} : vector<8x1xf32> -> vector<8x1xf32>
    %29 = vector.broadcast %28 : vector<8x1xf32> to vector<8x8xf32>
    %30 = arith.mulf %25, %29 : vector<8x8xf32>
    %31 = arith.truncf %30 : vector<8x8xf32> to vector<8x8xbf16>
    %32 = vector.extract_strided_slice %17 {offsets = [0, 0], sizes = [8, 8], strides = [1, 1]} : vector<8x32xbf16> to vector<8x8xbf16>
    %cst_15 = arith.constant dense<0.000000e+00> : vector<8x8xf32>
    %33 = tpu.matmul %31, %32, %cst_15 {dimension_numbers = #tpu.dot_dimension_numbers<[1], [0], [0], [1], [0, 0, 1, 1], [], []>} : vector<8x8xbf16>, vector<8x8xbf16>, vector<8x8xf32> -> vector<8x8xf32>
    %34 = vector.extract_strided_slice %15 {offsets = [0, 8], sizes = [8, 8], strides = [1, 1]} : vector<8x32xbf16> to vector<8x8xbf16>
    %35 = vector.extract_strided_slice %16 {offsets = [0, 8], sizes = [8, 8], strides = [1, 1]} : vector<8x32xbf16> to vector<8x8xbf16>
    %cst_16 = arith.constant dense<0.000000e+00> : vector<8x8xf32>
    %36 = tpu.matmul %34, %35, %cst_16 {dimension_numbers = #tpu.dot_dimension_numbers<[1], [1], [0], [0], [0, 0, 1, 0], [], []>} : vector<8x8xbf16>, vector<8x8xbf16>, vector<8x8xf32> -> vector<8x8xf32>
    %cst_17 = arith.constant dense<0xFF800000> : vector<8xf32>
    %37 = vector.multi_reduction <maximumf>, %36, %cst_17 [1] : vector<8x8xf32> to vector<8xf32>
    %38 = vector.shape_cast %37 : vector<8xf32> to vector<8x1xf32>
    %39 = vector.broadcast %38 : vector<8x1xf32> to vector<8x8xf32>
    %40 = arith.subf %36, %39 : vector<8x8xf32>
    %41 = math.exp %40 : vector<8x8xf32>
    %cst_18 = arith.constant dense<0.000000e+00> : vector<8xf32>
    %42 = vector.multi_reduction <add>, %41, %cst_18 [1] : vector<8x8xf32> to vector<8xf32>
    %43 = vector.shape_cast %42 : vector<8xf32> to vector<8x1xf32>
    %44 = tpu.reciprocal %43 {approx = true} : vector<8x1xf32> -> vector<8x1xf32>
    %45 = vector.broadcast %44 : vector<8x1xf32> to vector<8x8xf32>
    %46 = arith.mulf %41, %45 : vector<8x8xf32>
    %47 = arith.truncf %46 : vector<8x8xf32> to vector<8x8xbf16>
    %48 = vector.extract_strided_slice %17 {offsets = [0, 8], sizes = [8, 8], strides = [1, 1]} : vector<8x32xbf16> to vector<8x8xbf16>
    %cst_19 = arith.constant dense<0.000000e+00> : vector<8x8xf32>
    %49 = tpu.matmul %47, %48, %cst_19 {dimension_numbers = #tpu.dot_dimension_numbers<[1], [0], [0], [1], [0, 0, 1, 1], [], []>} : vector<8x8xbf16>, vector<8x8xbf16>, vector<8x8xf32> -> vector<8x8xf32>
    %50 = vector.extract_strided_slice %15 {offsets = [0, 16], sizes = [8, 8], strides = [1, 1]} : vector<8x32xbf16> to vector<8x8xbf16>
    %51 = vector.extract_strided_slice %16 {offsets = [0, 16], sizes = [8, 8], strides = [1, 1]} : vector<8x32xbf16> to vector<8x8xbf16>
    %cst_20 = arith.constant dense<0.000000e+00> : vector<8x8xf32>
    %52 = tpu.matmul %50, %51, %cst_20 {dimension_numbers = #tpu.dot_dimension_numbers<[1], [1], [0], [0], [0, 0, 1, 0], [], []>} : vector<8x8xbf16>, vector<8x8xbf16>, vector<8x8xf32> -> vector<8x8xf32>
    %cst_21 = arith.constant dense<0xFF800000> : vector<8xf32>
    %53 = vector.multi_reduction <maximumf>, %52, %cst_21 [1] : vector<8x8xf32> to vector<8xf32>
    %54 = vector.shape_cast %53 : vector<8xf32> to vector<8x1xf32>
    %55 = vector.broadcast %54 : vector<8x1xf32> to vector<8x8xf32>
    %56 = arith.subf %52, %55 : vector<8x8xf32>
    %57 = math.exp %56 : vector<8x8xf32>
    %cst_22 = arith.constant dense<0.000000e+00> : vector<8xf32>
    %58 = vector.multi_reduction <add>, %57, %cst_22 [1] : vector<8x8xf32> to vector<8xf32>
    %59 = vector.shape_cast %58 : vector<8xf32> to vector<8x1xf32>
    %60 = tpu.reciprocal %59 {approx = true} : vector<8x1xf32> -> vector<8x1xf32>
    %61 = vector.broadcast %60 : vector<8x1xf32> to vector<8x8xf32>
    %62 = arith.mulf %57, %61 : vector<8x8xf32>
    %63 = arith.truncf %62 : vector<8x8xf32> to vector<8x8xbf16>
    %64 = vector.extract_strided_slice %17 {offsets = [0, 16], sizes = [8, 8], strides = [1, 1]} : vector<8x32xbf16> to vector<8x8xbf16>
    %cst_23 = arith.constant dense<0.000000e+00> : vector<8x8xf32>
    %65 = tpu.matmul %63, %64, %cst_23 {dimension_numbers = #tpu.dot_dimension_numbers<[1], [0], [0], [1], [0, 0, 1, 1], [], []>} : vector<8x8xbf16>, vector<8x8xbf16>, vector<8x8xf32> -> vector<8x8xf32>
    %66 = vector.extract_strided_slice %15 {offsets = [0, 24], sizes = [8, 8], strides = [1, 1]} : vector<8x32xbf16> to vector<8x8xbf16>
    %67 = vector.extract_strided_slice %16 {offsets = [0, 24], sizes = [8, 8], strides = [1, 1]} : vector<8x32xbf16> to vector<8x8xbf16>
    %cst_24 = arith.constant dense<0.000000e+00> : vector<8x8xf32>
    %68 = tpu.matmul %66, %67, %cst_24 {dimension_numbers = #tpu.dot_dimension_numbers<[1], [1], [0], [0], [0, 0, 1, 0], [], []>} : vector<8x8xbf16>, vector<8x8xbf16>, vector<8x8xf32> -> vector<8x8xf32>
    %cst_25 = arith.constant dense<0xFF800000> : vector<8xf32>
    %69 = vector.multi_reduction <maximumf>, %68, %cst_25 [1] : vector<8x8xf32> to vector<8xf32>
    %70 = vector.shape_cast %69 : vector<8xf32> to vector<8x1xf32>
    %71 = vector.broadcast %70 : vector<8x1xf32> to vector<8x8xf32>
    %72 = arith.subf %68, %71 : vector<8x8xf32>
    %73 = math.exp %72 : vector<8x8xf32>
    %cst_26 = arith.constant dense<0.000000e+00> : vector<8xf32>
    %74 = vector.multi_reduction <add>, %73, %cst_26 [1] : vector<8x8xf32> to vector<8xf32>
    %75 = vector.shape_cast %74 : vector<8xf32> to vector<8x1xf32>
    %76 = tpu.reciprocal %75 {approx = true} : vector<8x1xf32> -> vector<8x1xf32>
    %77 = vector.broadcast %76 : vector<8x1xf32> to vector<8x8xf32>
    %78 = arith.mulf %73, %77 : vector<8x8xf32>
    %79 = arith.truncf %78 : vector<8x8xf32> to vector<8x8xbf16>
    %80 = vector.extract_strided_slice %17 {offsets = [0, 24], sizes = [8, 8], strides = [1, 1]} : vector<8x32xbf16> to vector<8x8xbf16>
    %cst_27 = arith.constant dense<0.000000e+00> : vector<8x8xf32>
    %81 = tpu.matmul %79, %80, %cst_27 {dimension_numbers = #tpu.dot_dimension_numbers<[1], [0], [0], [1], [0, 0, 1, 1], [], []>} : vector<8x8xbf16>, vector<8x8xbf16>, vector<8x8xf32> -> vector<8x8xf32>
    %82 = tpu.concatenate %33, %49, %65, %81 in 1 : vector<8x8xf32>, vector<8x8xf32>, vector<8x8xf32>, vector<8x8xf32> -> vector<8x32xf32>
    %83 = arith.truncf %82 : vector<8x32xf32> to vector<8x32xbf16>
    %c0_28 = arith.constant 0 : index
    %c0_29 = arith.constant 0 : index
    %84 = vector.load %arg5[%c0_28, %c0_29] : memref<32x32xbf16, #tpu.memory_space<vmem>>, vector<32x32xbf16>
    %cst_30 = arith.constant dense<0.000000e+00> : vector<8x32xf32>
    %85 = tpu.matmul %83, %84, %cst_30 {dimension_numbers = #tpu.dot_dimension_numbers<[1], [0], [0], [1], [0, 0, 1, 1], [], []>} : vector<8x32xbf16>, vector<32x32xbf16>, vector<8x32xf32> -> vector<8x32xf32>
    %86 = vector.broadcast %12 : vector<1x32xf32> to vector<8x32xf32>
    %87 = arith.addf %85, %86 : vector<8x32xf32>
    %88 = arith.addf %1, %87 : vector<8x32xf32>
    %c0_31 = arith.constant 0 : index
    %c0_32 = arith.constant 0 : index
    %89 = vector.load %arg7[%c0_31, %c0_32] : memref<1x32xf32, #tpu.memory_space<vmem>>, vector<1x32xf32>
    %c0_33 = arith.constant 0 : index
    %c0_34 = arith.constant 0 : index
    %90 = vector.load %arg8[%c0_33, %c0_34] : memref<1x32xf32, #tpu.memory_space<vmem>>, vector<1x32xf32>
    %cst_35 = arith.constant dense<0.000000e+00> : vector<8xf32>
    %91 = vector.multi_reduction <add>, %88, %cst_35 [1] : vector<8x32xf32> to vector<8xf32>
    %92 = vector.shape_cast %91 : vector<8xf32> to vector<8x1xf32>
    %cst_36 = arith.constant 3.200000e+01 : f32
    %93 = vector.broadcast %cst_36 : f32 to vector<8x1xf32>
    %94 = arith.divf %92, %93 : vector<8x1xf32>
    %95 = vector.broadcast %94 : vector<8x1xf32> to vector<8x32xf32>
    %96 = arith.subf %88, %95 : vector<8x32xf32>
    %97 = arith.mulf %96, %96 : vector<8x32xf32>
    %cst_37 = arith.constant dense<0.000000e+00> : vector<8xf32>
    %98 = vector.multi_reduction <add>, %97, %cst_37 [1] : vector<8x32xf32> to vector<8xf32>
    %99 = vector.shape_cast %98 : vector<8xf32> to vector<8x1xf32>
    %cst_38 = arith.constant 3.200000e+01 : f32
    %100 = vector.broadcast %cst_38 : f32 to vector<8x1xf32>
    %101 = arith.divf %99, %100 : vector<8x1xf32>
    %102 = vector.broadcast %94 : vector<8x1xf32> to vector<8x32xf32>
    %103 = arith.subf %88, %102 : vector<8x32xf32>
    %cst_39 = arith.constant 9.99999974E-6 : f32
    %104 = vector.broadcast %cst_39 : f32 to vector<8x1xf32>
    %105 = arith.addf %101, %104 : vector<8x1xf32>
    %106 = math.rsqrt %105 : vector<8x1xf32>
    %107 = vector.broadcast %106 : vector<8x1xf32> to vector<8x32xf32>
    %108 = arith.mulf %103, %107 : vector<8x32xf32>
    %109 = vector.broadcast %89 : vector<1x32xf32> to vector<8x32xf32>
    %110 = arith.mulf %108, %109 : vector<8x32xf32>
    %111 = vector.broadcast %90 : vector<1x32xf32> to vector<8x32xf32>
    %112 = arith.addf %110, %111 : vector<8x32xf32>
    %113 = arith.truncf %112 : vector<8x32xf32> to vector<8x32xbf16>
    %c0_40 = arith.constant 0 : index
    %c0_41 = arith.constant 0 : index
    %114 = vector.load %arg10[%c0_40, %c0_41] : memref<32x32xbf16, #tpu.memory_space<vmem>>, vector<32x32xbf16>
    %cst_42 = arith.constant dense<0.000000e+00> : vector<8x32xf32>
    %115 = tpu.matmul %113, %114, %cst_42 {dimension_numbers = #tpu.dot_dimension_numbers<[1], [0], [0], [1], [0, 0, 1, 1], [], []>} : vector<8x32xbf16>, vector<32x32xbf16>, vector<8x32xf32> -> vector<8x32xf32>
    %c0_43 = arith.constant 0 : index
    %c0_44 = arith.constant 0 : index
    %116 = vector.load %arg9[%c0_43, %c0_44] : memref<8x32xf32, #tpu.memory_space<vmem>>, vector<8x32xf32>
    %117 = arith.addf %115, %116 : vector<8x32xf32>
    %118 = arith.truncf %3 : vector<16x32xf32> to vector<16x32xbf16>
    %c0_45 = arith.constant 0 : index
    %c0_46 = arith.constant 0 : index
    %119 = vector.load %arg12[%c0_45, %c0_46] : memref<32x64xbf16, #tpu.memory_space<vmem>>, vector<32x64xbf16>
    %cst_47 = arith.constant dense<0.000000e+00> : vector<16x64xf32>
    %120 = tpu.matmul %118, %119, %cst_47 {dimension_numbers = #tpu.dot_dimension_numbers<[1], [0], [0], [1], [0, 0, 1, 1], [], []>} : vector<16x32xbf16>, vector<32x64xbf16>, vector<16x64xf32> -> vector<16x64xf32>
    %c0_48 = arith.constant 0 : index
    %c0_49 = arith.constant 0 : index
    %121 = vector.load %arg11[%c0_48, %c0_49] : memref<16x64xf32, #tpu.memory_space<vmem>>, vector<16x64xf32>
    %122 = arith.addf %120, %121 : vector<16x64xf32>
    %123 = vector.extract_strided_slice %122 {offsets = [0, 0], sizes = [16, 32], strides = [1, 1]} : vector<16x64xf32> to vector<16x32xf32>
    %124 = vector.extract_strided_slice %122 {offsets = [0, 32], sizes = [16, 32], strides = [1, 1]} : vector<16x64xf32> to vector<16x32xf32>
    %c0_50 = arith.constant 0 : index
    %c0_51 = arith.constant 0 : index
    %125 = vector.load %arg14[%c0_50, %c0_51] : memref<1x32xf32, #tpu.memory_space<vmem>>, vector<1x32xf32>
    %cst_52 = arith.constant 0.353553385 : f32
    %126 = vector.broadcast %cst_52 : f32 to vector<8x32xf32>
    %127 = arith.mulf %117, %126 : vector<8x32xf32>
    %128 = arith.truncf %127 : vector<8x32xf32> to vector<8x32xbf16>
    %129 = arith.truncf %123 : vector<16x32xf32> to vector<16x32xbf16>
    %130 = arith.truncf %124 : vector<16x32xf32> to vector<16x32xbf16>
    %131 = vector.extract_strided_slice %128 {offsets = [0, 0], sizes = [8, 8], strides = [1, 1]} : vector<8x32xbf16> to vector<8x8xbf16>
    %132 = vector.extract_strided_slice %129 {offsets = [0, 0], sizes = [16, 8], strides = [1, 1]} : vector<16x32xbf16> to vector<16x8xbf16>
    %cst_53 = arith.constant dense<0.000000e+00> : vector<8x16xf32>
    %133 = tpu.matmul %131, %132, %cst_53 {dimension_numbers = #tpu.dot_dimension_numbers<[1], [1], [0], [0], [0, 0, 1, 0], [], []>} : vector<8x8xbf16>, vector<16x8xbf16>, vector<8x16xf32> -> vector<8x16xf32>
    %cst_54 = arith.constant dense<0xFF800000> : vector<8xf32>
    %134 = vector.multi_reduction <maximumf>, %133, %cst_54 [1] : vector<8x16xf32> to vector<8xf32>
    %135 = vector.shape_cast %134 : vector<8xf32> to vector<8x1xf32>
    %136 = vector.broadcast %135 : vector<8x1xf32> to vector<8x16xf32>
    %137 = arith.subf %133, %136 : vector<8x16xf32>
    %138 = math.exp %137 : vector<8x16xf32>
    %cst_55 = arith.constant dense<0.000000e+00> : vector<8xf32>
    %139 = vector.multi_reduction <add>, %138, %cst_55 [1] : vector<8x16xf32> to vector<8xf32>
    %140 = vector.shape_cast %139 : vector<8xf32> to vector<8x1xf32>
    %141 = tpu.reciprocal %140 {approx = true} : vector<8x1xf32> -> vector<8x1xf32>
    %142 = vector.broadcast %141 : vector<8x1xf32> to vector<8x16xf32>
    %143 = arith.mulf %138, %142 : vector<8x16xf32>
    %144 = arith.truncf %143 : vector<8x16xf32> to vector<8x16xbf16>
    %145 = vector.extract_strided_slice %130 {offsets = [0, 0], sizes = [16, 8], strides = [1, 1]} : vector<16x32xbf16> to vector<16x8xbf16>
    %cst_56 = arith.constant dense<0.000000e+00> : vector<8x8xf32>
    %146 = tpu.matmul %144, %145, %cst_56 {dimension_numbers = #tpu.dot_dimension_numbers<[1], [0], [0], [1], [0, 0, 1, 1], [], []>} : vector<8x16xbf16>, vector<16x8xbf16>, vector<8x8xf32> -> vector<8x8xf32>
    %147 = vector.extract_strided_slice %128 {offsets = [0, 8], sizes = [8, 8], strides = [1, 1]} : vector<8x32xbf16> to vector<8x8xbf16>
    %148 = vector.extract_strided_slice %129 {offsets = [0, 8], sizes = [16, 8], strides = [1, 1]} : vector<16x32xbf16> to vector<16x8xbf16>
    %cst_57 = arith.constant dense<0.000000e+00> : vector<8x16xf32>
    %149 = tpu.matmul %147, %148, %cst_57 {dimension_numbers = #tpu.dot_dimension_numbers<[1], [1], [0], [0], [0, 0, 1, 0], [], []>} : vector<8x8xbf16>, vector<16x8xbf16>, vector<8x16xf32> -> vector<8x16xf32>
    %cst_58 = arith.constant dense<0xFF800000> : vector<8xf32>
    %150 = vector.multi_reduction <maximumf>, %149, %cst_58 [1] : vector<8x16xf32> to vector<8xf32>
    %151 = vector.shape_cast %150 : vector<8xf32> to vector<8x1xf32>
    %152 = vector.broadcast %151 : vector<8x1xf32> to vector<8x16xf32>
    %153 = arith.subf %149, %152 : vector<8x16xf32>
    %154 = math.exp %153 : vector<8x16xf32>
    %cst_59 = arith.constant dense<0.000000e+00> : vector<8xf32>
    %155 = vector.multi_reduction <add>, %154, %cst_59 [1] : vector<8x16xf32> to vector<8xf32>
    %156 = vector.shape_cast %155 : vector<8xf32> to vector<8x1xf32>
    %157 = tpu.reciprocal %156 {approx = true} : vector<8x1xf32> -> vector<8x1xf32>
    %158 = vector.broadcast %157 : vector<8x1xf32> to vector<8x16xf32>
    %159 = arith.mulf %154, %158 : vector<8x16xf32>
    %160 = arith.truncf %159 : vector<8x16xf32> to vector<8x16xbf16>
    %161 = vector.extract_strided_slice %130 {offsets = [0, 8], sizes = [16, 8], strides = [1, 1]} : vector<16x32xbf16> to vector<16x8xbf16>
    %cst_60 = arith.constant dense<0.000000e+00> : vector<8x8xf32>
    %162 = tpu.matmul %160, %161, %cst_60 {dimension_numbers = #tpu.dot_dimension_numbers<[1], [0], [0], [1], [0, 0, 1, 1], [], []>} : vector<8x16xbf16>, vector<16x8xbf16>, vector<8x8xf32> -> vector<8x8xf32>
    %163 = vector.extract_strided_slice %128 {offsets = [0, 16], sizes = [8, 8], strides = [1, 1]} : vector<8x32xbf16> to vector<8x8xbf16>
    %164 = vector.extract_strided_slice %129 {offsets = [0, 16], sizes = [16, 8], strides = [1, 1]} : vector<16x32xbf16> to vector<16x8xbf16>
    %cst_61 = arith.constant dense<0.000000e+00> : vector<8x16xf32>
    %165 = tpu.matmul %163, %164, %cst_61 {dimension_numbers = #tpu.dot_dimension_numbers<[1], [1], [0], [0], [0, 0, 1, 0], [], []>} : vector<8x8xbf16>, vector<16x8xbf16>, vector<8x16xf32> -> vector<8x16xf32>
    %cst_62 = arith.constant dense<0xFF800000> : vector<8xf32>
    %166 = vector.multi_reduction <maximumf>, %165, %cst_62 [1] : vector<8x16xf32> to vector<8xf32>
    %167 = vector.shape_cast %166 : vector<8xf32> to vector<8x1xf32>
    %168 = vector.broadcast %167 : vector<8x1xf32> to vector<8x16xf32>
    %169 = arith.subf %165, %168 : vector<8x16xf32>
    %170 = math.exp %169 : vector<8x16xf32>
    %cst_63 = arith.constant dense<0.000000e+00> : vector<8xf32>
    %171 = vector.multi_reduction <add>, %170, %cst_63 [1] : vector<8x16xf32> to vector<8xf32>
    %172 = vector.shape_cast %171 : vector<8xf32> to vector<8x1xf32>
    %173 = tpu.reciprocal %172 {approx = true} : vector<8x1xf32> -> vector<8x1xf32>
    %174 = vector.broadcast %173 : vector<8x1xf32> to vector<8x16xf32>
    %175 = arith.mulf %170, %174 : vector<8x16xf32>
    %176 = arith.truncf %175 : vector<8x16xf32> to vector<8x16xbf16>
    %177 = vector.extract_strided_slice %130 {offsets = [0, 16], sizes = [16, 8], strides = [1, 1]} : vector<16x32xbf16> to vector<16x8xbf16>
    %cst_64 = arith.constant dense<0.000000e+00> : vector<8x8xf32>
    %178 = tpu.matmul %176, %177, %cst_64 {dimension_numbers = #tpu.dot_dimension_numbers<[1], [0], [0], [1], [0, 0, 1, 1], [], []>} : vector<8x16xbf16>, vector<16x8xbf16>, vector<8x8xf32> -> vector<8x8xf32>
    %179 = vector.extract_strided_slice %128 {offsets = [0, 24], sizes = [8, 8], strides = [1, 1]} : vector<8x32xbf16> to vector<8x8xbf16>
    %180 = vector.extract_strided_slice %129 {offsets = [0, 24], sizes = [16, 8], strides = [1, 1]} : vector<16x32xbf16> to vector<16x8xbf16>
    %cst_65 = arith.constant dense<0.000000e+00> : vector<8x16xf32>
    %181 = tpu.matmul %179, %180, %cst_65 {dimension_numbers = #tpu.dot_dimension_numbers<[1], [1], [0], [0], [0, 0, 1, 0], [], []>} : vector<8x8xbf16>, vector<16x8xbf16>, vector<8x16xf32> -> vector<8x16xf32>
    %cst_66 = arith.constant dense<0xFF800000> : vector<8xf32>
    %182 = vector.multi_reduction <maximumf>, %181, %cst_66 [1] : vector<8x16xf32> to vector<8xf32>
    %183 = vector.shape_cast %182 : vector<8xf32> to vector<8x1xf32>
    %184 = vector.broadcast %183 : vector<8x1xf32> to vector<8x16xf32>
    %185 = arith.subf %181, %184 : vector<8x16xf32>
    %186 = math.exp %185 : vector<8x16xf32>
    %cst_67 = arith.constant dense<0.000000e+00> : vector<8xf32>
    %187 = vector.multi_reduction <add>, %186, %cst_67 [1] : vector<8x16xf32> to vector<8xf32>
    %188 = vector.shape_cast %187 : vector<8xf32> to vector<8x1xf32>
    %189 = tpu.reciprocal %188 {approx = true} : vector<8x1xf32> -> vector<8x1xf32>
    %190 = vector.broadcast %189 : vector<8x1xf32> to vector<8x16xf32>
    %191 = arith.mulf %186, %190 : vector<8x16xf32>
    %192 = arith.truncf %191 : vector<8x16xf32> to vector<8x16xbf16>
    %193 = vector.extract_strided_slice %130 {offsets = [0, 24], sizes = [16, 8], strides = [1, 1]} : vector<16x32xbf16> to vector<16x8xbf16>
    %cst_68 = arith.constant dense<0.000000e+00> : vector<8x8xf32>
    %194 = tpu.matmul %192, %193, %cst_68 {dimension_numbers = #tpu.dot_dimension_numbers<[1], [0], [0], [1], [0, 0, 1, 1], [], []>} : vector<8x16xbf16>, vector<16x8xbf16>, vector<8x8xf32> -> vector<8x8xf32>
    %195 = tpu.concatenate %146, %162, %178, %194 in 1 : vector<8x8xf32>, vector<8x8xf32>, vector<8x8xf32>, vector<8x8xf32> -> vector<8x32xf32>
    %196 = arith.truncf %195 : vector<8x32xf32> to vector<8x32xbf16>
    %c0_69 = arith.constant 0 : index
    %c0_70 = arith.constant 0 : index
    %197 = vector.load %arg13[%c0_69, %c0_70] : memref<32x32xbf16, #tpu.memory_space<vmem>>, vector<32x32xbf16>
    %cst_71 = arith.constant dense<0.000000e+00> : vector<8x32xf32>
    %198 = tpu.matmul %196, %197, %cst_71 {dimension_numbers = #tpu.dot_dimension_numbers<[1], [0], [0], [1], [0, 0, 1, 1], [], []>} : vector<8x32xbf16>, vector<32x32xbf16>, vector<8x32xf32> -> vector<8x32xf32>
    %199 = vector.broadcast %125 : vector<1x32xf32> to vector<8x32xf32>
    %200 = arith.addf %198, %199 : vector<8x32xf32>
    %201 = arith.addf %112, %200 : vector<8x32xf32>
    %c0_72 = arith.constant 0 : index
    %c0_73 = arith.constant 0 : index
    %202 = vector.load %arg15[%c0_72, %c0_73] : memref<1x32xf32, #tpu.memory_space<vmem>>, vector<1x32xf32>
    %c0_74 = arith.constant 0 : index
    %c0_75 = arith.constant 0 : index
    %203 = vector.load %arg16[%c0_74, %c0_75] : memref<1x32xf32, #tpu.memory_space<vmem>>, vector<1x32xf32>
    %cst_76 = arith.constant dense<0.000000e+00> : vector<8xf32>
    %204 = vector.multi_reduction <add>, %201, %cst_76 [1] : vector<8x32xf32> to vector<8xf32>
    %205 = vector.shape_cast %204 : vector<8xf32> to vector<8x1xf32>
    %cst_77 = arith.constant 3.200000e+01 : f32
    %206 = vector.broadcast %cst_77 : f32 to vector<8x1xf32>
    %207 = arith.divf %205, %206 : vector<8x1xf32>
    %208 = vector.broadcast %207 : vector<8x1xf32> to vector<8x32xf32>
    %209 = arith.subf %201, %208 : vector<8x32xf32>
    %210 = arith.mulf %209, %209 : vector<8x32xf32>
    %cst_78 = arith.constant dense<0.000000e+00> : vector<8xf32>
    %211 = vector.multi_reduction <add>, %210, %cst_78 [1] : vector<8x32xf32> to vector<8xf32>
    %212 = vector.shape_cast %211 : vector<8xf32> to vector<8x1xf32>
    %cst_79 = arith.constant 3.200000e+01 : f32
    %213 = vector.broadcast %cst_79 : f32 to vector<8x1xf32>
    %214 = arith.divf %212, %213 : vector<8x1xf32>
    %215 = vector.broadcast %207 : vector<8x1xf32> to vector<8x32xf32>
    %216 = arith.subf %201, %215 : vector<8x32xf32>
    %cst_80 = arith.constant 9.99999974E-6 : f32
    %217 = vector.broadcast %cst_80 : f32 to vector<8x1xf32>
    %218 = arith.addf %214, %217 : vector<8x1xf32>
    %219 = math.rsqrt %218 : vector<8x1xf32>
    %220 = vector.broadcast %219 : vector<8x1xf32> to vector<8x32xf32>
    %221 = arith.mulf %216, %220 : vector<8x32xf32>
    %222 = vector.broadcast %202 : vector<1x32xf32> to vector<8x32xf32>
    %223 = arith.mulf %221, %222 : vector<8x32xf32>
    %224 = vector.broadcast %203 : vector<1x32xf32> to vector<8x32xf32>
    %225 = arith.addf %223, %224 : vector<8x32xf32>
    %226 = arith.truncf %225 : vector<8x32xf32> to vector<8x32xbf16>
    %c0_81 = arith.constant 0 : index
    %c0_82 = arith.constant 0 : index
    %227 = vector.load %arg17[%c0_81, %c0_82] : memref<32x128xbf16, #tpu.memory_space<vmem>>, vector<32x128xbf16>
    %cst_83 = arith.constant dense<0.000000e+00> : vector<8x128xf32>
    %228 = tpu.matmul %226, %227, %cst_83 {dimension_numbers = #tpu.dot_dimension_numbers<[1], [0], [0], [1], [0, 0, 1, 1], [], []>} : vector<8x32xbf16>, vector<32x128xbf16>, vector<8x128xf32> -> vector<8x128xf32>
    %c0_84 = arith.constant 0 : index
    %c0_85 = arith.constant 0 : index
    %229 = vector.load %arg18[%c0_84, %c0_85] : memref<1x128xf32, #tpu.memory_space<vmem>>, vector<1x128xf32>
    %230 = vector.broadcast %229 : vector<1x128xf32> to vector<8x128xf32>
    %231 = arith.addf %228, %230 : vector<8x128xf32>
    %cst_86 = arith.constant 0.000000e+00 : f32
    %232 = vector.broadcast %cst_86 : f32 to vector<8x128xf32>
    %233 = arith.maximumf %231, %232 : vector<8x128xf32>
    %234 = arith.truncf %233 : vector<8x128xf32> to vector<8x128xbf16>
    %c0_87 = arith.constant 0 : index
    %c0_88 = arith.constant 0 : index
    %235 = vector.load %arg19[%c0_87, %c0_88] : memref<128x32xbf16, #tpu.memory_space<vmem>>, vector<128x32xbf16>
    %cst_89 = arith.constant dense<0.000000e+00> : vector<8x32xf32>
    %236 = tpu.matmul %234, %235, %cst_89 {dimension_numbers = #tpu.dot_dimension_numbers<[1], [0], [0], [1], [0, 0, 1, 1], [], []>} : vector<8x128xbf16>, vector<128x32xbf16>, vector<8x32xf32> -> vector<8x32xf32>
    %c0_90 = arith.constant 0 : index
    %c0_91 = arith.constant 0 : index
    %237 = vector.load %arg20[%c0_90, %c0_91] : memref<1x32xf32, #tpu.memory_space<vmem>>, vector<1x32xf32>
    %238 = vector.broadcast %237 : vector<1x32xf32> to vector<8x32xf32>
    %239 = arith.addf %236, %238 : vector<8x32xf32>
    %240 = arith.addf %225, %239 : vector<8x32xf32>
    %c0_92 = arith.constant 0 : index
    %c0_93 = arith.constant 0 : index
    %241 = vector.load %arg21[%c0_92, %c0_93] : memref<1x32xf32, #tpu.memory_space<vmem>>, vector<1x32xf32>
    %c0_94 = arith.constant 0 : index
    %c0_95 = arith.constant 0 : index
    %242 = vector.load %arg22[%c0_94, %c0_95] : memref<1x32xf32, #tpu.memory_space<vmem>>, vector<1x32xf32>
    %cst_96 = arith.constant dense<0.000000e+00> : vector<8xf32>
    %243 = vector.multi_reduction <add>, %240, %cst_96 [1] : vector<8x32xf32> to vector<8xf32>
    %244 = vector.shape_cast %243 : vector<8xf32> to vector<8x1xf32>
    %cst_97 = arith.constant 3.200000e+01 : f32
    %245 = vector.broadcast %cst_97 : f32 to vector<8x1xf32>
    %246 = arith.divf %244, %245 : vector<8x1xf32>
    %247 = vector.broadcast %246 : vector<8x1xf32> to vector<8x32xf32>
    %248 = arith.subf %240, %247 : vector<8x32xf32>
    %249 = arith.mulf %248, %248 : vector<8x32xf32>
    %cst_98 = arith.constant dense<0.000000e+00> : vector<8xf32>
    %250 = vector.multi_reduction <add>, %249, %cst_98 [1] : vector<8x32xf32> to vector<8xf32>
    %251 = vector.shape_cast %250 : vector<8xf32> to vector<8x1xf32>
    %cst_99 = arith.constant 3.200000e+01 : f32
    %252 = vector.broadcast %cst_99 : f32 to vector<8x1xf32>
    %253 = arith.divf %251, %252 : vector<8x1xf32>
    %254 = vector.broadcast %246 : vector<8x1xf32> to vector<8x32xf32>
    %255 = arith.subf %240, %254 : vector<8x32xf32>
    %cst_100 = arith.constant 9.99999974E-6 : f32
    %256 = vector.broadcast %cst_100 : f32 to vector<8x1xf32>
    %257 = arith.addf %253, %256 : vector<8x1xf32>
    %258 = math.rsqrt %257 : vector<8x1xf32>
    %259 = vector.broadcast %258 : vector<8x1xf32> to vector<8x32xf32>
    %260 = arith.mulf %255, %259 : vector<8x32xf32>
    %261 = vector.broadcast %241 : vector<1x32xf32> to vector<8x32xf32>
    %262 = arith.mulf %260, %261 : vector<8x32xf32>
    %263 = vector.broadcast %242 : vector<1x32xf32> to vector<8x32xf32>
    %264 = arith.addf %262, %263 : vector<8x32xf32>
    %c0_101 = arith.constant 0 : index
    %c0_102 = arith.constant 0 : index
    %c0_103 = arith.constant 0 : index
    %265 = vector.load %arg25[%c0_101, %c0_102, %c0_103] : memref<1x8x32xf32, #tpu.memory_space<vmem>>, vector<1x8x32xf32>
    %266 = vector.shape_cast %265 : vector<1x8x32xf32> to vector<8x32xf32>
    %267 = vector.shape_cast %264 : vector<8x32xf32> to vector<1x8x32xf32>
    tpu.vector_store %arg25[%c0_101, %c0_102, %c0_103], %267 {strides = array<i32>} : memref<1x8x32xf32, #tpu.memory_space<vmem>>, vector<1x8x32xf32>,
    %c0_104 = arith.constant 0 : index
    %c0_105 = arith.constant 0 : index
    %268 = vector.load %arg23[%c0_104, %c0_105] : memref<1x32xf32, #tpu.memory_space<vmem>>, vector<1x32xf32>
    %c0_106 = arith.constant 0 : index
    %c0_107 = arith.constant 0 : index
    %269 = vector.load %arg24[%c0_106, %c0_107] : memref<1x32xf32, #tpu.memory_space<vmem>>, vector<1x32xf32>
    %cst_108 = arith.constant dense<0.000000e+00> : vector<8xf32>
    %270 = vector.multi_reduction <add>, %264, %cst_108 [1] : vector<8x32xf32> to vector<8xf32>
    %271 = vector.shape_cast %270 : vector<8xf32> to vector<8x1xf32>
    %cst_109 = arith.constant 3.200000e+01 : f32
    %272 = vector.broadcast %cst_109 : f32 to vector<8x1xf32>
    %273 = arith.divf %271, %272 : vector<8x1xf32>
    %274 = vector.broadcast %273 : vector<8x1xf32> to vector<8x32xf32>
    %275 = arith.subf %264, %274 : vector<8x32xf32>
    %276 = arith.mulf %275, %275 : vector<8x32xf32>
    %cst_110 = arith.constant dense<0.000000e+00> : vector<8xf32>
    %277 = vector.multi_reduction <add>, %276, %cst_110 [1] : vector<8x32xf32> to vector<8xf32>
    %278 = vector.shape_cast %277 : vector<8xf32> to vector<8x1xf32>
    %cst_111 = arith.constant 3.200000e+01 : f32
    %279 = vector.broadcast %cst_111 : f32 to vector<8x1xf32>
    %280 = arith.divf %278, %279 : vector<8x1xf32>
    %281 = vector.broadcast %273 : vector<8x1xf32> to vector<8x32xf32>
    %282 = arith.subf %264, %281 : vector<8x32xf32>
    %cst_112 = arith.constant 9.99999974E-6 : f32
    %283 = vector.broadcast %cst_112 : f32 to vector<8x1xf32>
    %284 = arith.addf %280, %283 : vector<8x1xf32>
    %285 = math.rsqrt %284 : vector<8x1xf32>
    %286 = vector.broadcast %285 : vector<8x1xf32> to vector<8x32xf32>
    %287 = arith.mulf %282, %286 : vector<8x32xf32>
    %288 = vector.broadcast %268 : vector<1x32xf32> to vector<8x32xf32>
    %289 = arith.mulf %287, %288 : vector<8x32xf32>
    %290 = vector.broadcast %269 : vector<1x32xf32> to vector<8x32xf32>
    %291 = arith.addf %289, %290 : vector<8x32xf32>
    %c0_113 = arith.constant 0 : index
    %c0_114 = arith.constant 0 : index
    %c0_115 = arith.constant 0 : index
    %292 = vector.load %arg26[%c0_113, %c0_114, %c0_115] : memref<1x8x32xf32, #tpu.memory_space<vmem>>, vector<1x8x32xf32>
    %293 = vector.shape_cast %292 : vector<1x8x32xf32> to vector<8x32xf32>
    %294 = vector.shape_cast %291 : vector<8x32xf32> to vector<1x8x32xf32>
    tpu.vector_store %arg26[%c0_113, %c0_114, %c0_115], %294 {strides = array<i32>} : memref<1x8x32xf32, #tpu.memory_space<vmem>>, vector<1x8x32xf32>,
    return
  }
  func.func @transform_0(%arg0: i32) -> (i32, i32, i32) {
    %c0_i32 = arith.constant 0 : i32
    %c0_i32_0 = arith.constant 0 : i32
    %c0_i32_1 = arith.constant 0 : i32
    return %arg0, %c0_i32, %c0_i32_0 : i32, i32, i32
  }
  func.func @transform_1(%arg0: i32) -> (i32, i32, i32) {
    %c0_i32 = arith.constant 0 : i32
    %c0_i32_0 = arith.constant 0 : i32
    %c0_i32_1 = arith.constant 0 : i32
    return %arg0, %c0_i32, %c0_i32_0 : i32, i32, i32
  }
  func.func @transform_2(%arg0: i32) -> (i32, i32) {
    %c0_i32 = arith.constant 0 : i32
    %c0_i32_0 = arith.constant 0 : i32
    %c0_i32_1 = arith.constant 0 : i32
    return %c0_i32, %c0_i32_0 : i32, i32
  }
  func.func @transform_3(%arg0: i32) -> (i32, i32) {
    %c0_i32 = arith.constant 0 : i32
    %c0_i32_0 = arith.constant 0 : i32
    %c0_i32_1 = arith.constant 0 : i32
    return %c0_i32, %c0_i32_0 : i32, i32
  }
  func.func @transform_4(%arg0: i32) -> (i32, i32) {
    %c0_i32 = arith.constant 0 : i32
    %c0_i32_0 = arith.constant 0 : i32
    %c0_i32_1 = arith.constant 0 : i32
    return %c0_i32, %c0_i32_0 : i32, i32
  }
  func.func @transform_5(%arg0: i32) -> (i32, i32) {
    %c0_i32 = arith.constant 0 : i32
    %c0_i32_0 = arith.constant 0 : i32
    %c0_i32_1 = arith.constant 0 : i32
    return %c0_i32, %c0_i32_0 : i32, i32
  }
  func.func @transform_6(%arg0: i32) -> (i32, i32) {
    %c0_i32 = arith.constant 0 : i32
    %c0_i32_0 = arith.constant 0 : i32
    %c0_i32_1 = arith.constant 0 : i32
    return %c0_i32, %c0_i32_0 : i32, i32
  }
  func.func @transform_7(%arg0: i32) -> (i32, i32) {
    %c0_i32 = arith.constant 0 : i32
    %c0_i32_0 = arith.constant 0 : i32
    %c0_i32_1 = arith.constant 0 : i32
    return %c0_i32, %c0_i32_0 : i32, i32
  }
  func.func @transform_8(%arg0: i32) -> (i32, i32) {
    %c0_i32 = arith.constant 0 : i32
    %c0_i32_0 = arith.constant 0 : i32
    %c0_i32_1 = arith.constant 0 : i32
    return %c0_i32, %c0_i32_0 : i32, i32
  }
  func.func @transform_9(%arg0: i32) -> (i32, i32) {
    %c0_i32 = arith.constant 0 : i32
    %c0_i32_0 = arith.constant 0 : i32
    %c0_i32_1 = arith.constant 0 : i32
    return %c0_i32, %c0_i32_0 : i32, i32
  }
  func.func @transform_10(%arg0: i32) -> (i32, i32) {
    %c0_i32 = arith.constant 0 : i32
    %c0_i32_0 = arith.constant 0 : i32
    %c0_i32_1 = arith.constant 0 : i32
    return %c0_i32, %c0_i32_0 : i32, i32
  }
  func.func @transform_11(%arg0: i32) -> (i32, i32) {
    %c0_i32 = arith.constant 0 : i32
    %c0_i32_0 = arith.constant 0 : i32
    %c0_i32_1 = arith.constant 0 : i32
    return %c0_i32, %c0_i32_0 : i32, i32
  }
  func.func @transform_12(%arg0: i32) -> (i32, i32) {
    %c0_i32 = arith.constant 0 : i32
    %c0_i32_0 = arith.constant 0 : i32
    %c0_i32_1 = arith.constant 0 : i32
    return %c0_i32, %c0_i32_0 : i32, i32
  }
  func.func @transform_13(%arg0: i32) -> (i32, i32) {
    %c0_i32 = arith.constant 0 : i32
    %c0_i32_0 = arith.constant 0 : i32
    %c0_i32_1 = arith.constant 0 : i32
    return %c0_i32, %c0_i32_0 : i32, i32
  }
  func.func @transform_14(%arg0: i32) -> (i32, i32) {
    %c0_i32 = arith.constant 0 : i32
    %c0_i32_0 = arith.constant 0 : i32
    %c0_i32_1 = arith.constant 0 : i32
    return %c0_i32, %c0_i32_0 : i32, i32
  }
  func.func @transform_15(%arg0: i32) -> (i32, i32) {
    %c0_i32 = arith.constant 0 : i32
    %c0_i32_0 = arith.constant 0 : i32
    %c0_i32_1 = arith.constant 0 : i32
    return %c0_i32, %c0_i32_0 : i32, i32
  }
  func.func @transform_16(%arg0: i32) -> (i32, i32) {
    %c0_i32 = arith.constant 0 : i32
    %c0_i32_0 = arith.constant 0 : i32
    %c0_i32_1 = arith.constant 0 : i32
    return %c0_i32, %c0_i32_0 : i32, i32
  }
  func.func @transform_17(%arg0: i32) -> (i32, i32) {
    %c0_i32 = arith.constant 0 : i32
    %c0_i32_0 = arith.constant 0 : i32
    %c0_i32_1 = arith.constant 0 : i32
    return %c0_i32, %c0_i32_0 : i32, i32
  }
  func.func @transform_18(%arg0: i32) -> (i32, i32) {
    %c0_i32 = arith.constant 0 : i32
    %c0_i32_0 = arith.constant 0 : i32
    %c0_i32_1 = arith.constant 0 : i32
    return %c0_i32, %c0_i32_0 : i32, i32
  }
  func.func @transform_19(%arg0: i32) -> (i32, i32) {
    %c0_i32 = arith.constant 0 : i32
    %c0_i32_0 = arith.constant 0 : i32
    %c0_i32_1 = arith.constant 0 : i32
    return %c0_i32, %c0_i32_0 : i32, i32
  }
  func.func @transform_20(%arg0: i32) -> (i32, i32) {
    %c0_i32 = arith.constant 0 : i32
    %c0_i32_0 = arith.constant 0 : i32
    %c0_i32_1 = arith.constant 0 : i32
    return %c0_i32, %c0_i32_0 : i32, i32
  }
  func.func @transform_21(%arg0: i32) -> (i32, i32) {
    %c0_i32 = arith.constant 0 : i32
    %c0_i32_0 = arith.constant 0 : i32
    %c0_i32_1 = arith.constant 0 : i32
    return %c0_i32, %c0_i32_0 : i32, i32
  }
  func.func @transform_22(%arg0: i32) -> (i32, i32) {
    %c0_i32 = arith.constant 0 : i32
    %c0_i32_0 = arith.constant 0 : i32
    %c0_i32_1 = arith.constant 0 : i32
    return %c0_i32, %c0_i32_0 : i32, i32
  }
  func.func @transform_23(%arg0: i32) -> (i32, i32) {
    %c0_i32 = arith.constant 0 : i32
    %c0_i32_0 = arith.constant 0 : i32
    %c0_i32_1 = arith.constant 0 : i32
    return %c0_i32, %c0_i32_0 : i32, i32
  }
  func.func @transform_24(%arg0: i32) -> (i32, i32, i32) {
    %c0_i32 = arith.constant 0 : i32
    %c0_i32_0 = arith.constant 0 : i32
    %c0_i32_1 = arith.constant 0 : i32
    return %arg0, %c0_i32, %c0_i32_0 : i32, i32, i32
  }
  func.func @transform_25(%arg0: i32) -> (i32, i32, i32) {
    %c0_i32 = arith.constant 0 : i32
    %c0_i32_0 = arith.constant 0 : i32
    %c0_i32_1 = arith.constant 0 : i32
    return %arg0, %c0_i32, %c0_i32_0 : i32, i32, i32
  }
}

module attributes {stable_mosaic.version = 11 : i64} {
  func.func @_head_kernel(%arg0: i32, %arg1: memref<32x32xf32, #tpu.memory_space<vmem>>, %arg2: memref<32x32xbf16, #tpu.memory_space<vmem>>, %arg3: memref<1x32xf32, #tpu.memory_space<vmem>>, %arg4: memref<32x32xbf16, #tpu.memory_space<vmem>>, %arg5: memref<1x32xf32, #tpu.memory_space<vmem>>, %arg6: memref<64x128xbf16, #tpu.memory_space<vmem>>, %arg7: memref<1x128xf32, #tpu.memory_space<vmem>>, %arg8: memref<32x128xf32, #tpu.memory_space<vmem>>) attributes {dimension_semantics = [#tpu.dimension_semantics<parallel>], iteration_bounds = array<i64: 1>, scalar_prefetch = 0 : i64, scratch_operands = 0 : i64, tpu.core_type = #tpu.core_type<tc>, window_params = [{transform_indices = @transform_0, window_bounds = array<i64: 32, 32>}, {pipeline_mode = #tpu.pipeline_mode<synchronous>, transform_indices = @transform_1, window_bounds = array<i64: 32, 32>}, {pipeline_mode = #tpu.pipeline_mode<synchronous>, transform_indices = @transform_2, window_bounds = array<i64: 1, 32>}, {pipeline_mode = #tpu.pipeline_mode<synchronous>, transform_indices = @transform_3, window_bounds = array<i64: 32, 32>}, {pipeline_mode = #tpu.pipeline_mode<synchronous>, transform_indices = @transform_4, window_bounds = array<i64: 1, 32>}, {pipeline_mode = #tpu.pipeline_mode<synchronous>, transform_indices = @transform_5, window_bounds = array<i64: 64, 128>}, {pipeline_mode = #tpu.pipeline_mode<synchronous>, transform_indices = @transform_6, window_bounds = array<i64: 1, 128>}, {transform_indices = @transform_7, window_bounds = array<i64: 32, 128>}]} {
    %c0 = arith.constant 0 : index
    %c0_0 = arith.constant 0 : index
    %0 = vector.load %arg1[%c0, %c0_0] : memref<32x32xf32, #tpu.memory_space<vmem>>, vector<32x32xf32>
    %1 = arith.truncf %0 : vector<32x32xf32> to vector<32x32xbf16>
    %c0_1 = arith.constant 0 : index
    %c0_2 = arith.constant 0 : index
    %2 = vector.load %arg2[%c0_1, %c0_2] : memref<32x32xbf16, #tpu.memory_space<vmem>>, vector<32x32xbf16>
    %cst = arith.constant dense<0.000000e+00> : vector<32x32xf32>
    %3 = tpu.matmul %1, %2, %cst {dimension_numbers = #tpu.dot_dimension_numbers<[1], [0], [0], [1], [0, 0, 1, 1], [], []>} : vector<32x32xbf16>, vector<32x32xbf16>, vector<32x32xf32> -> vector<32x32xf32>
    %c0_3 = arith.constant 0 : index
    %c0_4 = arith.constant 0 : index
    %4 = vector.load %arg3[%c0_3, %c0_4] : memref<1x32xf32, #tpu.memory_space<vmem>>, vector<1x32xf32>
    %5 = vector.broadcast %4 : vector<1x32xf32> to vector<32x32xf32>
    %6 = arith.addf %3, %5 : vector<32x32xf32>
    %cst_5 = arith.constant 0.000000e+00 : f32
    %7 = vector.broadcast %cst_5 : f32 to vector<32x32xf32>
    %8 = arith.maximumf %6, %7 : vector<32x32xf32>
    %9 = arith.truncf %8 : vector<32x32xf32> to vector<32x32xbf16>
    %c0_6 = arith.constant 0 : index
    %c0_7 = arith.constant 0 : index
    %10 = vector.load %arg4[%c0_6, %c0_7] : memref<32x32xbf16, #tpu.memory_space<vmem>>, vector<32x32xbf16>
    %cst_8 = arith.constant dense<0.000000e+00> : vector<32x32xf32>
    %11 = tpu.matmul %9, %10, %cst_8 {dimension_numbers = #tpu.dot_dimension_numbers<[1], [0], [0], [1], [0, 0, 1, 1], [], []>} : vector<32x32xbf16>, vector<32x32xbf16>, vector<32x32xf32> -> vector<32x32xf32>
    %c0_9 = arith.constant 0 : index
    %c0_10 = arith.constant 0 : index
    %12 = vector.load %arg5[%c0_9, %c0_10] : memref<1x32xf32, #tpu.memory_space<vmem>>, vector<1x32xf32>
    %13 = vector.broadcast %12 : vector<1x32xf32> to vector<32x32xf32>
    %14 = arith.addf %11, %13 : vector<32x32xf32>
    %cst_11 = arith.constant 0.000000e+00 : f32
    %15 = vector.broadcast %cst_11 : f32 to vector<32x32xf32>
    %16 = arith.maximumf %14, %15 : vector<32x32xf32>
    %17 = arith.truncf %16 : vector<32x32xf32> to vector<32x32xbf16>
    %18 = tpu.concatenate %1, %17 in 1 : vector<32x32xbf16>, vector<32x32xbf16> -> vector<32x64xbf16>
    %c0_12 = arith.constant 0 : index
    %c0_13 = arith.constant 0 : index
    %19 = vector.load %arg6[%c0_12, %c0_13] : memref<64x128xbf16, #tpu.memory_space<vmem>>, vector<64x128xbf16>
    %cst_14 = arith.constant dense<0.000000e+00> : vector<32x128xf32>
    %20 = tpu.matmul %18, %19, %cst_14 {dimension_numbers = #tpu.dot_dimension_numbers<[1], [0], [0], [1], [0, 0, 1, 1], [], []>} : vector<32x64xbf16>, vector<64x128xbf16>, vector<32x128xf32> -> vector<32x128xf32>
    %c0_15 = arith.constant 0 : index
    %c0_16 = arith.constant 0 : index
    %21 = vector.load %arg7[%c0_15, %c0_16] : memref<1x128xf32, #tpu.memory_space<vmem>>, vector<1x128xf32>
    %22 = vector.broadcast %21 : vector<1x128xf32> to vector<32x128xf32>
    %23 = arith.addf %20, %22 : vector<32x128xf32>
    %24 = tpu.iota {dimensions = array<i32: 1>} : vector<32x128xi32>
    %c64_i32 = arith.constant 64 : i32
    %25 = vector.broadcast %c64_i32 : i32 to vector<32x128xi32>
    %26 = arith.cmpi sge, %24, %25 : vector<32x128xi32>
    %c68_i32 = arith.constant 68 : i32
    %27 = vector.broadcast %c68_i32 : i32 to vector<32x128xi32>
    %28 = arith.cmpi slt, %24, %27 : vector<32x128xi32>
    %29 = arith.andi %26, %28 : vector<32x128xi1>
    %30 = arith.negf %23 : vector<32x128xf32>
    %31 = math.exp %30 : vector<32x128xf32>
    %cst_17 = arith.constant 1.000000e+00 : f32
    %32 = vector.broadcast %cst_17 : f32 to vector<32x128xf32>
    %33 = arith.addf %32, %31 : vector<32x128xf32>
    %34 = arith.divf %32, %33 : vector<32x128xf32>
    %35 = arith.select %29, %34, %23 : vector<32x128xi1>, vector<32x128xf32>
    %c0_18 = arith.constant 0 : index
    %c0_19 = arith.constant 0 : index
    %36 = vector.load %arg8[%c0_18, %c0_19] : memref<32x128xf32, #tpu.memory_space<vmem>>, vector<32x128xf32>
    tpu.vector_store %arg8[%c0_18, %c0_19], %35 {strides = array<i32>} : memref<32x128xf32, #tpu.memory_space<vmem>>, vector<32x128xf32>,
    return
  }
  func.func @transform_0(%arg0: i32) -> (i32, i32) {
    %c0_i32 = arith.constant 0 : i32
    %c0_i32_0 = arith.constant 0 : i32
    return %arg0, %c0_i32 : i32, i32
  }
  func.func @transform_1(%arg0: i32) -> (i32, i32) {
    %c0_i32 = arith.constant 0 : i32
    %c0_i32_0 = arith.constant 0 : i32
    %c0_i32_1 = arith.constant 0 : i32
    return %c0_i32, %c0_i32_0 : i32, i32
  }
  func.func @transform_2(%arg0: i32) -> (i32, i32) {
    %c0_i32 = arith.constant 0 : i32
    %c0_i32_0 = arith.constant 0 : i32
    %c0_i32_1 = arith.constant 0 : i32
    return %c0_i32, %c0_i32_0 : i32, i32
  }
  func.func @transform_3(%arg0: i32) -> (i32, i32) {
    %c0_i32 = arith.constant 0 : i32
    %c0_i32_0 = arith.constant 0 : i32
    %c0_i32_1 = arith.constant 0 : i32
    return %c0_i32, %c0_i32_0 : i32, i32
  }
  func.func @transform_4(%arg0: i32) -> (i32, i32) {
    %c0_i32 = arith.constant 0 : i32
    %c0_i32_0 = arith.constant 0 : i32
    %c0_i32_1 = arith.constant 0 : i32
    return %c0_i32, %c0_i32_0 : i32, i32
  }
  func.func @transform_5(%arg0: i32) -> (i32, i32) {
    %c0_i32 = arith.constant 0 : i32
    %c0_i32_0 = arith.constant 0 : i32
    %c0_i32_1 = arith.constant 0 : i32
    return %c0_i32, %c0_i32_0 : i32, i32
  }
  func.func @transform_6(%arg0: i32) -> (i32, i32) {
    %c0_i32 = arith.constant 0 : i32
    %c0_i32_0 = arith.constant 0 : i32
    %c0_i32_1 = arith.constant 0 : i32
    return %c0_i32, %c0_i32_0 : i32, i32
  }
  func.func @transform_7(%arg0: i32) -> (i32, i32) {
    %c0_i32 = arith.constant 0 : i32
    %c0_i32_0 = arith.constant 0 : i32
    return %arg0, %c0_i32 : i32, i32
  }
}

module attributes {stable_mosaic.version = 11 : i64} {
  func.func @_decoder_layer_kernel(%arg0: i32, %arg1: memref<1x8x32xf32, #tpu.memory_space<vmem>>, %arg2: memref<1x16x32xf32, #tpu.memory_space<vmem>>, %arg3: memref<8x96xf32, #tpu.memory_space<vmem>>, %arg4: memref<32x96xbf16, #tpu.memory_space<vmem>>, %arg5: memref<32x32xbf16, #tpu.memory_space<vmem>>, %arg6: memref<1x32xf32, #tpu.memory_space<vmem>>, %arg7: memref<1x32xf32, #tpu.memory_space<vmem>>, %arg8: memref<1x32xf32, #tpu.memory_space<vmem>>, %arg9: memref<8x32xf32, #tpu.memory_space<vmem>>, %arg10: memref<32x32xbf16, #tpu.memory_space<vmem>>, %arg11: memref<16x64xf32, #tpu.memory_space<vmem>>, %arg12: memref<32x64xbf16, #tpu.memory_space<vmem>>, %arg13: memref<32x32xbf16, #tpu.memory_space<vmem>>, %arg14: memref<1x32xf32, #tpu.memory_space<vmem>>, %arg15: memref<1x32xf32, #tpu.memory_space<vmem>>, %arg16: memref<1x32xf32, #tpu.memory_space<vmem>>, %arg17: memref<32x128xbf16, #tpu.memory_space<vmem>>, %arg18: memref<1x128xf32, #tpu.memory_space<vmem>>, %arg19: memref<128x32xbf16, #tpu.memory_space<vmem>>, %arg20: memref<1x32xf32, #tpu.memory_space<vmem>>, %arg21: memref<1x32xf32, #tpu.memory_space<vmem>>, %arg22: memref<1x32xf32, #tpu.memory_space<vmem>>, %arg23: memref<1x32xf32, #tpu.memory_space<vmem>>, %arg24: memref<1x32xf32, #tpu.memory_space<vmem>>, %arg25: memref<1x8x32xf32, #tpu.memory_space<vmem>>, %arg26: memref<1x8x32xf32, #tpu.memory_space<vmem>>) attributes {dimension_semantics = [#tpu.dimension_semantics<parallel>], iteration_bounds = array<i64: 2>, scalar_prefetch = 0 : i64, scratch_operands = 0 : i64, tpu.core_type = #tpu.core_type<tc>, window_params = [{transform_indices = @transform_0, window_bounds = array<i64: 1, 8, 32>}, {transform_indices = @transform_1, window_bounds = array<i64: 1, 16, 32>}, {pipeline_mode = #tpu.pipeline_mode<synchronous>, transform_indices = @transform_2, window_bounds = array<i64: 8, 96>}, {pipeline_mode = #tpu.pipeline_mode<synchronous>, transform_indices = @transform_3, window_bounds = array<i64: 32, 96>}, {pipeline_mode = #tpu.pipeline_mode<synchronous>, transform_indices = @transform_4, window_bounds = array<i64: 32, 32>}, {pipeline_mode = #tpu.pipeline_mode<synchronous>, transform_indices = @transform_5, window_bounds = array<i64: 1, 32>}, {pipeline_mode = #tpu.pipeline_mode<synchronous>, transform_indices = @transform_6, window_bounds = array<i64: 1, 32>}, {pipeline_mode = #tpu.pipeline_mode<synchronous>, transform_indices = @transform_7, window_bounds = array<i64: 1, 32>}, {pipeline_mode = #tpu.pipeline_mode<synchronous>, transform_indices = @transform_8, window_bounds = array<i64: 8, 32>}, {pipeline_mode = #tpu.pipeline_mode<synchronous>, transform_indices = @transform_9, window_bounds = array<i64: 32, 32>}, {pipeline_mode = #tpu.pipeline_mode<synchronous>, transform_indices = @transform_10, window_bounds = array<i64: 16, 64>}, {pipeline_mode = #tpu.pipeline_mode<synchronous>, transform_indices = @transform_11, window_bounds = array<i64: 32, 64>}, {pipeline_mode = #tpu.pipeline_mode<synchronous>, transform_indices = @transform_12, window_bounds = array<i64: 32, 32>}, {pipeline_mode = #tpu.pipeline_mode<synchronous>, transform_indices = @transform_13, window_bounds = array<i64: 1, 32>}, {pipeline_mode = #tpu.pipeline_mode<synchronous>, transform_indices = @transform_14, window_bounds = array<i64: 1, 32>}, {pipeline_mode = #tpu.pipeline_mode<synchronous>, transform_indices = @transform_15, window_bounds = array<i64: 1, 32>}, {pipeline_mode = #tpu.pipeline_mode<synchronous>, transform_indices = @transform_16, window_bounds = array<i64: 32, 128>}, {pipeline_mode = #tpu.pipeline_mode<synchronous>, transform_indices = @transform_17, window_bounds = array<i64: 1, 128>}, {pipeline_mode = #tpu.pipeline_mode<synchronous>, transform_indices = @transform_18, window_bounds = array<i64: 128, 32>}, {pipeline_mode = #tpu.pipeline_mode<synchronous>, transform_indices = @transform_19, window_bounds = array<i64: 1, 32>}, {pipeline_mode = #tpu.pipeline_mode<synchronous>, transform_indices = @transform_20, window_bounds = array<i64: 1, 32>}, {pipeline_mode = #tpu.pipeline_mode<synchronous>, transform_indices = @transform_21, window_bounds = array<i64: 1, 32>}, {pipeline_mode = #tpu.pipeline_mode<synchronous>, transform_indices = @transform_22, window_bounds = array<i64: 1, 32>}, {pipeline_mode = #tpu.pipeline_mode<synchronous>, transform_indices = @transform_23, window_bounds = array<i64: 1, 32>}, {transform_indices = @transform_24, window_bounds = array<i64: 1, 8, 32>}, {transform_indices = @transform_25, window_bounds = array<i64: 1, 8, 32>}]} {
    %c0 = arith.constant 0 : index
    %c0_0 = arith.constant 0 : index
    %c0_1 = arith.constant 0 : index
    %0 = vector.load %arg1[%c0, %c0_0, %c0_1] : memref<1x8x32xf32, #tpu.memory_space<vmem>>, vector<1x8x32xf32>
    %1 = vector.shape_cast %0 : vector<1x8x32xf32> to vector<8x32xf32>
    %c0_2 = arith.constant 0 : index
    %c0_3 = arith.constant 0 : index
    %c0_4 = arith.constant 0 : index
    %2 = vector.load %arg2[%c0_2, %c0_3, %c0_4] : memref<1x16x32xf32, #tpu.memory_space<vmem>>, vector<1x16x32xf32>
    %3 = vector.shape_cast %2 : vector<1x16x32xf32> to vector<16x32xf32>
    %4 = arith.truncf %1 : vector<8x32xf32> to vector<8x32xbf16>
    %c0_5 = arith.constant 0 : index
    %c0_6 = arith.constant 0 : index
    %5 = vector.load %arg4[%c0_5, %c0_6] : memref<32x96xbf16, #tpu.memory_space<vmem>>, vector<32x96xbf16>
    %cst = arith.constant dense<0.000000e+00> : vector<8x96xf32>
    %6 = tpu.matmul %4, %5, %cst {dimension_numbers = #tpu.dot_dimension_numbers<[1], [0], [0], [1], [0, 0, 1, 1], [], []>} : vector<8x32xbf16>, vector<32x96xbf16>, vector<8x96xf32> -> vector<8x96xf32>
    %c0_7 = arith.constant 0 : index
    %c0_8 = arith.constant 0 : index
    %7 = vector.load %arg3[%c0_7, %c0_8] : memref<8x96xf32, #tpu.memory_space<vmem>>, vector<8x96xf32>
    %8 = arith.addf %6, %7 : vector<8x96xf32>
    %9 = vector.extract_strided_slice %8 {offsets = [0, 0], sizes = [8, 32], strides = [1, 1]} : vector<8x96xf32> to vector<8x32xf32>
    %10 = vector.extract_strided_slice %8 {offsets = [0, 32], sizes = [8, 32], strides = [1, 1]} : vector<8x96xf32> to vector<8x32xf32>
    %11 = vector.extract_strided_slice %8 {offsets = [0, 64], sizes = [8, 32], strides = [1, 1]} : vector<8x96xf32> to vector<8x32xf32>
    %c0_9 = arith.constant 0 : index
    %c0_10 = arith.constant 0 : index
    %12 = vector.load %arg6[%c0_9, %c0_10] : memref<1x32xf32, #tpu.memory_space<vmem>>, vector<1x32xf32>
    %cst_11 = arith.constant 0.353553385 : f32
    %13 = vector.broadcast %cst_11 : f32 to vector<8x32xf32>
    %14 = arith.mulf %9, %13 : vector<8x32xf32>
    %15 = arith.truncf %14 : vector<8x32xf32> to vector<8x32xbf16>
    %16 = arith.truncf %10 : vector<8x32xf32> to vector<8x32xbf16>
    %17 = arith.truncf %11 : vector<8x32xf32> to vector<8x32xbf16>
    %18 = vector.extract_strided_slice %15 {offsets = [0, 0], sizes = [8, 8], strides = [1, 1]} : vector<8x32xbf16> to vector<8x8xbf16>
    %19 = vector.extract_strided_slice %16 {offsets = [0, 0], sizes = [8, 8], strides = [1, 1]} : vector<8x32xbf16> to vector<8x8xbf16>
    %cst_12 = arith.constant dense<0.000000e+00> : vector<8x8xf32>
    %20 = tpu.matmul %18, %19, %cst_12 {dimension_numbers = #tpu.dot_dimension_numbers<[1], [1], [0], [0], [0, 0, 1, 0], [], []>} : vector<8x8xbf16>, vector<8x8xbf16>, vector<8x8xf32> -> vector<8x8xf32>
    %cst_13 = arith.constant dense<0xFF800000> : vector<8xf32>
    %21 = vector.multi_reduction <maximumf>, %20, %cst_13 [1] : vector<8x8xf32> to vector<8xf32>
    %22 = vector.shape_cast %21 : vector<8xf32> to vector<8x1xf32>
    %23 = vector.broadcast %22 : vector<8x1xf32> to vector<8x8xf32>
    %24 = arith.subf %20, %23 : vector<8x8xf32>
    %25 = math.exp %24 : vector<8x8xf32>
    %cst_14 = arith.constant dense<0.000000e+00> : vector<8xf32>
    %26 = vector.multi_reduction <add>, %25, %cst_14 [1] : vector<8x8xf32> to vector<8xf32>
    %27 = vector.shape_cast %26 : vector<8xf32> to vector<8x1xf32>
    %28 = tpu.reciprocal %27 {approx = true} : vector<8x1xf32> -> vector<8x1xf32>
    %29 = vector.broadcast %28 : vector<8x1xf32> to vector<8x8xf32>
    %30 = arith.mulf %25, %29 : vector<8x8xf32>
    %31 = arith.truncf %30 : vector<8x8xf32> to vector<8x8xbf16>
    %32 = vector.extract_strided_slice %17 {offsets = [0, 0], sizes = [8, 8], strides = [1, 1]} : vector<8x32xbf16> to vector<8x8xbf16>
    %cst_15 = arith.constant dense<0.000000e+00> : vector<8x8xf32>
    %33 = tpu.matmul %31, %32, %cst_15 {dimension_numbers = #tpu.dot_dimension_numbers<[1], [0], [0], [1], [0, 0, 1, 1], [], []>} : vector<8x8xbf16>, vector<8x8xbf16>, vector<8x8xf32> -> vector<8x8xf32>
    %34 = vector.extract_strided_slice %15 {offsets = [0, 8], sizes = [8, 8], strides = [1, 1]} : vector<8x32xbf16> to vector<8x8xbf16>
    %35 = vector.extract_strided_slice %16 {offsets = [0, 8], sizes = [8, 8], strides = [1, 1]} : vector<8x32xbf16> to vector<8x8xbf16>
    %cst_16 = arith.constant dense<0.000000e+00> : vector<8x8xf32>
    %36 = tpu.matmul %34, %35, %cst_16 {dimension_numbers = #tpu.dot_dimension_numbers<[1], [1], [0], [0], [0, 0, 1, 0], [], []>} : vector<8x8xbf16>, vector<8x8xbf16>, vector<8x8xf32> -> vector<8x8xf32>
    %cst_17 = arith.constant dense<0xFF800000> : vector<8xf32>
    %37 = vector.multi_reduction <maximumf>, %36, %cst_17 [1] : vector<8x8xf32> to vector<8xf32>
    %38 = vector.shape_cast %37 : vector<8xf32> to vector<8x1xf32>
    %39 = vector.broadcast %38 : vector<8x1xf32> to vector<8x8xf32>
    %40 = arith.subf %36, %39 : vector<8x8xf32>
    %41 = math.exp %40 : vector<8x8xf32>
    %cst_18 = arith.constant dense<0.000000e+00> : vector<8xf32>
    %42 = vector.multi_reduction <add>, %41, %cst_18 [1] : vector<8x8xf32> to vector<8xf32>
    %43 = vector.shape_cast %42 : vector<8xf32> to vector<8x1xf32>
    %44 = tpu.reciprocal %43 {approx = true} : vector<8x1xf32> -> vector<8x1xf32>
    %45 = vector.broadcast %44 : vector<8x1xf32> to vector<8x8xf32>
    %46 = arith.mulf %41, %45 : vector<8x8xf32>
    %47 = arith.truncf %46 : vector<8x8xf32> to vector<8x8xbf16>
    %48 = vector.extract_strided_slice %17 {offsets = [0, 8], sizes = [8, 8], strides = [1, 1]} : vector<8x32xbf16> to vector<8x8xbf16>
    %cst_19 = arith.constant dense<0.000000e+00> : vector<8x8xf32>
    %49 = tpu.matmul %47, %48, %cst_19 {dimension_numbers = #tpu.dot_dimension_numbers<[1], [0], [0], [1], [0, 0, 1, 1], [], []>} : vector<8x8xbf16>, vector<8x8xbf16>, vector<8x8xf32> -> vector<8x8xf32>
    %50 = vector.extract_strided_slice %15 {offsets = [0, 16], sizes = [8, 8], strides = [1, 1]} : vector<8x32xbf16> to vector<8x8xbf16>
    %51 = vector.extract_strided_slice %16 {offsets = [0, 16], sizes = [8, 8], strides = [1, 1]} : vector<8x32xbf16> to vector<8x8xbf16>
    %cst_20 = arith.constant dense<0.000000e+00> : vector<8x8xf32>
    %52 = tpu.matmul %50, %51, %cst_20 {dimension_numbers = #tpu.dot_dimension_numbers<[1], [1], [0], [0], [0, 0, 1, 0], [], []>} : vector<8x8xbf16>, vector<8x8xbf16>, vector<8x8xf32> -> vector<8x8xf32>
    %cst_21 = arith.constant dense<0xFF800000> : vector<8xf32>
    %53 = vector.multi_reduction <maximumf>, %52, %cst_21 [1] : vector<8x8xf32> to vector<8xf32>
    %54 = vector.shape_cast %53 : vector<8xf32> to vector<8x1xf32>
    %55 = vector.broadcast %54 : vector<8x1xf32> to vector<8x8xf32>
    %56 = arith.subf %52, %55 : vector<8x8xf32>
    %57 = math.exp %56 : vector<8x8xf32>
    %cst_22 = arith.constant dense<0.000000e+00> : vector<8xf32>
    %58 = vector.multi_reduction <add>, %57, %cst_22 [1] : vector<8x8xf32> to vector<8xf32>
    %59 = vector.shape_cast %58 : vector<8xf32> to vector<8x1xf32>
    %60 = tpu.reciprocal %59 {approx = true} : vector<8x1xf32> -> vector<8x1xf32>
    %61 = vector.broadcast %60 : vector<8x1xf32> to vector<8x8xf32>
    %62 = arith.mulf %57, %61 : vector<8x8xf32>
    %63 = arith.truncf %62 : vector<8x8xf32> to vector<8x8xbf16>
    %64 = vector.extract_strided_slice %17 {offsets = [0, 16], sizes = [8, 8], strides = [1, 1]} : vector<8x32xbf16> to vector<8x8xbf16>
    %cst_23 = arith.constant dense<0.000000e+00> : vector<8x8xf32>
    %65 = tpu.matmul %63, %64, %cst_23 {dimension_numbers = #tpu.dot_dimension_numbers<[1], [0], [0], [1], [0, 0, 1, 1], [], []>} : vector<8x8xbf16>, vector<8x8xbf16>, vector<8x8xf32> -> vector<8x8xf32>
    %66 = vector.extract_strided_slice %15 {offsets = [0, 24], sizes = [8, 8], strides = [1, 1]} : vector<8x32xbf16> to vector<8x8xbf16>
    %67 = vector.extract_strided_slice %16 {offsets = [0, 24], sizes = [8, 8], strides = [1, 1]} : vector<8x32xbf16> to vector<8x8xbf16>
    %cst_24 = arith.constant dense<0.000000e+00> : vector<8x8xf32>
    %68 = tpu.matmul %66, %67, %cst_24 {dimension_numbers = #tpu.dot_dimension_numbers<[1], [1], [0], [0], [0, 0, 1, 0], [], []>} : vector<8x8xbf16>, vector<8x8xbf16>, vector<8x8xf32> -> vector<8x8xf32>
    %cst_25 = arith.constant dense<0xFF800000> : vector<8xf32>
    %69 = vector.multi_reduction <maximumf>, %68, %cst_25 [1] : vector<8x8xf32> to vector<8xf32>
    %70 = vector.shape_cast %69 : vector<8xf32> to vector<8x1xf32>
    %71 = vector.broadcast %70 : vector<8x1xf32> to vector<8x8xf32>
    %72 = arith.subf %68, %71 : vector<8x8xf32>
    %73 = math.exp %72 : vector<8x8xf32>
    %cst_26 = arith.constant dense<0.000000e+00> : vector<8xf32>
    %74 = vector.multi_reduction <add>, %73, %cst_26 [1] : vector<8x8xf32> to vector<8xf32>
    %75 = vector.shape_cast %74 : vector<8xf32> to vector<8x1xf32>
    %76 = tpu.reciprocal %75 {approx = true} : vector<8x1xf32> -> vector<8x1xf32>
    %77 = vector.broadcast %76 : vector<8x1xf32> to vector<8x8xf32>
    %78 = arith.mulf %73, %77 : vector<8x8xf32>
    %79 = arith.truncf %78 : vector<8x8xf32> to vector<8x8xbf16>
    %80 = vector.extract_strided_slice %17 {offsets = [0, 24], sizes = [8, 8], strides = [1, 1]} : vector<8x32xbf16> to vector<8x8xbf16>
    %cst_27 = arith.constant dense<0.000000e+00> : vector<8x8xf32>
    %81 = tpu.matmul %79, %80, %cst_27 {dimension_numbers = #tpu.dot_dimension_numbers<[1], [0], [0], [1], [0, 0, 1, 1], [], []>} : vector<8x8xbf16>, vector<8x8xbf16>, vector<8x8xf32> -> vector<8x8xf32>
    %82 = tpu.concatenate %33, %49, %65, %81 in 1 : vector<8x8xf32>, vector<8x8xf32>, vector<8x8xf32>, vector<8x8xf32> -> vector<8x32xf32>
    %83 = arith.truncf %82 : vector<8x32xf32> to vector<8x32xbf16>
    %c0_28 = arith.constant 0 : index
    %c0_29 = arith.constant 0 : index
    %84 = vector.load %arg5[%c0_28, %c0_29] : memref<32x32xbf16, #tpu.memory_space<vmem>>, vector<32x32xbf16>
    %cst_30 = arith.constant dense<0.000000e+00> : vector<8x32xf32>
    %85 = tpu.matmul %83, %84, %cst_30 {dimension_numbers = #tpu.dot_dimension_numbers<[1], [0], [0], [1], [0, 0, 1, 1], [], []>} : vector<8x32xbf16>, vector<32x32xbf16>, vector<8x32xf32> -> vector<8x32xf32>
    %86 = vector.broadcast %12 : vector<1x32xf32> to vector<8x32xf32>
    %87 = arith.addf %85, %86 : vector<8x32xf32>
    %88 = arith.addf %1, %87 : vector<8x32xf32>
    %c0_31 = arith.constant 0 : index
    %c0_32 = arith.constant 0 : index
    %89 = vector.load %arg7[%c0_31, %c0_32] : memref<1x32xf32, #tpu.memory_space<vmem>>, vector<1x32xf32>
    %c0_33 = arith.constant 0 : index
    %c0_34 = arith.constant 0 : index
    %90 = vector.load %arg8[%c0_33, %c0_34] : memref<1x32xf32, #tpu.memory_space<vmem>>, vector<1x32xf32>
    %cst_35 = arith.constant dense<0.000000e+00> : vector<8xf32>
    %91 = vector.multi_reduction <add>, %88, %cst_35 [1] : vector<8x32xf32> to vector<8xf32>
    %92 = vector.shape_cast %91 : vector<8xf32> to vector<8x1xf32>
    %cst_36 = arith.constant 3.200000e+01 : f32
    %93 = vector.broadcast %cst_36 : f32 to vector<8x1xf32>
    %94 = arith.divf %92, %93 : vector<8x1xf32>
    %95 = vector.broadcast %94 : vector<8x1xf32> to vector<8x32xf32>
    %96 = arith.subf %88, %95 : vector<8x32xf32>
    %97 = arith.mulf %96, %96 : vector<8x32xf32>
    %cst_37 = arith.constant dense<0.000000e+00> : vector<8xf32>
    %98 = vector.multi_reduction <add>, %97, %cst_37 [1] : vector<8x32xf32> to vector<8xf32>
    %99 = vector.shape_cast %98 : vector<8xf32> to vector<8x1xf32>
    %cst_38 = arith.constant 3.200000e+01 : f32
    %100 = vector.broadcast %cst_38 : f32 to vector<8x1xf32>
    %101 = arith.divf %99, %100 : vector<8x1xf32>
    %102 = vector.broadcast %94 : vector<8x1xf32> to vector<8x32xf32>
    %103 = arith.subf %88, %102 : vector<8x32xf32>
    %cst_39 = arith.constant 9.99999974E-6 : f32
    %104 = vector.broadcast %cst_39 : f32 to vector<8x1xf32>
    %105 = arith.addf %101, %104 : vector<8x1xf32>
    %106 = math.rsqrt %105 : vector<8x1xf32>
    %107 = vector.broadcast %106 : vector<8x1xf32> to vector<8x32xf32>
    %108 = arith.mulf %103, %107 : vector<8x32xf32>
    %109 = vector.broadcast %89 : vector<1x32xf32> to vector<8x32xf32>
    %110 = arith.mulf %108, %109 : vector<8x32xf32>
    %111 = vector.broadcast %90 : vector<1x32xf32> to vector<8x32xf32>
    %112 = arith.addf %110, %111 : vector<8x32xf32>
    %113 = arith.truncf %112 : vector<8x32xf32> to vector<8x32xbf16>
    %c0_40 = arith.constant 0 : index
    %c0_41 = arith.constant 0 : index
    %114 = vector.load %arg10[%c0_40, %c0_41] : memref<32x32xbf16, #tpu.memory_space<vmem>>, vector<32x32xbf16>
    %cst_42 = arith.constant dense<0.000000e+00> : vector<8x32xf32>
    %115 = tpu.matmul %113, %114, %cst_42 {dimension_numbers = #tpu.dot_dimension_numbers<[1], [0], [0], [1], [0, 0, 1, 1], [], []>} : vector<8x32xbf16>, vector<32x32xbf16>, vector<8x32xf32> -> vector<8x32xf32>
    %c0_43 = arith.constant 0 : index
    %c0_44 = arith.constant 0 : index
    %116 = vector.load %arg9[%c0_43, %c0_44] : memref<8x32xf32, #tpu.memory_space<vmem>>, vector<8x32xf32>
    %117 = arith.addf %115, %116 : vector<8x32xf32>
    %118 = arith.truncf %3 : vector<16x32xf32> to vector<16x32xbf16>
    %c0_45 = arith.constant 0 : index
    %c0_46 = arith.constant 0 : index
    %119 = vector.load %arg12[%c0_45, %c0_46] : memref<32x64xbf16, #tpu.memory_space<vmem>>, vector<32x64xbf16>
    %cst_47 = arith.constant dense<0.000000e+00> : vector<16x64xf32>
    %120 = tpu.matmul %118, %119, %cst_47 {dimension_numbers = #tpu.dot_dimension_numbers<[1], [0], [0], [1], [0, 0, 1, 1], [], []>} : vector<16x32xbf16>, vector<32x64xbf16>, vector<16x64xf32> -> vector<16x64xf32>
    %c0_48 = arith.constant 0 : index
    %c0_49 = arith.constant 0 : index
    %121 = vector.load %arg11[%c0_48, %c0_49] : memref<16x64xf32, #tpu.memory_space<vmem>>, vector<16x64xf32>
    %122 = arith.addf %120, %121 : vector<16x64xf32>
    %123 = vector.extract_strided_slice %122 {offsets = [0, 0], sizes = [16, 32], strides = [1, 1]} : vector<16x64xf32> to vector<16x32xf32>
    %124 = vector.extract_strided_slice %122 {offsets = [0, 32], sizes = [16, 32], strides = [1, 1]} : vector<16x64xf32> to vector<16x32xf32>
    %c0_50 = arith.constant 0 : index
    %c0_51 = arith.constant 0 : index
    %125 = vector.load %arg14[%c0_50, %c0_51] : memref<1x32xf32, #tpu.memory_space<vmem>>, vector<1x32xf32>
    %cst_52 = arith.constant 0.353553385 : f32
    %126 = vector.broadcast %cst_52 : f32 to vector<8x32xf32>
    %127 = arith.mulf %117, %126 : vector<8x32xf32>
    %128 = arith.truncf %127 : vector<8x32xf32> to vector<8x32xbf16>
    %129 = arith.truncf %123 : vector<16x32xf32> to vector<16x32xbf16>
    %130 = arith.truncf %124 : vector<16x32xf32> to vector<16x32xbf16>
    %131 = vector.extract_strided_slice %128 {offsets = [0, 0], sizes = [8, 8], strides = [1, 1]} : vector<8x32xbf16> to vector<8x8xbf16>
    %132 = vector.extract_strided_slice %129 {offsets = [0, 0], sizes = [16, 8], strides = [1, 1]} : vector<16x32xbf16> to vector<16x8xbf16>
    %cst_53 = arith.constant dense<0.000000e+00> : vector<8x16xf32>
    %133 = tpu.matmul %131, %132, %cst_53 {dimension_numbers = #tpu.dot_dimension_numbers<[1], [1], [0], [0], [0, 0, 1, 0], [], []>} : vector<8x8xbf16>, vector<16x8xbf16>, vector<8x16xf32> -> vector<8x16xf32>
    %cst_54 = arith.constant dense<0xFF800000> : vector<8xf32>
    %134 = vector.multi_reduction <maximumf>, %133, %cst_54 [1] : vector<8x16xf32> to vector<8xf32>
    %135 = vector.shape_cast %134 : vector<8xf32> to vector<8x1xf32>
    %136 = vector.broadcast %135 : vector<8x1xf32> to vector<8x16xf32>
    %137 = arith.subf %133, %136 : vector<8x16xf32>
    %138 = math.exp %137 : vector<8x16xf32>
    %cst_55 = arith.constant dense<0.000000e+00> : vector<8xf32>
    %139 = vector.multi_reduction <add>, %138, %cst_55 [1] : vector<8x16xf32> to vector<8xf32>
    %140 = vector.shape_cast %139 : vector<8xf32> to vector<8x1xf32>
    %141 = tpu.reciprocal %140 {approx = true} : vector<8x1xf32> -> vector<8x1xf32>
    %142 = vector.broadcast %141 : vector<8x1xf32> to vector<8x16xf32>
    %143 = arith.mulf %138, %142 : vector<8x16xf32>
    %144 = arith.truncf %143 : vector<8x16xf32> to vector<8x16xbf16>
    %145 = vector.extract_strided_slice %130 {offsets = [0, 0], sizes = [16, 8], strides = [1, 1]} : vector<16x32xbf16> to vector<16x8xbf16>
    %cst_56 = arith.constant dense<0.000000e+00> : vector<8x8xf32>
    %146 = tpu.matmul %144, %145, %cst_56 {dimension_numbers = #tpu.dot_dimension_numbers<[1], [0], [0], [1], [0, 0, 1, 1], [], []>} : vector<8x16xbf16>, vector<16x8xbf16>, vector<8x8xf32> -> vector<8x8xf32>
    %147 = vector.extract_strided_slice %128 {offsets = [0, 8], sizes = [8, 8], strides = [1, 1]} : vector<8x32xbf16> to vector<8x8xbf16>
    %148 = vector.extract_strided_slice %129 {offsets = [0, 8], sizes = [16, 8], strides = [1, 1]} : vector<16x32xbf16> to vector<16x8xbf16>
    %cst_57 = arith.constant dense<0.000000e+00> : vector<8x16xf32>
    %149 = tpu.matmul %147, %148, %cst_57 {dimension_numbers = #tpu.dot_dimension_numbers<[1], [1], [0], [0], [0, 0, 1, 0], [], []>} : vector<8x8xbf16>, vector<16x8xbf16>, vector<8x16xf32> -> vector<8x16xf32>
    %cst_58 = arith.constant dense<0xFF800000> : vector<8xf32>
    %150 = vector.multi_reduction <maximumf>, %149, %cst_58 [1] : vector<8x16xf32> to vector<8xf32>
    %151 = vector.shape_cast %150 : vector<8xf32> to vector<8x1xf32>
    %152 = vector.broadcast %151 : vector<8x1xf32> to vector<8x16xf32>
    %153 = arith.subf %149, %152 : vector<8x16xf32>
    %154 = math.exp %153 : vector<8x16xf32>
    %cst_59 = arith.constant dense<0.000000e+00> : vector<8xf32>
    %155 = vector.multi_reduction <add>, %154, %cst_59 [1] : vector<8x16xf32> to vector<8xf32>
    %156 = vector.shape_cast %155 : vector<8xf32> to vector<8x1xf32>
    %157 = tpu.reciprocal %156 {approx = true} : vector<8x1xf32> -> vector<8x1xf32>
    %158 = vector.broadcast %157 : vector<8x1xf32> to vector<8x16xf32>
    %159 = arith.mulf %154, %158 : vector<8x16xf32>
    %160 = arith.truncf %159 : vector<8x16xf32> to vector<8x16xbf16>
    %161 = vector.extract_strided_slice %130 {offsets = [0, 8], sizes = [16, 8], strides = [1, 1]} : vector<16x32xbf16> to vector<16x8xbf16>
    %cst_60 = arith.constant dense<0.000000e+00> : vector<8x8xf32>
    %162 = tpu.matmul %160, %161, %cst_60 {dimension_numbers = #tpu.dot_dimension_numbers<[1], [0], [0], [1], [0, 0, 1, 1], [], []>} : vector<8x16xbf16>, vector<16x8xbf16>, vector<8x8xf32> -> vector<8x8xf32>
    %163 = vector.extract_strided_slice %128 {offsets = [0, 16], sizes = [8, 8], strides = [1, 1]} : vector<8x32xbf16> to vector<8x8xbf16>
    %164 = vector.extract_strided_slice %129 {offsets = [0, 16], sizes = [16, 8], strides = [1, 1]} : vector<16x32xbf16> to vector<16x8xbf16>
    %cst_61 = arith.constant dense<0.000000e+00> : vector<8x16xf32>
    %165 = tpu.matmul %163, %164, %cst_61 {dimension_numbers = #tpu.dot_dimension_numbers<[1], [1], [0], [0], [0, 0, 1, 0], [], []>} : vector<8x8xbf16>, vector<16x8xbf16>, vector<8x16xf32> -> vector<8x16xf32>
    %cst_62 = arith.constant dense<0xFF800000> : vector<8xf32>
    %166 = vector.multi_reduction <maximumf>, %165, %cst_62 [1] : vector<8x16xf32> to vector<8xf32>
    %167 = vector.shape_cast %166 : vector<8xf32> to vector<8x1xf32>
    %168 = vector.broadcast %167 : vector<8x1xf32> to vector<8x16xf32>
    %169 = arith.subf %165, %168 : vector<8x16xf32>
    %170 = math.exp %169 : vector<8x16xf32>
    %cst_63 = arith.constant dense<0.000000e+00> : vector<8xf32>
    %171 = vector.multi_reduction <add>, %170, %cst_63 [1] : vector<8x16xf32> to vector<8xf32>
    %172 = vector.shape_cast %171 : vector<8xf32> to vector<8x1xf32>
    %173 = tpu.reciprocal %172 {approx = true} : vector<8x1xf32> -> vector<8x1xf32>
    %174 = vector.broadcast %173 : vector<8x1xf32> to vector<8x16xf32>
    %175 = arith.mulf %170, %174 : vector<8x16xf32>
    %176 = arith.truncf %175 : vector<8x16xf32> to vector<8x16xbf16>
    %177 = vector.extract_strided_slice %130 {offsets = [0, 16], sizes = [16, 8], strides = [1, 1]} : vector<16x32xbf16> to vector<16x8xbf16>
    %cst_64 = arith.constant dense<0.000000e+00> : vector<8x8xf32>
    %178 = tpu.matmul %176, %177, %cst_64 {dimension_numbers = #tpu.dot_dimension_numbers<[1], [0], [0], [1], [0, 0, 1, 1], [], []>} : vector<8x16xbf16>, vector<16x8xbf16>, vector<8x8xf32> -> vector<8x8xf32>
    %179 = vector.extract_strided_slice %128 {offsets = [0, 24], sizes = [8, 8], strides = [1, 1]} : vector<8x32xbf16> to vector<8x8xbf16>
    %180 = vector.extract_strided_slice %129 {offsets = [0, 24], sizes = [16, 8], strides = [1, 1]} : vector<16x32xbf16> to vector<16x8xbf16>
    %cst_65 = arith.constant dense<0.000000e+00> : vector<8x16xf32>
    %181 = tpu.matmul %179, %180, %cst_65 {dimension_numbers = #tpu.dot_dimension_numbers<[1], [1], [0], [0], [0, 0, 1, 0], [], []>} : vector<8x8xbf16>, vector<16x8xbf16>, vector<8x16xf32> -> vector<8x16xf32>
    %cst_66 = arith.constant dense<0xFF800000> : vector<8xf32>
    %182 = vector.multi_reduction <maximumf>, %181, %cst_66 [1] : vector<8x16xf32> to vector<8xf32>
    %183 = vector.shape_cast %182 : vector<8xf32> to vector<8x1xf32>
    %184 = vector.broadcast %183 : vector<8x1xf32> to vector<8x16xf32>
    %185 = arith.subf %181, %184 : vector<8x16xf32>
    %186 = math.exp %185 : vector<8x16xf32>
    %cst_67 = arith.constant dense<0.000000e+00> : vector<8xf32>
    %187 = vector.multi_reduction <add>, %186, %cst_67 [1] : vector<8x16xf32> to vector<8xf32>
    %188 = vector.shape_cast %187 : vector<8xf32> to vector<8x1xf32>
    %189 = tpu.reciprocal %188 {approx = true} : vector<8x1xf32> -> vector<8x1xf32>
    %190 = vector.broadcast %189 : vector<8x1xf32> to vector<8x16xf32>
    %191 = arith.mulf %186, %190 : vector<8x16xf32>
    %192 = arith.truncf %191 : vector<8x16xf32> to vector<8x16xbf16>
    %193 = vector.extract_strided_slice %130 {offsets = [0, 24], sizes = [16, 8], strides = [1, 1]} : vector<16x32xbf16> to vector<16x8xbf16>
    %cst_68 = arith.constant dense<0.000000e+00> : vector<8x8xf32>
    %194 = tpu.matmul %192, %193, %cst_68 {dimension_numbers = #tpu.dot_dimension_numbers<[1], [0], [0], [1], [0, 0, 1, 1], [], []>} : vector<8x16xbf16>, vector<16x8xbf16>, vector<8x8xf32> -> vector<8x8xf32>
    %195 = tpu.concatenate %146, %162, %178, %194 in 1 : vector<8x8xf32>, vector<8x8xf32>, vector<8x8xf32>, vector<8x8xf32> -> vector<8x32xf32>
    %196 = arith.truncf %195 : vector<8x32xf32> to vector<8x32xbf16>
    %c0_69 = arith.constant 0 : index
    %c0_70 = arith.constant 0 : index
    %197 = vector.load %arg13[%c0_69, %c0_70] : memref<32x32xbf16, #tpu.memory_space<vmem>>, vector<32x32xbf16>
    %cst_71 = arith.constant dense<0.000000e+00> : vector<8x32xf32>
    %198 = tpu.matmul %196, %197, %cst_71 {dimension_numbers = #tpu.dot_dimension_numbers<[1], [0], [0], [1], [0, 0, 1, 1], [], []>} : vector<8x32xbf16>, vector<32x32xbf16>, vector<8x32xf32> -> vector<8x32xf32>
    %199 = vector.broadcast %125 : vector<1x32xf32> to vector<8x32xf32>
    %200 = arith.addf %198, %199 : vector<8x32xf32>
    %201 = arith.addf %112, %200 : vector<8x32xf32>
    %c0_72 = arith.constant 0 : index
    %c0_73 = arith.constant 0 : index
    %202 = vector.load %arg15[%c0_72, %c0_73] : memref<1x32xf32, #tpu.memory_space<vmem>>, vector<1x32xf32>
    %c0_74 = arith.constant 0 : index
    %c0_75 = arith.constant 0 : index
    %203 = vector.load %arg16[%c0_74, %c0_75] : memref<1x32xf32, #tpu.memory_space<vmem>>, vector<1x32xf32>
    %cst_76 = arith.constant dense<0.000000e+00> : vector<8xf32>
    %204 = vector.multi_reduction <add>, %201, %cst_76 [1] : vector<8x32xf32> to vector<8xf32>
    %205 = vector.shape_cast %204 : vector<8xf32> to vector<8x1xf32>
    %cst_77 = arith.constant 3.200000e+01 : f32
    %206 = vector.broadcast %cst_77 : f32 to vector<8x1xf32>
    %207 = arith.divf %205, %206 : vector<8x1xf32>
    %208 = vector.broadcast %207 : vector<8x1xf32> to vector<8x32xf32>
    %209 = arith.subf %201, %208 : vector<8x32xf32>
    %210 = arith.mulf %209, %209 : vector<8x32xf32>
    %cst_78 = arith.constant dense<0.000000e+00> : vector<8xf32>
    %211 = vector.multi_reduction <add>, %210, %cst_78 [1] : vector<8x32xf32> to vector<8xf32>
    %212 = vector.shape_cast %211 : vector<8xf32> to vector<8x1xf32>
    %cst_79 = arith.constant 3.200000e+01 : f32
    %213 = vector.broadcast %cst_79 : f32 to vector<8x1xf32>
    %214 = arith.divf %212, %213 : vector<8x1xf32>
    %215 = vector.broadcast %207 : vector<8x1xf32> to vector<8x32xf32>
    %216 = arith.subf %201, %215 : vector<8x32xf32>
    %cst_80 = arith.constant 9.99999974E-6 : f32
    %217 = vector.broadcast %cst_80 : f32 to vector<8x1xf32>
    %218 = arith.addf %214, %217 : vector<8x1xf32>
    %219 = math.rsqrt %218 : vector<8x1xf32>
    %220 = vector.broadcast %219 : vector<8x1xf32> to vector<8x32xf32>
    %221 = arith.mulf %216, %220 : vector<8x32xf32>
    %222 = vector.broadcast %202 : vector<1x32xf32> to vector<8x32xf32>
    %223 = arith.mulf %221, %222 : vector<8x32xf32>
    %224 = vector.broadcast %203 : vector<1x32xf32> to vector<8x32xf32>
    %225 = arith.addf %223, %224 : vector<8x32xf32>
    %226 = arith.truncf %225 : vector<8x32xf32> to vector<8x32xbf16>
    %c0_81 = arith.constant 0 : index
    %c0_82 = arith.constant 0 : index
    %227 = vector.load %arg17[%c0_81, %c0_82] : memref<32x128xbf16, #tpu.memory_space<vmem>>, vector<32x128xbf16>
    %cst_83 = arith.constant dense<0.000000e+00> : vector<8x128xf32>
    %228 = tpu.matmul %226, %227, %cst_83 {dimension_numbers = #tpu.dot_dimension_numbers<[1], [0], [0], [1], [0, 0, 1, 1], [], []>} : vector<8x32xbf16>, vector<32x128xbf16>, vector<8x128xf32> -> vector<8x128xf32>
    %c0_84 = arith.constant 0 : index
    %c0_85 = arith.constant 0 : index
    %229 = vector.load %arg18[%c0_84, %c0_85] : memref<1x128xf32, #tpu.memory_space<vmem>>, vector<1x128xf32>
    %230 = vector.broadcast %229 : vector<1x128xf32> to vector<8x128xf32>
    %231 = arith.addf %228, %230 : vector<8x128xf32>
    %cst_86 = arith.constant 0.000000e+00 : f32
    %232 = vector.broadcast %cst_86 : f32 to vector<8x128xf32>
    %233 = arith.maximumf %231, %232 : vector<8x128xf32>
    %234 = arith.truncf %233 : vector<8x128xf32> to vector<8x128xbf16>
    %c0_87 = arith.constant 0 : index
    %c0_88 = arith.constant 0 : index
    %235 = vector.load %arg19[%c0_87, %c0_88] : memref<128x32xbf16, #tpu.memory_space<vmem>>, vector<128x32xbf16>
    %cst_89 = arith.constant dense<0.000000e+00> : vector<8x32xf32>
    %236 = tpu.matmul %234, %235, %cst_89 {dimension_numbers = #tpu.dot_dimension_numbers<[1], [0], [0], [1], [0, 0, 1, 1], [], []>} : vector<8x128xbf16>, vector<128x32xbf16>, vector<8x32xf32> -> vector<8x32xf32>
    %c0_90 = arith.constant 0 : index
    %c0_91 = arith.constant 0 : index
    %237 = vector.load %arg20[%c0_90, %c0_91] : memref<1x32xf32, #tpu.memory_space<vmem>>, vector<1x32xf32>
    %238 = vector.broadcast %237 : vector<1x32xf32> to vector<8x32xf32>
    %239 = arith.addf %236, %238 : vector<8x32xf32>
    %240 = arith.addf %225, %239 : vector<8x32xf32>
    %c0_92 = arith.constant 0 : index
    %c0_93 = arith.constant 0 : index
    %241 = vector.load %arg21[%c0_92, %c0_93] : memref<1x32xf32, #tpu.memory_space<vmem>>, vector<1x32xf32>
    %c0_94 = arith.constant 0 : index
    %c0_95 = arith.constant 0 : index
    %242 = vector.load %arg22[%c0_94, %c0_95] : memref<1x32xf32, #tpu.memory_space<vmem>>, vector<1x32xf32>
    %cst_96 = arith.constant dense<0.000000e+00> : vector<8xf32>
    %243 = vector.multi_reduction <add>, %240, %cst_96 [1] : vector<8x32xf32> to vector<8xf32>
    %244 = vector.shape_cast %243 : vector<8xf32> to vector<8x1xf32>
    %cst_97 = arith.constant 3.200000e+01 : f32
    %245 = vector.broadcast %cst_97 : f32 to vector<8x1xf32>
    %246 = arith.divf %244, %245 : vector<8x1xf32>
    %247 = vector.broadcast %246 : vector<8x1xf32> to vector<8x32xf32>
    %248 = arith.subf %240, %247 : vector<8x32xf32>
    %249 = arith.mulf %248, %248 : vector<8x32xf32>
    %cst_98 = arith.constant dense<0.000000e+00> : vector<8xf32>
    %250 = vector.multi_reduction <add>, %249, %cst_98 [1] : vector<8x32xf32> to vector<8xf32>
    %251 = vector.shape_cast %250 : vector<8xf32> to vector<8x1xf32>
    %cst_99 = arith.constant 3.200000e+01 : f32
    %252 = vector.broadcast %cst_99 : f32 to vector<8x1xf32>
    %253 = arith.divf %251, %252 : vector<8x1xf32>
    %254 = vector.broadcast %246 : vector<8x1xf32> to vector<8x32xf32>
    %255 = arith.subf %240, %254 : vector<8x32xf32>
    %cst_100 = arith.constant 9.99999974E-6 : f32
    %256 = vector.broadcast %cst_100 : f32 to vector<8x1xf32>
    %257 = arith.addf %253, %256 : vector<8x1xf32>
    %258 = math.rsqrt %257 : vector<8x1xf32>
    %259 = vector.broadcast %258 : vector<8x1xf32> to vector<8x32xf32>
    %260 = arith.mulf %255, %259 : vector<8x32xf32>
    %261 = vector.broadcast %241 : vector<1x32xf32> to vector<8x32xf32>
    %262 = arith.mulf %260, %261 : vector<8x32xf32>
    %263 = vector.broadcast %242 : vector<1x32xf32> to vector<8x32xf32>
    %264 = arith.addf %262, %263 : vector<8x32xf32>
    %c0_101 = arith.constant 0 : index
    %c0_102 = arith.constant 0 : index
    %c0_103 = arith.constant 0 : index
    %265 = vector.load %arg25[%c0_101, %c0_102, %c0_103] : memref<1x8x32xf32, #tpu.memory_space<vmem>>, vector<1x8x32xf32>
    %266 = vector.shape_cast %265 : vector<1x8x32xf32> to vector<8x32xf32>
    %267 = vector.shape_cast %264 : vector<8x32xf32> to vector<1x8x32xf32>
    tpu.vector_store %arg25[%c0_101, %c0_102, %c0_103], %267 {strides = array<i32>} : memref<1x8x32xf32, #tpu.memory_space<vmem>>, vector<1x8x32xf32>,
    %c0_104 = arith.constant 0 : index
    %c0_105 = arith.constant 0 : index
    %268 = vector.load %arg23[%c0_104, %c0_105] : memref<1x32xf32, #tpu.memory_space<vmem>>, vector<1x32xf32>
    %c0_106 = arith.constant 0 : index
    %c0_107 = arith.constant 0 : index
    %269 = vector.load %arg24[%c0_106, %c0_107] : memref<1x32xf32, #tpu.memory_space<vmem>>, vector<1x32xf32>
    %cst_108 = arith.constant dense<0.000000e+00> : vector<8xf32>
    %270 = vector.multi_reduction <add>, %264, %cst_108 [1] : vector<8x32xf32> to vector<8xf32>
    %271 = vector.shape_cast %270 : vector<8xf32> to vector<8x1xf32>
    %cst_109 = arith.constant 3.200000e+01 : f32
    %272 = vector.broadcast %cst_109 : f32 to vector<8x1xf32>
    %273 = arith.divf %271, %272 : vector<8x1xf32>
    %274 = vector.broadcast %273 : vector<8x1xf32> to vector<8x32xf32>
    %275 = arith.subf %264, %274 : vector<8x32xf32>
    %276 = arith.mulf %275, %275 : vector<8x32xf32>
    %cst_110 = arith.constant dense<0.000000e+00> : vector<8xf32>
    %277 = vector.multi_reduction <add>, %276, %cst_110 [1] : vector<8x32xf32> to vector<8xf32>
    %278 = vector.shape_cast %277 : vector<8xf32> to vector<8x1xf32>
    %cst_111 = arith.constant 3.200000e+01 : f32
    %279 = vector.broadcast %cst_111 : f32 to vector<8x1xf32>
    %280 = arith.divf %278, %279 : vector<8x1xf32>
    %281 = vector.broadcast %273 : vector<8x1xf32> to vector<8x32xf32>
    %282 = arith.subf %264, %281 : vector<8x32xf32>
    %cst_112 = arith.constant 9.99999974E-6 : f32
    %283 = vector.broadcast %cst_112 : f32 to vector<8x1xf32>
    %284 = arith.addf %280, %283 : vector<8x1xf32>
    %285 = math.rsqrt %284 : vector<8x1xf32>
    %286 = vector.broadcast %285 : vector<8x1xf32> to vector<8x32xf32>
    %287 = arith.mulf %282, %286 : vector<8x32xf32>
    %288 = vector.broadcast %268 : vector<1x32xf32> to vector<8x32xf32>
    %289 = arith.mulf %287, %288 : vector<8x32xf32>
    %290 = vector.broadcast %269 : vector<1x32xf32> to vector<8x32xf32>
    %291 = arith.addf %289, %290 : vector<8x32xf32>
    %c0_113 = arith.constant 0 : index
    %c0_114 = arith.constant 0 : index
    %c0_115 = arith.constant 0 : index
    %292 = vector.load %arg26[%c0_113, %c0_114, %c0_115] : memref<1x8x32xf32, #tpu.memory_space<vmem>>, vector<1x8x32xf32>
    %293 = vector.shape_cast %292 : vector<1x8x32xf32> to vector<8x32xf32>
    %294 = vector.shape_cast %291 : vector<8x32xf32> to vector<1x8x32xf32>
    tpu.vector_store %arg26[%c0_113, %c0_114, %c0_115], %294 {strides = array<i32>} : memref<1x8x32xf32, #tpu.memory_space<vmem>>, vector<1x8x32xf32>,
    return
  }
  func.func @transform_0(%arg0: i32) -> (i32, i32, i32) {
    %c0_i32 = arith.constant 0 : i32
    %c0_i32_0 = arith.constant 0 : i32
    %c0_i32_1 = arith.constant 0 : i32
    return %arg0, %c0_i32, %c0_i32_0 : i32, i32, i32
  }
  func.func @transform_1(%arg0: i32) -> (i32, i32, i32) {
    %c0_i32 = arith.constant 0 : i32
    %c0_i32_0 = arith.constant 0 : i32
    %c0_i32_1 = arith.constant 0 : i32
    return %arg0, %c0_i32, %c0_i32_0 : i32, i32, i32
  }
  func.func @transform_2(%arg0: i32) -> (i32, i32) {
    %c0_i32 = arith.constant 0 : i32
    %c0_i32_0 = arith.constant 0 : i32
    %c0_i32_1 = arith.constant 0 : i32
    return %c0_i32, %c0_i32_0 : i32, i32
  }
  func.func @transform_3(%arg0: i32) -> (i32, i32) {
    %c0_i32 = arith.constant 0 : i32
    %c0_i32_0 = arith.constant 0 : i32
    %c0_i32_1 = arith.constant 0 : i32
    return %c0_i32, %c0_i32_0 : i32, i32
  }
  func.func @transform_4(%arg0: i32) -> (i32, i32) {
    %c0_i32 = arith.constant 0 : i32
    %c0_i32_0 = arith.constant 0 : i32
    %c0_i32_1 = arith.constant 0 : i32
    return %c0_i32, %c0_i32_0 : i32, i32
  }
  func.func @transform_5(%arg0: i32) -> (i32, i32) {
    %c0_i32 = arith.constant 0 : i32
    %c0_i32_0 = arith.constant 0 : i32
    %c0_i32_1 = arith.constant 0 : i32
    return %c0_i32, %c0_i32_0 : i32, i32
  }
  func.func @transform_6(%arg0: i32) -> (i32, i32) {
    %c0_i32 = arith.constant 0 : i32
    %c0_i32_0 = arith.constant 0 : i32
    %c0_i32_1 = arith.constant 0 : i32
    return %c0_i32, %c0_i32_0 : i32, i32
  }
  func.func @transform_7(%arg0: i32) -> (i32, i32) {
    %c0_i32 = arith.constant 0 : i32
    %c0_i32_0 = arith.constant 0 : i32
    %c0_i32_1 = arith.constant 0 : i32
    return %c0_i32, %c0_i32_0 : i32, i32
  }
  func.func @transform_8(%arg0: i32) -> (i32, i32) {
    %c0_i32 = arith.constant 0 : i32
    %c0_i32_0 = arith.constant 0 : i32
    %c0_i32_1 = arith.constant 0 : i32
    return %c0_i32, %c0_i32_0 : i32, i32
  }
  func.func @transform_9(%arg0: i32) -> (i32, i32) {
    %c0_i32 = arith.constant 0 : i32
    %c0_i32_0 = arith.constant 0 : i32
    %c0_i32_1 = arith.constant 0 : i32
    return %c0_i32, %c0_i32_0 : i32, i32
  }
  func.func @transform_10(%arg0: i32) -> (i32, i32) {
    %c0_i32 = arith.constant 0 : i32
    %c0_i32_0 = arith.constant 0 : i32
    %c0_i32_1 = arith.constant 0 : i32
    return %c0_i32, %c0_i32_0 : i32, i32
  }
  func.func @transform_11(%arg0: i32) -> (i32, i32) {
    %c0_i32 = arith.constant 0 : i32
    %c0_i32_0 = arith.constant 0 : i32
    %c0_i32_1 = arith.constant 0 : i32
    return %c0_i32, %c0_i32_0 : i32, i32
  }
  func.func @transform_12(%arg0: i32) -> (i32, i32) {
    %c0_i32 = arith.constant 0 : i32
    %c0_i32_0 = arith.constant 0 : i32
    %c0_i32_1 = arith.constant 0 : i32
    return %c0_i32, %c0_i32_0 : i32, i32
  }
  func.func @transform_13(%arg0: i32) -> (i32, i32) {
    %c0_i32 = arith.constant 0 : i32
    %c0_i32_0 = arith.constant 0 : i32
    %c0_i32_1 = arith.constant 0 : i32
    return %c0_i32, %c0_i32_0 : i32, i32
  }
  func.func @transform_14(%arg0: i32) -> (i32, i32) {
    %c0_i32 = arith.constant 0 : i32
    %c0_i32_0 = arith.constant 0 : i32
    %c0_i32_1 = arith.constant 0 : i32
    return %c0_i32, %c0_i32_0 : i32, i32
  }
  func.func @transform_15(%arg0: i32) -> (i32, i32) {
    %c0_i32 = arith.constant 0 : i32
    %c0_i32_0 = arith.constant 0 : i32
    %c0_i32_1 = arith.constant 0 : i32
    return %c0_i32, %c0_i32_0 : i32, i32
  }
  func.func @transform_16(%arg0: i32) -> (i32, i32) {
    %c0_i32 = arith.constant 0 : i32
    %c0_i32_0 = arith.constant 0 : i32
    %c0_i32_1 = arith.constant 0 : i32
    return %c0_i32, %c0_i32_0 : i32, i32
  }
  func.func @transform_17(%arg0: i32) -> (i32, i32) {
    %c0_i32 = arith.constant 0 : i32
    %c0_i32_0 = arith.constant 0 : i32
    %c0_i32_1 = arith.constant 0 : i32
    return %c0_i32, %c0_i32_0 : i32, i32
  }
  func.func @transform_18(%arg0: i32) -> (i32, i32) {
    %c0_i32 = arith.constant 0 : i32
    %c0_i32_0 = arith.constant 0 : i32
    %c0_i32_1 = arith.constant 0 : i32
    return %c0_i32, %c0_i32_0 : i32, i32
  }
  func.func @transform_19(%arg0: i32) -> (i32, i32) {
    %c0_i32 = arith.constant 0 : i32
    %c0_i32_0 = arith.constant 0 : i32
    %c0_i32_1 = arith.constant 0 : i32
    return %c0_i32, %c0_i32_0 : i32, i32
  }
  func.func @transform_20(%arg0: i32) -> (i32, i32) {
    %c0_i32 = arith.constant 0 : i32
    %c0_i32_0 = arith.constant 0 : i32
    %c0_i32_1 = arith.constant 0 : i32
    return %c0_i32, %c0_i32_0 : i32, i32
  }
  func.func @transform_21(%arg0: i32) -> (i32, i32) {
    %c0_i32 = arith.constant 0 : i32
    %c0_i32_0 = arith.constant 0 : i32
    %c0_i32_1 = arith.constant 0 : i32
    return %c0_i32, %c0_i32_0 : i32, i32
  }
  func.func @transform_22(%arg0: i32) -> (i32, i32) {
    %c0_i32 = arith.constant 0 : i32
    %c0_i32_0 = arith.constant 0 : i32
    %c0_i32_1 = arith.constant 0 : i32
    return %c0_i32, %c0_i32_0 : i32, i32
  }
  func.func @transform_23(%arg0: i32) -> (i32, i32) {
    %c0_i32 = arith.constant 0 : i32
    %c0_i32_0 = arith.constant 0 : i32
    %c0_i32_1 = arith.constant 0 : i32
    return %c0_i32, %c0_i32_0 : i32, i32
  }
  func.func @transform_24(%arg0: i32) -> (i32, i32, i32) {
    %c0_i32 = arith.constant 0 : i32
    %c0_i32_0 = arith.constant 0 : i32
    %c0_i32_1 = arith.constant 0 : i32
    return %arg0, %c0_i32, %c0_i32_0 : i32, i32, i32
  }
  func.func @transform_25(%arg0: i32) -> (i32, i32, i32) {
    %c0_i32 = arith.constant 0 : i32
    %c0_i32_0 = arith.constant 0 : i32
    %c0_i32_1 = arith.constant 0 : i32
    return %arg0, %c0_i32, %c0_i32_0 : i32, i32, i32
  }
}

</mosaic_0001>

<llo_original>
// kernel: rfdetr_forward.6
$region0: #{rfdetr_forward.6}
  #allocation0 [shape = 'u32[]', space=smem, size = 0x4, offset = 0x4, fixed_abs, tag = 'smem constant byte address 0x4 - core index']
  #allocation1 [shape = 'u32[72,128]{1,0:T(1,128)}', space=vmem, size = 0x9000, scoped, tag = 'internal scratch']
  %s0 = inlined_call_operand.vmem [shape: bf16[32,48], index: 0, kind: input, shape index: {}]
  %s1 = inlined_call_operand.vmem [shape: bf16[48,32], index: 1, kind: input, shape index: {}]
  %s2 = inlined_call_operand.vmem [shape: f32[1,32], index: 2, kind: input, shape index: {}]
  %s3 = inlined_call_operand.vmem [shape: f32[32,32], index: 3, kind: output, shape index: {}]
  %s4 = sld [smem:[#allocation0]]
  $region22: #{rfdetr_forward.6} parent=0
    _
  %s6 = ssub.s32 1, %s4
  %s7 = scalar_select 0, %s6, %s4
  // Predicated region
  $region2: #{rfdetr_forward.6} parent=0 // pred_check
    _
  $region3: #{rfdetr_forward.6} parent=0 // pred_check_branch
    %9 = sbr.rel (0) target = $region5
  $region4: #{rfdetr_forward.6} parent=0 // pred_region
    _
  $region5: #{rfdetr_forward.6} parent=0 // pred_fallthru
    _
  // Predicated region
  $region6: #{rfdetr_forward.6} parent=0 // pred_check
    _
  $region7: #{rfdetr_forward.6} parent=0 // pred_check_branch
    %11 = sbr.rel (0) target = $region9
  $region8: #{rfdetr_forward.6} parent=0 // pred_region
    _
  $region9: #{rfdetr_forward.6} parent=0 // pred_fallthru
    _
  // Predicated region
  $region10: #{rfdetr_forward.6} parent=0 // pred_check
    _
  $region11: #{rfdetr_forward.6} parent=0 // pred_check_branch
    %13 = sbr.rel (0) target = $region13
  $region12: #{rfdetr_forward.6} parent=0 // pred_region
    _
  $region13: #{rfdetr_forward.6} parent=0 // pred_fallthru
    _
  %v15 = vld [vmem:[%s0] sm:$0xf]
  %v16 = vld [vmem:[%s0 + $0x4] sm:$0xf]
  %v17 = vld [vmem:[%s0 + $0x8] sm:$0xf]
  %v18 = vld [vmem:[%s0 + $0xc] sm:$0xf]
  %v19 = vld [vmem:[%s1] sm:$0xf]
  %v20 = vld [vmem:[%s1 + $0x4] sm:$0xf]
  %v21 = vld [vmem:[%s1 + $0x8] sm:$0xf]
  %v22 = vld [vmem:[%s1 + $0xc] sm:$0xf]
  %v23 = vld [vmem:[%s1 + $0x10] sm:$0xf]
  %v24 = vld [vmem:[%s1 + $0x14] sm:$0xf]
  %v25 = vld [vmem:[%s2] sm:$0x1]
  %v27 = vperm.slane %v25, 0
  %v33 = vunpack.c.l.b16 %v15
  %v34 = vunpack.c.l.b16 %v16
  %v35 = vunpack.c.l.b16 %v17
  %v36 = vunpack.c.l.b16 %v18
  %v37 = vpack.c.b16 %v34, %v33
  %v38 = vpack.c.b16 %v36, %v35
  %v45 = vunpack.c.l.b16 %v19
  %v46 = vunpack.c.l.b16 %v20
  %v47 = vunpack.c.l.b16 %v21
  %v48 = vunpack.c.l.b16 %v22
  %v49 = vunpack.c.l.b16 %v23
  %v50 = vunpack.c.l.b16 %v24
  %v51 = vpack.c.b16 %v46, %v45
  %v52 = vpack.c.b16 %v48, %v47
  %v53 = vpack.c.b16 %v50, %v49
  %vm57 = vcmask 392192
  %v59 = vsel %vm57, %v37, 0
  %v62 = vsel %vm57, %v38, 0
  %64 = vmatpush.bf16.msra.mxu0 0
  %65 = vmatpush.bf16.msra.mxu0 0
  %66 = vmatpush.bf16.msra.mxu0 0
  %67 = vmatpush.bf16.msra.mxu0 0
  %68 = vmatpush.bf16.msra.mxu0 0
  %69 = vmatpush.bf16.msra.mxu0 %v53
  %70 = vmatpush.bf16.msra.mxu0 %v52
  %71 = vmatpush.bf16.msra.mxu0 %v51
  %72 = vmatmul.bf16.gmra.mxu0 %v59
  %v73 = vpop.f32.mrf.mxu0
  %v74 = vadd.f32 %v27, %v73
  %v75 = vpop.f32.mrf.mxu0
  %v76 = vadd.f32 %v27, %v75
  %77 = vmatmul.bf16.gmra.mxu0 %v62
  %v78 = vpop.f32.mrf.mxu0
  %v79 = vadd.f32 %v27, %v78
  %v80 = vpop.f32.mrf.mxu0
  %v81 = vadd.f32 %v27, %v80
  %82 = vdwg.mxu0
  %vm83 = vcmask 261120
  %84 = vst.msk [vmem:[%s3] sm:$0xff] %vm83, %v74
  %85 = vst.msk [vmem:[%s3 + $0x8] sm:$0xff] %vm83, %v76
  %86 = vst.msk [vmem:[%s3 + $0x10] sm:$0xff] %vm83, %v79
  %87 = vst.msk [vmem:[%s3 + $0x18] sm:$0xff] %vm83, %v81
  // Predicated region
  $region14: #{rfdetr_forward.6} parent=0 // pred_check
    _
  $region15: #{rfdetr_forward.6} parent=0 // pred_check_branch
    %89 = sbr.rel (0) target = $region17
  $region16: #{rfdetr_forward.6} parent=0 // pred_region
    _
  $region17: #{rfdetr_forward.6} parent=0 // pred_fallthru
    _
  // Predicated region
  $region18: #{rfdetr_forward.6} parent=0 // pred_check
    _
  $region19: #{rfdetr_forward.6} parent=0 // pred_check_branch
    %91 = sbr.rel (0) target = $region21
  $region20: #{rfdetr_forward.6} parent=0 // pred_region
    _
  $region21: #{rfdetr_forward.6} parent=0 // pred_fallthru
    _

// kernel: rfdetr_forward.7
$region0: #{rfdetr_forward.7}
  #allocation0 [shape = 'u32[]', space=smem, size = 0x4, offset = 0x4, fixed_abs, tag = 'smem constant byte address 0x4 - core index']
  #allocation1 [shape = 'u32[72,128]{1,0:T(1,128)}', space=vmem, size = 0x9000, scoped, tag = 'internal scratch']
  %s0 = inlined_call_operand.vmem [shape: f32[2,16,32], index: 0, kind: input, shape index: {}]
  %s1 = inlined_call_operand.vmem [shape: f32[16,96], index: 1, kind: input, shape index: {}]
  %s2 = inlined_call_operand.vmem [shape: bf16[32,96], index: 2, kind: input, shape index: {}]
  %s3 = inlined_call_operand.vmem [shape: bf16[32,32], index: 3, kind: input, shape index: {}]
  %s4 = inlined_call_operand.vmem [shape: f32[1,32], index: 4, kind: input, shape index: {}]
  %s5 = inlined_call_operand.vmem [shape: f32[1,32], index: 5, kind: input, shape index: {}]
  %s6 = inlined_call_operand.vmem [shape: f32[1,32], index: 6, kind: input, shape index: {}]
  %s7 = inlined_call_operand.vmem [shape: bf16[32,128], index: 7, kind: input, shape index: {}]
  %s8 = inlined_call_operand.vmem [shape: f32[1,128], index: 8, kind: input, shape index: {}]
  %s9 = inlined_call_operand.vmem [shape: bf16[128,32], index: 9, kind: input, shape index: {}]
  %s10 = inlined_call_operand.vmem [shape: f32[1,32], index: 10, kind: input, shape index: {}]
  %s11 = inlined_call_operand.vmem [shape: f32[1,32], index: 11, kind: input, shape index: {}]
  %s12 = inlined_call_operand.vmem [shape: f32[1,32], index: 12, kind: input, shape index: {}]
  %s13 = inlined_call_operand.vmem [shape: f32[2,16,32], index: 13, kind: output, shape index: {}]
  %s14 = sld [smem:[#allocation0]]
  $region85: #{rfdetr_forward.7} parent=0
    _
  %s16 = ssub.s32 1, %s14
  %s17 = scalar_select 0, %s16, %s14
  loop: start=0, step=1, limit=4
  $region2: #{rfdetr_forward.7} parent=0 // loop_pre_header
    _
  $region3: #{rfdetr_forward.7} parent=0 // loop_header
    %s19 = sphi 0, %s23
    %p20 = scmp.ge.s32.totalorder %s19, 4
    %s29 = sphi 0, %s31
    %s32 = sphi 0, %s29
    %s33 = sphi 0, %s32
    %s49 = sphi 0, %s33
    %s53 = sphi 0, %s53
    %s55 = sphi 0, %s53
    %s56 = sphi 0, %s55
    %s70 = sphi 0, %s56
    %s74 = sphi 0, %s74
    %s76 = sphi 0, %s74
    %s77 = sphi 0, %s76
    %s91 = sphi 0, %s77
    %s95 = sphi 0, %s95
    %s97 = sphi 0, %s95
    %s98 = sphi 0, %s97
    %s112 = sphi 0, %s98
    %s116 = sphi 0, %s116
    %s118 = sphi 0, %s116
    %s119 = sphi 0, %s118
    %s133 = sphi 0, %s119
    %s137 = sphi 0, %s137
    %s139 = sphi 0, %s137
    %s140 = sphi 0, %s139
    %s154 = sphi 0, %s140
    %s158 = sphi 0, %s158
    %s160 = sphi 0, %s158
    %s161 = sphi 0, %s160
    %s175 = sphi 0, %s161
    %s179 = sphi 0, %s179
    %s181 = sphi 0, %s179
    %s182 = sphi 0, %s181
    %s196 = sphi 0, %s182
    %s200 = sphi 0, %s200
    %s202 = sphi 0, %s200
    %s203 = sphi 0, %s202
    %s217 = sphi 0, %s203
    %s221 = sphi 0, %s221
    %s223 = sphi 0, %s221
    %s224 = sphi 0, %s223
    %s238 = sphi 0, %s224
    %s242 = sphi 0, %s242
    %s244 = sphi 0, %s242
    %s245 = sphi 0, %s244
    %s259 = sphi 0, %s245
    %s263 = sphi 0, %s263
    %s265 = sphi 0, %s263
    %s266 = sphi 0, %s265
    %s280 = sphi 0, %s266
    %s284 = sphi 0, %s284
    %s286 = sphi 0, %s284
    %s287 = sphi 0, %s286
    %s301 = sphi 0, %s287
    %s307 = sphi 0, %s309
    %s310 = sphi 0, %s307
    %s311 = sphi 0, %s310
    %s327 = sphi 0, %s311
  $region4: #{rfdetr_forward.7} parent=0 // loop_header_branch
    %22 = sbr.rel (%p20) target = $region8
  $region5: #{rfdetr_forward.7} parent=0 // loop_body
    %s24 = ssub.s32 %s19, 1
    %s25 = ssub.s32 %s19, 2
    %s26 = sadd.s32 %s19, 1
    %s27 = ssub.s32 %s19, %s26
    %p28 = scmp.eq.s32.totalorder %s27, 0
    %s30 = sadd.s32 %s29, 1
    %s31 = scalar_select %p28, %s29, %s30
    %p34 = pneg %p28
    %p35 = scmp.eq.s32.totalorder %s19, 1
    %p36 = por %p34, %p35
    %p37 = scmp.ne.s32.totalorder %s29, %s32
    %p38 = scmp.eq.s32.totalorder %s19, 0
    %p39 = por %p37, %p38
    %p40 = scmp.ne.s32.totalorder %s29, %s32
    %p41 = scmp.eq.s32.totalorder %s24, 1
    %p42 = por %p40, %p41
    %p43 = scmp.ne.s32.totalorder %s32, %s33
    %p44 = scmp.eq.s32.totalorder %s24, 0
    %p45 = por %p43, %p44
    %p46 = scmp.ne.s32.totalorder %s32, %s33
    %p47 = scmp.eq.s32.totalorder %s25, 1
    %p48 = por %p46, %p47
    %p50 = scmp.ne.s32.totalorder %s33, %s49
    %p51 = scmp.eq.s32.totalorder %s25, 0
    %p52 = por %p50, %p51
    %s54 = sadd.s32 %s53, 1
    %p57 = scmp.eq.s32.totalorder %s19, 1
    %p58 = scmp.ne.s32.totalorder %s53, %s55
    %p59 = scmp.eq.s32.totalorder %s19, 0
    %p60 = por %p58, %p59
    %p61 = scmp.ne.s32.totalorder %s53, %s55
    %p62 = scmp.eq.s32.totalorder %s24, 1
    %p63 = por %p61, %p62
    %p64 = scmp.ne.s32.totalorder %s55, %s56
    %p65 = scmp.eq.s32.totalorder %s24, 0
    %p66 = por %p64, %p65
    %p67 = scmp.ne.s32.totalorder %s55, %s56
    %p68 = scmp.eq.s32.totalorder %s25, 1
    %p69 = por %p67, %p68
    %p71 = scmp.ne.s32.totalorder %s56, %s70
    %p72 = scmp.eq.s32.totalorder %s25, 0
    %p73 = por %p71, %p72
    %s75 = sadd.s32 %s74, 1
    %p78 = scmp.eq.s32.totalorder %s19, 1
    %p79 = scmp.ne.s32.totalorder %s74, %s76
    %p80 = scmp.eq.s32.totalorder %s19, 0
    %p81 = por %p79, %p80
    %p82 = scmp.ne.s32.totalorder %s74, %s76
    %p83 = scmp.eq.s32.totalorder %s24, 1
    %p84 = por %p82, %p83
    %p85 = scmp.ne.s32.totalorder %s76, %s77
    %p86 = scmp.eq.s32.totalorder %s24, 0
    %p87 = por %p85, %p86
    %p88 = scmp.ne.s32.totalorder %s76, %s77
    %p89 = scmp.eq.s32.totalorder %s25, 1
    %p90 = por %p88, %p89
    %p92 = scmp.ne.s32.totalorder %s77, %s91
    %p93 = scmp.eq.s32.totalorder %s25, 0
    %p94 = por %p92, %p93
    %s96 = sadd.s32 %s95, 1
    %p99 = scmp.eq.s32.totalorder %s19, 1
    %p100 = scmp.ne.s32.totalorder %s95, %s97
    %p101 = scmp.eq.s32.totalorder %s19, 0
    %p102 = por %p100, %p101
    %p103 = scmp.ne.s32.totalorder %s95, %s97
    %p104 = scmp.eq.s32.totalorder %s24, 1
    %p105 = por %p103, %p104
    %p106 = scmp.ne.s32.totalorder %s97, %s98
    %p107 = scmp.eq.s32.totalorder %s24, 0
    %p108 = por %p106, %p107
    %p109 = scmp.ne.s32.totalorder %s97, %s98
    %p110 = scmp.eq.s32.totalorder %s25, 1
    %p111 = por %p109, %p110
    %p113 = scmp.ne.s32.totalorder %s98, %s112
    %p114 = scmp.eq.s32.totalorder %s25, 0
    %p115 = por %p113, %p114
    %s117 = sadd.s32 %s116, 1
    %p120 = scmp.eq.s32.totalorder %s19, 1
    %p121 = scmp.ne.s32.totalorder %s116, %s118
    %p122 = scmp.eq.s32.totalorder %s19, 0
    %p123 = por %p121, %p122
    %p124 = scmp.ne.s32.totalorder %s116, %s118
    %p125 = scmp.eq.s32.totalorder %s24, 1
    %p126 = por %p124, %p125
    %p127 = scmp.ne.s32.totalorder %s118, %s119
    %p128 = scmp.eq.s32.totalorder %s24, 0
    %p129 = por %p127, %p128
    %p130 = scmp.ne.s32.totalorder %s118, %s119
    %p131 = scmp.eq.s32.totalorder %s25, 1
    %p132 = por %p130, %p131
    %p134 = scmp.ne.s32.totalorder %s119, %s133
    %p135 = scmp.eq.s32.totalorder %s25, 0
    %p136 = por %p134, %p135
    %s138 = sadd.s32 %s137, 1
    %p141 = scmp.eq.s32.totalorder %s19, 1
    %p142 = scmp.ne.s32.totalorder %s137, %s139
    %p143 = scmp.eq.s32.totalorder %s19, 0
    %p144 = por %p142, %p143
    %p145 = scmp.ne.s32.totalorder %s137, %s139
    %p146 = scmp.eq.s32.totalorder %s24, 1
    %p147 = por %p145, %p146
    %p148 = scmp.ne.s32.totalorder %s139, %s140
    %p149 = scmp.eq.s32.totalorder %s24, 0
    %p150 = por %p148, %p149
    %p151 = scmp.ne.s32.totalorder %s139, %s140
    %p152 = scmp.eq.s32.totalorder %s25, 1
    %p153 = por %p151, %p152
    %p155 = scmp.ne.s32.totalorder %s140, %s154
    %p156 = scmp.eq.s32.totalorder %s25, 0
    %p157 = por %p155, %p156
    %s159 = sadd.s32 %s158, 1
    %p162 = scmp.eq.s32.totalorder %s19, 1
    %p163 = scmp.ne.s32.totalorder %s158, %s160
    %p164 = scmp.eq.s32.totalorder %s19, 0
    %p165 = por %p163, %p164
    %p166 = scmp.ne.s32.totalorder %s158, %s160
    %p167 = scmp.eq.s32.totalorder %s24, 1
    %p168 = por %p166, %p167
    %p169 = scmp.ne.s32.totalorder %s160, %s161
    %p170 = scmp.eq.s32.totalorder %s24, 0
    %p171 = por %p169, %p170
    %p172 = scmp.ne.s32.totalorder %s160, %s161
    %p173 = scmp.eq.s32.totalorder %s25, 1
    %p174 = por %p172, %p173
    %p176 = scmp.ne.s32.totalorder %s161, %s175
    %p177 = scmp.eq.s32.totalorder %s25, 0
    %p178 = por %p176, %p177
    %s180 = sadd.s32 %s179, 1
    %p183 = scmp.eq.s32.totalorder %s19, 1
    %p184 = scmp.ne.s32.totalorder %s179, %s181
    %p185 = scmp.eq.s32.totalorder %s19, 0
    %p186 = por %p184, %p185
    %p187 = scmp.ne.s32.totalorder %s179, %s181
    %p188 = scmp.eq.s32.totalorder %s24, 1
    %p189 = por %p187, %p188
    %p190 = scmp.ne.s32.totalorder %s181, %s182
    %p191 = scmp.eq.s32.totalorder %s24, 0
    %p192 = por %p190, %p191
    %p193 = scmp.ne.s32.totalorder %s181, %s182
    %p194 = scmp.eq.s32.totalorder %s25, 1
    %p195 = por %p193, %p194
    %p197 = scmp.ne.s32.totalorder %s182, %s196
    %p198 = scmp.eq.s32.totalorder %s25, 0
    %p199 = por %p197, %p198
    %s201 = sadd.s32 %s200, 1
    %p204 = scmp.eq.s32.totalorder %s19, 1
    %p205 = scmp.ne.s32.totalorder %s200, %s202
    %p206 = scmp.eq.s32.totalorder %s19, 0
    %p207 = por %p205, %p206
    %p208 = scmp.ne.s32.totalorder %s200, %s202
    %p209 = scmp.eq.s32.totalorder %s24, 1
    %p210 = por %p208, %p209
    %p211 = scmp.ne.s32.totalorder %s202, %s203
    %p212 = scmp.eq.s32.totalorder %s24, 0
    %p213 = por %p211, %p212
    %p214 = scmp.ne.s32.totalorder %s202, %s203
    %p215 = scmp.eq.s32.totalorder %s25, 1
    %p216 = por %p214, %p215
    %p218 = scmp.ne.s32.totalorder %s203, %s217
    %p219 = scmp.eq.s32.totalorder %s25, 0
    %p220 = por %p218, %p219
    %s222 = sadd.s32 %s221, 1
    %p225 = scmp.eq.s32.totalorder %s19, 1
    %p226 = scmp.ne.s32.totalorder %s221, %s223
    %p227 = scmp.eq.s32.totalorder %s19, 0
    %p228 = por %p226, %p227
    %p229 = scmp.ne.s32.totalorder %s221, %s223
    %p230 = scmp.eq.s32.totalorder %s24, 1
    %p231 = por %p229, %p230
    %p232 = scmp.ne.s32.totalorder %s223, %s224
    %p233 = scmp.eq.s32.totalorder %s24, 0
    %p234 = por %p232, %p233
    %p235 = scmp.ne.s32.totalorder %s223, %s224
    %p236 = scmp.eq.s32.totalorder %s25, 1
    %p237 = por %p235, %p236
    %p239 = scmp.ne.s32.totalorder %s224, %s238
    %p240 = scmp.eq.s32.totalorder %s25, 0
    %p241 = por %p239, %p240
    %s243 = sadd.s32 %s242, 1
    %p246 = scmp.eq.s32.totalorder %s19, 1
    %p247 = scmp.ne.s32.totalorder %s242, %s244
    %p248 = scmp.eq.s32.totalorder %s19, 0
    %p249 = por %p247, %p248
    %p250 = scmp.ne.s32.totalorder %s242, %s244
    %p251 = scmp.eq.s32.totalorder %s24, 1
    %p252 = por %p250, %p251
    %p253 = scmp.ne.s32.totalorder %s244, %s245
    %p254 = scmp.eq.s32.totalorder %s24, 0
    %p255 = por %p253, %p254
    %p256 = scmp.ne.s32.totalorder %s244, %s245
    %p257 = scmp.eq.s32.totalorder %s25, 1
    %p258 = por %p256, %p257
    %p260 = scmp.ne.s32.totalorder %s245, %s259
    %p261 = scmp.eq.s32.totalorder %s25, 0
    %p262 = por %p260, %p261
    %s264 = sadd.s32 %s263, 1
    %p267 = scmp.eq.s32.totalorder %s19, 1
    %p268 = scmp.ne.s32.totalorder %s263, %s265
    %p269 = scmp.eq.s32.totalorder %s19, 0
    %p270 = por %p268, %p269
    %p271 = scmp.ne.s32.totalorder %s263, %s265
    %p272 = scmp.eq.s32.totalorder %s24, 1
    %p273 = por %p271, %p272
    %p274 = scmp.ne.s32.totalorder %s265, %s266
    %p275 = scmp.eq.s32.totalorder %s24, 0
    %p276 = por %p274, %p275
    %p277 = scmp.ne.s32.totalorder %s265, %s266
    %p278 = scmp.eq.s32.totalorder %s25, 1
    %p279 = por %p277, %p278
    %p281 = scmp.ne.s32.totalorder %s266, %s280
    %p282 = scmp.eq.s32.totalorder %s25, 0
    %p283 = por %p281, %p282
    %s285 = sadd.s32 %s284, 1
    %p288 = scmp.eq.s32.totalorder %s19, 1
    %p289 = scmp.ne.s32.totalorder %s284, %s286
    %p290 = scmp.eq.s32.totalorder %s19, 0
    %p291 = por %p289, %p290
    %p292 = scmp.ne.s32.totalorder %s284, %s286
    %p293 = scmp.eq.s32.totalorder %s24, 1
    %p294 = por %p292, %p293
    %p295 = scmp.ne.s32.totalorder %s286, %s287
    %p296 = scmp.eq.s32.totalorder %s24, 0
    %p297 = por %p295, %p296
    %p298 = scmp.ne.s32.totalorder %s286, %s287
    %p299 = scmp.eq.s32.totalorder %s25, 1
    %p300 = por %p298, %p299
    %p302 = scmp.ne.s32.totalorder %s287, %s301
    %p303 = scmp.eq.s32.totalorder %s25, 0
    %p304 = por %p302, %p303
    %s305 = ssub.s32 %s19, %s26
    %p306 = scmp.eq.s32.totalorder %s305, 0
    %s308 = sadd.s32 %s307, 1
    %s309 = scalar_select %p306, %s307, %s308
    %p312 = pneg %p306
    %p313 = scmp.eq.s32.totalorder %s19, 1
    %p314 = por %p312, %p313
    %p315 = scmp.ne.s32.totalorder %s307, %s310
    %p316 = scmp.eq.s32.totalorder %s19, 0
    %p317 = por %p315, %p316
    %p318 = scmp.ne.s32.totalorder %s307, %s310
    %p319 = scmp.eq.s32.totalorder %s24, 1
    %p320 = por %p318, %p319
    %p321 = scmp.ne.s32.totalorder %s310, %s311
    %p322 = scmp.eq.s32.totalorder %s24, 0
    %p323 = por %p321, %p322
    %p324 = scmp.ne.s32.totalorder %s310, %s311
    %p325 = scmp.eq.s32.totalorder %s25, 1
    %p326 = por %p324, %p325
    %p328 = scmp.ne.s32.totalorder %s311, %s327
    %p329 = scmp.eq.s32.totalorder %s25, 0
    %p330 = por %p328, %p329
    %p331 = scmp.le.s32.totalorder 1, %s19
    %p332 = scmp.lt.s32.totalorder %s19, 3
    %p333 = pnand %p331, %p332
    %p334 = pneg %p333
    // Predicated region
    $region9: #{rfdetr_forward.7} parent=5 // pred_check
      _
    $region10: #{rfdetr_forward.7} parent=5 // pred_check_branch
      %336 = sbr.rel (%p333) target = $region12
    $region11: #{rfdetr_forward.7} parent=5 // pred_region
      %s337 = ssub.s32 %s19, 1
      // Predicated region
      $region13: #{rfdetr_forward.7} parent=11 // pred_check
        %p338 = pneg %p66
      $region14: #{rfdetr_forward.7} parent=11 // pred_check_branch
        %340 = sbr.rel (%p338) target = $region16
      $region15: #{rfdetr_forward.7} parent=11 // pred_region
        _
      $region16: #{rfdetr_forward.7} parent=11 // pred_fallthru
        _
      // Predicated region
      $region17: #{rfdetr_forward.7} parent=11 // pred_check
        %p341 = pneg %p87
      $region18: #{rfdetr_forward.7} parent=11 // pred_check_branch
        %343 = sbr.rel (%p341) target = $region20
      $region19: #{rfdetr_forward.7} parent=11 // pred_region
        _
      $region20: #{rfdetr_forward.7} parent=11 // pred_fallthru
        _
      // Predicated region
      $region21: #{rfdetr_forward.7} parent=11 // pred_check
        %p344 = pneg %p108
      $region22: #{rfdetr_forward.7} parent=11 // pred_check_branch
        %346 = sbr.rel (%p344) target = $region24
      $region23: #{rfdetr_forward.7} parent=11 // pred_region
        _
      $region24: #{rfdetr_forward.7} parent=11 // pred_fallthru
        _
      // Predicated region
      $region25: #{rfdetr_forward.7} parent=11 // pred_check
        %p347 = pneg %p129
      $region26: #{rfdetr_forward.7} parent=11 // pred_check_branch
        %349 = sbr.rel (%p347) target = $region28
      $region27: #{rfdetr_forward.7} parent=11 // pred_region
        _
      $region28: #{rfdetr_forward.7} parent=11 // pred_fallthru
        _
      // Predicated region
      $region29: #{rfdetr_forward.7} parent=11 // pred_check
        %p350 = pneg %p150
      $region30: #{rfdetr_forward.7} parent=11 // pred_check_branch
        %352 = sbr.rel (%p350) target = $region32
      $region31: #{rfdetr_forward.7} parent=11 // pred_region
        _
      $region32: #{rfdetr_forward.7} parent=11 // pred_fallthru
        _
      // Predicated region
      $region33: #{rfdetr_forward.7} parent=11 // pred_check
        %p353 = pneg %p171
      $region34: #{rfdetr_forward.7} parent=11 // pred_check_branch
        %355 = sbr.rel (%p353) target = $region36
      $region35: #{rfdetr_forward.7} parent=11 // pred_region
        _
      $region36: #{rfdetr_forward.7} parent=11 // pred_fallthru
        _
      // Predicated region
      $region37: #{rfdetr_forward.7} parent=11 // pred_check
        %p356 = pneg %p192
      $region38: #{rfdetr_forward.7} parent=11 // pred_check_branch
        %358 = sbr.rel (%p356) target = $region40
      $region39: #{rfdetr_forward.7} parent=11 // pred_region
        _
      $region40: #{rfdetr_forward.7} parent=11 // pred_fallthru
        _
      // Predicated region
      $region41: #{rfdetr_forward.7} parent=11 // pred_check
        %p359 = pneg %p213
      $region42: #{rfdetr_forward.7} parent=11 // pred_check_branch
        %361 = sbr.rel (%p359) target = $region44
      $region43: #{rfdetr_forward.7} parent=11 // pred_region
        _
      $region44: #{rfdetr_forward.7} parent=11 // pred_fallthru
        _
      // Predicated region
      $region45: #{rfdetr_forward.7} parent=11 // pred_check
        %p362 = pneg %p234
      $region46: #{rfdetr_forward.7} parent=11 // pred_check_branch
        %364 = sbr.rel (%p362) target = $region48
      $region47: #{rfdetr_forward.7} parent=11 // pred_region
        _
      $region48: #{rfdetr_forward.7} parent=11 // pred_fallthru
        _
      // Predicated region
      $region49: #{rfdetr_forward.7} parent=11 // pred_check
        %p365 = pneg %p255
      $region50: #{rfdetr_forward.7} parent=11 // pred_check_branch
        %367 = sbr.rel (%p365) target = $region52
      $region51: #{rfdetr_forward.7} parent=11 // pred_region
        _
      $region52: #{rfdetr_forward.7} parent=11 // pred_fallthru
        _
      // Predicated region
      $region53: #{rfdetr_forward.7} parent=11 // pred_check
        %p368 = pneg %p276
      $region54: #{rfdetr_forward.7} parent=11 // pred_check_branch
        %370 = sbr.rel (%p368) target = $region56
      $region55: #{rfdetr_forward.7} parent=11 // pred_region
        _
      $region56: #{rfdetr_forward.7} parent=11 // pred_fallthru
        _
      // Predicated region
      $region57: #{rfdetr_forward.7} parent=11 // pred_check
        %p371 = pneg %p297
      $region58: #{rfdetr_forward.7} parent=11 // pred_check_branch
        %373 = sbr.rel (%p371) target = $region60
      $region59: #{rfdetr_forward.7} parent=11 // pred_region
        _
      $region60: #{rfdetr_forward.7} parent=11 // pred_fallthru
        _
    $region12: #{rfdetr_forward.7} parent=5 // pred_fallthru
      _
    %p374 = scmp.lt.s32.totalorder %s19, 2
    // Predicated region
    $region61: #{rfdetr_forward.7} parent=5 // pred_check
      %p375 = pneg %p374
    $region62: #{rfdetr_forward.7} parent=5 // pred_check_branch
      %377 = sbr.rel (%p375) target = $region64
    $region63: #{rfdetr_forward.7} parent=5 // pred_region
      // Predicated region
      $region65: #{rfdetr_forward.7} parent=63 // pred_check
        %p378 = pneg %p39
      $region66: #{rfdetr_forward.7} parent=63 // pred_check_branch
        %380 = sbr.rel (%p378) target = $region68
      $region67: #{rfdetr_forward.7} parent=63 // pred_region
        %p381 = scmp.lt.s32.totalorder %s19, 1
        %s382 = scalar_select %p381, %s19, 1
        %s383 = smul.addr %s382, 2
        %s384 = smul.addr %s383, 8
        %s385 = scalar_lea.vmem %s0, %s384
      $region68: #{rfdetr_forward.7} parent=63 // pred_fallthru
        _
    $region64: #{rfdetr_forward.7} parent=5 // pred_fallthru
      _
    %p386 = scmp.le.s32.totalorder 1, %s19
    %p387 = scmp.lt.s32.totalorder %s19, 3
    %p388 = pnand %p386, %p387
    %p389 = pneg %p388
    // Predicated region
    $region69: #{rfdetr_forward.7} parent=5 // pred_check
      _
    $region70: #{rfdetr_forward.7} parent=5 // pred_check_branch
      %391 = sbr.rel (%p388) target = $region72
    $region71: #{rfdetr_forward.7} parent=5 // pred_region
      %s392 = ssub.s32 %s19, 1
      %p393 = scmp.lt.s32.totalorder %s24, 1
      %s394 = scalar_select %p393, %s24, 1
      %s395 = smul.addr %s394, 2
      %s396 = smul.addr %s395, 8
      %s397 = scalar_lea.vmem %s0, %s396
      %p398 = pneg %p45
      %p399 = pneg %p42
      %p400 = pneg %p66
      %p401 = pneg %p63
      %p402 = pneg %p87
      %p403 = pneg %p84
      %p404 = pneg %p108
      %p405 = pneg %p105
      %p406 = pneg %p129
      %p407 = pneg %p126
      %p408 = pneg %p150
      %p409 = pneg %p147
      %p410 = pneg %p171
      %p411 = pneg %p168
      %p412 = pneg %p192
      %p413 = pneg %p189
      %p414 = pneg %p213
      %p415 = pneg %p210
      %p416 = pneg %p234
      %p417 = pneg %p231
      %p418 = pneg %p255
      %p419 = pneg %p252
      %p420 = pneg %p276
      %p421 = pneg %p273
      %p422 = pneg %p297
      %p423 = pneg %p294
      %p424 = pneg %p323
      %p425 = pneg %p320
      %p426 = scmp.lt.s32.totalorder %s24, 1
      %s427 = scalar_select %p426, %s24, 1
      %s428 = smul.addr %s427, 2
      %s429 = smul.addr %s428, 8
      %s430 = scalar_lea.vmem %s13, %s429
      %p431 = scmp.lt.s32.totalorder %s24, 1
      %s432 = scalar_select %p431, %s24, 1
      %s433 = smul.addr %s432, 2
      %s434 = smul.addr %s433, 8
      %s435 = scalar_lea.vmem %s0, %s434
      %p436 = scmp.lt.s32.totalorder %s24, 1
      %s437 = scalar_select %p436, %s24, 1
      %s438 = smul.addr %s437, 2
      %s439 = smul.addr %s438, 8
      %s440 = scalar_lea.vmem %s13, %s439
      %v442 = vld [vmem:[%s435] sm:$0xff]
      %v443 = vld [vmem:[%s435 + $0x8] sm:$0xff]
      %v444 = vpack.c.bf16 %v443, %v442
      %v445 = vld [vmem:[%s2] sm:$0xf]
      %v446 = vld [vmem:[%s2 + $0x4] sm:$0xf]
      %v447 = vld [vmem:[%s2 + $0x8] sm:$0xf]
      %v448 = vld [vmem:[%s2 + $0xc] sm:$0xf]
      %v449 = vld [vmem:[%s1] sm:$0xff]
      %v450 = vld [vmem:[%s1 + $0x8] sm:$0xff]
      %v455 = vunpack.c.l.b16 %v445
      %v456 = vunpack.c.l.b16 %v446
      %v457 = vunpack.c.l.b16 %v447
      %v458 = vunpack.c.l.b16 %v448
      %v459 = vpack.c.b16 %v456, %v455
      %v460 = vpack.c.b16 %v458, %v457
      %vm463 = vcmask 261120
      %v465 = vsel %vm463, %v444, 0
      %467 = vmatpush.bf16.msra.mxu0 0
      %468 = vmatpush.bf16.msra.mxu0 0
      %469 = vmatpush.bf16.msra.mxu0 0
      %470 = vmatpush.bf16.msra.mxu0 0
      %471 = vmatpush.bf16.msra.mxu0 0
      %472 = vmatpush.bf16.msra.mxu0 0
      %473 = vmatpush.bf16.msra.mxu0 %v460
      %474 = vmatpush.bf16.msra.mxu0 %v459
      %475 = vmatmul.bf16.gmra.mxu0 %v465
      %v476 = vpop.f32.mrf.mxu0
      %v477 = vadd.f32 %v449, %v476
      %v478 = vpop.f32.mrf.mxu0
      %v479 = vadd.f32 %v450, %v478
      %480 = vdwg.mxu0
      %v481 = vld [vmem:[%s4] sm:$0x1]
      %v482 = vmul.f32 %v477, 0.35355338
      %v483 = vmul.f32 %v479, 0.35355338
      %v484 = vpack.c.bf16 %v482, %v482
      %v485 = vpack.c.bf16 %v483, %v483
      %v486 = vpack.c.bf16 %v477, %v477
      %v487 = vpack.c.bf16 %v479, %v479
      %v490 = vunpack.c.l.b16 %v484
      %v491 = vunpack.c.l.b16 %v485
      %v492 = vpack.c.b16 %v491, %v490
      %v495 = vunpack.c.l.b16 %v486
      %v496 = vunpack.c.l.b16 %v487
      %v497 = vpack.c.b16 %v496, %v495
      %498 = vrot.lane.b32.xlu0 %v497, 96
      %v499 = vpop.permute.xlu0 %498
      %vm500 = vcmask 64512
      %v502 = vsel %vm500, %v492, 0
      %v505 = vsel %vm500, %v499, 0
      %507 = vmatpush.bf16.xpose.msra.mxu0 0
      %508 = vmatpush.bf16.xpose.msra.mxu0 0
      %509 = vmatpush.bf16.xpose.msra.mxu0 0
      %510 = vmatpush.bf16.xpose.msra.mxu0 0
      %511 = vmatpush.bf16.xpose.msra.mxu0 0
      %512 = vmatpush.bf16.xpose.msra.mxu0 0
      %513 = vmatpush.bf16.xpose.msra.mxu0 0
      %514 = vmatpush.bf16.xpose.msra.mxu0 %v505
      %515 = vmatmul.bf16.gmra.mxu0 %v502
      %v516 = vpop.f32.mrf.mxu0
      %v517 = vadd.f32 0.0, %v516
      %v518 = vpop.f32.mrf.mxu0
      %v519 = vadd.f32 0.0, %v518
      %520 = vdwg.mxu0
      %vm521 = vcmask 130048
      %v522 = vsel %vm521, %v517, -inf
      %523 = vmax.xlane.f32.xlu0 %v522
      %v524 = vpop.xlane.xlu0 %523
      %v525 = vsel %vm521, %v519, -inf
      %526 = vmax.xlane.f32.xlu0 %v525
      %v527 = vpop.xlane.xlu0 %526
      %v528 = vsub.f32 %v517, %v524
      %v529 = vsub.f32 %v519, %v527
      %v530 = vmul.f32 %v528, 1.442695
      %v531 = vpow.pop %v530
      %v532 = vmul.f32 %v529, 1.442695
      %v533 = vpow.pop %v532
      %v534 = vsel %vm521, %v531, 0.0
      %535 = vadd.xlane.f32.xlu0 %v534
      %v536 = vpop.xlane.xlu0 %535
      %v537 = vsel %vm521, %v533, 0.0
      %538 = vadd.xlane.f32.xlu0 %v537
      %v539 = vpop.xlane.xlu0 %538
      %v540 = vrcp.pop %v536
      %v541 = vrcp.pop %v539
      %v542 = vmul.f32 %v531, %v540
      %v543 = vmul.f32 %v533, %v541
      %v544 = vpack.c.bf16 %v543, %v542
      %545 = vrot.lane.b32.xlu0 %v497, 64
      %v546 = vpop.permute.xlu0 %545
      %v549 = vsel %vm521, %v544, 0
      %551 = vmatpush.bf16.msra.mxu0 0
      %552 = vmatpush.bf16.msra.mxu0 0
      %553 = vmatpush.bf16.msra.mxu0 0
      %554 = vmatpush.bf16.msra.mxu0 0
      %555 = vmatpush.bf16.msra.mxu0 0
      %556 = vmatpush.bf16.msra.mxu0 0
      %557 = vmatpush.bf16.msra.mxu0 0
      %558 = vmatpush.bf16.msra.mxu0 %v546
      %559 = vmatmul.bf16.gmra.mxu0 %v549
      %v560 = vpop.f32.mrf.mxu0
      %v561 = vadd.f32 0.0, %v560
      %v562 = vpop.f32.mrf.mxu0
      %v563 = vadd.f32 0.0, %v562
      %564 = vdwg.mxu0
      %565 = vrot.lane.b32.xlu0 %v492, 120
      %v566 = vpop.permute.xlu0 %565
      %567 = vrot.lane.b32.xlu0 %v497, 88
      %v568 = vpop.permute.xlu0 %567
      %v570 = vsel %vm500, %v566, 0
      %v573 = vsel %vm500, %v568, 0
      %575 = vmatpush.bf16.xpose.msra.mxu0 0
      %576 = vmatpush.bf16.xpose.msra.mxu0 0
      %577 = vmatpush.bf16.xpose.msra.mxu0 0
      %578 = vmatpush.bf16.xpose.msra.mxu0 0
      %579 = vmatpush.bf16.xpose.msra.mxu0 0
      %580 = vmatpush.bf16.xpose.msra.mxu0 0
      %581 = vmatpush.bf16.xpose.msra.mxu0 0
      %582 = vmatpush.bf16.xpose.msra.mxu0 %v573
      %583 = vmatmul.bf16.gmra.mxu0 %v570
      %v584 = vpop.f32.mrf.mxu0
      %v585 = vadd.f32 0.0, %v584
      %v586 = vpop.f32.mrf.mxu0
      %v587 = vadd.f32 0.0, %v586
      %588 = vdwg.mxu0
      %v589 = vsel %vm521, %v585, -inf
      %590 = vmax.xlane.f32.xlu0 %v589
      %v591 = vpop.xlane.xlu0 %590
      %v592 = vsel %vm521, %v587, -inf
      %593 = vmax.xlane.f32.xlu0 %v592
      %v594 = vpop.xlane.xlu0 %593
      %v595 = vsub.f32 %v585, %v591
      %v596 = vsub.f32 %v587, %v594
      %v597 = vmul.f32 %v595, 1.442695
      %v598 = vpow.pop %v597
      %v599 = vmul.f32 %v596, 1.442695
      %v600 = vpow.pop %v599
      %v601 = vsel %vm521, %v598, 0.0
      %602 = vadd.xlane.f32.xlu0 %v601
      %v603 = vpop.xlane.xlu0 %602
      %v604 = vsel %vm521, %v600, 0.0
      %605 = vadd.xlane.f32.xlu0 %v604
      %v606 = vpop.xlane.xlu0 %605
      %v607 = vrcp.pop %v603
      %v608 = vrcp.pop %v606
      %v609 = vmul.f32 %v598, %v607
      %v610 = vmul.f32 %v600, %v608
      %v611 = vpack.c.bf16 %v610, %v609
      %612 = vrot.lane.b32.xlu0 %v497, 56
      %v613 = vpop.permute.xlu0 %612
      %v616 = vsel %vm521, %v611, 0
      %618 = vmatpush.bf16.msra.mxu0 0
      %619 = vmatpush.bf16.msra.mxu0 0
      %620 = vmatpush.bf16.msra.mxu0 0
      %621 = vmatpush.bf16.msra.mxu0 0
      %622 = vmatpush.bf16.msra.mxu0 0
      %623 = vmatpush.bf16.msra.mxu0 0
      %624 = vmatpush.bf16.msra.mxu0 0
      %625 = vmatpush.bf16.msra.mxu0 %v613
      %626 = vmatmul.bf16.gmra.mxu0 %v616
      %v627 = vpop.f32.mrf.mxu0
      %v628 = vadd.f32 0.0, %v627
      %v629 = vpop.f32.mrf.mxu0
      %v630 = vadd.f32 0.0, %v629
      %631 = vdwg.mxu0
      %632 = vrot.lane.b32.xlu0 %v492, 112
      %v633 = vpop.permute.xlu0 %632
      %634 = vrot.lane.b32.xlu0 %v497, 80
      %v635 = vpop.permute.xlu0 %634
      %v637 = vsel %vm500, %v633, 0
      %v640 = vsel %vm500, %v635, 0
      %642 = vmatpush.bf16.xpose.msra.mxu0 0
      %643 = vmatpush.bf16.xpose.msra.mxu0 0
      %644 = vmatpush.bf16.xpose.msra.mxu0 0
      %645 = vmatpush.bf16.xpose.msra.mxu0 0
      %646 = vmatpush.bf16.xpose.msra.mxu0 0
      %647 = vmatpush.bf16.xpose.msra.mxu0 0
      %648 = vmatpush.bf16.xpose.msra.mxu0 0
      %649 = vmatpush.bf16.xpose.msra.mxu0 %v640
      %650 = vmatmul.bf16.gmra.mxu0 %v637
      %v651 = vpop.f32.mrf.mxu0
      %v652 = vadd.f32 0.0, %v651
      %v653 = vpop.f32.mrf.mxu0
      %v654 = vadd.f32 0.0, %v653
      %655 = vdwg.mxu0
      %v656 = vsel %vm521, %v652, -inf
      %657 = vmax.xlane.f32.xlu0 %v656
      %v658 = vpop.xlane.xlu0 %657
      %v659 = vsel %vm521, %v654, -inf
      %660 = vmax.xlane.f32.xlu0 %v659
      %v661 = vpop.xlane.xlu0 %660
      %v662 = vsub.f32 %v652, %v658
      %v663 = vsub.f32 %v654, %v661
      %v664 = vmul.f32 %v662, 1.442695
      %v665 = vpow.pop %v664
      %v666 = vmul.f32 %v663, 1.442695
      %v667 = vpow.pop %v666
      %v668 = vsel %vm521, %v665, 0.0
      %669 = vadd.xlane.f32.xlu0 %v668
      %v670 = vpop.xlane.xlu0 %669
      %v671 = vsel %vm521, %v667, 0.0
      %672 = vadd.xlane.f32.xlu0 %v671
      %v673 = vpop.xlane.xlu0 %672
      %v674 = vrcp.pop %v670
      %v675 = vrcp.pop %v673
      %v676 = vmul.f32 %v665, %v674
      %v677 = vmul.f32 %v667, %v675
      %v678 = vpack.c.bf16 %v677, %v676
      %679 = vrot.lane.b32.xlu0 %v497, 48
      %v680 = vpop.permute.xlu0 %679
      %v683 = vsel %vm521, %v678, 0
      %685 = vmatpush.bf16.msra.mxu0 0
      %686 = vmatpush.bf16.msra.mxu0 0
      %687 = vmatpush.bf16.msra.mxu0 0
      %688 = vmatpush.bf16.msra.mxu0 0
      %689 = vmatpush.bf16.msra.mxu0 0
      %690 = vmatpush.bf16.msra.mxu0 0
      %691 = vmatpush.bf16.msra.mxu0 0
      %692 = vmatpush.bf16.msra.mxu0 %v680
      %693 = vmatmul.bf16.gmra.mxu0 %v683
      %v694 = vpop.f32.mrf.mxu0
      %v695 = vadd.f32 0.0, %v694
      %v696 = vpop.f32.mrf.mxu0
      %v697 = vadd.f32 0.0, %v696
      %698 = vdwg.mxu0
      %699 = vrot.lane.b32.xlu0 %v492, 104
      %v700 = vpop.permute.xlu0 %699
      %701 = vrot.lane.b32.xlu0 %v497, 72
      %v702 = vpop.permute.xlu0 %701
      %v704 = vsel %vm500, %v700, 0
      %v707 = vsel %vm500, %v702, 0
      %709 = vmatpush.bf16.xpose.msra.mxu0 0
      %710 = vmatpush.bf16.xpose.msra.mxu0 0
      %711 = vmatpush.bf16.xpose.msra.mxu0 0
      %712 = vmatpush.bf16.xpose.msra.mxu0 0
      %713 = vmatpush.bf16.xpose.msra.mxu0 0
      %714 = vmatpush.bf16.xpose.msra.mxu0 0
      %715 = vmatpush.bf16.xpose.msra.mxu0 0
      %716 = vmatpush.bf16.xpose.msra.mxu0 %v707
      %717 = vmatmul.bf16.gmra.mxu0 %v704
      %v718 = vpop.f32.mrf.mxu0
      %v719 = vadd.f32 0.0, %v718
      %v720 = vpop.f32.mrf.mxu0
      %v721 = vadd.f32 0.0, %v720
      %722 = vdwg.mxu0
      %v723 = vsel %vm521, %v719, -inf
      %724 = vmax.xlane.f32.xlu0 %v723
      %v725 = vpop.xlane.xlu0 %724
      %v726 = vsel %vm521, %v721, -inf
      %727 = vmax.xlane.f32.xlu0 %v726
      %v728 = vpop.xlane.xlu0 %727
      %v729 = vsub.f32 %v719, %v725
      %v730 = vsub.f32 %v721, %v728
      %v731 = vmul.f32 %v729, 1.442695
      %v732 = vpow.pop %v731
      %v733 = vmul.f32 %v730, 1.442695
      %v734 = vpow.pop %v733
      %v735 = vsel %vm521, %v732, 0.0
      %736 = vadd.xlane.f32.xlu0 %v735
      %v737 = vpop.xlane.xlu0 %736
      %v738 = vsel %vm521, %v734, 0.0
      %739 = vadd.xlane.f32.xlu0 %v738
      %v740 = vpop.xlane.xlu0 %739
      %v741 = vrcp.pop %v737
      %v742 = vrcp.pop %v740
      %v743 = vmul.f32 %v732, %v741
      %v744 = vmul.f32 %v734, %v742
      %v745 = vpack.c.bf16 %v744, %v743
      %746 = vrot.lane.b32.xlu0 %v497, 40
      %v747 = vpop.permute.xlu0 %746
      %v750 = vsel %vm521, %v745, 0
      %752 = vmatpush.bf16.msra.mxu0 0
      %753 = vmatpush.bf16.msra.mxu0 0
      %754 = vmatpush.bf16.msra.mxu0 0
      %755 = vmatpush.bf16.msra.mxu0 0
      %756 = vmatpush.bf16.msra.mxu0 0
      %757 = vmatpush.bf16.msra.mxu0 0
      %758 = vmatpush.bf16.msra.mxu0 0
      %759 = vmatpush.bf16.msra.mxu0 %v747
      %760 = vmatmul.bf16.gmra.mxu0 %v750
      %v761 = vpop.f32.mrf.mxu0
      %v762 = vadd.f32 0.0, %v761
      %v763 = vpop.f32.mrf.mxu0
      %v764 = vadd.f32 0.0, %v763
      %765 = vdwg.mxu0
      %768 = vrot.lane.b32.xlu0 %v628, 8
      %v769 = vpop.permute.xlu0 %768
      %770 = vrot.lane.b32.xlu0 %v630, 8
      %v771 = vpop.permute.xlu0 %770
      %776 = vrot.lane.b32.xlu0 %v695, 16
      %v777 = vpop.permute.xlu0 %776
      %778 = vrot.lane.b32.xlu0 %v697, 16
      %v779 = vpop.permute.xlu0 %778
      %784 = vrot.lane.b32.xlu0 %v762, 24
      %v785 = vpop.permute.xlu0 %784
      %786 = vrot.lane.b32.xlu0 %v764, 24
      %v787 = vpop.permute.xlu0 %786
      %v790 = vsel %vm500, %v561, %v769
      %v791 = vsel %vm500, %v563, %v771
      %v792 = vsel %vm521, %v790, %v777
      %v793 = vsel %vm521, %v791, %v779
      %vm794 = vcmask 195584
      %v795 = vsel %vm794, %v792, %v785
      %v796 = vsel %vm794, %v793, %v787
      %v797 = vpack.c.bf16 %v796, %v795
      %v798 = vld [vmem:[%s3] sm:$0xf]
      %v799 = vld [vmem:[%s3 + $0x4] sm:$0xf]
      %v800 = vld [vmem:[%s3 + $0x8] sm:$0xf]
      %v801 = vld [vmem:[%s3 + $0xc] sm:$0xf]
      %v803 = vperm.slane %v481, 0
      %v809 = vunpack.c.l.b16 %v798
      %v810 = vunpack.c.l.b16 %v799
      %v811 = vunpack.c.l.b16 %v800
      %v812 = vunpack.c.l.b16 %v801
      %v813 = vpack.c.b16 %v810, %v809
      %v814 = vpack.c.b16 %v812, %v811
      %v818 = vsel %vm463, %v797, 0
      %820 = vmatpush.bf16.msra.mxu0 0
      %821 = vmatpush.bf16.msra.mxu0 0
      %822 = vmatpush.bf16.msra.mxu0 0
      %823 = vmatpush.bf16.msra.mxu0 0
      %824 = vmatpush.bf16.msra.mxu0 0
      %825 = vmatpush.bf16.msra.mxu0 0
      %826 = vmatpush.bf16.msra.mxu0 %v814
      %827 = vmatpush.bf16.msra.mxu0 %v813
      %828 = vmatmul.bf16.gmra.mxu0 %v818
      %v829 = vpop.f32.mrf.mxu0
      %v830 = vadd.f32 %v803, %v829
      %v831 = vpop.f32.mrf.mxu0
      %v832 = vadd.f32 %v803, %v831
      %833 = vdwg.mxu0
      %v834 = vadd.f32 %v442, %v830
      %v835 = vadd.f32 %v443, %v832
      %v836 = vld [vmem:[%s5] sm:$0x1]
      %v837 = vld [vmem:[%s6] sm:$0x1]
      %v838 = vsel %vm463, %v834, 0.0
      %839 = vadd.xlane.f32.xlu0 %v838
      %v840 = vpop.xlane.xlu0 %839
      %v841 = vsel %vm463, %v835, 0.0
      %842 = vadd.xlane.f32.xlu0 %v841
      %v843 = vpop.xlane.xlu0 %842
      %v844 = vrcp.pop 32.0
      %v845 = vmul.f32 32.0, %v844
      %v846 = vsub.f32 1.0, %v845
      %v847 = vmul.f32 %v844, %v846
      %v848 = vadd.f32 %v844, %v847
      %vm849 = vweird.f32 %v844
      %v850 = vsel %vm849, %v844, %v848
      %v851 = vmul.f32 %v840, %v850
      %v852 = vmul.f32 %v843, %v850
      %v853 = vsub.f32 %v834, %v851
      %v854 = vsub.f32 %v835, %v852
      %v855 = vmul.f32 %v853, %v853
      %v856 = vmul.f32 %v854, %v854
      %v857 = vsel %vm463, %v855, 0.0
      %858 = vadd.xlane.f32.xlu0 %v857
      %v859 = vpop.xlane.xlu0 %858
      %v860 = vsel %vm463, %v856, 0.0
      %861 = vadd.xlane.f32.xlu0 %v860
      %v862 = vpop.xlane.xlu0 %861
      %v863 = vmul.f32 %v859, %v850
      %v864 = vmul.f32 %v862, %v850
      %v865 = vadd.f32 %v863, 1e-05
      %v866 = vadd.f32 %v864, 1e-05
      %v867 = vrsqrt.pop %v865
      %v868 = vmul.f32 %v867, %v865
      %v869 = vmul.f32 %v868, %v867
      %v870 = vmul.f32 0.5, %v869
      %v871 = vsub.f32 1.5, %v870
      %v872 = vmul.f32 %v867, %v871
      %vm873 = vweird.f32 %v865
      %vm874 = vweird.f32 %v867
      %vm875 = vmor %vm873, %vm874
      %v876 = vsel %vm875, %v867, %v872
      %v877 = vrsqrt.pop %v866
      %v878 = vmul.f32 %v877, %v866
      %v879 = vmul.f32 %v878, %v877
      %v880 = vmul.f32 0.5, %v879
      %v881 = vsub.f32 1.5, %v880
      %v882 = vmul.f32 %v877, %v881
      %vm883 = vweird.f32 %v866
      %vm884 = vweird.f32 %v877
      %vm885 = vmor %vm883, %vm884
      %v886 = vsel %vm885, %v877, %v882
      %v887 = vmul.f32 %v853, %v876
      %v888 = vmul.f32 %v854, %v886
      %v890 = vperm.slane %v836, 0
      %v892 = vmul.f32 %v887, %v890
      %v893 = vmul.f32 %v888, %v890
      %v895 = vperm.slane %v837, 0
      %v897 = vadd.f32 %v892, %v895
      %v898 = vadd.f32 %v893, %v895
      %v899 = vpack.c.bf16 %v898, %v897
      %v900 = vld [vmem:[%s7] sm:$0xf]
      %v901 = vld [vmem:[%s7 + $0x4] sm:$0xf]
      %v902 = vld [vmem:[%s7 + $0x8] sm:$0xf]
      %v903 = vld [vmem:[%s7 + $0xc] sm:$0xf]
      %v904 = vld [vmem:[%s8] sm:$0x1]
      %v906 = vperm.slane %v904, 0
      %v912 = vunpack.c.l.b16 %v900
      %v913 = vunpack.c.l.b16 %v901
      %v914 = vunpack.c.l.b16 %v902
      %v915 = vunpack.c.l.b16 %v903
      %v916 = vpack.c.b16 %v913, %v912
      %v917 = vpack.c.b16 %v915, %v914
      %v921 = vsel %vm463, %v899, 0
      %923 = vmatpush.bf16.msra.mxu0 0
      %924 = vmatpush.bf16.msra.mxu0 0
      %925 = vmatpush.bf16.msra.mxu0 0
      %926 = vmatpush.bf16.msra.mxu0 0
      %927 = vmatpush.bf16.msra.mxu0 0
      %928 = vmatpush.bf16.msra.mxu0 0
      %929 = vmatpush.bf16.msra.mxu0 %v917
      %930 = vmatpush.bf16.msra.mxu0 %v916
      %931 = vmatmul.bf16.gmra.mxu0 %v921
      %v932 = vpop.f32.mrf.mxu0
      %v933 = vadd.f32 %v906, %v932
      %v934 = vpop.f32.mrf.mxu0
      %v935 = vadd.f32 %v906, %v934
      %936 = vdwg.mxu0
      %v937 = vmax.f32 %v933, 0.0
      %v938 = vmax.f32 %v935, 0.0
      %v939 = vpack.c.bf16 %v938, %v937
      %v940 = vld [vmem:[%s9] sm:$0xf]
      %v941 = vld [vmem:[%s9 + $0x4] sm:$0xf]
      %v942 = vld [vmem:[%s9 + $0x8] sm:$0xf]
      %v943 = vld [vmem:[%s9 + $0xc] sm:$0xf]
      %v944 = vld [vmem:[%s9 + $0x10] sm:$0xf]
      %v945 = vld [vmem:[%s9 + $0x14] sm:$0xf]
      %v946 = vld [vmem:[%s9 + $0x18] sm:$0xf]
      %v947 = vld [vmem:[%s9 + $0x1c] sm:$0xf]
      %v948 = vld [vmem:[%s9 + $0x20] sm:$0xf]
      %v949 = vld [vmem:[%s9 + $0x24] sm:$0xf]
      %v950 = vld [vmem:[%s9 + $0x28] sm:$0xf]
      %v951 = vld [vmem:[%s9 + $0x2c] sm:$0xf]
      %v952 = vld [vmem:[%s9 + $0x30] sm:$0xf]
      %v953 = vld [vmem:[%s9 + $0x34] sm:$0xf]
      %v954 = vld [vmem:[%s9 + $0x38] sm:$0xf]
      %v955 = vld [vmem:[%s9 + $0x3c] sm:$0xf]
      %v956 = vld [vmem:[%s10] sm:$0x1]
      %v958 = vperm.slane %v956, 0
      %v976 = vunpack.c.l.b16 %v940
      %v977 = vunpack.c.l.b16 %v941
      %v978 = vunpack.c.l.b16 %v942
      %v979 = vunpack.c.l.b16 %v943
      %v980 = vunpack.c.l.b16 %v944
      %v981 = vunpack.c.l.b16 %v945
      %v982 = vunpack.c.l.b16 %v946
      %v983 = vunpack.c.l.b16 %v947
      %v984 = vunpack.c.l.b16 %v948
      %v985 = vunpack.c.l.b16 %v949
      %v986 = vunpack.c.l.b16 %v950
      %v987 = vunpack.c.l.b16 %v951
      %v988 = vunpack.c.l.b16 %v952
      %v989 = vunpack.c.l.b16 %v953
      %v990 = vunpack.c.l.b16 %v954
      %v991 = vunpack.c.l.b16 %v955
      %v992 = vpack.c.b16 %v977, %v976
      %v993 = vpack.c.b16 %v979, %v978
      %v994 = vpack.c.b16 %v981, %v980
      %v995 = vpack.c.b16 %v983, %v982
      %v996 = vpack.c.b16 %v985, %v984
      %v997 = vpack.c.b16 %v987, %v986
      %v998 = vpack.c.b16 %v989, %v988
      %v999 = vpack.c.b16 %v991, %v990
      %1008 = vmatpush.bf16.msra.mxu0 %v999
      %1009 = vmatpush.bf16.msra.mxu0 %v998
      %1010 = vmatpush.bf16.msra.mxu0 %v997
      %1011 = vmatpush.bf16.msra.mxu0 %v996
      %1012 = vmatpush.bf16.msra.mxu0 %v995
      %1013 = vmatpush.bf16.msra.mxu0 %v994
      %1014 = vmatpush.bf16.msra.mxu0 %v993
      %1015 = vmatpush.bf16.msra.mxu0 %v992
      %1016 = vmatmul.bf16.gmra.mxu0 %v939
      %v1017 = vpop.f32.mrf.mxu0
      %v1018 = vadd.f32 %v958, %v1017
      %v1019 = vpop.f32.mrf.mxu0
      %v1020 = vadd.f32 %v958, %v1019
      %1021 = vdwg.mxu0
      %v1022 = vadd.f32 %v897, %v1018
      %v1023 = vadd.f32 %v898, %v1020
      %v1024 = vld [vmem:[%s11] sm:$0x1]
      %v1025 = vld [vmem:[%s12] sm:$0x1]
      %v1026 = vsel %vm463, %v1022, 0.0
      %1027 = vadd.xlane.f32.xlu0 %v1026
      %v1028 = vpop.xlane.xlu0 %1027
      %v1029 = vsel %vm463, %v1023, 0.0
      %1030 = vadd.xlane.f32.xlu0 %v1029
      %v1031 = vpop.xlane.xlu0 %1030
      %v1032 = vmul.f32 %v1028, %v850
      %v1033 = vmul.f32 %v1031, %v850
      %v1034 = vsub.f32 %v1022, %v1032
      %v1035 = vsub.f32 %v1023, %v1033
      %v1036 = vmul.f32 %v1034, %v1034
      %v1037 = vmul.f32 %v1035, %v1035
      %v1038 = vsel %vm463, %v1036, 0.0
      %1039 = vadd.xlane.f32.xlu0 %v1038
      %v1040 = vpop.xlane.xlu0 %1039
      %v1041 = vsel %vm463, %v1037, 0.0
      %1042 = vadd.xlane.f32.xlu0 %v1041
      %v1043 = vpop.xlane.xlu0 %1042
      %v1044 = vmul.f32 %v1040, %v850
      %v1045 = vmul.f32 %v1043, %v850
      %v1046 = vadd.f32 %v1044, 1e-05
      %v1047 = vadd.f32 %v1045, 1e-05
      %v1048 = vrsqrt.pop %v1046
      %v1049 = vmul.f32 %v1048, %v1046
      %v1050 = vmul.f32 %v1049, %v1048
      %v1051 = vmul.f32 0.5, %v1050
      %v1052 = vsub.f32 1.5, %v1051
      %v1053 = vmul.f32 %v1048, %v1052
      %vm1054 = vweird.f32 %v1046
      %vm1055 = vweird.f32 %v1048
      %vm1056 = vmor %vm1054, %vm1055
      %v1057 = vsel %vm1056, %v1048, %v1053
      %v1058 = vrsqrt.pop %v1047
      %v1059 = vmul.f32 %v1058, %v1047
      %v1060 = vmul.f32 %v1059, %v1058
      %v1061 = vmul.f32 0.5, %v1060
      %v1062 = vsub.f32 1.5, %v1061
      %v1063 = vmul.f32 %v1058, %v1062
      %vm1064 = vweird.f32 %v1047
      %vm1065 = vweird.f32 %v1058
      %vm1066 = vmor %vm1064, %vm1065
      %v1067 = vsel %vm1066, %v1058, %v1063
      %v1068 = vmul.f32 %v1034, %v1057
      %v1069 = vmul.f32 %v1035, %v1067
      %v1071 = vperm.slane %v1024, 0
      %v1073 = vmul.f32 %v1068, %v1071
      %v1074 = vmul.f32 %v1069, %v1071
      %v1076 = vperm.slane %v1025, 0
      %v1078 = vadd.f32 %v1073, %v1076
      %v1079 = vadd.f32 %v1074, %v1076
      %1080 = vst.msk [vmem:[%s440] sm:$0xff] %vm463, %v1078
      %1081 = vst.msk [vmem:[%s440 + $0x8] sm:$0xff] %vm463, %v1079
      %p1082 = scmp.lt.s32.totalorder %s24, 1
      %s1083 = scalar_select %p1082, %s24, 1
      %s1084 = smul.addr %s1083, 2
      %s1085 = smul.addr %s1084, 8
      %s1086 = scalar_lea.vmem %s13, %s1085
      // Predicated region
      $region73: #{rfdetr_forward.7} parent=71 // pred_check
        %p1087 = pneg %p320
      $region74: #{rfdetr_forward.7} parent=71 // pred_check_branch
        %1089 = sbr.rel (%p1087) target = $region76
      $region75: #{rfdetr_forward.7} parent=71 // pred_region
        _
      $region76: #{rfdetr_forward.7} parent=71 // pred_fallthru
        _
    $region72: #{rfdetr_forward.7} parent=5 // pred_fallthru
      _
    %p1090 = scmp.le.s32.totalorder 2, %s19
    // Predicated region
    $region77: #{rfdetr_forward.7} parent=5 // pred_check
      %p1091 = pneg %p1090
    $region78: #{rfdetr_forward.7} parent=5 // pred_check_branch
      %1093 = sbr.rel (%p1091) target = $region80
    $region79: #{rfdetr_forward.7} parent=5 // pred_region
      %s1094 = ssub.s32 %s19, 2
      // Predicated region
      $region81: #{rfdetr_forward.7} parent=79 // pred_check
        %p1095 = pneg %p326
      $region82: #{rfdetr_forward.7} parent=79 // pred_check_branch
        %1097 = sbr.rel (%p1095) target = $region84
      $region83: #{rfdetr_forward.7} parent=79 // pred_region
        %p1098 = scmp.lt.s32.totalorder %s25, 1
        %s1099 = scalar_select %p1098, %s25, 1
        %s1100 = smul.addr %s1099, 2
        %s1101 = smul.addr %s1100, 8
        %s1102 = scalar_lea.vmem %s13, %s1101
      $region84: #{rfdetr_forward.7} parent=79 // pred_fallthru
        _
    $region80: #{rfdetr_forward.7} parent=5 // pred_fallthru
      _
  $region6: #{rfdetr_forward.7} parent=0 // loop_footer
    %s23 = sadd.s32 1, %s19
  $region7: #{rfdetr_forward.7} parent=0 // loop_footer_branch
    %18 = sbr.rel target = $region3
  $region8: #{rfdetr_forward.7} parent=0 // loop_exit
    _

// kernel: rfdetr_forward.11
$region0: #{rfdetr_forward.11}
  #allocation0 [shape = 'u32[]', space=smem, size = 0x4, offset = 0x4, fixed_abs, tag = 'smem constant byte address 0x4 - core index']
  #allocation1 [shape = 'u32[72,128]{1,0:T(1,128)}', space=vmem, size = 0x9000, scoped, tag = 'internal scratch']
  %s0 = inlined_call_operand.vmem [shape: f32[32,32], index: 0, kind: input, shape index: {}]
  %s1 = inlined_call_operand.vmem [shape: bf16[32,32], index: 1, kind: input, shape index: {}]
  %s2 = inlined_call_operand.vmem [shape: f32[1,32], index: 2, kind: input, shape index: {}]
  %s3 = inlined_call_operand.vmem [shape: bf16[32,32], index: 3, kind: input, shape index: {}]
  %s4 = inlined_call_operand.vmem [shape: f32[1,32], index: 4, kind: input, shape index: {}]
  %s5 = inlined_call_operand.vmem [shape: bf16[64,128], index: 5, kind: input, shape index: {}]
  %s6 = inlined_call_operand.vmem [shape: f32[1,128], index: 6, kind: input, shape index: {}]
  %s7 = inlined_call_operand.vmem [shape: f32[32,128], index: 7, kind: output, shape index: {}]
  %s8 = sld [smem:[#allocation0]]
  $region38: #{rfdetr_forward.11} parent=0
    _
  %s10 = ssub.s32 1, %s8
  %s11 = scalar_select 0, %s10, %s8
  // Predicated region
  $region2: #{rfdetr_forward.11} parent=0 // pred_check
    _
  $region3: #{rfdetr_forward.11} parent=0 // pred_check_branch
    %13 = sbr.rel (0) target = $region5
  $region4: #{rfdetr_forward.11} parent=0 // pred_region
    _
  $region5: #{rfdetr_forward.11} parent=0 // pred_fallthru
    _
  // Predicated region
  $region6: #{rfdetr_forward.11} parent=0 // pred_check
    _
  $region7: #{rfdetr_forward.11} parent=0 // pred_check_branch
    %15 = sbr.rel (0) target = $region9
  $region8: #{rfdetr_forward.11} parent=0 // pred_region
    _
  $region9: #{rfdetr_forward.11} parent=0 // pred_fallthru
    _
  // Predicated region
  $region10: #{rfdetr_forward.11} parent=0 // pred_check
    _
  $region11: #{rfdetr_forward.11} parent=0 // pred_check_branch
    %17 = sbr.rel (0) target = $region13
  $region12: #{rfdetr_forward.11} parent=0 // pred_region
    _
  $region13: #{rfdetr_forward.11} parent=0 // pred_fallthru
    _
  // Predicated region
  $region14: #{rfdetr_forward.11} parent=0 // pred_check
    _
  $region15: #{rfdetr_forward.11} parent=0 // pred_check_branch
    %19 = sbr.rel (0) target = $region17
  $region16: #{rfdetr_forward.11} parent=0 // pred_region
    _
  $region17: #{rfdetr_forward.11} parent=0 // pred_fallthru
    _
  // Predicated region
  $region18: #{rfdetr_forward.11} parent=0 // pred_check
    _
  $region19: #{rfdetr_forward.11} parent=0 // pred_check_branch
    %21 = sbr.rel (0) target = $region21
  $region20: #{rfdetr_forward.11} parent=0 // pred_region
    _
  $region21: #{rfdetr_forward.11} parent=0 // pred_fallthru
    _
  // Predicated region
  $region22: #{rfdetr_forward.11} parent=0 // pred_check
    _
  $region23: #{rfdetr_forward.11} parent=0 // pred_check_branch
    %23 = sbr.rel (0) target = $region25
  $region24: #{rfdetr_forward.11} parent=0 // pred_region
    _
  $region25: #{rfdetr_forward.11} parent=0 // pred_fallthru
    _
  // Predicated region
  $region26: #{rfdetr_forward.11} parent=0 // pred_check
    _
  $region27: #{rfdetr_forward.11} parent=0 // pred_check_branch
    %25 = sbr.rel (0) target = $region29
  $region28: #{rfdetr_forward.11} parent=0 // pred_region
    _
  $region29: #{rfdetr_forward.11} parent=0 // pred_fallthru
    _
  %v27 = vld [vmem:[%s0] sm:$0xff]
  %v28 = vld [vmem:[%s0 + $0x8] sm:$0xff]
  %v29 = vld [vmem:[%s0 + $0x10] sm:$0xff]
  %v30 = vld [vmem:[%s0 + $0x18] sm:$0xff]
  %v31 = vpack.c.bf16 %v27, %v27
  %v32 = vpack.c.bf16 %v28, %v28
  %v33 = vpack.c.bf16 %v29, %v29
  %v34 = vpack.c.bf16 %v30, %v30
  %v35 = vld [vmem:[%s1] sm:$0xf]
  %v36 = vld [vmem:[%s1 + $0x4] sm:$0xf]
  %v37 = vld [vmem:[%s1 + $0x8] sm:$0xf]
  %v38 = vld [vmem:[%s1 + $0xc] sm:$0xf]
  %v39 = vld [vmem:[%s2] sm:$0x1]
  %v41 = vperm.slane %v39, 0
  %v47 = vunpack.c.l.b16 %v31
  %v48 = vunpack.c.l.b16 %v32
  %v49 = vunpack.c.l.b16 %v33
  %v50 = vunpack.c.l.b16 %v34
  %v51 = vpack.c.b16 %v48, %v47
  %v52 = vpack.c.b16 %v50, %v49
  %v57 = vunpack.c.l.b16 %v35
  %v58 = vunpack.c.l.b16 %v36
  %v59 = vunpack.c.l.b16 %v37
  %v60 = vunpack.c.l.b16 %v38
  %v61 = vpack.c.b16 %v58, %v57
  %v62 = vpack.c.b16 %v60, %v59
  %vm65 = vcmask 261120
  %v67 = vsel %vm65, %v51, 0
  %v70 = vsel %vm65, %v52, 0
  %72 = vmatpush.bf16.msra.mxu0 0
  %73 = vmatpush.bf16.msra.mxu0 0
  %74 = vmatpush.bf16.msra.mxu0 0
  %75 = vmatpush.bf16.msra.mxu0 0
  %76 = vmatpush.bf16.msra.mxu0 0
  %77 = vmatpush.bf16.msra.mxu0 0
  %78 = vmatpush.bf16.msra.mxu0 %v62
  %79 = vmatpush.bf16.msra.mxu0 %v61
  %80 = vmatmul.bf16.gmra.mxu0 %v67
  %v81 = vpop.f32.mrf.mxu0
  %v82 = vadd.f32 %v41, %v81
  %v83 = vpop.f32.mrf.mxu0
  %v84 = vadd.f32 %v41, %v83
  %85 = vmatmul.bf16.gmra.mxu0 %v70
  %v86 = vpop.f32.mrf.mxu0
  %v87 = vadd.f32 %v41, %v86
  %v88 = vpop.f32.mrf.mxu0
  %v89 = vadd.f32 %v41, %v88
  %90 = vdwg.mxu0
  %v91 = vmax.f32 %v82, 0.0
  %v92 = vmax.f32 %v84, 0.0
  %v93 = vmax.f32 %v87, 0.0
  %v94 = vmax.f32 %v89, 0.0
  %v95 = vpack.c.bf16 %v92, %v91
  %v96 = vpack.c.bf16 %v94, %v93
  %v97 = vld [vmem:[%s3] sm:$0xf]
  %v98 = vld [vmem:[%s3 + $0x4] sm:$0xf]
  %v99 = vld [vmem:[%s3 + $0x8] sm:$0xf]
  %v100 = vld [vmem:[%s3 + $0xc] sm:$0xf]
  %v101 = vld [vmem:[%s4] sm:$0x1]
  %v103 = vperm.slane %v101, 0
  %v109 = vunpack.c.l.b16 %v97
  %v110 = vunpack.c.l.b16 %v98
  %v111 = vunpack.c.l.b16 %v99
  %v112 = vunpack.c.l.b16 %v100
  %v113 = vpack.c.b16 %v110, %v109
  %v114 = vpack.c.b16 %v112, %v111
  %v118 = vsel %vm65, %v95, 0
  %v121 = vsel %vm65, %v96, 0
  %123 = vmatpush.bf16.msra.mxu0 0
  %124 = vmatpush.bf16.msra.mxu0 0
  %125 = vmatpush.bf16.msra.mxu0 0
  %126 = vmatpush.bf16.msra.mxu0 0
  %127 = vmatpush.bf16.msra.mxu0 0
  %128 = vmatpush.bf16.msra.mxu0 0
  %129 = vmatpush.bf16.msra.mxu0 %v114
  %130 = vmatpush.bf16.msra.mxu0 %v113
  %131 = vmatmul.bf16.gmra.mxu0 %v118
  %v132 = vpop.f32.mrf.mxu0
  %v133 = vadd.f32 %v103, %v132
  %v134 = vpop.f32.mrf.mxu0
  %v135 = vadd.f32 %v103, %v134
  %136 = vmatmul.bf16.gmra.mxu0 %v121
  %v137 = vpop.f32.mrf.mxu0
  %v138 = vadd.f32 %v103, %v137
  %v139 = vpop.f32.mrf.mxu0
  %v140 = vadd.f32 %v103, %v139
  %141 = vdwg.mxu0
  %v142 = vmax.f32 %v133, 0.0
  %v143 = vmax.f32 %v135, 0.0
  %v144 = vmax.f32 %v138, 0.0
  %v145 = vmax.f32 %v140, 0.0
  %v146 = vpack.c.bf16 %v142, %v142
  %v147 = vpack.c.bf16 %v143, %v143
  %v148 = vpack.c.bf16 %v144, %v144
  %v149 = vpack.c.bf16 %v145, %v145
  %v154 = vunpack.c.l.b16 %v146
  %v155 = vunpack.c.l.b16 %v147
  %v156 = vunpack.c.l.b16 %v148
  %v157 = vunpack.c.l.b16 %v149
  %v158 = vpack.c.b16 %v155, %v154
  %v159 = vpack.c.b16 %v157, %v156
  %160 = vrot.lane.b32.xlu0 %v158, 32
  %v161 = vpop.permute.xlu0 %160
  %162 = vrot.lane.b32.xlu0 %v159, 32
  %v163 = vpop.permute.xlu0 %162
  %v165 = vsel %vm65, %v51, %v161
  %v167 = vsel %vm65, %v52, %v163
  %v168 = vld [vmem:[%s5] sm:$0xf]
  %v169 = vld [vmem:[%s5 + $0x4] sm:$0xf]
  %v170 = vld [vmem:[%s5 + $0x8] sm:$0xf]
  %v171 = vld [vmem:[%s5 + $0xc] sm:$0xf]
  %v172 = vld [vmem:[%s5 + $0x10] sm:$0xf]
  %v173 = vld [vmem:[%s5 + $0x14] sm:$0xf]
  %v174 = vld [vmem:[%s5 + $0x18] sm:$0xf]
  %v175 = vld [vmem:[%s5 + $0x1c] sm:$0xf]
  %v176 = vld [vmem:[%s6] sm:$0x1]
  %v178 = vperm.slane %v176, 0
  %v188 = vunpack.c.l.b16 %v168
  %v189 = vunpack.c.l.b16 %v169
  %v190 = vunpack.c.l.b16 %v170
  %v191 = vunpack.c.l.b16 %v171
  %v192 = vunpack.c.l.b16 %v172
  %v193 = vunpack.c.l.b16 %v173
  %v194 = vunpack.c.l.b16 %v174
  %v195 = vunpack.c.l.b16 %v175
  %v196 = vpack.c.b16 %v189, %v188
  %v197 = vpack.c.b16 %v191, %v190
  %v198 = vpack.c.b16 %v193, %v192
  %v199 = vpack.c.b16 %v195, %v194
  %vm204 = vcmask 523264
  %v205 = vsel %vm204, %v165, 0
  %v207 = vsel %vm204, %v167, 0
  %209 = vmatpush.bf16.msra.mxu0 0
  %210 = vmatpush.bf16.msra.mxu0 0
  %211 = vmatpush.bf16.msra.mxu0 0
  %212 = vmatpush.bf16.msra.mxu0 0
  %213 = vmatpush.bf16.msra.mxu0 %v199
  %214 = vmatpush.bf16.msra.mxu0 %v198
  %215 = vmatpush.bf16.msra.mxu0 %v197
  %216 = vmatpush.bf16.msra.mxu0 %v196
  %217 = vmatmul.bf16.gmra.mxu0 %v205
  %v218 = vpop.f32.mrf.mxu0
  %v219 = vadd.f32 %v178, %v218
  %v220 = vpop.f32.mrf.mxu0
  %v221 = vadd.f32 %v178, %v220
  %222 = vmatmul.bf16.gmra.mxu0 %v207
  %v223 = vpop.f32.mrf.mxu0
  %v224 = vadd.f32 %v178, %v223
  %v225 = vpop.f32.mrf.mxu0
  %v226 = vadd.f32 %v178, %v225
  %227 = vdwg.mxu0
  %v228 = vlaneseq
  %v229 = vand.u32 %v228, 127
  %vm230 = vcmp.ge.s32.totalorder %v229, 64
  %vm231 = vcmp.lt.s32.totalorder %v229, 68
  %vm232 = vmand %vm230, %vm231
  %v233 = vxor.u32 %v219, 2147483648
  %v234 = vxor.u32 %v221, 2147483648
  %v235 = vxor.u32 %v224, 2147483648
  %v236 = vxor.u32 %v226, 2147483648
  %v237 = vmul.f32 %v233, 1.442695
  %v238 = vpow.pop %v237
  %v239 = vmul.f32 %v234, 1.442695
  %v240 = vpow.pop %v239
  %v241 = vmul.f32 %v235, 1.442695
  %v242 = vpow.pop %v241
  %v243 = vmul.f32 %v236, 1.442695
  %v244 = vpow.pop %v243
  %v245 = vadd.f32 %v238, 1.0
  %v246 = vadd.f32 %v240, 1.0
  %v247 = vadd.f32 %v242, 1.0
  %v248 = vadd.f32 %v244, 1.0
  %v249 = vrcp.pop %v245
  %v250 = vmul.f32 %v245, %v249
  %v251 = vsub.f32 1.0, %v250
  %v252 = vmul.f32 %v249, %v251
  %v253 = vadd.f32 %v249, %v252
  %vm254 = vweird.f32 %v245
  %vm255 = vweird.f32 %v249
  %vm256 = vmor %vm254, %vm255
  %v257 = vsel %vm256, %v249, %v253
  %v258 = vand.u32 2147483647, %v245
  %vm259 = vcmp.eq.f32.partialorder %v258, 8.507059e+37
  %v260 = vand.u32 %v245, 2147483648
  %v261 = vor.u32 1.1754944e-38, %v260
  %v262 = vsel %vm259, %v261, %v257
  %v263 = vmul.f32 1.0, %v262
  %v264 = vrcp.pop %v246
  %v265 = vmul.f32 %v246, %v264
  %v266 = vsub.f32 1.0, %v265
  %v267 = vmul.f32 %v264, %v266
  %v268 = vadd.f32 %v264, %v267
  %vm269 = vweird.f32 %v246
  %vm270 = vweird.f32 %v264
  %vm271 = vmor %vm269, %vm270
  %v272 = vsel %vm271, %v264, %v268
  %v273 = vand.u32 2147483647, %v246
  %vm274 = vcmp.eq.f32.partialorder %v273, 8.507059e+37
  %v275 = vand.u32 %v246, 2147483648
  %v276 = vor.u32 1.1754944e-38, %v275
  %v277 = vsel %vm274, %v276, %v272
  %v278 = vmul.f32 1.0, %v277
  %v279 = vrcp.pop %v247
  %v280 = vmul.f32 %v247, %v279
  %v281 = vsub.f32 1.0, %v280
  %v282 = vmul.f32 %v279, %v281
  %v283 = vadd.f32 %v279, %v282
  %vm284 = vweird.f32 %v247
  %vm285 = vweird.f32 %v279
  %vm286 = vmor %vm284, %vm285
  %v287 = vsel %vm286, %v279, %v283
  %v288 = vand.u32 2147483647, %v247
  %vm289 = vcmp.eq.f32.partialorder %v288, 8.507059e+37
  %v290 = vand.u32 %v247, 2147483648
  %v291 = vor.u32 1.1754944e-38, %v290
  %v292 = vsel %vm289, %v291, %v287
  %v293 = vmul.f32 1.0, %v292
  %v294 = vrcp.pop %v248
  %v295 = vmul.f32 %v248, %v294
  %v296 = vsub.f32 1.0, %v295
  %v297 = vmul.f32 %v294, %v296
  %v298 = vadd.f32 %v294, %v297
  %vm299 = vweird.f32 %v248
  %vm300 = vweird.f32 %v294
  %vm301 = vmor %vm299, %vm300
  %v302 = vsel %vm301, %v294, %v298
  %v303 = vand.u32 2147483647, %v248
  %vm304 = vcmp.eq.f32.partialorder %v303, 8.507059e+37
  %v305 = vand.u32 %v248, 2147483648
  %v306 = vor.u32 1.1754944e-38, %v305
  %v307 = vsel %vm304, %v306, %v302
  %v308 = vmul.f32 1.0, %v307
  %v309 = vsel %vm232, %v263, %v219
  %v310 = vsel %vm232, %v278, %v221
  %v311 = vsel %vm232, %v293, %v224
  %v312 = vsel %vm232, %v308, %v226
  %313 = vst [vmem:[%s7] sm:$0xff] %v309
  %314 = vst [vmem:[%s7 + $0x8] sm:$0xff] %v310
  %315 = vst [vmem:[%s7 + $0x10] sm:$0xff] %v311
  %316 = vst [vmem:[%s7 + $0x18] sm:$0xff] %v312
  // Predicated region
  $region30: #{rfdetr_forward.11} parent=0 // pred_check
    _
  $region31: #{rfdetr_forward.11} parent=0 // pred_check_branch
    %318 = sbr.rel (0) target = $region33
  $region32: #{rfdetr_forward.11} parent=0 // pred_region
    _
  $region33: #{rfdetr_forward.11} parent=0 // pred_fallthru
    _
  // Predicated region
  $region34: #{rfdetr_forward.11} parent=0 // pred_check
    _
  $region35: #{rfdetr_forward.11} parent=0 // pred_check_branch
    %320 = sbr.rel (0) target = $region37
  $region36: #{rfdetr_forward.11} parent=0 // pred_region
    _
  $region37: #{rfdetr_forward.11} parent=0 // pred_fallthru
    _

// kernel: rfdetr_forward.9
$region0: #{rfdetr_forward.9}
  #allocation0 [shape = 'u32[]', space=smem, size = 0x4, offset = 0x4, fixed_abs, tag = 'smem constant byte address 0x4 - core index']
  #allocation1 [shape = 'u32[72,128]{1,0:T(1,128)}', space=vmem, size = 0x9000, scoped, tag = 'internal scratch']
  %s0 = inlined_call_operand.vmem [shape: f32[2,8,32], index: 0, kind: input, shape index: {}]
  %s1 = inlined_call_operand.vmem [shape: f32[2,16,32], index: 1, kind: input, shape index: {}]
  %s2 = inlined_call_operand.vmem [shape: f32[8,96], index: 2, kind: input, shape index: {}]
  %s3 = inlined_call_operand.vmem [shape: bf16[32,96], index: 3, kind: input, shape index: {}]
  %s4 = inlined_call_operand.vmem [shape: bf16[32,32], index: 4, kind: input, shape index: {}]
  %s5 = inlined_call_operand.vmem [shape: f32[1,32], index: 5, kind: input, shape index: {}]
  %s6 = inlined_call_operand.vmem [shape: f32[1,32], index: 6, kind: input, shape index: {}]
  %s7 = inlined_call_operand.vmem [shape: f32[1,32], index: 7, kind: input, shape index: {}]
  %s8 = inlined_call_operand.vmem [shape: f32[8,32], index: 8, kind: input, shape index: {}]
  %s9 = inlined_call_operand.vmem [shape: bf16[32,32], index: 9, kind: input, shape index: {}]
  %s10 = inlined_call_operand.vmem [shape: f32[16,64], index: 10, kind: input, shape index: {}]
  %s11 = inlined_call_operand.vmem [shape: bf16[32,64], index: 11, kind: input, shape index: {}]
  %s12 = inlined_call_operand.vmem [shape: bf16[32,32], index: 12, kind: input, shape index: {}]
  %s13 = inlined_call_operand.vmem [shape: f32[1,32], index: 13, kind: input, shape index: {}]
  %s14 = inlined_call_operand.vmem [shape: f32[1,32], index: 14, kind: input, shape index: {}]
  %s15 = inlined_call_operand.vmem [shape: f32[1,32], index: 15, kind: input, shape index: {}]
  %s16 = inlined_call_operand.vmem [shape: bf16[32,128], index: 16, kind: input, shape index: {}]
  %s17 = inlined_call_operand.vmem [shape: f32[1,128], index: 17, kind: input, shape index: {}]
  %s18 = inlined_call_operand.vmem [shape: bf16[128,32], index: 18, kind: input, shape index: {}]
  %s19 = inlined_call_operand.vmem [shape: f32[1,32], index: 19, kind: input, shape index: {}]
  %s20 = inlined_call_operand.vmem [shape: f32[1,32], index: 20, kind: input, shape index: {}]
  %s21 = inlined_call_operand.vmem [shape: f32[1,32], index: 21, kind: input, shape index: {}]
  %s22 = inlined_call_operand.vmem [shape: f32[1,32], index: 22, kind: input, shape index: {}]
  %s23 = inlined_call_operand.vmem [shape: f32[1,32], index: 23, kind: input, shape index: {}]
  %s24 = inlined_call_operand.vmem [shape: f32[2,8,32], index: 24, kind: output, shape index: {0}]
  %s25 = inlined_call_operand.vmem [shape: f32[2,8,32], index: 25, kind: output, shape index: {1}]
  %26 = xla_tuple %s24, %s25
  %s27 = sld [smem:[#allocation0]]
  $region137: #{rfdetr_forward.9} parent=0
    _
  %s29 = ssub.s32 1, %s27
  %s30 = scalar_select 0, %s29, %s27
  loop: start=0, step=1, limit=4
  $region2: #{rfdetr_forward.9} parent=0 // loop_pre_header
    _
  $region3: #{rfdetr_forward.9} parent=0 // loop_header
    %s32 = sphi 0, %s36
    %p33 = scmp.ge.s32.totalorder %s32, 4
    %s42 = sphi 0, %s44
    %s45 = sphi 0, %s42
    %s46 = sphi 0, %s45
    %s62 = sphi 0, %s46
    %s68 = sphi 0, %s70
    %s71 = sphi 0, %s68
    %s72 = sphi 0, %s71
    %s88 = sphi 0, %s72
    %s92 = sphi 0, %s92
    %s94 = sphi 0, %s92
    %s95 = sphi 0, %s94
    %s109 = sphi 0, %s95
    %s113 = sphi 0, %s113
    %s115 = sphi 0, %s113
    %s116 = sphi 0, %s115
    %s130 = sphi 0, %s116
    %s134 = sphi 0, %s134
    %s136 = sphi 0, %s134
    %s137 = sphi 0, %s136
    %s151 = sphi 0, %s137
    %s155 = sphi 0, %s155
    %s157 = sphi 0, %s155
    %s158 = sphi 0, %s157
    %s172 = sphi 0, %s158
    %s176 = sphi 0, %s176
    %s178 = sphi 0, %s176
    %s179 = sphi 0, %s178
    %s193 = sphi 0, %s179
    %s197 = sphi 0, %s197
    %s199 = sphi 0, %s197
    %s200 = sphi 0, %s199
    %s214 = sphi 0, %s200
    %s218 = sphi 0, %s218
    %s220 = sphi 0, %s218
    %s221 = sphi 0, %s220
    %s235 = sphi 0, %s221
    %s239 = sphi 0, %s239
    %s241 = sphi 0, %s239
    %s242 = sphi 0, %s241
    %s256 = sphi 0, %s242
    %s260 = sphi 0, %s260
    %s262 = sphi 0, %s260
    %s263 = sphi 0, %s262
    %s277 = sphi 0, %s263
    %s281 = sphi 0, %s281
    %s283 = sphi 0, %s281
    %s284 = sphi 0, %s283
    %s298 = sphi 0, %s284
    %s302 = sphi 0, %s302
    %s304 = sphi 0, %s302
    %s305 = sphi 0, %s304
    %s319 = sphi 0, %s305
    %s323 = sphi 0, %s323
    %s325 = sphi 0, %s323
    %s326 = sphi 0, %s325
    %s340 = sphi 0, %s326
    %s344 = sphi 0, %s344
    %s346 = sphi 0, %s344
    %s347 = sphi 0, %s346
    %s361 = sphi 0, %s347
    %s365 = sphi 0, %s365
    %s367 = sphi 0, %s365
    %s368 = sphi 0, %s367
    %s382 = sphi 0, %s368
    %s386 = sphi 0, %s386
    %s388 = sphi 0, %s386
    %s389 = sphi 0, %s388
    %s403 = sphi 0, %s389
    %s407 = sphi 0, %s407
    %s409 = sphi 0, %s407
    %s410 = sphi 0, %s409
    %s424 = sphi 0, %s410
    %s428 = sphi 0, %s428
    %s430 = sphi 0, %s428
    %s431 = sphi 0, %s430
    %s445 = sphi 0, %s431
    %s449 = sphi 0, %s449
    %s451 = sphi 0, %s449
    %s452 = sphi 0, %s451
    %s466 = sphi 0, %s452
    %s470 = sphi 0, %s470
    %s472 = sphi 0, %s470
    %s473 = sphi 0, %s472
    %s487 = sphi 0, %s473
    %s491 = sphi 0, %s491
    %s493 = sphi 0, %s491
    %s494 = sphi 0, %s493
    %s508 = sphi 0, %s494
    %s512 = sphi 0, %s512
    %s514 = sphi 0, %s512
    %s515 = sphi 0, %s514
    %s529 = sphi 0, %s515
    %s533 = sphi 0, %s533
    %s535 = sphi 0, %s533
    %s536 = sphi 0, %s535
    %s550 = sphi 0, %s536
    %s556 = sphi 0, %s558
    %s559 = sphi 0, %s556
    %s560 = sphi 0, %s559
    %s576 = sphi 0, %s560
    %s582 = sphi 0, %s584
    %s585 = sphi 0, %s582
    %s586 = sphi 0, %s585
    %s602 = sphi 0, %s586
  $region4: #{rfdetr_forward.9} parent=0 // loop_header_branch
    %35 = sbr.rel (%p33) target = $region8
  $region5: #{rfdetr_forward.9} parent=0 // loop_body
    %s37 = ssub.s32 %s32, 1
    %s38 = ssub.s32 %s32, 2
    %s39 = sadd.s32 %s32, 1
    %s40 = ssub.s32 %s32, %s39
    %p41 = scmp.eq.s32.totalorder %s40, 0
    %s43 = sadd.s32 %s42, 1
    %s44 = scalar_select %p41, %s42, %s43
    %p47 = pneg %p41
    %p48 = scmp.eq.s32.totalorder %s32, 1
    %p49 = por %p47, %p48
    %p50 = scmp.ne.s32.totalorder %s42, %s45
    %p51 = scmp.eq.s32.totalorder %s32, 0
    %p52 = por %p50, %p51
    %p53 = scmp.ne.s32.totalorder %s42, %s45
    %p54 = scmp.eq.s32.totalorder %s37, 1
    %p55 = por %p53, %p54
    %p56 = scmp.ne.s32.totalorder %s45, %s46
    %p57 = scmp.eq.s32.totalorder %s37, 0
    %p58 = por %p56, %p57
    %p59 = scmp.ne.s32.totalorder %s45, %s46
    %p60 = scmp.eq.s32.totalorder %s38, 1
    %p61 = por %p59, %p60
    %p63 = scmp.ne.s32.totalorder %s46, %s62
    %p64 = scmp.eq.s32.totalorder %s38, 0
    %p65 = por %p63, %p64
    %s66 = ssub.s32 %s32, %s39
    %p67 = scmp.eq.s32.totalorder %s66, 0
    %s69 = sadd.s32 %s68, 1
    %s70 = scalar_select %p67, %s68, %s69
    %p73 = pneg %p67
    %p74 = scmp.eq.s32.totalorder %s32, 1
    %p75 = por %p73, %p74
    %p76 = scmp.ne.s32.totalorder %s68, %s71
    %p77 = scmp.eq.s32.totalorder %s32, 0
    %p78 = por %p76, %p77
    %p79 = scmp.ne.s32.totalorder %s68, %s71
    %p80 = scmp.eq.s32.totalorder %s37, 1
    %p81 = por %p79, %p80
    %p82 = scmp.ne.s32.totalorder %s71, %s72
    %p83 = scmp.eq.s32.totalorder %s37, 0
    %p84 = por %p82, %p83
    %p85 = scmp.ne.s32.totalorder %s71, %s72
    %p86 = scmp.eq.s32.totalorder %s38, 1
    %p87 = por %p85, %p86
    %p89 = scmp.ne.s32.totalorder %s72, %s88
    %p90 = scmp.eq.s32.totalorder %s38, 0
    %p91 = por %p89, %p90
    %s93 = sadd.s32 %s92, 1
    %p96 = scmp.eq.s32.totalorder %s32, 1
    %p97 = scmp.ne.s32.totalorder %s92, %s94
    %p98 = scmp.eq.s32.totalorder %s32, 0
    %p99 = por %p97, %p98
    %p100 = scmp.ne.s32.totalorder %s92, %s94
    %p101 = scmp.eq.s32.totalorder %s37, 1
    %p102 = por %p100, %p101
    %p103 = scmp.ne.s32.totalorder %s94, %s95
    %p104 = scmp.eq.s32.totalorder %s37, 0
    %p105 = por %p103, %p104
    %p106 = scmp.ne.s32.totalorder %s94, %s95
    %p107 = scmp.eq.s32.totalorder %s38, 1
    %p108 = por %p106, %p107
    %p110 = scmp.ne.s32.totalorder %s95, %s109
    %p111 = scmp.eq.s32.totalorder %s38, 0
    %p112 = por %p110, %p111
    %s114 = sadd.s32 %s113, 1
    %p117 = scmp.eq.s32.totalorder %s32, 1
    %p118 = scmp.ne.s32.totalorder %s113, %s115
    %p119 = scmp.eq.s32.totalorder %s32, 0
    %p120 = por %p118, %p119
    %p121 = scmp.ne.s32.totalorder %s113, %s115
    %p122 = scmp.eq.s32.totalorder %s37, 1
    %p123 = por %p121, %p122
    %p124 = scmp.ne.s32.totalorder %s115, %s116
    %p125 = scmp.eq.s32.totalorder %s37, 0
    %p126 = por %p124, %p125
    %p127 = scmp.ne.s32.totalorder %s115, %s116
    %p128 = scmp.eq.s32.totalorder %s38, 1
    %p129 = por %p127, %p128
    %p131 = scmp.ne.s32.totalorder %s116, %s130
    %p132 = scmp.eq.s32.totalorder %s38, 0
    %p133 = por %p131, %p132
    %s135 = sadd.s32 %s134, 1
    %p138 = scmp.eq.s32.totalorder %s32, 1
    %p139 = scmp.ne.s32.totalorder %s134, %s136
    %p140 = scmp.eq.s32.totalorder %s32, 0
    %p141 = por %p139, %p140
    %p142 = scmp.ne.s32.totalorder %s134, %s136
    %p143 = scmp.eq.s32.totalorder %s37, 1
    %p144 = por %p142, %p143
    %p145 = scmp.ne.s32.totalorder %s136, %s137
    %p146 = scmp.eq.s32.totalorder %s37, 0
    %p147 = por %p145, %p146
    %p148 = scmp.ne.s32.totalorder %s136, %s137
    %p149 = scmp.eq.s32.totalorder %s38, 1
    %p150 = por %p148, %p149
    %p152 = scmp.ne.s32.totalorder %s137, %s151
    %p153 = scmp.eq.s32.totalorder %s38, 0
    %p154 = por %p152, %p153
    %s156 = sadd.s32 %s155, 1
    %p159 = scmp.eq.s32.totalorder %s32, 1
    %p160 = scmp.ne.s32.totalorder %s155, %s157
    %p161 = scmp.eq.s32.totalorder %s32, 0
    %p162 = por %p160, %p161
    %p163 = scmp.ne.s32.totalorder %s155, %s157
    %p164 = scmp.eq.s32.totalorder %s37, 1
    %p165 = por %p163, %p164
    %p166 = scmp.ne.s32.totalorder %s157, %s158
    %p167 = scmp.eq.s32.totalorder %s37, 0
    %p168 = por %p166, %p167
    %p169 = scmp.ne.s32.totalorder %s157, %s158
    %p170 = scmp.eq.s32.totalorder %s38, 1
    %p171 = por %p169, %p170
    %p173 = scmp.ne.s32.totalorder %s158, %s172
    %p174 = scmp.eq.s32.totalorder %s38, 0
    %p175 = por %p173, %p174
    %s177 = sadd.s32 %s176, 1
    %p180 = scmp.eq.s32.totalorder %s32, 1
    %p181 = scmp.ne.s32.totalorder %s176, %s178
    %p182 = scmp.eq.s32.totalorder %s32, 0
    %p183 = por %p181, %p182
    %p184 = scmp.ne.s32.totalorder %s176, %s178
    %p185 = scmp.eq.s32.totalorder %s37, 1
    %p186 = por %p184, %p185
    %p187 = scmp.ne.s32.totalorder %s178, %s179
    %p188 = scmp.eq.s32.totalorder %s37, 0
    %p189 = por %p187, %p188
    %p190 = scmp.ne.s32.totalorder %s178, %s179
    %p191 = scmp.eq.s32.totalorder %s38, 1
    %p192 = por %p190, %p191
    %p194 = scmp.ne.s32.totalorder %s179, %s193
    %p195 = scmp.eq.s32.totalorder %s38, 0
    %p196 = por %p194, %p195
    %s198 = sadd.s32 %s197, 1
    %p201 = scmp.eq.s32.totalorder %s32, 1
    %p202 = scmp.ne.s32.totalorder %s197, %s199
    %p203 = scmp.eq.s32.totalorder %s32, 0
    %p204 = por %p202, %p203
    %p205 = scmp.ne.s32.totalorder %s197, %s199
    %p206 = scmp.eq.s32.totalorder %s37, 1
    %p207 = por %p205, %p206
    %p208 = scmp.ne.s32.totalorder %s199, %s200
    %p209 = scmp.eq.s32.totalorder %s37, 0
    %p210 = por %p208, %p209
    %p211 = scmp.ne.s32.totalorder %s199, %s200
    %p212 = scmp.eq.s32.totalorder %s38, 1
    %p213 = por %p211, %p212
    %p215 = scmp.ne.s32.totalorder %s200, %s214
    %p216 = scmp.eq.s32.totalorder %s38, 0
    %p217 = por %p215, %p216
    %s219 = sadd.s32 %s218, 1
    %p222 = scmp.eq.s32.totalorder %s32, 1
    %p223 = scmp.ne.s32.totalorder %s218, %s220
    %p224 = scmp.eq.s32.totalorder %s32, 0
    %p225 = por %p223, %p224
    %p226 = scmp.ne.s32.totalorder %s218, %s220
    %p227 = scmp.eq.s32.totalorder %s37, 1
    %p228 = por %p226, %p227
    %p229 = scmp.ne.s32.totalorder %s220, %s221
    %p230 = scmp.eq.s32.totalorder %s37, 0
    %p231 = por %p229, %p230
    %p232 = scmp.ne.s32.totalorder %s220, %s221
    %p233 = scmp.eq.s32.totalorder %s38, 1
    %p234 = por %p232, %p233
    %p236 = scmp.ne.s32.totalorder %s221, %s235
    %p237 = scmp.eq.s32.totalorder %s38, 0
    %p238 = por %p236, %p237
    %s240 = sadd.s32 %s239, 1
    %p243 = scmp.eq.s32.totalorder %s32, 1
    %p244 = scmp.ne.s32.totalorder %s239, %s241
    %p245 = scmp.eq.s32.totalorder %s32, 0
    %p246 = por %p244, %p245
    %p247 = scmp.ne.s32.totalorder %s239, %s241
    %p248 = scmp.eq.s32.totalorder %s37, 1
    %p249 = por %p247, %p248
    %p250 = scmp.ne.s32.totalorder %s241, %s242
    %p251 = scmp.eq.s32.totalorder %s37, 0
    %p252 = por %p250, %p251
    %p253 = scmp.ne.s32.totalorder %s241, %s242
    %p254 = scmp.eq.s32.totalorder %s38, 1
    %p255 = por %p253, %p254
    %p257 = scmp.ne.s32.totalorder %s242, %s256
    %p258 = scmp.eq.s32.totalorder %s38, 0
    %p259 = por %p257, %p258
    %s261 = sadd.s32 %s260, 1
    %p264 = scmp.eq.s32.totalorder %s32, 1
    %p265 = scmp.ne.s32.totalorder %s260, %s262
    %p266 = scmp.eq.s32.totalorder %s32, 0
    %p267 = por %p265, %p266
    %p268 = scmp.ne.s32.totalorder %s260, %s262
    %p269 = scmp.eq.s32.totalorder %s37, 1
    %p270 = por %p268, %p269
    %p271 = scmp.ne.s32.totalorder %s262, %s263
    %p272 = scmp.eq.s32.totalorder %s37, 0
    %p273 = por %p271, %p272
    %p274 = scmp.ne.s32.totalorder %s262, %s263
    %p275 = scmp.eq.s32.totalorder %s38, 1
    %p276 = por %p274, %p275
    %p278 = scmp.ne.s32.totalorder %s263, %s277
    %p279 = scmp.eq.s32.totalorder %s38, 0
    %p280 = por %p278, %p279
    %s282 = sadd.s32 %s281, 1
    %p285 = scmp.eq.s32.totalorder %s32, 1
    %p286 = scmp.ne.s32.totalorder %s281, %s283
    %p287 = scmp.eq.s32.totalorder %s32, 0
    %p288 = por %p286, %p287
    %p289 = scmp.ne.s32.totalorder %s281, %s283
    %p290 = scmp.eq.s32.totalorder %s37, 1
    %p291 = por %p289, %p290
    %p292 = scmp.ne.s32.totalorder %s283, %s284
    %p293 = scmp.eq.s32.totalorder %s37, 0
    %p294 = por %p292, %p293
    %p295 = scmp.ne.s32.totalorder %s283, %s284
    %p296 = scmp.eq.s32.totalorder %s38, 1
    %p297 = por %p295, %p296
    %p299 = scmp.ne.s32.totalorder %s284, %s298
    %p300 = scmp.eq.s32.totalorder %s38, 0
    %p301 = por %p299, %p300
    %s303 = sadd.s32 %s302, 1
    %p306 = scmp.eq.s32.totalorder %s32, 1
    %p307 = scmp.ne.s32.totalorder %s302, %s304
    %p308 = scmp.eq.s32.totalorder %s32, 0
    %p309 = por %p307, %p308
    %p310 = scmp.ne.s32.totalorder %s302, %s304
    %p311 = scmp.eq.s32.totalorder %s37, 1
    %p312 = por %p310, %p311
    %p313 = scmp.ne.s32.totalorder %s304, %s305
    %p314 = scmp.eq.s32.totalorder %s37, 0
    %p315 = por %p313, %p314
    %p316 = scmp.ne.s32.totalorder %s304, %s305
    %p317 = scmp.eq.s32.totalorder %s38, 1
    %p318 = por %p316, %p317
    %p320 = scmp.ne.s32.totalorder %s305, %s319
    %p321 = scmp.eq.s32.totalorder %s38, 0
    %p322 = por %p320, %p321
    %s324 = sadd.s32 %s323, 1
    %p327 = scmp.eq.s32.totalorder %s32, 1
    %p328 = scmp.ne.s32.totalorder %s323, %s325
    %p329 = scmp.eq.s32.totalorder %s32, 0
    %p330 = por %p328, %p329
    %p331 = scmp.ne.s32.totalorder %s323, %s325
    %p332 = scmp.eq.s32.totalorder %s37, 1
    %p333 = por %p331, %p332
    %p334 = scmp.ne.s32.totalorder %s325, %s326
    %p335 = scmp.eq.s32.totalorder %s37, 0
    %p336 = por %p334, %p335
    %p337 = scmp.ne.s32.totalorder %s325, %s326
    %p338 = scmp.eq.s32.totalorder %s38, 1
    %p339 = por %p337, %p338
    %p341 = scmp.ne.s32.totalorder %s326, %s340
    %p342 = scmp.eq.s32.totalorder %s38, 0
    %p343 = por %p341, %p342
    %s345 = sadd.s32 %s344, 1
    %p348 = scmp.eq.s32.totalorder %s32, 1
    %p349 = scmp.ne.s32.totalorder %s344, %s346
    %p350 = scmp.eq.s32.totalorder %s32, 0
    %p351 = por %p349, %p350
    %p352 = scmp.ne.s32.totalorder %s344, %s346
    %p353 = scmp.eq.s32.totalorder %s37, 1
    %p354 = por %p352, %p353
    %p355 = scmp.ne.s32.totalorder %s346, %s347
    %p356 = scmp.eq.s32.totalorder %s37, 0
    %p357 = por %p355, %p356
    %p358 = scmp.ne.s32.totalorder %s346, %s347
    %p359 = scmp.eq.s32.totalorder %s38, 1
    %p360 = por %p358, %p359
    %p362 = scmp.ne.s32.totalorder %s347, %s361
    %p363 = scmp.eq.s32.totalorder %s38, 0
    %p364 = por %p362, %p363
    %s366 = sadd.s32 %s365, 1
    %p369 = scmp.eq.s32.totalorder %s32, 1
    %p370 = scmp.ne.s32.totalorder %s365, %s367
    %p371 = scmp.eq.s32.totalorder %s32, 0
    %p372 = por %p370, %p371
    %p373 = scmp.ne.s32.totalorder %s365, %s367
    %p374 = scmp.eq.s32.totalorder %s37, 1
    %p375 = por %p373, %p374
    %p376 = scmp.ne.s32.totalorder %s367, %s368
    %p377 = scmp.eq.s32.totalorder %s37, 0
    %p378 = por %p376, %p377
    %p379 = scmp.ne.s32.totalorder %s367, %s368
    %p380 = scmp.eq.s32.totalorder %s38, 1
    %p381 = por %p379, %p380
    %p383 = scmp.ne.s32.totalorder %s368, %s382
    %p384 = scmp.eq.s32.totalorder %s38, 0
    %p385 = por %p383, %p384
    %s387 = sadd.s32 %s386, 1
    %p390 = scmp.eq.s32.totalorder %s32, 1
    %p391 = scmp.ne.s32.totalorder %s386, %s388
    %p392 = scmp.eq.s32.totalorder %s32, 0
    %p393 = por %p391, %p392
    %p394 = scmp.ne.s32.totalorder %s386, %s388
    %p395 = scmp.eq.s32.totalorder %s37, 1
    %p396 = por %p394, %p395
    %p397 = scmp.ne.s32.totalorder %s388, %s389
    %p398 = scmp.eq.s32.totalorder %s37, 0
    %p399 = por %p397, %p398
    %p400 = scmp.ne.s32.totalorder %s388, %s389
    %p401 = scmp.eq.s32.totalorder %s38, 1
    %p402 = por %p400, %p401
    %p404 = scmp.ne.s32.totalorder %s389, %s403
    %p405 = scmp.eq.s32.totalorder %s38, 0
    %p406 = por %p404, %p405
    %s408 = sadd.s32 %s407, 1
    %p411 = scmp.eq.s32.totalorder %s32, 1
    %p412 = scmp.ne.s32.totalorder %s407, %s409
    %p413 = scmp.eq.s32.totalorder %s32, 0
    %p414 = por %p412, %p413
    %p415 = scmp.ne.s32.totalorder %s407, %s409
    %p416 = scmp.eq.s32.totalorder %s37, 1
    %p417 = por %p415, %p416
    %p418 = scmp.ne.s32.totalorder %s409, %s410
    %p419 = scmp.eq.s32.totalorder %s37, 0
    %p420 = por %p418, %p419
    %p421 = scmp.ne.s32.totalorder %s409, %s410
    %p422 = scmp.eq.s32.totalorder %s38, 1
    %p423 = por %p421, %p422
    %p425 = scmp.ne.s32.totalorder %s410, %s424
    %p426 = scmp.eq.s32.totalorder %s38, 0
    %p427 = por %p425, %p426
    %s429 = sadd.s32 %s428, 1
    %p432 = scmp.eq.s32.totalorder %s32, 1
    %p433 = scmp.ne.s32.totalorder %s428, %s430
    %p434 = scmp.eq.s32.totalorder %s32, 0
    %p435 = por %p433, %p434
    %p436 = scmp.ne.s32.totalorder %s428, %s430
    %p437 = scmp.eq.s32.totalorder %s37, 1
    %p438 = por %p436, %p437
    %p439 = scmp.ne.s32.totalorder %s430, %s431
    %p440 = scmp.eq.s32.totalorder %s37, 0
    %p441 = por %p439, %p440
    %p442 = scmp.ne.s32.totalorder %s430, %s431
    %p443 = scmp.eq.s32.totalorder %s38, 1
    %p444 = por %p442, %p443
    %p446 = scmp.ne.s32.totalorder %s431, %s445
    %p447 = scmp.eq.s32.totalorder %s38, 0
    %p448 = por %p446, %p447
    %s450 = sadd.s32 %s449, 1
    %p453 = scmp.eq.s32.totalorder %s32, 1
    %p454 = scmp.ne.s32.totalorder %s449, %s451
    %p455 = scmp.eq.s32.totalorder %s32, 0
    %p456 = por %p454, %p455
    %p457 = scmp.ne.s32.totalorder %s449, %s451
    %p458 = scmp.eq.s32.totalorder %s37, 1
    %p459 = por %p457, %p458
    %p460 = scmp.ne.s32.totalorder %s451, %s452
    %p461 = scmp.eq.s32.totalorder %s37, 0
    %p462 = por %p460, %p461
    %p463 = scmp.ne.s32.totalorder %s451, %s452
    %p464 = scmp.eq.s32.totalorder %s38, 1
    %p465 = por %p463, %p464
    %p467 = scmp.ne.s32.totalorder %s452, %s466
    %p468 = scmp.eq.s32.totalorder %s38, 0
    %p469 = por %p467, %p468
    %s471 = sadd.s32 %s470, 1
    %p474 = scmp.eq.s32.totalorder %s32, 1
    %p475 = scmp.ne.s32.totalorder %s470, %s472
    %p476 = scmp.eq.s32.totalorder %s32, 0
    %p477 = por %p475, %p476
    %p478 = scmp.ne.s32.totalorder %s470, %s472
    %p479 = scmp.eq.s32.totalorder %s37, 1
    %p480 = por %p478, %p479
    %p481 = scmp.ne.s32.totalorder %s472, %s473
    %p482 = scmp.eq.s32.totalorder %s37, 0
    %p483 = por %p481, %p482
    %p484 = scmp.ne.s32.totalorder %s472, %s473
    %p485 = scmp.eq.s32.totalorder %s38, 1
    %p486 = por %p484, %p485
    %p488 = scmp.ne.s32.totalorder %s473, %s487
    %p489 = scmp.eq.s32.totalorder %s38, 0
    %p490 = por %p488, %p489
    %s492 = sadd.s32 %s491, 1
    %p495 = scmp.eq.s32.totalorder %s32, 1
    %p496 = scmp.ne.s32.totalorder %s491, %s493
    %p497 = scmp.eq.s32.totalorder %s32, 0
    %p498 = por %p496, %p497
    %p499 = scmp.ne.s32.totalorder %s491, %s493
    %p500 = scmp.eq.s32.totalorder %s37, 1
    %p501 = por %p499, %p500
    %p502 = scmp.ne.s32.totalorder %s493, %s494
    %p503 = scmp.eq.s32.totalorder %s37, 0
    %p504 = por %p502, %p503
    %p505 = scmp.ne.s32.totalorder %s493, %s494
    %p506 = scmp.eq.s32.totalorder %s38, 1
    %p507 = por %p505, %p506
    %p509 = scmp.ne.s32.totalorder %s494, %s508
    %p510 = scmp.eq.s32.totalorder %s38, 0
    %p511 = por %p509, %p510
    %s513 = sadd.s32 %s512, 1
    %p516 = scmp.eq.s32.totalorder %s32, 1
    %p517 = scmp.ne.s32.totalorder %s512, %s514
    %p518 = scmp.eq.s32.totalorder %s32, 0
    %p519 = por %p517, %p518
    %p520 = scmp.ne.s32.totalorder %s512, %s514
    %p521 = scmp.eq.s32.totalorder %s37, 1
    %p522 = por %p520, %p521
    %p523 = scmp.ne.s32.totalorder %s514, %s515
    %p524 = scmp.eq.s32.totalorder %s37, 0
    %p525 = por %p523, %p524
    %p526 = scmp.ne.s32.totalorder %s514, %s515
    %p527 = scmp.eq.s32.totalorder %s38, 1
    %p528 = por %p526, %p527
    %p530 = scmp.ne.s32.totalorder %s515, %s529
    %p531 = scmp.eq.s32.totalorder %s38, 0
    %p532 = por %p530, %p531
    %s534 = sadd.s32 %s533, 1
    %p537 = scmp.eq.s32.totalorder %s32, 1
    %p538 = scmp.ne.s32.totalorder %s533, %s535
    %p539 = scmp.eq.s32.totalorder %s32, 0
    %p540 = por %p538, %p539
    %p541 = scmp.ne.s32.totalorder %s533, %s535
    %p542 = scmp.eq.s32.totalorder %s37, 1
    %p543 = por %p541, %p542
    %p544 = scmp.ne.s32.totalorder %s535, %s536
    %p545 = scmp.eq.s32.totalorder %s37, 0
    %p546 = por %p544, %p545
    %p547 = scmp.ne.s32.totalorder %s535, %s536
    %p548 = scmp.eq.s32.totalorder %s38, 1
    %p549 = por %p547, %p548
    %p551 = scmp.ne.s32.totalorder %s536, %s550
    %p552 = scmp.eq.s32.totalorder %s38, 0
    %p553 = por %p551, %p552
    %s554 = ssub.s32 %s32, %s39
    %p555 = scmp.eq.s32.totalorder %s554, 0
    %s557 = sadd.s32 %s556, 1
    %s558 = scalar_select %p555, %s556, %s557
    %p561 = pneg %p555
    %p562 = scmp.eq.s32.totalorder %s32, 1
    %p563 = por %p561, %p562
    %p564 = scmp.ne.s32.totalorder %s556, %s559
    %p565 = scmp.eq.s32.totalorder %s32, 0
    %p566 = por %p564, %p565
    %p567 = scmp.ne.s32.totalorder %s556, %s559
    %p568 = scmp.eq.s32.totalorder %s37, 1
    %p569 = por %p567, %p568
    %p570 = scmp.ne.s32.totalorder %s559, %s560
    %p571 = scmp.eq.s32.totalorder %s37, 0
    %p572 = por %p570, %p571
    %p573 = scmp.ne.s32.totalorder %s559, %s560
    %p574 = scmp.eq.s32.totalorder %s38, 1
    %p575 = por %p573, %p574
    %p577 = scmp.ne.s32.totalorder %s560, %s576
    %p578 = scmp.eq.s32.totalorder %s38, 0
    %p579 = por %p577, %p578
    %s580 = ssub.s32 %s32, %s39
    %p581 = scmp.eq.s32.totalorder %s580, 0
    %s583 = sadd.s32 %s582, 1
    %s584 = scalar_select %p581, %s582, %s583
    %p587 = pneg %p581
    %p588 = scmp.eq.s32.totalorder %s32, 1
    %p589 = por %p587, %p588
    %p590 = scmp.ne.s32.totalorder %s582, %s585
    %p591 = scmp.eq.s32.totalorder %s32, 0
    %p592 = por %p590, %p591
    %p593 = scmp.ne.s32.totalorder %s582, %s585
    %p594 = scmp.eq.s32.totalorder %s37, 1
    %p595 = por %p593, %p594
    %p596 = scmp.ne.s32.totalorder %s585, %s586
    %p597 = scmp.eq.s32.totalorder %s37, 0
    %p598 = por %p596, %p597
    %p599 = scmp.ne.s32.totalorder %s585, %s586
    %p600 = scmp.eq.s32.totalorder %s38, 1
    %p601 = por %p599, %p600
    %p603 = scmp.ne.s32.totalorder %s586, %s602
    %p604 = scmp.eq.s32.totalorder %s38, 0
    %p605 = por %p603, %p604
    %p606 = scmp.le.s32.totalorder 1, %s32
    %p607 = scmp.lt.s32.totalorder %s32, 3
    %p608 = pnand %p606, %p607
    %p609 = pneg %p608
    // Predicated region
    $region9: #{rfdetr_forward.9} parent=5 // pred_check
      _
    $region10: #{rfdetr_forward.9} parent=5 // pred_check_branch
      %611 = sbr.rel (%p608) target = $region12
    $region11: #{rfdetr_forward.9} parent=5 // pred_region
      %s612 = ssub.s32 %s32, 1
      // Predicated region
      $region13: #{rfdetr_forward.9} parent=11 // pred_check
        %p613 = pneg %p105
      $region14: #{rfdetr_forward.9} parent=11 // pred_check_branch
        %615 = sbr.rel (%p613) target = $region16
      $region15: #{rfdetr_forward.9} parent=11 // pred_region
        _
      $region16: #{rfdetr_forward.9} parent=11 // pred_fallthru
        _
      // Predicated region
      $region17: #{rfdetr_forward.9} parent=11 // pred_check
        %p616 = pneg %p126
      $region18: #{rfdetr_forward.9} parent=11 // pred_check_branch
        %618 = sbr.rel (%p616) target = $region20
      $region19: #{rfdetr_forward.9} parent=11 // pred_region
        _
      $region20: #{rfdetr_forward.9} parent=11 // pred_fallthru
        _
      // Predicated region
      $region21: #{rfdetr_forward.9} parent=11 // pred_check
        %p619 = pneg %p147
      $region22: #{rfdetr_forward.9} parent=11 // pred_check_branch
        %621 = sbr.rel (%p619) target = $region24
      $region23: #{rfdetr_forward.9} parent=11 // pred_region
        _
      $region24: #{rfdetr_forward.9} parent=11 // pred_fallthru
        _
      // Predicated region
      $region25: #{rfdetr_forward.9} parent=11 // pred_check
        %p622 = pneg %p168
      $region26: #{rfdetr_forward.9} parent=11 // pred_check_branch
        %624 = sbr.rel (%p622) target = $region28
      $region27: #{rfdetr_forward.9} parent=11 // pred_region
        _
      $region28: #{rfdetr_forward.9} parent=11 // pred_fallthru
        _
      // Predicated region
      $region29: #{rfdetr_forward.9} parent=11 // pred_check
        %p625 = pneg %p189
      $region30: #{rfdetr_forward.9} parent=11 // pred_check_branch
        %627 = sbr.rel (%p625) target = $region32
      $region31: #{rfdetr_forward.9} parent=11 // pred_region
        _
      $region32: #{rfdetr_forward.9} parent=11 // pred_fallthru
        _
      // Predicated region
      $region33: #{rfdetr_forward.9} parent=11 // pred_check
        %p628 = pneg %p210
      $region34: #{rfdetr_forward.9} parent=11 // pred_check_branch
        %630 = sbr.rel (%p628) target = $region36
      $region35: #{rfdetr_forward.9} parent=11 // pred_region
        _
      $region36: #{rfdetr_forward.9} parent=11 // pred_fallthru
        _
      // Predicated region
      $region37: #{rfdetr_forward.9} parent=11 // pred_check
        %p631 = pneg %p231
      $region38: #{rfdetr_forward.9} parent=11 // pred_check_branch
        %633 = sbr.rel (%p631) target = $region40
      $region39: #{rfdetr_forward.9} parent=11 // pred_region
        _
      $region40: #{rfdetr_forward.9} parent=11 // pred_fallthru
        _
      // Predicated region
      $region41: #{rfdetr_forward.9} parent=11 // pred_check
        %p634 = pneg %p252
      $region42: #{rfdetr_forward.9} parent=11 // pred_check_branch
        %636 = sbr.rel (%p634) target = $region44
      $region43: #{rfdetr_forward.9} parent=11 // pred_region
        _
      $region44: #{rfdetr_forward.9} parent=11 // pred_fallthru
        _
      // Predicated region
      $region45: #{rfdetr_forward.9} parent=11 // pred_check
        %p637 = pneg %p273
      $region46: #{rfdetr_forward.9} parent=11 // pred_check_branch
        %639 = sbr.rel (%p637) target = $region48
      $region47: #{rfdetr_forward.9} parent=11 // pred_region
        _
      $region48: #{rfdetr_forward.9} parent=11 // pred_fallthru
        _
      // Predicated region
      $region49: #{rfdetr_forward.9} parent=11 // pred_check
        %p640 = pneg %p294
      $region50: #{rfdetr_forward.9} parent=11 // pred_check_branch
        %642 = sbr.rel (%p640) target = $region52
      $region51: #{rfdetr_forward.9} parent=11 // pred_region
        _
      $region52: #{rfdetr_forward.9} parent=11 // pred_fallthru
        _
      // Predicated region
      $region53: #{rfdetr_forward.9} parent=11 // pred_check
        %p643 = pneg %p315
      $region54: #{rfdetr_forward.9} parent=11 // pred_check_branch
        %645 = sbr.rel (%p643) target = $region56
      $region55: #{rfdetr_forward.9} parent=11 // pred_region
        _
      $region56: #{rfdetr_forward.9} parent=11 // pred_fallthru
        _
      // Predicated region
      $region57: #{rfdetr_forward.9} parent=11 // pred_check
        %p646 = pneg %p336
      $region58: #{rfdetr_forward.9} parent=11 // pred_check_branch
        %648 = sbr.rel (%p646) target = $region60
      $region59: #{rfdetr_forward.9} parent=11 // pred_region
        _
      $region60: #{rfdetr_forward.9} parent=11 // pred_fallthru
        _
      // Predicated region
      $region61: #{rfdetr_forward.9} parent=11 // pred_check
        %p649 = pneg %p357
      $region62: #{rfdetr_forward.9} parent=11 // pred_check_branch
        %651 = sbr.rel (%p649) target = $region64
      $region63: #{rfdetr_forward.9} parent=11 // pred_region
        _
      $region64: #{rfdetr_forward.9} parent=11 // pred_fallthru
        _
      // Predicated region
      $region65: #{rfdetr_forward.9} parent=11 // pred_check
        %p652 = pneg %p378
      $region66: #{rfdetr_forward.9} parent=11 // pred_check_branch
        %654 = sbr.rel (%p652) target = $region68
      $region67: #{rfdetr_forward.9} parent=11 // pred_region
        _
      $region68: #{rfdetr_forward.9} parent=11 // pred_fallthru
        _
      // Predicated region
      $region69: #{rfdetr_forward.9} parent=11 // pred_check
        %p655 = pneg %p399
      $region70: #{rfdetr_forward.9} parent=11 // pred_check_branch
        %657 = sbr.rel (%p655) target = $region72
      $region71: #{rfdetr_forward.9} parent=11 // pred_region
        _
      $region72: #{rfdetr_forward.9} parent=11 // pred_fallthru
        _
      // Predicated region
      $region73: #{rfdetr_forward.9} parent=11 // pred_check
        %p658 = pneg %p420
      $region74: #{rfdetr_forward.9} parent=11 // pred_check_branch
        %660 = sbr.rel (%p658) target = $region76
      $region75: #{rfdetr_forward.9} parent=11 // pred_region
        _
      $region76: #{rfdetr_forward.9} parent=11 // pred_fallthru
        _
      // Predicated region
      $region77: #{rfdetr_forward.9} parent=11 // pred_check
        %p661 = pneg %p441
      $region78: #{rfdetr_forward.9} parent=11 // pred_check_branch
        %663 = sbr.rel (%p661) target = $region80
      $region79: #{rfdetr_forward.9} parent=11 // pred_region
        _
      $region80: #{rfdetr_forward.9} parent=11 // pred_fallthru
        _
      // Predicated region
      $region81: #{rfdetr_forward.9} parent=11 // pred_check
        %p664 = pneg %p462
      $region82: #{rfdetr_forward.9} parent=11 // pred_check_branch
        %666 = sbr.rel (%p664) target = $region84
      $region83: #{rfdetr_forward.9} parent=11 // pred_region
        _
      $region84: #{rfdetr_forward.9} parent=11 // pred_fallthru
        _
      // Predicated region
      $region85: #{rfdetr_forward.9} parent=11 // pred_check
        %p667 = pneg %p483
      $region86: #{rfdetr_forward.9} parent=11 // pred_check_branch
        %669 = sbr.rel (%p667) target = $region88
      $region87: #{rfdetr_forward.9} parent=11 // pred_region
        _
      $region88: #{rfdetr_forward.9} parent=11 // pred_fallthru
        _
      // Predicated region
      $region89: #{rfdetr_forward.9} parent=11 // pred_check
        %p670 = pneg %p504
      $region90: #{rfdetr_forward.9} parent=11 // pred_check_branch
        %672 = sbr.rel (%p670) target = $region92
      $region91: #{rfdetr_forward.9} parent=11 // pred_region
        _
      $region92: #{rfdetr_forward.9} parent=11 // pred_fallthru
        _
      // Predicated region
      $region93: #{rfdetr_forward.9} parent=11 // pred_check
        %p673 = pneg %p525
      $region94: #{rfdetr_forward.9} parent=11 // pred_check_branch
        %675 = sbr.rel (%p673) target = $region96
      $region95: #{rfdetr_forward.9} parent=11 // pred_region
        _
      $region96: #{rfdetr_forward.9} parent=11 // pred_fallthru
        _
      // Predicated region
      $region97: #{rfdetr_forward.9} parent=11 // pred_check
        %p676 = pneg %p546
      $region98: #{rfdetr_forward.9} parent=11 // pred_check_branch
        %678 = sbr.rel (%p676) target = $region100
      $region99: #{rfdetr_forward.9} parent=11 // pred_region
        _
      $region100: #{rfdetr_forward.9} parent=11 // pred_fallthru
        _
    $region12: #{rfdetr_forward.9} parent=5 // pred_fallthru
      _
    %p679 = scmp.lt.s32.totalorder %s32, 2
    // Predicated region
    $region101: #{rfdetr_forward.9} parent=5 // pred_check
      %p680 = pneg %p679
    $region102: #{rfdetr_forward.9} parent=5 // pred_check_branch
      %682 = sbr.rel (%p680) target = $region104
    $region103: #{rfdetr_forward.9} parent=5 // pred_region
      // Predicated region
      $region105: #{rfdetr_forward.9} parent=103 // pred_check
        %p683 = pneg %p52
      $region106: #{rfdetr_forward.9} parent=103 // pred_check_branch
        %685 = sbr.rel (%p683) target = $region108
      $region107: #{rfdetr_forward.9} parent=103 // pred_region
        %p686 = scmp.lt.s32.totalorder %s32, 1
        %s687 = scalar_select %p686, %s32, 1
        %s688 = smul.addr %s687, 8
        %s689 = scalar_lea.vmem %s0, %s688
      $region108: #{rfdetr_forward.9} parent=103 // pred_fallthru
        _
      // Predicated region
      $region109: #{rfdetr_forward.9} parent=103 // pred_check
        %p690 = pneg %p78
      $region110: #{rfdetr_forward.9} parent=103 // pred_check_branch
        %692 = sbr.rel (%p690) target = $region112
      $region111: #{rfdetr_forward.9} parent=103 // pred_region
        %p693 = scmp.lt.s32.totalorder %s32, 1
        %s694 = scalar_select %p693, %s32, 1
        %s695 = smul.addr %s694, 2
        %s696 = smul.addr %s695, 8
        %s697 = scalar_lea.vmem %s1, %s696
      $region112: #{rfdetr_forward.9} parent=103 // pred_fallthru
        _
    $region104: #{rfdetr_forward.9} parent=5 // pred_fallthru
      _
    %p698 = scmp.le.s32.totalorder 1, %s32
    %p699 = scmp.lt.s32.totalorder %s32, 3
    %p700 = pnand %p698, %p699
    %p701 = pneg %p700
    // Predicated region
    $region113: #{rfdetr_forward.9} parent=5 // pred_check
      _
    $region114: #{rfdetr_forward.9} parent=5 // pred_check_branch
      %703 = sbr.rel (%p700) target = $region116
    $region115: #{rfdetr_forward.9} parent=5 // pred_region
      %s704 = ssub.s32 %s32, 1
      %p705 = scmp.lt.s32.totalorder %s37, 1
      %s706 = scalar_select %p705, %s37, 1
      %s707 = smul.addr %s706, 8
      %s708 = scalar_lea.vmem %s0, %s707
      %p709 = pneg %p58
      %p710 = pneg %p55
      %p711 = scmp.lt.s32.totalorder %s37, 1
      %s712 = scalar_select %p711, %s37, 1
      %s713 = smul.addr %s712, 2
      %s714 = smul.addr %s713, 8
      %s715 = scalar_lea.vmem %s1, %s714
      %p716 = pneg %p84
      %p717 = pneg %p81
      %p718 = pneg %p105
      %p719 = pneg %p102
      %p720 = pneg %p126
      %p721 = pneg %p123
      %p722 = pneg %p147
      %p723 = pneg %p144
      %p724 = pneg %p168
      %p725 = pneg %p165
      %p726 = pneg %p189
      %p727 = pneg %p186
      %p728 = pneg %p210
      %p729 = pneg %p207
      %p730 = pneg %p231
      %p731 = pneg %p228
      %p732 = pneg %p252
      %p733 = pneg %p249
      %p734 = pneg %p273
      %p735 = pneg %p270
      %p736 = pneg %p294
      %p737 = pneg %p291
      %p738 = pneg %p315
      %p739 = pneg %p312
      %p740 = pneg %p336
      %p741 = pneg %p333
      %p742 = pneg %p357
      %p743 = pneg %p354
      %p744 = pneg %p378
      %p745 = pneg %p375
      %p746 = pneg %p399
      %p747 = pneg %p396
      %p748 = pneg %p420
      %p749 = pneg %p417
      %p750 = pneg %p441
      %p751 = pneg %p438
      %p752 = pneg %p462
      %p753 = pneg %p459
      %p754 = pneg %p483
      %p755 = pneg %p480
      %p756 = pneg %p504
      %p757 = pneg %p501
      %p758 = pneg %p525
      %p759 = pneg %p522
      %p760 = pneg %p546
      %p761 = pneg %p543
      %p762 = pneg %p572
      %p763 = pneg %p569
      %p764 = scmp.lt.s32.totalorder %s37, 1
      %s765 = scalar_select %p764, %s37, 1
      %s766 = smul.addr %s765, 8
      %s767 = scalar_lea.vmem %s24, %s766
      %p768 = pneg %p598
      %p769 = pneg %p595
      %p770 = scmp.lt.s32.totalorder %s37, 1
      %s771 = scalar_select %p770, %s37, 1
      %s772 = smul.addr %s771, 8
      %s773 = scalar_lea.vmem %s25, %s772
      %p774 = scmp.lt.s32.totalorder %s37, 1
      %s775 = scalar_select %p774, %s37, 1
      %s776 = smul.addr %s775, 8
      %s777 = scalar_lea.vmem %s0, %s776
      %p778 = scmp.lt.s32.totalorder %s37, 1
      %s779 = scalar_select %p778, %s37, 1
      %s780 = smul.addr %s779, 2
      %s781 = smul.addr %s780, 8
      %s782 = scalar_lea.vmem %s1, %s781
      %p783 = scmp.lt.s32.totalorder %s37, 1
      %s784 = scalar_select %p783, %s37, 1
      %s785 = smul.addr %s784, 8
      %s786 = scalar_lea.vmem %s24, %s785
      %p787 = scmp.lt.s32.totalorder %s37, 1
      %s788 = scalar_select %p787, %s37, 1
      %s789 = smul.addr %s788, 8
      %s790 = scalar_lea.vmem %s25, %s789
      %v792 = vld [vmem:[%s777] sm:$0xff]
      %v793 = vld [vmem:[%s782] sm:$0xff]
      %v794 = vld [vmem:[%s782 + $0x8] sm:$0xff]
      %v795 = vpack.c.bf16 %v792, %v792
      %v796 = vld [vmem:[%s3] sm:$0xf]
      %v797 = vld [vmem:[%s3 + $0x4] sm:$0xf]
      %v798 = vld [vmem:[%s3 + $0x8] sm:$0xf]
      %v799 = vld [vmem:[%s3 + $0xc] sm:$0xf]
      %v800 = vld [vmem:[%s2] sm:$0xff]
      %v805 = vunpack.c.l.b16 %v796
      %v806 = vunpack.c.l.b16 %v797
      %v807 = vunpack.c.l.b16 %v798
      %v808 = vunpack.c.l.b16 %v799
      %v809 = vpack.c.b16 %v806, %v805
      %v810 = vpack.c.b16 %v808, %v807
      %vm813 = vcmask 261120
      %v815 = vsel %vm813, %v795, 0
      %817 = vmatpush.bf16.msra.mxu0 0
      %818 = vmatpush.bf16.msra.mxu0 0
      %819 = vmatpush.bf16.msra.mxu0 0
      %820 = vmatpush.bf16.msra.mxu0 0
      %821 = vmatpush.bf16.msra.mxu0 0
      %822 = vmatpush.bf16.msra.mxu0 0
      %823 = vmatpush.bf16.msra.mxu0 %v810
      %824 = vmatpush.bf16.msra.mxu0 %v809
      %825 = vmatmul.bf16.gmra.mxu0 %v815
      %v826 = vpop.f32.mrf.mxu0
      %v827 = vadd.f32 %v800, %v826
      %v828 = vpop.f32.mrf.mxu0
      %829 = vdwg.mxu0
      %v830 = vld [vmem:[%s5] sm:$0x1]
      %v831 = vmul.f32 %v827, 0.35355338
      %v832 = vpack.c.bf16 %v831, %v831
      %v833 = vpack.c.bf16 %v827, %v827
      %v835 = vunpack.c.l.b16 %v833
      %v836 = vpack.c.b16 %v835, %v835
      %837 = vrot.lane.b32.xlu0 %v836, 96
      %v838 = vpop.permute.xlu0 %837
      %vm839 = vcmask 64512
      %v841 = vsel %vm839, %v832, 0
      %v844 = vsel %vm839, %v838, 0
      %846 = vmatpush.bf16.xpose.msra.mxu0 0
      %847 = vmatpush.bf16.xpose.msra.mxu0 0
      %848 = vmatpush.bf16.xpose.msra.mxu0 0
      %849 = vmatpush.bf16.xpose.msra.mxu0 0
      %850 = vmatpush.bf16.xpose.msra.mxu0 0
      %851 = vmatpush.bf16.xpose.msra.mxu0 0
      %852 = vmatpush.bf16.xpose.msra.mxu0 0
      %853 = vmatpush.bf16.xpose.msra.mxu0 %v844
      %854 = vmatmul.bf16.gmra.mxu0 %v841
      %v855 = vpop.f32.mrf.mxu0
      %v856 = vadd.f32 0.0, %v855
      %v857 = vpop.f32.mrf.mxu0
      %858 = vdwg.mxu0
      %v859 = vsel %vm839, %v856, -inf
      %860 = vmax.xlane.f32.xlu0 %v859
      %v861 = vpop.xlane.xlu0 %860
      %v862 = vsub.f32 %v856, %v861
      %v863 = vmul.f32 %v862, 1.442695
      %v864 = vpow.pop %v863
      %v865 = vsel %vm839, %v864, 0.0
      %866 = vadd.xlane.f32.xlu0 %v865
      %v867 = vpop.xlane.xlu0 %866
      %v868 = vrcp.pop %v867
      %v869 = vmul.f32 %v864, %v868
      %v870 = vpack.c.bf16 %v869, %v869
      %871 = vrot.lane.b32.xlu0 %v836, 64
      %v872 = vpop.permute.xlu0 %871
      %v874 = vsel %vm839, %v870, 0
      %vm876 = vcmask 1043456
      %v878 = vsel %vm876, %v872, 0
      %880 = vmatpush.bf16.msra.mxu0 0
      %881 = vmatpush.bf16.msra.mxu0 0
      %882 = vmatpush.bf16.msra.mxu0 0
      %883 = vmatpush.bf16.msra.mxu0 0
      %884 = vmatpush.bf16.msra.mxu0 0
      %885 = vmatpush.bf16.msra.mxu0 0
      %886 = vmatpush.bf16.msra.mxu0 0
      %887 = vmatpush.bf16.msra.mxu0 %v878
      %888 = vmatmul.bf16.gmra.mxu0 %v874
      %v889 = vpop.f32.mrf.mxu0
      %v890 = vadd.f32 0.0, %v889
      %v891 = vpop.f32.mrf.mxu0
      %892 = vdwg.mxu0
      %v894 = vunpack.c.l.b16 %v832
      %v895 = vpack.c.b16 %v894, %v894
      %896 = vrot.lane.b32.xlu0 %v895, 120
      %v897 = vpop.permute.xlu0 %896
      %898 = vrot.lane.b32.xlu0 %v836, 88
      %v899 = vpop.permute.xlu0 %898
      %v901 = vsel %vm839, %v897, 0
      %v904 = vsel %vm839, %v899, 0
      %906 = vmatpush.bf16.xpose.msra.mxu0 0
      %907 = vmatpush.bf16.xpose.msra.mxu0 0
      %908 = vmatpush.bf16.xpose.msra.mxu0 0
      %909 = vmatpush.bf16.xpose.msra.mxu0 0
      %910 = vmatpush.bf16.xpose.msra.mxu0 0
      %911 = vmatpush.bf16.xpose.msra.mxu0 0
      %912 = vmatpush.bf16.xpose.msra.mxu0 0
      %913 = vmatpush.bf16.xpose.msra.mxu0 %v904
      %914 = vmatmul.bf16.gmra.mxu0 %v901
      %v915 = vpop.f32.mrf.mxu0
      %v916 = vadd.f32 0.0, %v915
      %v917 = vpop.f32.mrf.mxu0
      %918 = vdwg.mxu0
      %v919 = vsel %vm839, %v916, -inf
      %920 = vmax.xlane.f32.xlu0 %v919
      %v921 = vpop.xlane.xlu0 %920
      %v922 = vsub.f32 %v916, %v921
      %v923 = vmul.f32 %v922, 1.442695
      %v924 = vpow.pop %v923
      %v925 = vsel %vm839, %v924, 0.0
      %926 = vadd.xlane.f32.xlu0 %v925
      %v927 = vpop.xlane.xlu0 %926
      %v928 = vrcp.pop %v927
      %v929 = vmul.f32 %v924, %v928
      %v930 = vpack.c.bf16 %v929, %v929
      %931 = vrot.lane.b32.xlu0 %v836, 56
      %v932 = vpop.permute.xlu0 %931
      %v934 = vsel %vm839, %v930, 0
      %v937 = vsel %vm876, %v932, 0
      %939 = vmatpush.bf16.msra.mxu0 0
      %940 = vmatpush.bf16.msra.mxu0 0
      %941 = vmatpush.bf16.msra.mxu0 0
      %942 = vmatpush.bf16.msra.mxu0 0
      %943 = vmatpush.bf16.msra.mxu0 0
      %944 = vmatpush.bf16.msra.mxu0 0
      %945 = vmatpush.bf16.msra.mxu0 0
      %946 = vmatpush.bf16.msra.mxu0 %v937
      %947 = vmatmul.bf16.gmra.mxu0 %v934
      %v948 = vpop.f32.mrf.mxu0
      %v949 = vadd.f32 0.0, %v948
      %v950 = vpop.f32.mrf.mxu0
      %951 = vdwg.mxu0
      %952 = vrot.lane.b32.xlu0 %v895, 112
      %v953 = vpop.permute.xlu0 %952
      %954 = vrot.lane.b32.xlu0 %v836, 80
      %v955 = vpop.permute.xlu0 %954
      %v957 = vsel %vm839, %v953, 0
      %v960 = vsel %vm839, %v955, 0
      %962 = vmatpush.bf16.xpose.msra.mxu0 0
      %963 = vmatpush.bf16.xpose.msra.mxu0 0
      %964 = vmatpush.bf16.xpose.msra.mxu0 0
      %965 = vmatpush.bf16.xpose.msra.mxu0 0
      %966 = vmatpush.bf16.xpose.msra.mxu0 0
      %967 = vmatpush.bf16.xpose.msra.mxu0 0
      %968 = vmatpush.bf16.xpose.msra.mxu0 0
      %969 = vmatpush.bf16.xpose.msra.mxu0 %v960
      %970 = vmatmul.bf16.gmra.mxu0 %v957
      %v971 = vpop.f32.mrf.mxu0
      %v972 = vadd.f32 0.0, %v971
      %v973 = vpop.f32.mrf.mxu0
      %974 = vdwg.mxu0
      %v975 = vsel %vm839, %v972, -inf
      %976 = vmax.xlane.f32.xlu0 %v975
      %v977 = vpop.xlane.xlu0 %976
      %v978 = vsub.f32 %v972, %v977
      %v979 = vmul.f32 %v978, 1.442695
      %v980 = vpow.pop %v979
      %v981 = vsel %vm839, %v980, 0.0
      %982 = vadd.xlane.f32.xlu0 %v981
      %v983 = vpop.xlane.xlu0 %982
      %v984 = vrcp.pop %v983
      %v985 = vmul.f32 %v980, %v984
      %v986 = vpack.c.bf16 %v985, %v985
      %987 = vrot.lane.b32.xlu0 %v836, 48
      %v988 = vpop.permute.xlu0 %987
      %v990 = vsel %vm839, %v986, 0
      %v993 = vsel %vm876, %v988, 0
      %995 = vmatpush.bf16.msra.mxu0 0
      %996 = vmatpush.bf16.msra.mxu0 0
      %997 = vmatpush.bf16.msra.mxu0 0
      %998 = vmatpush.bf16.msra.mxu0 0
      %999 = vmatpush.bf16.msra.mxu0 0
      %1000 = vmatpush.bf16.msra.mxu0 0
      %1001 = vmatpush.bf16.msra.mxu0 0
      %1002 = vmatpush.bf16.msra.mxu0 %v993
      %1003 = vmatmul.bf16.gmra.mxu0 %v990
      %v1004 = vpop.f32.mrf.mxu0
      %v1005 = vadd.f32 0.0, %v1004
      %v1006 = vpop.f32.mrf.mxu0
      %1007 = vdwg.mxu0
      %1008 = vrot.lane.b32.xlu0 %v895, 104
      %v1009 = vpop.permute.xlu0 %1008
      %1010 = vrot.lane.b32.xlu0 %v836, 72
      %v1011 = vpop.permute.xlu0 %1010
      %v1013 = vsel %vm839, %v1009, 0
      %v1016 = vsel %vm839, %v1011, 0
      %1018 = vmatpush.bf16.xpose.msra.mxu0 0
      %1019 = vmatpush.bf16.xpose.msra.mxu0 0
      %1020 = vmatpush.bf16.xpose.msra.mxu0 0
      %1021 = vmatpush.bf16.xpose.msra.mxu0 0
      %1022 = vmatpush.bf16.xpose.msra.mxu0 0
      %1023 = vmatpush.bf16.xpose.msra.mxu0 0
      %1024 = vmatpush.bf16.xpose.msra.mxu0 0
      %1025 = vmatpush.bf16.xpose.msra.mxu0 %v1016
      %1026 = vmatmul.bf16.gmra.mxu0 %v1013
      %v1027 = vpop.f32.mrf.mxu0
      %v1028 = vadd.f32 0.0, %v1027
      %v1029 = vpop.f32.mrf.mxu0
      %1030 = vdwg.mxu0
      %v1031 = vsel %vm839, %v1028, -inf
      %1032 = vmax.xlane.f32.xlu0 %v1031
      %v1033 = vpop.xlane.xlu0 %1032
      %v1034 = vsub.f32 %v1028, %v1033
      %v1035 = vmul.f32 %v1034, 1.442695
      %v1036 = vpow.pop %v1035
      %v1037 = vsel %vm839, %v1036, 0.0
      %1038 = vadd.xlane.f32.xlu0 %v1037
      %v1039 = vpop.xlane.xlu0 %1038
      %v1040 = vrcp.pop %v1039
      %v1041 = vmul.f32 %v1036, %v1040
      %v1042 = vpack.c.bf16 %v1041, %v1041
      %1043 = vrot.lane.b32.xlu0 %v836, 40
      %v1044 = vpop.permute.xlu0 %1043
      %v1046 = vsel %vm839, %v1042, 0
      %v1049 = vsel %vm876, %v1044, 0
      %1051 = vmatpush.bf16.msra.mxu0 0
      %1052 = vmatpush.bf16.msra.mxu0 0
      %1053 = vmatpush.bf16.msra.mxu0 0
      %1054 = vmatpush.bf16.msra.mxu0 0
      %1055 = vmatpush.bf16.msra.mxu0 0
      %1056 = vmatpush.bf16.msra.mxu0 0
      %1057 = vmatpush.bf16.msra.mxu0 0
      %1058 = vmatpush.bf16.msra.mxu0 %v1049
      %1059 = vmatmul.bf16.gmra.mxu0 %v1046
      %v1060 = vpop.f32.mrf.mxu0
      %v1061 = vadd.f32 0.0, %v1060
      %v1062 = vpop.f32.mrf.mxu0
      %1063 = vdwg.mxu0
      %1065 = vrot.lane.b32.xlu0 %v949, 8
      %v1066 = vpop.permute.xlu0 %1065
      %1069 = vrot.lane.b32.xlu0 %v1005, 16
      %v1070 = vpop.permute.xlu0 %1069
      %1073 = vrot.lane.b32.xlu0 %v1061, 24
      %v1074 = vpop.permute.xlu0 %1073
      %v1076 = vsel %vm839, %v890, %v1066
      %vm1077 = vcmask 130048
      %v1078 = vsel %vm1077, %v1076, %v1070
      %vm1079 = vcmask 195584
      %v1080 = vsel %vm1079, %v1078, %v1074
      %v1081 = vpack.c.bf16 %v1080, %v1080
      %v1082 = vld [vmem:[%s4] sm:$0xf]
      %v1083 = vld [vmem:[%s4 + $0x4] sm:$0xf]
      %v1084 = vld [vmem:[%s4 + $0x8] sm:$0xf]
      %v1085 = vld [vmem:[%s4 + $0xc] sm:$0xf]
      %v1087 = vperm.slane %v830, 0
      %v1093 = vunpack.c.l.b16 %v1082
      %v1094 = vunpack.c.l.b16 %v1083
      %v1095 = vunpack.c.l.b16 %v1084
      %v1096 = vunpack.c.l.b16 %v1085
      %v1097 = vpack.c.b16 %v1094, %v1093
      %v1098 = vpack.c.b16 %v1096, %v1095
      %v1102 = vsel %vm813, %v1081, 0
      %1104 = vmatpush.bf16.msra.mxu0 0
      %1105 = vmatpush.bf16.msra.mxu0 0
      %1106 = vmatpush.bf16.msra.mxu0 0
      %1107 = vmatpush.bf16.msra.mxu0 0
      %1108 = vmatpush.bf16.msra.mxu0 0
      %1109 = vmatpush.bf16.msra.mxu0 0
      %1110 = vmatpush.bf16.msra.mxu0 %v1098
      %1111 = vmatpush.bf16.msra.mxu0 %v1097
      %1112 = vmatmul.bf16.gmra.mxu0 %v1102
      %v1113 = vpop.f32.mrf.mxu0
      %v1114 = vadd.f32 %v1087, %v1113
      %v1115 = vpop.f32.mrf.mxu0
      %1116 = vdwg.mxu0
      %v1117 = vadd.f32 %v792, %v1114
      %v1118 = vld [vmem:[%s6] sm:$0x1]
      %v1119 = vld [vmem:[%s7] sm:$0x1]
      %v1120 = vsel %vm813, %v1117, 0.0
      %1121 = vadd.xlane.f32.xlu0 %v1120
      %v1122 = vpop.xlane.xlu0 %1121
      %v1123 = vrcp.pop 32.0
      %v1124 = vmul.f32 32.0, %v1123
      %v1125 = vsub.f32 1.0, %v1124
      %v1126 = vmul.f32 %v1123, %v1125
      %v1127 = vadd.f32 %v1123, %v1126
      %vm1128 = vweird.f32 %v1123
      %v1129 = vsel %vm1128, %v1123, %v1127
      %v1130 = vmul.f32 %v1122, %v1129
      %v1131 = vsub.f32 %v1117, %v1130
      %v1132 = vmul.f32 %v1131, %v1131
      %v1133 = vsel %vm813, %v1132, 0.0
      %1134 = vadd.xlane.f32.xlu0 %v1133
      %v1135 = vpop.xlane.xlu0 %1134
      %v1136 = vmul.f32 %v1135, %v1129
      %v1137 = vadd.f32 %v1136, 1e-05
      %v1138 = vrsqrt.pop %v1137
      %v1139 = vmul.f32 %v1138, %v1137
      %v1140 = vmul.f32 %v1139, %v1138
      %v1141 = vmul.f32 0.5, %v1140
      %v1142 = vsub.f32 1.5, %v1141
      %v1143 = vmul.f32 %v1138, %v1142
      %vm1144 = vweird.f32 %v1137
      %vm1145 = vweird.f32 %v1138
      %vm1146 = vmor %vm1144, %vm1145
      %v1147 = vsel %vm1146, %v1138, %v1143
      %v1148 = vmul.f32 %v1131, %v1147
      %v1150 = vperm.slane %v1118, 0
      %v1152 = vmul.f32 %v1148, %v1150
      %v1154 = vperm.slane %v1119, 0
      %v1156 = vadd.f32 %v1152, %v1154
      %v1157 = vpack.c.bf16 %v1156, %v1156
      %v1158 = vld [vmem:[%s9] sm:$0xf]
      %v1159 = vld [vmem:[%s9 + $0x4] sm:$0xf]
      %v1160 = vld [vmem:[%s9 + $0x8] sm:$0xf]
      %v1161 = vld [vmem:[%s9 + $0xc] sm:$0xf]
      %v1162 = vld [vmem:[%s8] sm:$0xff]
      %v1167 = vunpack.c.l.b16 %v1158
      %v1168 = vunpack.c.l.b16 %v1159
      %v1169 = vunpack.c.l.b16 %v1160
      %v1170 = vunpack.c.l.b16 %v1161
      %v1171 = vpack.c.b16 %v1168, %v1167
      %v1172 = vpack.c.b16 %v1170, %v1169
      %v1176 = vsel %vm813, %v1157, 0
      %1178 = vmatpush.bf16.msra.mxu0 0
      %1179 = vmatpush.bf16.msra.mxu0 0
      %1180 = vmatpush.bf16.msra.mxu0 0
      %1181 = vmatpush.bf16.msra.mxu0 0
      %1182 = vmatpush.bf16.msra.mxu0 0
      %1183 = vmatpush.bf16.msra.mxu0 0
      %1184 = vmatpush.bf16.msra.mxu0 %v1172
      %1185 = vmatpush.bf16.msra.mxu0 %v1171
      %1186 = vmatmul.bf16.gmra.mxu0 %v1176
      %v1187 = vpop.f32.mrf.mxu0
      %v1188 = vadd.f32 %v1162, %v1187
      %v1189 = vpop.f32.mrf.mxu0
      %1190 = vdwg.mxu0
      %v1191 = vpack.c.bf16 %v794, %v793
      %v1192 = vld [vmem:[%s11] sm:$0xf]
      %v1193 = vld [vmem:[%s11 + $0x4] sm:$0xf]
      %v1194 = vld [vmem:[%s11 + $0x8] sm:$0xf]
      %v1195 = vld [vmem:[%s11 + $0xc] sm:$0xf]
      %v1196 = vld [vmem:[%s10] sm:$0xff]
      %v1197 = vld [vmem:[%s10 + $0x8] sm:$0xff]
      %v1202 = vunpack.c.l.b16 %v1192
      %v1203 = vunpack.c.l.b16 %v1193
      %v1204 = vunpack.c.l.b16 %v1194
      %v1205 = vunpack.c.l.b16 %v1195
      %v1206 = vpack.c.b16 %v1203, %v1202
      %v1207 = vpack.c.b16 %v1205, %v1204
      %v1211 = vsel %vm813, %v1191, 0
      %1213 = vmatpush.bf16.msra.mxu0 0
      %1214 = vmatpush.bf16.msra.mxu0 0
      %1215 = vmatpush.bf16.msra.mxu0 0
      %1216 = vmatpush.bf16.msra.mxu0 0
      %1217 = vmatpush.bf16.msra.mxu0 0
      %1218 = vmatpush.bf16.msra.mxu0 0
      %1219 = vmatpush.bf16.msra.mxu0 %v1207
      %1220 = vmatpush.bf16.msra.mxu0 %v1206
      %1221 = vmatmul.bf16.gmra.mxu0 %v1211
      %v1222 = vpop.f32.mrf.mxu0
      %v1223 = vadd.f32 %v1196, %v1222
      %v1224 = vpop.f32.mrf.mxu0
      %v1225 = vadd.f32 %v1197, %v1224
      %1226 = vdwg.mxu0
      %v1227 = vld [vmem:[%s13] sm:$0x1]
      %v1228 = vmul.f32 %v1188, 0.35355338
      %v1229 = vpack.c.bf16 %v1228, %v1228
      %v1230 = vpack.c.bf16 %v1223, %v1223
      %v1231 = vpack.c.bf16 %v1225, %v1225
      %v1234 = vunpack.c.l.b16 %v1230
      %v1235 = vunpack.c.l.b16 %v1231
      %v1236 = vpack.c.b16 %v1235, %v1234
      %v1238 = vsel %vm839, %v1229, 0
      %v1241 = vsel %vm839, %v1236, 0
      %1243 = vmatpush.bf16.xpose.msra.mxu0 0
      %1244 = vmatpush.bf16.xpose.msra.mxu0 0
      %1245 = vmatpush.bf16.xpose.msra.mxu0 0
      %1246 = vmatpush.bf16.xpose.msra.mxu0 0
      %1247 = vmatpush.bf16.xpose.msra.mxu0 0
      %1248 = vmatpush.bf16.xpose.msra.mxu0 0
      %1249 = vmatpush.bf16.xpose.msra.mxu0 0
      %1250 = vmatpush.bf16.xpose.msra.mxu0 %v1241
      %1251 = vmatmul.bf16.gmra.mxu0 %v1238
      %v1252 = vpop.f32.mrf.mxu0
      %v1253 = vadd.f32 0.0, %v1252
      %v1254 = vpop.f32.mrf.mxu0
      %1255 = vdwg.mxu0
      %v1256 = vsel %vm1077, %v1253, -inf
      %1257 = vmax.xlane.f32.xlu0 %v1256
      %v1258 = vpop.xlane.xlu0 %1257
      %v1259 = vsub.f32 %v1253, %v1258
      %v1260 = vmul.f32 %v1259, 1.442695
      %v1261 = vpow.pop %v1260
      %v1262 = vsel %vm1077, %v1261, 0.0
      %1263 = vadd.xlane.f32.xlu0 %v1262
      %v1264 = vpop.xlane.xlu0 %1263
      %v1265 = vrcp.pop %v1264
      %v1266 = vmul.f32 %v1261, %v1265
      %v1267 = vpack.c.bf16 %v1266, %v1266
      %1268 = vrot.lane.b32.xlu0 %v1236, 96
      %v1269 = vpop.permute.xlu0 %1268
      %v1272 = vsel %vm1077, %v1267, 0
      %1274 = vmatpush.bf16.msra.mxu0 0
      %1275 = vmatpush.bf16.msra.mxu0 0
      %1276 = vmatpush.bf16.msra.mxu0 0
      %1277 = vmatpush.bf16.msra.mxu0 0
      %1278 = vmatpush.bf16.msra.mxu0 0
      %1279 = vmatpush.bf16.msra.mxu0 0
      %1280 = vmatpush.bf16.msra.mxu0 0
      %1281 = vmatpush.bf16.msra.mxu0 %v1269
      %1282 = vmatmul.bf16.gmra.mxu0 %v1272
      %v1283 = vpop.f32.mrf.mxu0
      %v1284 = vadd.f32 0.0, %v1283
      %v1285 = vpop.f32.mrf.mxu0
      %1286 = vdwg.mxu0
      %v1288 = vunpack.c.l.b16 %v1229
      %v1289 = vpack.c.b16 %v1288, %v1288
      %1290 = vrot.lane.b32.xlu0 %v1289, 120
      %v1291 = vpop.permute.xlu0 %1290
      %1292 = vrot.lane.b32.xlu0 %v1236, 120
      %v1293 = vpop.permute.xlu0 %1292
      %v1295 = vsel %vm839, %v1291, 0
      %v1298 = vsel %vm839, %v1293, 0
      %1300 = vmatpush.bf16.xpose.msra.mxu0 0
      %1301 = vmatpush.bf16.xpose.msra.mxu0 0
      %1302 = vmatpush.bf16.xpose.msra.mxu0 0
      %1303 = vmatpush.bf16.xpose.msra.mxu0 0
      %1304 = vmatpush.bf16.xpose.msra.mxu0 0
      %1305 = vmatpush.bf16.xpose.msra.mxu0 0
      %1306 = vmatpush.bf16.xpose.msra.mxu0 0
      %1307 = vmatpush.bf16.xpose.msra.mxu0 %v1298
      %1308 = vmatmul.bf16.gmra.mxu0 %v1295
      %v1309 = vpop.f32.mrf.mxu0
      %v1310 = vadd.f32 0.0, %v1309
      %v1311 = vpop.f32.mrf.mxu0
      %1312 = vdwg.mxu0
      %v1313 = vsel %vm1077, %v1310, -inf
      %1314 = vmax.xlane.f32.xlu0 %v1313
      %v1315 = vpop.xlane.xlu0 %1314
      %v1316 = vsub.f32 %v1310, %v1315
      %v1317 = vmul.f32 %v1316, 1.442695
      %v1318 = vpow.pop %v1317
      %v1319 = vsel %vm1077, %v1318, 0.0
      %1320 = vadd.xlane.f32.xlu0 %v1319
      %v1321 = vpop.xlane.xlu0 %1320
      %v1322 = vrcp.pop %v1321
      %v1323 = vmul.f32 %v1318, %v1322
      %v1324 = vpack.c.bf16 %v1323, %v1323
      %1325 = vrot.lane.b32.xlu0 %v1236, 88
      %v1326 = vpop.permute.xlu0 %1325
      %v1329 = vsel %vm1077, %v1324, 0
      %1331 = vmatpush.bf16.msra.mxu0 0
      %1332 = vmatpush.bf16.msra.mxu0 0
      %1333 = vmatpush.bf16.msra.mxu0 0
      %1334 = vmatpush.bf16.msra.mxu0 0
      %1335 = vmatpush.bf16.msra.mxu0 0
      %1336 = vmatpush.bf16.msra.mxu0 0
      %1337 = vmatpush.bf16.msra.mxu0 0
      %1338 = vmatpush.bf16.msra.mxu0 %v1326
      %1339 = vmatmul.bf16.gmra.mxu0 %v1329
      %v1340 = vpop.f32.mrf.mxu0
      %v1341 = vadd.f32 0.0, %v1340
      %v1342 = vpop.f32.mrf.mxu0
      %1343 = vdwg.mxu0
      %1344 = vrot.lane.b32.xlu0 %v1289, 112
      %v1345 = vpop.permute.xlu0 %1344
      %1346 = vrot.lane.b32.xlu0 %v1236, 112
      %v1347 = vpop.permute.xlu0 %1346
      %v1349 = vsel %vm839, %v1345, 0
      %v1352 = vsel %vm839, %v1347, 0
      %1354 = vmatpush.bf16.xpose.msra.mxu0 0
      %1355 = vmatpush.bf16.xpose.msra.mxu0 0
      %1356 = vmatpush.bf16.xpose.msra.mxu0 0
      %1357 = vmatpush.bf16.xpose.msra.mxu0 0
      %1358 = vmatpush.bf16.xpose.msra.mxu0 0
      %1359 = vmatpush.bf16.xpose.msra.mxu0 0
      %1360 = vmatpush.bf16.xpose.msra.mxu0 0
      %1361 = vmatpush.bf16.xpose.msra.mxu0 %v1352
      %1362 = vmatmul.bf16.gmra.mxu0 %v1349
      %v1363 = vpop.f32.mrf.mxu0
      %v1364 = vadd.f32 0.0, %v1363
      %v1365 = vpop.f32.mrf.mxu0
      %1366 = vdwg.mxu0
      %v1367 = vsel %vm1077, %v1364, -inf
      %1368 = vmax.xlane.f32.xlu0 %v1367
      %v1369 = vpop.xlane.xlu0 %1368
      %v1370 = vsub.f32 %v1364, %v1369
      %v1371 = vmul.f32 %v1370, 1.442695
      %v1372 = vpow.pop %v1371
      %v1373 = vsel %vm1077, %v1372, 0.0
      %1374 = vadd.xlane.f32.xlu0 %v1373
      %v1375 = vpop.xlane.xlu0 %1374
      %v1376 = vrcp.pop %v1375
      %v1377 = vmul.f32 %v1372, %v1376
      %v1378 = vpack.c.bf16 %v1377, %v1377
      %1379 = vrot.lane.b32.xlu0 %v1236, 80
      %v1380 = vpop.permute.xlu0 %1379
      %v1383 = vsel %vm1077, %v1378, 0
      %1385 = vmatpush.bf16.msra.mxu0 0
      %1386 = vmatpush.bf16.msra.mxu0 0
      %1387 = vmatpush.bf16.msra.mxu0 0
      %1388 = vmatpush.bf16.msra.mxu0 0
      %1389 = vmatpush.bf16.msra.mxu0 0
      %1390 = vmatpush.bf16.msra.mxu0 0
      %1391 = vmatpush.bf16.msra.mxu0 0
      %1392 = vmatpush.bf16.msra.mxu0 %v1380
      %1393 = vmatmul.bf16.gmra.mxu0 %v1383
      %v1394 = vpop.f32.mrf.mxu0
      %v1395 = vadd.f32 0.0, %v1394
      %v1396 = vpop.f32.mrf.mxu0
      %1397 = vdwg.mxu0
      %1398 = vrot.lane.b32.xlu0 %v1289, 104
      %v1399 = vpop.permute.xlu0 %1398
      %1400 = vrot.lane.b32.xlu0 %v1236, 104
      %v1401 = vpop.permute.xlu0 %1400
      %v1403 = vsel %vm839, %v1399, 0
      %v1406 = vsel %vm839, %v1401, 0
      %1408 = vmatpush.bf16.xpose.msra.mxu0 0
      %1409 = vmatpush.bf16.xpose.msra.mxu0 0
      %1410 = vmatpush.bf16.xpose.msra.mxu0 0
      %1411 = vmatpush.bf16.xpose.msra.mxu0 0
      %1412 = vmatpush.bf16.xpose.msra.mxu0 0
      %1413 = vmatpush.bf16.xpose.msra.mxu0 0
      %1414 = vmatpush.bf16.xpose.msra.mxu0 0
      %1415 = vmatpush.bf16.xpose.msra.mxu0 %v1406
      %1416 = vmatmul.bf16.gmra.mxu0 %v1403
      %v1417 = vpop.f32.mrf.mxu0
      %v1418 = vadd.f32 0.0, %v1417
      %v1419 = vpop.f32.mrf.mxu0
      %1420 = vdwg.mxu0
      %v1421 = vsel %vm1077, %v1418, -inf
      %1422 = vmax.xlane.f32.xlu0 %v1421
      %v1423 = vpop.xlane.xlu0 %1422
      %v1424 = vsub.f32 %v1418, %v1423
      %v1425 = vmul.f32 %v1424, 1.442695
      %v1426 = vpow.pop %v1425
      %v1427 = vsel %vm1077, %v1426, 0.0
      %1428 = vadd.xlane.f32.xlu0 %v1427
      %v1429 = vpop.xlane.xlu0 %1428
      %v1430 = vrcp.pop %v1429
      %v1431 = vmul.f32 %v1426, %v1430
      %v1432 = vpack.c.bf16 %v1431, %v1431
      %1433 = vrot.lane.b32.xlu0 %v1236, 72
      %v1434 = vpop.permute.xlu0 %1433
      %v1437 = vsel %vm1077, %v1432, 0
      %1439 = vmatpush.bf16.msra.mxu0 0
      %1440 = vmatpush.bf16.msra.mxu0 0
      %1441 = vmatpush.bf16.msra.mxu0 0
      %1442 = vmatpush.bf16.msra.mxu0 0
      %1443 = vmatpush.bf16.msra.mxu0 0
      %1444 = vmatpush.bf16.msra.mxu0 0
      %1445 = vmatpush.bf16.msra.mxu0 0
      %1446 = vmatpush.bf16.msra.mxu0 %v1434
      %1447 = vmatmul.bf16.gmra.mxu0 %v1437
      %v1448 = vpop.f32.mrf.mxu0
      %v1449 = vadd.f32 0.0, %v1448
      %v1450 = vpop.f32.mrf.mxu0
      %1451 = vdwg.mxu0
      %1453 = vrot.lane.b32.xlu0 %v1341, 8
      %v1454 = vpop.permute.xlu0 %1453
      %1457 = vrot.lane.b32.xlu0 %v1395, 16
      %v1458 = vpop.permute.xlu0 %1457
      %1461 = vrot.lane.b32.xlu0 %v1449, 24
      %v1462 = vpop.permute.xlu0 %1461
      %v1464 = vsel %vm839, %v1284, %v1454
      %v1465 = vsel %vm1077, %v1464, %v1458
      %v1466 = vsel %vm1079, %v1465, %v1462
      %v1467 = vpack.c.bf16 %v1466, %v1466
      %v1468 = vld [vmem:[%s12] sm:$0xf]
      %v1469 = vld [vmem:[%s12 + $0x4] sm:$0xf]
      %v1470 = vld [vmem:[%s12 + $0x8] sm:$0xf]
      %v1471 = vld [vmem:[%s12 + $0xc] sm:$0xf]
      %v1473 = vperm.slane %v1227, 0
      %v1479 = vunpack.c.l.b16 %v1468
      %v1480 = vunpack.c.l.b16 %v1469
      %v1481 = vunpack.c.l.b16 %v1470
      %v1482 = vunpack.c.l.b16 %v1471
      %v1483 = vpack.c.b16 %v1480, %v1479
      %v1484 = vpack.c.b16 %v1482, %v1481
      %v1488 = vsel %vm813, %v1467, 0
      %1490 = vmatpush.bf16.msra.mxu0 0
      %1491 = vmatpush.bf16.msra.mxu0 0
      %1492 = vmatpush.bf16.msra.mxu0 0
      %1493 = vmatpush.bf16.msra.mxu0 0
      %1494 = vmatpush.bf16.msra.mxu0 0
      %1495 = vmatpush.bf16.msra.mxu0 0
      %1496 = vmatpush.bf16.msra.mxu0 %v1484
      %1497 = vmatpush.bf16.msra.mxu0 %v1483
      %1498 = vmatmul.bf16.gmra.mxu0 %v1488
      %v1499 = vpop.f32.mrf.mxu0
      %v1500 = vadd.f32 %v1473, %v1499
      %v1501 = vpop.f32.mrf.mxu0
      %1502 = vdwg.mxu0
      %v1503 = vadd.f32 %v1156, %v1500
      %v1504 = vld [vmem:[%s14] sm:$0x1]
      %v1505 = vld [vmem:[%s15] sm:$0x1]
      %v1506 = vsel %vm813, %v1503, 0.0
      %1507 = vadd.xlane.f32.xlu0 %v1506
      %v1508 = vpop.xlane.xlu0 %1507
      %v1509 = vmul.f32 %v1508, %v1129
      %v1510 = vsub.f32 %v1503, %v1509
      %v1511 = vmul.f32 %v1510, %v1510
      %v1512 = vsel %vm813, %v1511, 0.0
      %1513 = vadd.xlane.f32.xlu0 %v1512
      %v1514 = vpop.xlane.xlu0 %1513
      %v1515 = vmul.f32 %v1514, %v1129
      %v1516 = vadd.f32 %v1515, 1e-05
      %v1517 = vrsqrt.pop %v1516
      %v1518 = vmul.f32 %v1517, %v1516
      %v1519 = vmul.f32 %v1518, %v1517
      %v1520 = vmul.f32 0.5, %v1519
      %v1521 = vsub.f32 1.5, %v1520
      %v1522 = vmul.f32 %v1517, %v1521
      %vm1523 = vweird.f32 %v1516
      %vm1524 = vweird.f32 %v1517
      %vm1525 = vmor %vm1523, %vm1524
      %v1526 = vsel %vm1525, %v1517, %v1522
      %v1527 = vmul.f32 %v1510, %v1526
      %v1529 = vperm.slane %v1504, 0
      %v1531 = vmul.f32 %v1527, %v1529
      %v1533 = vperm.slane %v1505, 0
      %v1535 = vadd.f32 %v1531, %v1533
      %v1536 = vpack.c.bf16 %v1535, %v1535
      %v1537 = vld [vmem:[%s16] sm:$0xf]
      %v1538 = vld [vmem:[%s16 + $0x4] sm:$0xf]
      %v1539 = vld [vmem:[%s16 + $0x8] sm:$0xf]
      %v1540 = vld [vmem:[%s16 + $0xc] sm:$0xf]
      %v1541 = vld [vmem:[%s17] sm:$0x1]
      %v1543 = vperm.slane %v1541, 0
      %v1549 = vunpack.c.l.b16 %v1537
      %v1550 = vunpack.c.l.b16 %v1538
      %v1551 = vunpack.c.l.b16 %v1539
      %v1552 = vunpack.c.l.b16 %v1540
      %v1553 = vpack.c.b16 %v1550, %v1549
      %v1554 = vpack.c.b16 %v1552, %v1551
      %v1558 = vsel %vm813, %v1536, 0
      %1560 = vmatpush.bf16.msra.mxu0 0
      %1561 = vmatpush.bf16.msra.mxu0 0
      %1562 = vmatpush.bf16.msra.mxu0 0
      %1563 = vmatpush.bf16.msra.mxu0 0
      %1564 = vmatpush.bf16.msra.mxu0 0
      %1565 = vmatpush.bf16.msra.mxu0 0
      %1566 = vmatpush.bf16.msra.mxu0 %v1554
      %1567 = vmatpush.bf16.msra.mxu0 %v1553
      %1568 = vmatmul.bf16.gmra.mxu0 %v1558
      %v1569 = vpop.f32.mrf.mxu0
      %v1570 = vadd.f32 %v1543, %v1569
      %v1571 = vpop.f32.mrf.mxu0
      %1572 = vdwg.mxu0
      %v1573 = vmax.f32 %v1570, 0.0
      %v1574 = vpack.c.bf16 %v1573, %v1573
      %v1575 = vld [vmem:[%s18] sm:$0xf]
      %v1576 = vld [vmem:[%s18 + $0x4] sm:$0xf]
      %v1577 = vld [vmem:[%s18 + $0x8] sm:$0xf]
      %v1578 = vld [vmem:[%s18 + $0xc] sm:$0xf]
      %v1579 = vld [vmem:[%s18 + $0x10] sm:$0xf]
      %v1580 = vld [vmem:[%s18 + $0x14] sm:$0xf]
      %v1581 = vld [vmem:[%s18 + $0x18] sm:$0xf]
      %v1582 = vld [vmem:[%s18 + $0x1c] sm:$0xf]
      %v1583 = vld [vmem:[%s18 + $0x20] sm:$0xf]
      %v1584 = vld [vmem:[%s18 + $0x24] sm:$0xf]
      %v1585 = vld [vmem:[%s18 + $0x28] sm:$0xf]
      %v1586 = vld [vmem:[%s18 + $0x2c] sm:$0xf]
      %v1587 = vld [vmem:[%s18 + $0x30] sm:$0xf]
      %v1588 = vld [vmem:[%s18 + $0x34] sm:$0xf]
      %v1589 = vld [vmem:[%s18 + $0x38] sm:$0xf]
      %v1590 = vld [vmem:[%s18 + $0x3c] sm:$0xf]
      %v1591 = vld [vmem:[%s19] sm:$0x1]
      %v1593 = vperm.slane %v1591, 0
      %v1611 = vunpack.c.l.b16 %v1575
      %v1612 = vunpack.c.l.b16 %v1576
      %v1613 = vunpack.c.l.b16 %v1577
      %v1614 = vunpack.c.l.b16 %v1578
      %v1615 = vunpack.c.l.b16 %v1579
      %v1616 = vunpack.c.l.b16 %v1580
      %v1617 = vunpack.c.l.b16 %v1581
      %v1618 = vunpack.c.l.b16 %v1582
      %v1619 = vunpack.c.l.b16 %v1583
      %v1620 = vunpack.c.l.b16 %v1584
      %v1621 = vunpack.c.l.b16 %v1585
      %v1622 = vunpack.c.l.b16 %v1586
      %v1623 = vunpack.c.l.b16 %v1587
      %v1624 = vunpack.c.l.b16 %v1588
      %v1625 = vunpack.c.l.b16 %v1589
      %v1626 = vunpack.c.l.b16 %v1590
      %v1627 = vpack.c.b16 %v1612, %v1611
      %v1628 = vpack.c.b16 %v1614, %v1613
      %v1629 = vpack.c.b16 %v1616, %v1615
      %v1630 = vpack.c.b16 %v1618, %v1617
      %v1631 = vpack.c.b16 %v1620, %v1619
      %v1632 = vpack.c.b16 %v1622, %v1621
      %v1633 = vpack.c.b16 %v1624, %v1623
      %v1634 = vpack.c.b16 %v1626, %v1625
      %1643 = vmatpush.bf16.msra.mxu0 %v1634
      %1644 = vmatpush.bf16.msra.mxu0 %v1633
      %1645 = vmatpush.bf16.msra.mxu0 %v1632
      %1646 = vmatpush.bf16.msra.mxu0 %v1631
      %1647 = vmatpush.bf16.msra.mxu0 %v1630
      %1648 = vmatpush.bf16.msra.mxu0 %v1629
      %1649 = vmatpush.bf16.msra.mxu0 %v1628
      %1650 = vmatpush.bf16.msra.mxu0 %v1627
      %1651 = vmatmul.bf16.gmra.mxu0 %v1574
      %v1652 = vpop.f32.mrf.mxu0
      %v1653 = vadd.f32 %v1593, %v1652
      %v1654 = vpop.f32.mrf.mxu0
      %1655 = vdwg.mxu0
      %v1656 = vadd.f32 %v1535, %v1653
      %v1657 = vld [vmem:[%s20] sm:$0x1]
      %v1658 = vld [vmem:[%s21] sm:$0x1]
      %v1659 = vsel %vm813, %v1656, 0.0
      %1660 = vadd.xlane.f32.xlu0 %v1659
      %v1661 = vpop.xlane.xlu0 %1660
      %v1662 = vmul.f32 %v1661, %v1129
      %v1663 = vsub.f32 %v1656, %v1662
      %v1664 = vmul.f32 %v1663, %v1663
      %v1665 = vsel %vm813, %v1664, 0.0
      %1666 = vadd.xlane.f32.xlu0 %v1665
      %v1667 = vpop.xlane.xlu0 %1666
      %v1668 = vmul.f32 %v1667, %v1129
      %v1669 = vadd.f32 %v1668, 1e-05
      %v1670 = vrsqrt.pop %v1669
      %v1671 = vmul.f32 %v1670, %v1669
      %v1672 = vmul.f32 %v1671, %v1670
      %v1673 = vmul.f32 0.5, %v1672
      %v1674 = vsub.f32 1.5, %v1673
      %v1675 = vmul.f32 %v1670, %v1674
      %vm1676 = vweird.f32 %v1669
      %vm1677 = vweird.f32 %v1670
      %vm1678 = vmor %vm1676, %vm1677
      %v1679 = vsel %vm1678, %v1670, %v1675
      %v1680 = vmul.f32 %v1663, %v1679
      %v1682 = vperm.slane %v1657, 0
      %v1684 = vmul.f32 %v1680, %v1682
      %v1686 = vperm.slane %v1658, 0
      %v1688 = vadd.f32 %v1684, %v1686
      %1689 = vst.msk [vmem:[%s786] sm:$0xff] %vm813, %v1688
      %v1690 = vld [vmem:[%s22] sm:$0x1]
      %v1691 = vld [vmem:[%s23] sm:$0x1]
      %v1692 = vsel %vm813, %v1688, 0.0
      %1693 = vadd.xlane.f32.xlu0 %v1692
      %v1694 = vpop.xlane.xlu0 %1693
      %v1695 = vmul.f32 %v1694, %v1129
      %v1696 = vsub.f32 %v1688, %v1695
      %v1697 = vmul.f32 %v1696, %v1696
      %v1698 = vsel %vm813, %v1697, 0.0
      %1699 = vadd.xlane.f32.xlu0 %v1698
      %v1700 = vpop.xlane.xlu0 %1699
      %v1701 = vmul.f32 %v1700, %v1129
      %v1702 = vadd.f32 %v1701, 1e-05
      %v1703 = vrsqrt.pop %v1702
      %v1704 = vmul.f32 %v1703, %v1702
      %v1705 = vmul.f32 %v1704, %v1703
      %v1706 = vmul.f32 0.5, %v1705
      %v1707 = vsub.f32 1.5, %v1706
      %v1708 = vmul.f32 %v1703, %v1707
      %vm1709 = vweird.f32 %v1702
      %vm1710 = vweird.f32 %v1703
      %vm1711 = vmor %vm1709, %vm1710
      %v1712 = vsel %vm1711, %v1703, %v1708
      %v1713 = vmul.f32 %v1696, %v1712
      %v1715 = vperm.slane %v1690, 0
      %v1717 = vmul.f32 %v1713, %v1715
      %v1719 = vperm.slane %v1691, 0
      %v1721 = vadd.f32 %v1717, %v1719
      %1722 = vst.msk [vmem:[%s790] sm:$0xff] %vm813, %v1721
      %p1723 = scmp.lt.s32.totalorder %s37, 1
      %s1724 = scalar_select %p1723, %s37, 1
      %s1725 = smul.addr %s1724, 8
      %s1726 = scalar_lea.vmem %s24, %s1725
      %p1727 = scmp.lt.s32.totalorder %s37, 1
      %s1728 = scalar_select %p1727, %s37, 1
      %s1729 = smul.addr %s1728, 8
      %s1730 = scalar_lea.vmem %s25, %s1729
      // Predicated region
      $region117: #{rfdetr_forward.9} parent=115 // pred_check
        %p1731 = pneg %p569
      $region118: #{rfdetr_forward.9} parent=115 // pred_check_branch
        %1733 = sbr.rel (%p1731) target = $region120
      $region119: #{rfdetr_forward.9} parent=115 // pred_region
        _
      $region120: #{rfdetr_forward.9} parent=115 // pred_fallthru
        _
      // Predicated region
      $region121: #{rfdetr_forward.9} parent=115 // pred_check
        %p1734 = pneg %p595
      $region122: #{rfdetr_forward.9} parent=115 // pred_check_branch
        %1736 = sbr.rel (%p1734) target = $region124
      $region123: #{rfdetr_forward.9} parent=115 // pred_region
        _
      $region124: #{rfdetr_forward.9} parent=115 // pred_fallthru
        _
    $region116: #{rfdetr_forward.9} parent=5 // pred_fallthru
      _
    %p1737 = scmp.le.s32.totalorder 2, %s32
    // Predicated region
    $region125: #{rfdetr_forward.9} parent=5 // pred_check
      %p1738 = pneg %p1737
    $region126: #{rfdetr_forward.9} parent=5 // pred_check_branch
      %1740 = sbr.rel (%p1738) target = $region128
    $region127: #{rfdetr_forward.9} parent=5 // pred_region
      %s1741 = ssub.s32 %s32, 2
      // Predicated region
      $region129: #{rfdetr_forward.9} parent=127 // pred_check
        %p1742 = pneg %p575
      $region130: #{rfdetr_forward.9} parent=127 // pred_check_branch
        %1744 = sbr.rel (%p1742) target = $region132
      $region131: #{rfdetr_forward.9} parent=127 // pred_region
        %p1745 = scmp.lt.s32.totalorder %s38, 1
        %s1746 = scalar_select %p1745, %s38, 1
        %s1747 = smul.addr %s1746, 8
        %s1748 = scalar_lea.vmem %s24, %s1747
      $region132: #{rfdetr_forward.9} parent=127 // pred_fallthru
        _
      // Predicated region
      $region133: #{rfdetr_forward.9} parent=127 // pred_check
        %p1749 = pneg %p601
      $region134: #{rfdetr_forward.9} parent=127 // pred_check_branch
        %1751 = sbr.rel (%p1749) target = $region136
      $region135: #{rfdetr_forward.9} parent=127 // pred_region
        %p1752 = scmp.lt.s32.totalorder %s38, 1
        %s1753 = scalar_select %p1752, %s38, 1
        %s1754 = smul.addr %s1753, 8
        %s1755 = scalar_lea.vmem %s25, %s1754
      $region136: #{rfdetr_forward.9} parent=127 // pred_fallthru
        _
    $region128: #{rfdetr_forward.9} parent=5 // pred_fallthru
      _
  $region6: #{rfdetr_forward.9} parent=0 // loop_footer
    %s36 = sadd.s32 1, %s32
  $region7: #{rfdetr_forward.9} parent=0 // loop_footer_branch
    %31 = sbr.rel target = $region3
  $region8: #{rfdetr_forward.9} parent=0 // loop_exit
    _

// kernel: rfdetr_forward.10
$region0: #{rfdetr_forward.10}
  #allocation0 [shape = 'u32[]', space=smem, size = 0x4, offset = 0x4, fixed_abs, tag = 'smem constant byte address 0x4 - core index']
  #allocation1 [shape = 'u32[72,128]{1,0:T(1,128)}', space=vmem, size = 0x9000, scoped, tag = 'internal scratch']
  %s0 = inlined_call_operand.vmem [shape: f32[2,8,32], index: 0, kind: input, shape index: {}]
  %s1 = inlined_call_operand.vmem [shape: f32[2,16,32], index: 1, kind: input, shape index: {}]
  %s2 = inlined_call_operand.vmem [shape: f32[8,96], index: 2, kind: input, shape index: {}]
  %s3 = inlined_call_operand.vmem [shape: bf16[32,96], index: 3, kind: input, shape index: {}]
  %s4 = inlined_call_operand.vmem [shape: bf16[32,32], index: 4, kind: input, shape index: {}]
  %s5 = inlined_call_operand.vmem [shape: f32[1,32], index: 5, kind: input, shape index: {}]
  %s6 = inlined_call_operand.vmem [shape: f32[1,32], index: 6, kind: input, shape index: {}]
  %s7 = inlined_call_operand.vmem [shape: f32[1,32], index: 7, kind: input, shape index: {}]
  %s8 = inlined_call_operand.vmem [shape: f32[8,32], index: 8, kind: input, shape index: {}]
  %s9 = inlined_call_operand.vmem [shape: bf16[32,32], index: 9, kind: input, shape index: {}]
  %s10 = inlined_call_operand.vmem [shape: f32[16,64], index: 10, kind: input, shape index: {}]
  %s11 = inlined_call_operand.vmem [shape: bf16[32,64], index: 11, kind: input, shape index: {}]
  %s12 = inlined_call_operand.vmem [shape: bf16[32,32], index: 12, kind: input, shape index: {}]
  %s13 = inlined_call_operand.vmem [shape: f32[1,32], index: 13, kind: input, shape index: {}]
  %s14 = inlined_call_operand.vmem [shape: f32[1,32], index: 14, kind: input, shape index: {}]
  %s15 = inlined_call_operand.vmem [shape: f32[1,32], index: 15, kind: input, shape index: {}]
  %s16 = inlined_call_operand.vmem [shape: bf16[32,128], index: 16, kind: input, shape index: {}]
  %s17 = inlined_call_operand.vmem [shape: f32[1,128], index: 17, kind: input, shape index: {}]
  %s18 = inlined_call_operand.vmem [shape: bf16[128,32], index: 18, kind: input, shape index: {}]
  %s19 = inlined_call_operand.vmem [shape: f32[1,32], index: 19, kind: input, shape index: {}]
  %s20 = inlined_call_operand.vmem [shape: f32[1,32], index: 20, kind: input, shape index: {}]
  %s21 = inlined_call_operand.vmem [shape: f32[1,32], index: 21, kind: input, shape index: {}]
  %s22 = inlined_call_operand.vmem [shape: f32[1,32], index: 22, kind: input, shape index: {}]
  %s23 = inlined_call_operand.vmem [shape: f32[1,32], index: 23, kind: input, shape index: {}]
  %s24 = inlined_call_operand.hbm [shape: f32[2,8,32], index: 24, kind: output, shape index: {0}]
  %s25 = inlined_call_operand.vmem [shape: f32[2,8,32], index: 25, kind: output, shape index: {1}]
  %26 = xla_tuple %s24, %s25
  %s27 = sld [smem:[#allocation0]]
  $region137: #{rfdetr_forward.10} parent=0
    _
  %s29 = ssub.s32 1, %s27
  %s30 = scalar_select 0, %s29, %s27
  $region1: #{rfdetr_forward.10} parent=0
    #allocation2 [shape = 'u8[8192]{0}', space=vmem, size = 0x2000, scoped, tag = 'output window, operand 0']
    #allocation3 [shape = 's32[2]{0}', space=sflag, size = 0x8, scoped, tag = 'scoped memory for rfdetr_forward.10']
    %31 = vsyncpa [#allocation3], 0
    %s32 = scalar_lea.sflag [#allocation3], 1
    %33 = vsyncpa %s32, 0
    loop: start=0, step=1, limit=4
    $region2: #{rfdetr_forward.10} parent=1 // loop_pre_header
      _
    $region3: #{rfdetr_forward.10} parent=1 // loop_header
      %s35 = sphi 0, %s39
      %p36 = scmp.ge.s32.totalorder %s35, 4
      %s45 = sphi 0, %s47
      %s48 = sphi 0, %s45
      %s49 = sphi 0, %s48
      %s65 = sphi 0, %s49
      %s71 = sphi 0, %s73
      %s74 = sphi 0, %s71
      %s75 = sphi 0, %s74
      %s91 = sphi 0, %s75
      %s95 = sphi 0, %s95
      %s97 = sphi 0, %s95
      %s98 = sphi 0, %s97
      %s112 = sphi 0, %s98
      %s116 = sphi 0, %s116
      %s118 = sphi 0, %s116
      %s119 = sphi 0, %s118
      %s133 = sphi 0, %s119
      %s137 = sphi 0, %s137
      %s139 = sphi 0, %s137
      %s140 = sphi 0, %s139
      %s154 = sphi 0, %s140
      %s158 = sphi 0, %s158
      %s160 = sphi 0, %s158
      %s161 = sphi 0, %s160
      %s175 = sphi 0, %s161
      %s179 = sphi 0, %s179
      %s181 = sphi 0, %s179
      %s182 = sphi 0, %s181
      %s196 = sphi 0, %s182
      %s200 = sphi 0, %s200
      %s202 = sphi 0, %s200
      %s203 = sphi 0, %s202
      %s217 = sphi 0, %s203
      %s221 = sphi 0, %s221
      %s223 = sphi 0, %s221
      %s224 = sphi 0, %s223
      %s238 = sphi 0, %s224
      %s242 = sphi 0, %s242
      %s244 = sphi 0, %s242
      %s245 = sphi 0, %s244
      %s259 = sphi 0, %s245
      %s263 = sphi 0, %s263
      %s265 = sphi 0, %s263
      %s266 = sphi 0, %s265
      %s280 = sphi 0, %s266
      %s284 = sphi 0, %s284
      %s286 = sphi 0, %s284
      %s287 = sphi 0, %s286
      %s301 = sphi 0, %s287
      %s305 = sphi 0, %s305
      %s307 = sphi 0, %s305
      %s308 = sphi 0, %s307
      %s322 = sphi 0, %s308
      %s326 = sphi 0, %s326
      %s328 = sphi 0, %s326
      %s329 = sphi 0, %s328
      %s343 = sphi 0, %s329
      %s347 = sphi 0, %s347
      %s349 = sphi 0, %s347
      %s350 = sphi 0, %s349
      %s364 = sphi 0, %s350
      %s368 = sphi 0, %s368
      %s370 = sphi 0, %s368
      %s371 = sphi 0, %s370
      %s385 = sphi 0, %s371
      %s389 = sphi 0, %s389
      %s391 = sphi 0, %s389
      %s392 = sphi 0, %s391
      %s406 = sphi 0, %s392
      %s410 = sphi 0, %s410
      %s412 = sphi 0, %s410
      %s413 = sphi 0, %s412
      %s427 = sphi 0, %s413
      %s431 = sphi 0, %s431
      %s433 = sphi 0, %s431
      %s434 = sphi 0, %s433
      %s448 = sphi 0, %s434
      %s452 = sphi 0, %s452
      %s454 = sphi 0, %s452
      %s455 = sphi 0, %s454
      %s469 = sphi 0, %s455
      %s473 = sphi 0, %s473
      %s475 = sphi 0, %s473
      %s476 = sphi 0, %s475
      %s490 = sphi 0, %s476
      %s494 = sphi 0, %s494
      %s496 = sphi 0, %s494
      %s497 = sphi 0, %s496
      %s511 = sphi 0, %s497
      %s515 = sphi 0, %s515
      %s517 = sphi 0, %s515
      %s518 = sphi 0, %s517
      %s532 = sphi 0, %s518
      %s536 = sphi 0, %s536
      %s538 = sphi 0, %s536
      %s539 = sphi 0, %s538
      %s553 = sphi 0, %s539
      %s559 = sphi 0, %s561
      %s562 = sphi 0, %s559
      %s563 = sphi 0, %s562
      %s579 = sphi 0, %s563
      %s585 = sphi 0, %s587
      %s588 = sphi 0, %s585
      %s589 = sphi 0, %s588
      %s605 = sphi 0, %s589
    $region4: #{rfdetr_forward.10} parent=1 // loop_header_branch
      %38 = sbr.rel (%p36) target = $region8
    $region5: #{rfdetr_forward.10} parent=1 // loop_body
      %s40 = ssub.s32 %s35, 1
      %s41 = ssub.s32 %s35, 2
      %s42 = sadd.s32 %s35, 1
      %s43 = ssub.s32 %s35, %s42
      %p44 = scmp.eq.s32.totalorder %s43, 0
      %s46 = sadd.s32 %s45, 1
      %s47 = scalar_select %p44, %s45, %s46
      %p50 = pneg %p44
      %p51 = scmp.eq.s32.totalorder %s35, 1
      %p52 = por %p50, %p51
      %p53 = scmp.ne.s32.totalorder %s45, %s48
      %p54 = scmp.eq.s32.totalorder %s35, 0
      %p55 = por %p53, %p54
      %p56 = scmp.ne.s32.totalorder %s45, %s48
      %p57 = scmp.eq.s32.totalorder %s40, 1
      %p58 = por %p56, %p57
      %p59 = scmp.ne.s32.totalorder %s48, %s49
      %p60 = scmp.eq.s32.totalorder %s40, 0
      %p61 = por %p59, %p60
      %p62 = scmp.ne.s32.totalorder %s48, %s49
      %p63 = scmp.eq.s32.totalorder %s41, 1
      %p64 = por %p62, %p63
      %p66 = scmp.ne.s32.totalorder %s49, %s65
      %p67 = scmp.eq.s32.totalorder %s41, 0
      %p68 = por %p66, %p67
      %s69 = ssub.s32 %s35, %s42
      %p70 = scmp.eq.s32.totalorder %s69, 0
      %s72 = sadd.s32 %s71, 1
      %s73 = scalar_select %p70, %s71, %s72
      %p76 = pneg %p70
      %p77 = scmp.eq.s32.totalorder %s35, 1
      %p78 = por %p76, %p77
      %p79 = scmp.ne.s32.totalorder %s71, %s74
      %p80 = scmp.eq.s32.totalorder %s35, 0
      %p81 = por %p79, %p80
      %p82 = scmp.ne.s32.totalorder %s71, %s74
      %p83 = scmp.eq.s32.totalorder %s40, 1
      %p84 = por %p82, %p83
      %p85 = scmp.ne.s32.totalorder %s74, %s75
      %p86 = scmp.eq.s32.totalorder %s40, 0
      %p87 = por %p85, %p86
      %p88 = scmp.ne.s32.totalorder %s74, %s75
      %p89 = scmp.eq.s32.totalorder %s41, 1
      %p90 = por %p88, %p89
      %p92 = scmp.ne.s32.totalorder %s75, %s91
      %p93 = scmp.eq.s32.totalorder %s41, 0
      %p94 = por %p92, %p93
      %s96 = sadd.s32 %s95, 1
      %p99 = scmp.eq.s32.totalorder %s35, 1
      %p100 = scmp.ne.s32.totalorder %s95, %s97
      %p101 = scmp.eq.s32.totalorder %s35, 0
      %p102 = por %p100, %p101
      %p103 = scmp.ne.s32.totalorder %s95, %s97
      %p104 = scmp.eq.s32.totalorder %s40, 1
      %p105 = por %p103, %p104
      %p106 = scmp.ne.s32.totalorder %s97, %s98
      %p107 = scmp.eq.s32.totalorder %s40, 0
      %p108 = por %p106, %p107
      %p109 = scmp.ne.s32.totalorder %s97, %s98
      %p110 = scmp.eq.s32.totalorder %s41, 1
      %p111 = por %p109, %p110
      %p113 = scmp.ne.s32.totalorder %s98, %s112
      %p114 = scmp.eq.s32.totalorder %s41, 0
      %p115 = por %p113, %p114
      %s117 = sadd.s32 %s116, 1
      %p120 = scmp.eq.s32.totalorder %s35, 1
      %p121 = scmp.ne.s32.totalorder %s116, %s118
      %p122 = scmp.eq.s32.totalorder %s35, 0
      %p123 = por %p121, %p122
      %p124 = scmp.ne.s32.totalorder %s116, %s118
      %p125 = scmp.eq.s32.totalorder %s40, 1
      %p126 = por %p124, %p125
      %p127 = scmp.ne.s32.totalorder %s118, %s119
      %p128 = scmp.eq.s32.totalorder %s40, 0
      %p129 = por %p127, %p128
      %p130 = scmp.ne.s32.totalorder %s118, %s119
      %p131 = scmp.eq.s32.totalorder %s41, 1
      %p132 = por %p130, %p131
      %p134 = scmp.ne.s32.totalorder %s119, %s133
      %p135 = scmp.eq.s32.totalorder %s41, 0
      %p136 = por %p134, %p135
      %s138 = sadd.s32 %s137, 1
      %p141 = scmp.eq.s32.totalorder %s35, 1
      %p142 = scmp.ne.s32.totalorder %s137, %s139
      %p143 = scmp.eq.s32.totalorder %s35, 0
      %p144 = por %p142, %p143
      %p145 = scmp.ne.s32.totalorder %s137, %s139
      %p146 = scmp.eq.s32.totalorder %s40, 1
      %p147 = por %p145, %p146
      %p148 = scmp.ne.s32.totalorder %s139, %s140
      %p149 = scmp.eq.s32.totalorder %s40, 0
      %p150 = por %p148, %p149
      %p151 = scmp.ne.s32.totalorder %s139, %s140
      %p152 = scmp.eq.s32.totalorder %s41, 1
      %p153 = por %p151, %p152
      %p155 = scmp.ne.s32.totalorder %s140, %s154
      %p156 = scmp.eq.s32.totalorder %s41, 0
      %p157 = por %p155, %p156
      %s159 = sadd.s32 %s158, 1
      %p162 = scmp.eq.s32.totalorder %s35, 1
      %p163 = scmp.ne.s32.totalorder %s158, %s160
      %p164 = scmp.eq.s32.totalorder %s35, 0
      %p165 = por %p163, %p164
      %p166 = scmp.ne.s32.totalorder %s158, %s160
      %p167 = scmp.eq.s32.totalorder %s40, 1
      %p168 = por %p166, %p167
      %p169 = scmp.ne.s32.totalorder %s160, %s161
      %p170 = scmp.eq.s32.totalorder %s40, 0
      %p171 = por %p169, %p170
      %p172 = scmp.ne.s32.totalorder %s160, %s161
      %p173 = scmp.eq.s32.totalorder %s41, 1
      %p174 = por %p172, %p173
      %p176 = scmp.ne.s32.totalorder %s161, %s175
      %p177 = scmp.eq.s32.totalorder %s41, 0
      %p178 = por %p176, %p177
      %s180 = sadd.s32 %s179, 1
      %p183 = scmp.eq.s32.totalorder %s35, 1
      %p184 = scmp.ne.s32.totalorder %s179, %s181
      %p185 = scmp.eq.s32.totalorder %s35, 0
      %p186 = por %p184, %p185
      %p187 = scmp.ne.s32.totalorder %s179, %s181
      %p188 = scmp.eq.s32.totalorder %s40, 1
      %p189 = por %p187, %p188
      %p190 = scmp.ne.s32.totalorder %s181, %s182
      %p191 = scmp.eq.s32.totalorder %s40, 0
      %p192 = por %p190, %p191
      %p193 = scmp.ne.s32.totalorder %s181, %s182
      %p194 = scmp.eq.s32.totalorder %s41, 1
      %p195 = por %p193, %p194
      %p197 = scmp.ne.s32.totalorder %s182, %s196
      %p198 = scmp.eq.s32.totalorder %s41, 0
      %p199 = por %p197, %p198
      %s201 = sadd.s32 %s200, 1
      %p204 = scmp.eq.s32.totalorder %s35, 1
      %p205 = scmp.ne.s32.totalorder %s200, %s202
      %p206 = scmp.eq.s32.totalorder %s35, 0
      %p207 = por %p205, %p206
      %p208 = scmp.ne.s32.totalorder %s200, %s202
      %p209 = scmp.eq.s32.totalorder %s40, 1
      %p210 = por %p208, %p209
      %p211 = scmp.ne.s32.totalorder %s202, %s203
      %p212 = scmp.eq.s32.totalorder %s40, 0
      %p213 = por %p211, %p212
      %p214 = scmp.ne.s32.totalorder %s202, %s203
      %p215 = scmp.eq.s32.totalorder %s41, 1
      %p216 = por %p214, %p215
      %p218 = scmp.ne.s32.totalorder %s203, %s217
      %p219 = scmp.eq.s32.totalorder %s41, 0
      %p220 = por %p218, %p219
      %s222 = sadd.s32 %s221, 1
      %p225 = scmp.eq.s32.totalorder %s35, 1
      %p226 = scmp.ne.s32.totalorder %s221, %s223
      %p227 = scmp.eq.s32.totalorder %s35, 0
      %p228 = por %p226, %p227
      %p229 = scmp.ne.s32.totalorder %s221, %s223
      %p230 = scmp.eq.s32.totalorder %s40, 1
      %p231 = por %p229, %p230
      %p232 = scmp.ne.s32.totalorder %s223, %s224
      %p233 = scmp.eq.s32.totalorder %s40, 0
      %p234 = por %p232, %p233
      %p235 = scmp.ne.s32.totalorder %s223, %s224
      %p236 = scmp.eq.s32.totalorder %s41, 1
      %p237 = por %p235, %p236
      %p239 = scmp.ne.s32.totalorder %s224, %s238
      %p240 = scmp.eq.s32.totalorder %s41, 0
      %p241 = por %p239, %p240
      %s243 = sadd.s32 %s242, 1
      %p246 = scmp.eq.s32.totalorder %s35, 1
      %p247 = scmp.ne.s32.totalorder %s242, %s244
      %p248 = scmp.eq.s32.totalorder %s35, 0
      %p249 = por %p247, %p248
      %p250 = scmp.ne.s32.totalorder %s242, %s244
      %p251 = scmp.eq.s32.totalorder %s40, 1
      %p252 = por %p250, %p251
      %p253 = scmp.ne.s32.totalorder %s244, %s245
      %p254 = scmp.eq.s32.totalorder %s40, 0
      %p255 = por %p253, %p254
      %p256 = scmp.ne.s32.totalorder %s244, %s245
      %p257 = scmp.eq.s32.totalorder %s41, 1
      %p258 = por %p256, %p257
      %p260 = scmp.ne.s32.totalorder %s245, %s259
      %p261 = scmp.eq.s32.totalorder %s41, 0
      %p262 = por %p260, %p261
      %s264 = sadd.s32 %s263, 1
      %p267 = scmp.eq.s32.totalorder %s35, 1
      %p268 = scmp.ne.s32.totalorder %s263, %s265
      %p269 = scmp.eq.s32.totalorder %s35, 0
      %p270 = por %p268, %p269
      %p271 = scmp.ne.s32.totalorder %s263, %s265
      %p272 = scmp.eq.s32.totalorder %s40, 1
      %p273 = por %p271, %p272
      %p274 = scmp.ne.s32.totalorder %s265, %s266
      %p275 = scmp.eq.s32.totalorder %s40, 0
      %p276 = por %p274, %p275
      %p277 = scmp.ne.s32.totalorder %s265, %s266
      %p278 = scmp.eq.s32.totalorder %s41, 1
      %p279 = por %p277, %p278
      %p281 = scmp.ne.s32.totalorder %s266, %s280
      %p282 = scmp.eq.s32.totalorder %s41, 0
      %p283 = por %p281, %p282
      %s285 = sadd.s32 %s284, 1
      %p288 = scmp.eq.s32.totalorder %s35, 1
      %p289 = scmp.ne.s32.totalorder %s284, %s286
      %p290 = scmp.eq.s32.totalorder %s35, 0
      %p291 = por %p289, %p290
      %p292 = scmp.ne.s32.totalorder %s284, %s286
      %p293 = scmp.eq.s32.totalorder %s40, 1
      %p294 = por %p292, %p293
      %p295 = scmp.ne.s32.totalorder %s286, %s287
      %p296 = scmp.eq.s32.totalorder %s40, 0
      %p297 = por %p295, %p296
      %p298 = scmp.ne.s32.totalorder %s286, %s287
      %p299 = scmp.eq.s32.totalorder %s41, 1
      %p300 = por %p298, %p299
      %p302 = scmp.ne.s32.totalorder %s287, %s301
      %p303 = scmp.eq.s32.totalorder %s41, 0
      %p304 = por %p302, %p303
      %s306 = sadd.s32 %s305, 1
      %p309 = scmp.eq.s32.totalorder %s35, 1
      %p310 = scmp.ne.s32.totalorder %s305, %s307
      %p311 = scmp.eq.s32.totalorder %s35, 0
      %p312 = por %p310, %p311
      %p313 = scmp.ne.s32.totalorder %s305, %s307
      %p314 = scmp.eq.s32.totalorder %s40, 1
      %p315 = por %p313, %p314
      %p316 = scmp.ne.s32.totalorder %s307, %s308
      %p317 = scmp.eq.s32.totalorder %s40, 0
      %p318 = por %p316, %p317
      %p319 = scmp.ne.s32.totalorder %s307, %s308
      %p320 = scmp.eq.s32.totalorder %s41, 1
      %p321 = por %p319, %p320
      %p323 = scmp.ne.s32.totalorder %s308, %s322
      %p324 = scmp.eq.s32.totalorder %s41, 0
      %p325 = por %p323, %p324
      %s327 = sadd.s32 %s326, 1
      %p330 = scmp.eq.s32.totalorder %s35, 1
      %p331 = scmp.ne.s32.totalorder %s326, %s328
      %p332 = scmp.eq.s32.totalorder %s35, 0
      %p333 = por %p331, %p332
      %p334 = scmp.ne.s32.totalorder %s326, %s328
      %p335 = scmp.eq.s32.totalorder %s40, 1
      %p336 = por %p334, %p335
      %p337 = scmp.ne.s32.totalorder %s328, %s329
      %p338 = scmp.eq.s32.totalorder %s40, 0
      %p339 = por %p337, %p338
      %p340 = scmp.ne.s32.totalorder %s328, %s329
      %p341 = scmp.eq.s32.totalorder %s41, 1
      %p342 = por %p340, %p341
      %p344 = scmp.ne.s32.totalorder %s329, %s343
      %p345 = scmp.eq.s32.totalorder %s41, 0
      %p346 = por %p344, %p345
      %s348 = sadd.s32 %s347, 1
      %p351 = scmp.eq.s32.totalorder %s35, 1
      %p352 = scmp.ne.s32.totalorder %s347, %s349
      %p353 = scmp.eq.s32.totalorder %s35, 0
      %p354 = por %p352, %p353
      %p355 = scmp.ne.s32.totalorder %s347, %s349
      %p356 = scmp.eq.s32.totalorder %s40, 1
      %p357 = por %p355, %p356
      %p358 = scmp.ne.s32.totalorder %s349, %s350
      %p359 = scmp.eq.s32.totalorder %s40, 0
      %p360 = por %p358, %p359
      %p361 = scmp.ne.s32.totalorder %s349, %s350
      %p362 = scmp.eq.s32.totalorder %s41, 1
      %p363 = por %p361, %p362
      %p365 = scmp.ne.s32.totalorder %s350, %s364
      %p366 = scmp.eq.s32.totalorder %s41, 0
      %p367 = por %p365, %p366
      %s369 = sadd.s32 %s368, 1
      %p372 = scmp.eq.s32.totalorder %s35, 1
      %p373 = scmp.ne.s32.totalorder %s368, %s370
      %p374 = scmp.eq.s32.totalorder %s35, 0
      %p375 = por %p373, %p374
      %p376 = scmp.ne.s32.totalorder %s368, %s370
      %p377 = scmp.eq.s32.totalorder %s40, 1
      %p378 = por %p376, %p377
      %p379 = scmp.ne.s32.totalorder %s370, %s371
      %p380 = scmp.eq.s32.totalorder %s40, 0
      %p381 = por %p379, %p380
      %p382 = scmp.ne.s32.totalorder %s370, %s371
      %p383 = scmp.eq.s32.totalorder %s41, 1
      %p384 = por %p382, %p383
      %p386 = scmp.ne.s32.totalorder %s371, %s385
      %p387 = scmp.eq.s32.totalorder %s41, 0
      %p388 = por %p386, %p387
      %s390 = sadd.s32 %s389, 1
      %p393 = scmp.eq.s32.totalorder %s35, 1
      %p394 = scmp.ne.s32.totalorder %s389, %s391
      %p395 = scmp.eq.s32.totalorder %s35, 0
      %p396 = por %p394, %p395
      %p397 = scmp.ne.s32.totalorder %s389, %s391
      %p398 = scmp.eq.s32.totalorder %s40, 1
      %p399 = por %p397, %p398
      %p400 = scmp.ne.s32.totalorder %s391, %s392
      %p401 = scmp.eq.s32.totalorder %s40, 0
      %p402 = por %p400, %p401
      %p403 = scmp.ne.s32.totalorder %s391, %s392
      %p404 = scmp.eq.s32.totalorder %s41, 1
      %p405 = por %p403, %p404
      %p407 = scmp.ne.s32.totalorder %s392, %s406
      %p408 = scmp.eq.s32.totalorder %s41, 0
      %p409 = por %p407, %p408
      %s411 = sadd.s32 %s410, 1
      %p414 = scmp.eq.s32.totalorder %s35, 1
      %p415 = scmp.ne.s32.totalorder %s410, %s412
      %p416 = scmp.eq.s32.totalorder %s35, 0
      %p417 = por %p415, %p416
      %p418 = scmp.ne.s32.totalorder %s410, %s412
      %p419 = scmp.eq.s32.totalorder %s40, 1
      %p420 = por %p418, %p419
      %p421 = scmp.ne.s32.totalorder %s412, %s413
      %p422 = scmp.eq.s32.totalorder %s40, 0
      %p423 = por %p421, %p422
      %p424 = scmp.ne.s32.totalorder %s412, %s413
      %p425 = scmp.eq.s32.totalorder %s41, 1
      %p426 = por %p424, %p425
      %p428 = scmp.ne.s32.totalorder %s413, %s427
      %p429 = scmp.eq.s32.totalorder %s41, 0
      %p430 = por %p428, %p429
      %s432 = sadd.s32 %s431, 1
      %p435 = scmp.eq.s32.totalorder %s35, 1
      %p436 = scmp.ne.s32.totalorder %s431, %s433
      %p437 = scmp.eq.s32.totalorder %s35, 0
      %p438 = por %p436, %p437
      %p439 = scmp.ne.s32.totalorder %s431, %s433
      %p440 = scmp.eq.s32.totalorder %s40, 1
      %p441 = por %p439, %p440
      %p442 = scmp.ne.s32.totalorder %s433, %s434
      %p443 = scmp.eq.s32.totalorder %s40, 0
      %p444 = por %p442, %p443
      %p445 = scmp.ne.s32.totalorder %s433, %s434
      %p446 = scmp.eq.s32.totalorder %s41, 1
      %p447 = por %p445, %p446
      %p449 = scmp.ne.s32.totalorder %s434, %s448
      %p450 = scmp.eq.s32.totalorder %s41, 0
      %p451 = por %p449, %p450
      %s453 = sadd.s32 %s452, 1
      %p456 = scmp.eq.s32.totalorder %s35, 1
      %p457 = scmp.ne.s32.totalorder %s452, %s454
      %p458 = scmp.eq.s32.totalorder %s35, 0
      %p459 = por %p457, %p458
      %p460 = scmp.ne.s32.totalorder %s452, %s454
      %p461 = scmp.eq.s32.totalorder %s40, 1
      %p462 = por %p460, %p461
      %p463 = scmp.ne.s32.totalorder %s454, %s455
      %p464 = scmp.eq.s32.totalorder %s40, 0
      %p465 = por %p463, %p464
      %p466 = scmp.ne.s32.totalorder %s454, %s455
      %p467 = scmp.eq.s32.totalorder %s41, 1
      %p468 = por %p466, %p467
      %p470 = scmp.ne.s32.totalorder %s455, %s469
      %p471 = scmp.eq.s32.totalorder %s41, 0
      %p472 = por %p470, %p471
      %s474 = sadd.s32 %s473, 1
      %p477 = scmp.eq.s32.totalorder %s35, 1
      %p478 = scmp.ne.s32.totalorder %s473, %s475
      %p479 = scmp.eq.s32.totalorder %s35, 0
      %p480 = por %p478, %p479
      %p481 = scmp.ne.s32.totalorder %s473, %s475
      %p482 = scmp.eq.s32.totalorder %s40, 1
      %p483 = por %p481, %p482
      %p484 = scmp.ne.s32.totalorder %s475, %s476
      %p485 = scmp.eq.s32.totalorder %s40, 0
      %p486 = por %p484, %p485
      %p487 = scmp.ne.s32.totalorder %s475, %s476
      %p488 = scmp.eq.s32.totalorder %s41, 1
      %p489 = por %p487, %p488
      %p491 = scmp.ne.s32.totalorder %s476, %s490
      %p492 = scmp.eq.s32.totalorder %s41, 0
      %p493 = por %p491, %p492
      %s495 = sadd.s32 %s494, 1
      %p498 = scmp.eq.s32.totalorder %s35, 1
      %p499 = scmp.ne.s32.totalorder %s494, %s496
      %p500 = scmp.eq.s32.totalorder %s35, 0
      %p501 = por %p499, %p500
      %p502 = scmp.ne.s32.totalorder %s494, %s496
      %p503 = scmp.eq.s32.totalorder %s40, 1
      %p504 = por %p502, %p503
      %p505 = scmp.ne.s32.totalorder %s496, %s497
      %p506 = scmp.eq.s32.totalorder %s40, 0
      %p507 = por %p505, %p506
      %p508 = scmp.ne.s32.totalorder %s496, %s497
      %p509 = scmp.eq.s32.totalorder %s41, 1
      %p510 = por %p508, %p509
      %p512 = scmp.ne.s32.totalorder %s497, %s511
      %p513 = scmp.eq.s32.totalorder %s41, 0
      %p514 = por %p512, %p513
      %s516 = sadd.s32 %s515, 1
      %p519 = scmp.eq.s32.totalorder %s35, 1
      %p520 = scmp.ne.s32.totalorder %s515, %s517
      %p521 = scmp.eq.s32.totalorder %s35, 0
      %p522 = por %p520, %p521
      %p523 = scmp.ne.s32.totalorder %s515, %s517
      %p524 = scmp.eq.s32.totalorder %s40, 1
      %p525 = por %p523, %p524
      %p526 = scmp.ne.s32.totalorder %s517, %s518
      %p527 = scmp.eq.s32.totalorder %s40, 0
      %p528 = por %p526, %p527
      %p529 = scmp.ne.s32.totalorder %s517, %s518
      %p530 = scmp.eq.s32.totalorder %s41, 1
      %p531 = por %p529, %p530
      %p533 = scmp.ne.s32.totalorder %s518, %s532
      %p534 = scmp.eq.s32.totalorder %s41, 0
      %p535 = por %p533, %p534
      %s537 = sadd.s32 %s536, 1
      %p540 = scmp.eq.s32.totalorder %s35, 1
      %p541 = scmp.ne.s32.totalorder %s536, %s538
      %p542 = scmp.eq.s32.totalorder %s35, 0
      %p543 = por %p541, %p542
      %p544 = scmp.ne.s32.totalorder %s536, %s538
      %p545 = scmp.eq.s32.totalorder %s40, 1
      %p546 = por %p544, %p545
      %p547 = scmp.ne.s32.totalorder %s538, %s539
      %p548 = scmp.eq.s32.totalorder %s40, 0
      %p549 = por %p547, %p548
      %p550 = scmp.ne.s32.totalorder %s538, %s539
      %p551 = scmp.eq.s32.totalorder %s41, 1
      %p552 = por %p550, %p551
      %p554 = scmp.ne.s32.totalorder %s539, %s553
      %p555 = scmp.eq.s32.totalorder %s41, 0
      %p556 = por %p554, %p555
      %s557 = ssub.s32 %s35, %s42
      %p558 = scmp.eq.s32.totalorder %s557, 0
      %s560 = sadd.s32 %s559, 1
      %s561 = scalar_select %p558, %s559, %s560
      %p564 = pneg %p558
      %p565 = scmp.eq.s32.totalorder %s35, 1
      %p566 = por %p564, %p565
      %p567 = scmp.ne.s32.totalorder %s559, %s562
      %p568 = scmp.eq.s32.totalorder %s35, 0
      %p569 = por %p567, %p568
      %p570 = scmp.ne.s32.totalorder %s559, %s562
      %p571 = scmp.eq.s32.totalorder %s40, 1
      %p572 = por %p570, %p571
      %p573 = scmp.ne.s32.totalorder %s562, %s563
      %p574 = scmp.eq.s32.totalorder %s40, 0
      %p575 = por %p573, %p574
      %p576 = scmp.ne.s32.totalorder %s562, %s563
      %p577 = scmp.eq.s32.totalorder %s41, 1
      %p578 = por %p576, %p577
      %p580 = scmp.ne.s32.totalorder %s563, %s579
      %p581 = scmp.eq.s32.totalorder %s41, 0
      %p582 = por %p580, %p581
      %s583 = ssub.s32 %s35, %s42
      %p584 = scmp.eq.s32.totalorder %s583, 0
      %s586 = sadd.s32 %s585, 1
      %s587 = scalar_select %p584, %s585, %s586
      %p590 = pneg %p584
      %p591 = scmp.eq.s32.totalorder %s35, 1
      %p592 = por %p590, %p591
      %p593 = scmp.ne.s32.totalorder %s585, %s588
      %p594 = scmp.eq.s32.totalorder %s35, 0
      %p595 = por %p593, %p594
      %p596 = scmp.ne.s32.totalorder %s585, %s588
      %p597 = scmp.eq.s32.totalorder %s40, 1
      %p598 = por %p596, %p597
      %p599 = scmp.ne.s32.totalorder %s588, %s589
      %p600 = scmp.eq.s32.totalorder %s40, 0
      %p601 = por %p599, %p600
      %p602 = scmp.ne.s32.totalorder %s588, %s589
      %p603 = scmp.eq.s32.totalorder %s41, 1
      %p604 = por %p602, %p603
      %p606 = scmp.ne.s32.totalorder %s589, %s605
      %p607 = scmp.eq.s32.totalorder %s41, 0
      %p608 = por %p606, %p607
      %p609 = scmp.le.s32.totalorder 1, %s35
      %p610 = scmp.lt.s32.totalorder %s35, 3
      %p611 = pnand %p609, %p610
      %p612 = pneg %p611
      // Predicated region
      $region9: #{rfdetr_forward.10} parent=5 // pred_check
        _
      $region10: #{rfdetr_forward.10} parent=5 // pred_check_branch
        %614 = sbr.rel (%p611) target = $region12
      $region11: #{rfdetr_forward.10} parent=5 // pred_region
        %s615 = ssub.s32 %s35, 1
        // Predicated region
        $region13: #{rfdetr_forward.10} parent=11 // pred_check
          %p616 = pneg %p108
        $region14: #{rfdetr_forward.10} parent=11 // pred_check_branch
          %618 = sbr.rel (%p616) target = $region16
        $region15: #{rfdetr_forward.10} parent=11 // pred_region
          _
        $region16: #{rfdetr_forward.10} parent=11 // pred_fallthru
          _
        // Predicated region
        $region17: #{rfdetr_forward.10} parent=11 // pred_check
          %p619 = pneg %p129
        $region18: #{rfdetr_forward.10} parent=11 // pred_check_branch
          %621 = sbr.rel (%p619) target = $region20
        $region19: #{rfdetr_forward.10} parent=11 // pred_region
          _
        $region20: #{rfdetr_forward.10} parent=11 // pred_fallthru
          _
        // Predicated region
        $region21: #{rfdetr_forward.10} parent=11 // pred_check
          %p622 = pneg %p150
        $region22: #{rfdetr_forward.10} parent=11 // pred_check_branch
          %624 = sbr.rel (%p622) target = $region24
        $region23: #{rfdetr_forward.10} parent=11 // pred_region
          _
        $region24: #{rfdetr_forward.10} parent=11 // pred_fallthru
          _
        // Predicated region
        $region25: #{rfdetr_forward.10} parent=11 // pred_check
          %p625 = pneg %p171
        $region26: #{rfdetr_forward.10} parent=11 // pred_check_branch
          %627 = sbr.rel (%p625) target = $region28
        $region27: #{rfdetr_forward.10} parent=11 // pred_region
          _
        $region28: #{rfdetr_forward.10} parent=11 // pred_fallthru
          _
        // Predicated region
        $region29: #{rfdetr_forward.10} parent=11 // pred_check
          %p628 = pneg %p192
        $region30: #{rfdetr_forward.10} parent=11 // pred_check_branch
          %630 = sbr.rel (%p628) target = $region32
        $region31: #{rfdetr_forward.10} parent=11 // pred_region
          _
        $region32: #{rfdetr_forward.10} parent=11 // pred_fallthru
          _
        // Predicated region
        $region33: #{rfdetr_forward.10} parent=11 // pred_check
          %p631 = pneg %p213
        $region34: #{rfdetr_forward.10} parent=11 // pred_check_branch
          %633 = sbr.rel (%p631) target = $region36
        $region35: #{rfdetr_forward.10} parent=11 // pred_region
          _
        $region36: #{rfdetr_forward.10} parent=11 // pred_fallthru
          _
        // Predicated region
        $region37: #{rfdetr_forward.10} parent=11 // pred_check
          %p634 = pneg %p234
        $region38: #{rfdetr_forward.10} parent=11 // pred_check_branch
          %636 = sbr.rel (%p634) target = $region40
        $region39: #{rfdetr_forward.10} parent=11 // pred_region
          _
        $region40: #{rfdetr_forward.10} parent=11 // pred_fallthru
          _
        // Predicated region
        $region41: #{rfdetr_forward.10} parent=11 // pred_check
          %p637 = pneg %p255
        $region42: #{rfdetr_forward.10} parent=11 // pred_check_branch
          %639 = sbr.rel (%p637) target = $region44
        $region43: #{rfdetr_forward.10} parent=11 // pred_region
          _
        $region44: #{rfdetr_forward.10} parent=11 // pred_fallthru
          _
        // Predicated region
        $region45: #{rfdetr_forward.10} parent=11 // pred_check
          %p640 = pneg %p276
        $region46: #{rfdetr_forward.10} parent=11 // pred_check_branch
          %642 = sbr.rel (%p640) target = $region48
        $region47: #{rfdetr_forward.10} parent=11 // pred_region
          _
        $region48: #{rfdetr_forward.10} parent=11 // pred_fallthru
          _
        // Predicated region
        $region49: #{rfdetr_forward.10} parent=11 // pred_check
          %p643 = pneg %p297
        $region50: #{rfdetr_forward.10} parent=11 // pred_check_branch
          %645 = sbr.rel (%p643) target = $region52
        $region51: #{rfdetr_forward.10} parent=11 // pred_region
          _
        $region52: #{rfdetr_forward.10} parent=11 // pred_fallthru
          _
        // Predicated region
        $region53: #{rfdetr_forward.10} parent=11 // pred_check
          %p646 = pneg %p318
        $region54: #{rfdetr_forward.10} parent=11 // pred_check_branch
          %648 = sbr.rel (%p646) target = $region56
        $region55: #{rfdetr_forward.10} parent=11 // pred_region
          _
        $region56: #{rfdetr_forward.10} parent=11 // pred_fallthru
          _
        // Predicated region
        $region57: #{rfdetr_forward.10} parent=11 // pred_check
          %p649 = pneg %p339
        $region58: #{rfdetr_forward.10} parent=11 // pred_check_branch
          %651 = sbr.rel (%p649) target = $region60
        $region59: #{rfdetr_forward.10} parent=11 // pred_region
          _
        $region60: #{rfdetr_forward.10} parent=11 // pred_fallthru
          _
        // Predicated region
        $region61: #{rfdetr_forward.10} parent=11 // pred_check
          %p652 = pneg %p360
        $region62: #{rfdetr_forward.10} parent=11 // pred_check_branch
          %654 = sbr.rel (%p652) target = $region64
        $region63: #{rfdetr_forward.10} parent=11 // pred_region
          _
        $region64: #{rfdetr_forward.10} parent=11 // pred_fallthru
          _
        // Predicated region
        $region65: #{rfdetr_forward.10} parent=11 // pred_check
          %p655 = pneg %p381
        $region66: #{rfdetr_forward.10} parent=11 // pred_check_branch
          %657 = sbr.rel (%p655) target = $region68
        $region67: #{rfdetr_forward.10} parent=11 // pred_region
          _
        $region68: #{rfdetr_forward.10} parent=11 // pred_fallthru
          _
        // Predicated region
        $region69: #{rfdetr_forward.10} parent=11 // pred_check
          %p658 = pneg %p402
        $region70: #{rfdetr_forward.10} parent=11 // pred_check_branch
          %660 = sbr.rel (%p658) target = $region72
        $region71: #{rfdetr_forward.10} parent=11 // pred_region
          _
        $region72: #{rfdetr_forward.10} parent=11 // pred_fallthru
          _
        // Predicated region
        $region73: #{rfdetr_forward.10} parent=11 // pred_check
          %p661 = pneg %p423
        $region74: #{rfdetr_forward.10} parent=11 // pred_check_branch
          %663 = sbr.rel (%p661) target = $region76
        $region75: #{rfdetr_forward.10} parent=11 // pred_region
          _
        $region76: #{rfdetr_forward.10} parent=11 // pred_fallthru
          _
        // Predicated region
        $region77: #{rfdetr_forward.10} parent=11 // pred_check
          %p664 = pneg %p444
        $region78: #{rfdetr_forward.10} parent=11 // pred_check_branch
          %666 = sbr.rel (%p664) target = $region80
        $region79: #{rfdetr_forward.10} parent=11 // pred_region
          _
        $region80: #{rfdetr_forward.10} parent=11 // pred_fallthru
          _
        // Predicated region
        $region81: #{rfdetr_forward.10} parent=11 // pred_check
          %p667 = pneg %p465
        $region82: #{rfdetr_forward.10} parent=11 // pred_check_branch
          %669 = sbr.rel (%p667) target = $region84
        $region83: #{rfdetr_forward.10} parent=11 // pred_region
          _
        $region84: #{rfdetr_forward.10} parent=11 // pred_fallthru
          _
        // Predicated region
        $region85: #{rfdetr_forward.10} parent=11 // pred_check
          %p670 = pneg %p486
        $region86: #{rfdetr_forward.10} parent=11 // pred_check_branch
          %672 = sbr.rel (%p670) target = $region88
        $region87: #{rfdetr_forward.10} parent=11 // pred_region
          _
        $region88: #{rfdetr_forward.10} parent=11 // pred_fallthru
          _
        // Predicated region
        $region89: #{rfdetr_forward.10} parent=11 // pred_check
          %p673 = pneg %p507
        $region90: #{rfdetr_forward.10} parent=11 // pred_check_branch
          %675 = sbr.rel (%p673) target = $region92
        $region91: #{rfdetr_forward.10} parent=11 // pred_region
          _
        $region92: #{rfdetr_forward.10} parent=11 // pred_fallthru
          _
        // Predicated region
        $region93: #{rfdetr_forward.10} parent=11 // pred_check
          %p676 = pneg %p528
        $region94: #{rfdetr_forward.10} parent=11 // pred_check_branch
          %678 = sbr.rel (%p676) target = $region96
        $region95: #{rfdetr_forward.10} parent=11 // pred_region
          _
        $region96: #{rfdetr_forward.10} parent=11 // pred_fallthru
          _
        // Predicated region
        $region97: #{rfdetr_forward.10} parent=11 // pred_check
          %p679 = pneg %p549
        $region98: #{rfdetr_forward.10} parent=11 // pred_check_branch
          %681 = sbr.rel (%p679) target = $region100
        $region99: #{rfdetr_forward.10} parent=11 // pred_region
          _
        $region100: #{rfdetr_forward.10} parent=11 // pred_fallthru
          _
      $region12: #{rfdetr_forward.10} parent=5 // pred_fallthru
        _
      %p682 = scmp.lt.s32.totalorder %s35, 2
      // Predicated region
      $region101: #{rfdetr_forward.10} parent=5 // pred_check
        %p683 = pneg %p682
      $region102: #{rfdetr_forward.10} parent=5 // pred_check_branch
        %685 = sbr.rel (%p683) target = $region104
      $region103: #{rfdetr_forward.10} parent=5 // pred_region
        // Predicated region
        $region105: #{rfdetr_forward.10} parent=103 // pred_check
          %p686 = pneg %p55
        $region106: #{rfdetr_forward.10} parent=103 // pred_check_branch
          %688 = sbr.rel (%p686) target = $region108
        $region107: #{rfdetr_forward.10} parent=103 // pred_region
          %p689 = scmp.lt.s32.totalorder %s35, 1
          %s690 = scalar_select %p689, %s35, 1
          %s691 = smul.addr %s690, 8
          %s692 = scalar_lea.vmem %s0, %s691
        $region108: #{rfdetr_forward.10} parent=103 // pred_fallthru
          _
        // Predicated region
        $region109: #{rfdetr_forward.10} parent=103 // pred_check
          %p693 = pneg %p81
        $region110: #{rfdetr_forward.10} parent=103 // pred_check_branch
          %695 = sbr.rel (%p693) target = $region112
        $region111: #{rfdetr_forward.10} parent=103 // pred_region
          %p696 = scmp.lt.s32.totalorder %s35, 1
          %s697 = scalar_select %p696, %s35, 1
          %s698 = smul.addr %s697, 2
          %s699 = smul.addr %s698, 8
          %s700 = scalar_lea.vmem %s1, %s699
        $region112: #{rfdetr_forward.10} parent=103 // pred_fallthru
          _
      $region104: #{rfdetr_forward.10} parent=5 // pred_fallthru
        _
      %p701 = scmp.le.s32.totalorder 1, %s35
      %p702 = scmp.lt.s32.totalorder %s35, 3
      %p703 = pnand %p701, %p702
      %p704 = pneg %p703
      // Predicated region
      $region113: #{rfdetr_forward.10} parent=5 // pred_check
        _
      $region114: #{rfdetr_forward.10} parent=5 // pred_check_branch
        %706 = sbr.rel (%p703) target = $region116
      $region115: #{rfdetr_forward.10} parent=5 // pred_region
        %s707 = ssub.s32 %s35, 1
        %p708 = scmp.lt.s32.totalorder %s40, 1
        %s709 = scalar_select %p708, %s40, 1
        %s710 = smul.addr %s709, 8
        %s711 = scalar_lea.vmem %s0, %s710
        %p712 = pneg %p61
        %p713 = pneg %p58
        %p714 = scmp.lt.s32.totalorder %s40, 1
        %s715 = scalar_select %p714, %s40, 1
        %s716 = smul.addr %s715, 2
        %s717 = smul.addr %s716, 8
        %s718 = scalar_lea.vmem %s1, %s717
        %p719 = pneg %p87
        %p720 = pneg %p84
        %p721 = pneg %p108
        %p722 = pneg %p105
        %p723 = pneg %p129
        %p724 = pneg %p126
        %p725 = pneg %p150
        %p726 = pneg %p147
        %p727 = pneg %p171
        %p728 = pneg %p168
        %p729 = pneg %p192
        %p730 = pneg %p189
        %p731 = pneg %p213
        %p732 = pneg %p210
        %p733 = pneg %p234
        %p734 = pneg %p231
        %p735 = pneg %p255
        %p736 = pneg %p252
        %p737 = pneg %p276
        %p738 = pneg %p273
        %p739 = pneg %p297
        %p740 = pneg %p294
        %p741 = pneg %p318
        %p742 = pneg %p315
        %p743 = pneg %p339
        %p744 = pneg %p336
        %p745 = pneg %p360
        %p746 = pneg %p357
        %p747 = pneg %p381
        %p748 = pneg %p378
        %p749 = pneg %p402
        %p750 = pneg %p399
        %p751 = pneg %p423
        %p752 = pneg %p420
        %p753 = pneg %p444
        %p754 = pneg %p441
        %p755 = pneg %p465
        %p756 = pneg %p462
        %p757 = pneg %p486
        %p758 = pneg %p483
        %p759 = pneg %p507
        %p760 = pneg %p504
        %p761 = pneg %p528
        %p762 = pneg %p525
        %p763 = pneg %p549
        %p764 = pneg %p546
        %p765 = pneg %p575
        %p766 = pneg %p572
        %s767 = sand.u32 %s562, 1
        %s768 = scalar_lea.sflag [#allocation3], %s767
        %s769 = sand.u32 %s562, 1
        %s770 = smul.addr %s769, 8
        %s771 = scalar_lea.vmem [#allocation2], %s770
        %p772 = pneg %p601
        %p773 = pneg %p598
        %p774 = scmp.lt.s32.totalorder %s40, 1
        %s775 = scalar_select %p774, %s40, 1
        %s776 = smul.addr %s775, 8
        %s777 = scalar_lea.vmem %s25, %s776
        %p778 = scmp.lt.s32.totalorder %s40, 1
        %s779 = scalar_select %p778, %s40, 1
        %s780 = smul.addr %s779, 8
        %s781 = scalar_lea.vmem %s0, %s780
        %p782 = scmp.lt.s32.totalorder %s40, 1
        %s783 = scalar_select %p782, %s40, 1
        %s784 = smul.addr %s783, 2
        %s785 = smul.addr %s784, 8
        %s786 = scalar_lea.vmem %s1, %s785
        %p787 = scmp.lt.s32.totalorder %s40, 1
        %s788 = scalar_select %p787, %s40, 1
        %s789 = smul.addr %s788, 8
        %s790 = scalar_lea.vmem %s25, %s789
        %v792 = vld [vmem:[%s781] sm:$0xff]
        %v793 = vld [vmem:[%s786] sm:$0xff]
        %v794 = vld [vmem:[%s786 + $0x8] sm:$0xff]
        %v795 = vpack.c.bf16 %v792, %v792
        %v796 = vld [vmem:[%s3] sm:$0xf]
        %v797 = vld [vmem:[%s3 + $0x4] sm:$0xf]
        %v798 = vld [vmem:[%s3 + $0x8] sm:$0xf]
        %v799 = vld [vmem:[%s3 + $0xc] sm:$0xf]
        %v800 = vld [vmem:[%s2] sm:$0xff]
        %v805 = vunpack.c.l.b16 %v796
        %v806 = vunpack.c.l.b16 %v797
        %v807 = vunpack.c.l.b16 %v798
        %v808 = vunpack.c.l.b16 %v799
        %v809 = vpack.c.b16 %v806, %v805
        %v810 = vpack.c.b16 %v808, %v807
        %vm813 = vcmask 261120
        %v815 = vsel %vm813, %v795, 0
        %817 = vmatpush.bf16.msra.mxu0 0
        %818 = vmatpush.bf16.msra.mxu0 0
        %819 = vmatpush.bf16.msra.mxu0 0
        %820 = vmatpush.bf16.msra.mxu0 0
        %821 = vmatpush.bf16.msra.mxu0 0
        %822 = vmatpush.bf16.msra.mxu0 0
        %823 = vmatpush.bf16.msra.mxu0 %v810
        %824 = vmatpush.bf16.msra.mxu0 %v809
        %825 = vmatmul.bf16.gmra.mxu0 %v815
        %v826 = vpop.f32.mrf.mxu0
        %v827 = vadd.f32 %v800, %v826
        %v828 = vpop.f32.mrf.mxu0
        %829 = vdwg.mxu0
        %v830 = vld [vmem:[%s5] sm:$0x1]
        %v831 = vmul.f32 %v827, 0.35355338
        %v832 = vpack.c.bf16 %v831, %v831
        %v833 = vpack.c.bf16 %v827, %v827
        %v835 = vunpack.c.l.b16 %v833
        %v836 = vpack.c.b16 %v835, %v835
        %837 = vrot.lane.b32.xlu0 %v836, 96
        %v838 = vpop.permute.xlu0 %837
        %vm839 = vcmask 64512
        %v841 = vsel %vm839, %v832, 0
        %v844 = vsel %vm839, %v838, 0
        %846 = vmatpush.bf16.xpose.msra.mxu0 0
        %847 = vmatpush.bf16.xpose.msra.mxu0 0
        %848 = vmatpush.bf16.xpose.msra.mxu0 0
        %849 = vmatpush.bf16.xpose.msra.mxu0 0
        %850 = vmatpush.bf16.xpose.msra.mxu0 0
        %851 = vmatpush.bf16.xpose.msra.mxu0 0
        %852 = vmatpush.bf16.xpose.msra.mxu0 0
        %853 = vmatpush.bf16.xpose.msra.mxu0 %v844
        %854 = vmatmul.bf16.gmra.mxu0 %v841
        %v855 = vpop.f32.mrf.mxu0
        %v856 = vadd.f32 0.0, %v855
        %v857 = vpop.f32.mrf.mxu0
        %858 = vdwg.mxu0
        %v859 = vsel %vm839, %v856, -inf
        %860 = vmax.xlane.f32.xlu0 %v859
        %v861 = vpop.xlane.xlu0 %860
        %v862 = vsub.f32 %v856, %v861
        %v863 = vmul.f32 %v862, 1.442695
        %v864 = vpow.pop %v863
        %v865 = vsel %vm839, %v864, 0.0
        %866 = vadd.xlane.f32.xlu0 %v865
        %v867 = vpop.xlane.xlu0 %866
        %v868 = vrcp.pop %v867
        %v869 = vmul.f32 %v864, %v868
        %v870 = vpack.c.bf16 %v869, %v869
        %871 = vrot.lane.b32.xlu0 %v836, 64
        %v872 = vpop.permute.xlu0 %871
        %v874 = vsel %vm839, %v870, 0
        %vm876 = vcmask 1043456
        %v878 = vsel %vm876, %v872, 0
        %880 = vmatpush.bf16.msra.mxu0 0
        %881 = vmatpush.bf16.msra.mxu0 0
        %882 = vmatpush.bf16.msra.mxu0 0
        %883 = vmatpush.bf16.msra.mxu0 0
        %884 = vmatpush.bf16.msra.mxu0 0
        %885 = vmatpush.bf16.msra.mxu0 0
        %886 = vmatpush.bf16.msra.mxu0 0
        %887 = vmatpush.bf16.msra.mxu0 %v878
        %888 = vmatmul.bf16.gmra.mxu0 %v874
        %v889 = vpop.f32.mrf.mxu0
        %v890 = vadd.f32 0.0, %v889
        %v891 = vpop.f32.mrf.mxu0
        %892 = vdwg.mxu0
        %v894 = vunpack.c.l.b16 %v832
        %v895 = vpack.c.b16 %v894, %v894
        %896 = vrot.lane.b32.xlu0 %v895, 120
        %v897 = vpop.permute.xlu0 %896
        %898 = vrot.lane.b32.xlu0 %v836, 88
        %v899 = vpop.permute.xlu0 %898
        %v901 = vsel %vm839, %v897, 0
        %v904 = vsel %vm839, %v899, 0
        %906 = vmatpush.bf16.xpose.msra.mxu0 0
        %907 = vmatpush.bf16.xpose.msra.mxu0 0
        %908 = vmatpush.bf16.xpose.msra.mxu0 0
        %909 = vmatpush.bf16.xpose.msra.mxu0 0
        %910 = vmatpush.bf16.xpose.msra.mxu0 0
        %911 = vmatpush.bf16.xpose.msra.mxu0 0
        %912 = vmatpush.bf16.xpose.msra.mxu0 0
        %913 = vmatpush.bf16.xpose.msra.mxu0 %v904
        %914 = vmatmul.bf16.gmra.mxu0 %v901
        %v915 = vpop.f32.mrf.mxu0
        %v916 = vadd.f32 0.0, %v915
        %v917 = vpop.f32.mrf.mxu0
        %918 = vdwg.mxu0
        %v919 = vsel %vm839, %v916, -inf
        %920 = vmax.xlane.f32.xlu0 %v919
        %v921 = vpop.xlane.xlu0 %920
        %v922 = vsub.f32 %v916, %v921
        %v923 = vmul.f32 %v922, 1.442695
        %v924 = vpow.pop %v923
        %v925 = vsel %vm839, %v924, 0.0
        %926 = vadd.xlane.f32.xlu0 %v925
        %v927 = vpop.xlane.xlu0 %926
        %v928 = vrcp.pop %v927
        %v929 = vmul.f32 %v924, %v928
        %v930 = vpack.c.bf16 %v929, %v929
        %931 = vrot.lane.b32.xlu0 %v836, 56
        %v932 = vpop.permute.xlu0 %931
        %v934 = vsel %vm839, %v930, 0
        %v937 = vsel %vm876, %v932, 0
        %939 = vmatpush.bf16.msra.mxu0 0
        %940 = vmatpush.bf16.msra.mxu0 0
        %941 = vmatpush.bf16.msra.mxu0 0
        %942 = vmatpush.bf16.msra.mxu0 0
        %943 = vmatpush.bf16.msra.mxu0 0
        %944 = vmatpush.bf16.msra.mxu0 0
        %945 = vmatpush.bf16.msra.mxu0 0
        %946 = vmatpush.bf16.msra.mxu0 %v937
        %947 = vmatmul.bf16.gmra.mxu0 %v934
        %v948 = vpop.f32.mrf.mxu0
        %v949 = vadd.f32 0.0, %v948
        %v950 = vpop.f32.mrf.mxu0
        %951 = vdwg.mxu0
        %952 = vrot.lane.b32.xlu0 %v895, 112
        %v953 = vpop.permute.xlu0 %952
        %954 = vrot.lane.b32.xlu0 %v836, 80
        %v955 = vpop.permute.xlu0 %954
        %v957 = vsel %vm839, %v953, 0
        %v960 = vsel %vm839, %v955, 0
        %962 = vmatpush.bf16.xpose.msra.mxu0 0
        %963 = vmatpush.bf16.xpose.msra.mxu0 0
        %964 = vmatpush.bf16.xpose.msra.mxu0 0
        %965 = vmatpush.bf16.xpose.msra.mxu0 0
        %966 = vmatpush.bf16.xpose.msra.mxu0 0
        %967 = vmatpush.bf16.xpose.msra.mxu0 0
        %968 = vmatpush.bf16.xpose.msra.mxu0 0
        %969 = vmatpush.bf16.xpose.msra.mxu0 %v960
        %970 = vmatmul.bf16.gmra.mxu0 %v957
        %v971 = vpop.f32.mrf.mxu0
        %v972 = vadd.f32 0.0, %v971
        %v973 = vpop.f32.mrf.mxu0
        %974 = vdwg.mxu0
        %v975 = vsel %vm839, %v972, -inf
        %976 = vmax.xlane.f32.xlu0 %v975
        %v977 = vpop.xlane.xlu0 %976
        %v978 = vsub.f32 %v972, %v977
        %v979 = vmul.f32 %v978, 1.442695
        %v980 = vpow.pop %v979
        %v981 = vsel %vm839, %v980, 0.0
        %982 = vadd.xlane.f32.xlu0 %v981
        %v983 = vpop.xlane.xlu0 %982
        %v984 = vrcp.pop %v983
        %v985 = vmul.f32 %v980, %v984
        %v986 = vpack.c.bf16 %v985, %v985
        %987 = vrot.lane.b32.xlu0 %v836, 48
        %v988 = vpop.permute.xlu0 %987
        %v990 = vsel %vm839, %v986, 0
        %v993 = vsel %vm876, %v988, 0
        %995 = vmatpush.bf16.msra.mxu0 0
        %996 = vmatpush.bf16.msra.mxu0 0
        %997 = vmatpush.bf16.msra.mxu0 0
        %998 = vmatpush.bf16.msra.mxu0 0
        %999 = vmatpush.bf16.msra.mxu0 0
        %1000 = vmatpush.bf16.msra.mxu0 0
        %1001 = vmatpush.bf16.msra.mxu0 0
        %1002 = vmatpush.bf16.msra.mxu0 %v993
        %1003 = vmatmul.bf16.gmra.mxu0 %v990
        %v1004 = vpop.f32.mrf.mxu0
        %v1005 = vadd.f32 0.0, %v1004
        %v1006 = vpop.f32.mrf.mxu0
        %1007 = vdwg.mxu0
        %1008 = vrot.lane.b32.xlu0 %v895, 104
        %v1009 = vpop.permute.xlu0 %1008
        %1010 = vrot.lane.b32.xlu0 %v836, 72
        %v1011 = vpop.permute.xlu0 %1010
        %v1013 = vsel %vm839, %v1009, 0
        %v1016 = vsel %vm839, %v1011, 0
        %1018 = vmatpush.bf16.xpose.msra.mxu0 0
        %1019 = vmatpush.bf16.xpose.msra.mxu0 0
        %1020 = vmatpush.bf16.xpose.msra.mxu0 0
        %1021 = vmatpush.bf16.xpose.msra.mxu0 0
        %1022 = vmatpush.bf16.xpose.msra.mxu0 0
        %1023 = vmatpush.bf16.xpose.msra.mxu0 0
        %1024 = vmatpush.bf16.xpose.msra.mxu0 0
        %1025 = vmatpush.bf16.xpose.msra.mxu0 %v1016
        %1026 = vmatmul.bf16.gmra.mxu0 %v1013
        %v1027 = vpop.f32.mrf.mxu0
        %v1028 = vadd.f32 0.0, %v1027
        %v1029 = vpop.f32.mrf.mxu0
        %1030 = vdwg.mxu0
        %v1031 = vsel %vm839, %v1028, -inf
        %1032 = vmax.xlane.f32.xlu0 %v1031
        %v1033 = vpop.xlane.xlu0 %1032
        %v1034 = vsub.f32 %v1028, %v1033
        %v1035 = vmul.f32 %v1034, 1.442695
        %v1036 = vpow.pop %v1035
        %v1037 = vsel %vm839, %v1036, 0.0
        %1038 = vadd.xlane.f32.xlu0 %v1037
        %v1039 = vpop.xlane.xlu0 %1038
        %v1040 = vrcp.pop %v1039
        %v1041 = vmul.f32 %v1036, %v1040
        %v1042 = vpack.c.bf16 %v1041, %v1041
        %1043 = vrot.lane.b32.xlu0 %v836, 40
        %v1044 = vpop.permute.xlu0 %1043
        %v1046 = vsel %vm839, %v1042, 0
        %v1049 = vsel %vm876, %v1044, 0
        %1051 = vmatpush.bf16.msra.mxu0 0
        %1052 = vmatpush.bf16.msra.mxu0 0
        %1053 = vmatpush.bf16.msra.mxu0 0
        %1054 = vmatpush.bf16.msra.mxu0 0
        %1055 = vmatpush.bf16.msra.mxu0 0
        %1056 = vmatpush.bf16.msra.mxu0 0
        %1057 = vmatpush.bf16.msra.mxu0 0
        %1058 = vmatpush.bf16.msra.mxu0 %v1049
        %1059 = vmatmul.bf16.gmra.mxu0 %v1046
        %v1060 = vpop.f32.mrf.mxu0
        %v1061 = vadd.f32 0.0, %v1060
        %v1062 = vpop.f32.mrf.mxu0
        %1063 = vdwg.mxu0
        %1065 = vrot.lane.b32.xlu0 %v949, 8
        %v1066 = vpop.permute.xlu0 %1065
        %1069 = vrot.lane.b32.xlu0 %v1005, 16
        %v1070 = vpop.permute.xlu0 %1069
        %1073 = vrot.lane.b32.xlu0 %v1061, 24
        %v1074 = vpop.permute.xlu0 %1073
        %v1076 = vsel %vm839, %v890, %v1066
        %vm1077 = vcmask 130048
        %v1078 = vsel %vm1077, %v1076, %v1070
        %vm1079 = vcmask 195584
        %v1080 = vsel %vm1079, %v1078, %v1074
        %v1081 = vpack.c.bf16 %v1080, %v1080
        %v1082 = vld [vmem:[%s4] sm:$0xf]
        %v1083 = vld [vmem:[%s4 + $0x4] sm:$0xf]
        %v1084 = vld [vmem:[%s4 + $0x8] sm:$0xf]
        %v1085 = vld [vmem:[%s4 + $0xc] sm:$0xf]
        %v1087 = vperm.slane %v830, 0
        %v1093 = vunpack.c.l.b16 %v1082
        %v1094 = vunpack.c.l.b16 %v1083
        %v1095 = vunpack.c.l.b16 %v1084
        %v1096 = vunpack.c.l.b16 %v1085
        %v1097 = vpack.c.b16 %v1094, %v1093
        %v1098 = vpack.c.b16 %v1096, %v1095
        %v1102 = vsel %vm813, %v1081, 0
        %1104 = vmatpush.bf16.msra.mxu0 0
        %1105 = vmatpush.bf16.msra.mxu0 0
        %1106 = vmatpush.bf16.msra.mxu0 0
        %1107 = vmatpush.bf16.msra.mxu0 0
        %1108 = vmatpush.bf16.msra.mxu0 0
        %1109 = vmatpush.bf16.msra.mxu0 0
        %1110 = vmatpush.bf16.msra.mxu0 %v1098
        %1111 = vmatpush.bf16.msra.mxu0 %v1097
        %1112 = vmatmul.bf16.gmra.mxu0 %v1102
        %v1113 = vpop.f32.mrf.mxu0
        %v1114 = vadd.f32 %v1087, %v1113
        %v1115 = vpop.f32.mrf.mxu0
        %1116 = vdwg.mxu0
        %v1117 = vadd.f32 %v792, %v1114
        %v1118 = vld [vmem:[%s6] sm:$0x1]
        %v1119 = vld [vmem:[%s7] sm:$0x1]
        %v1120 = vsel %vm813, %v1117, 0.0
        %1121 = vadd.xlane.f32.xlu0 %v1120
        %v1122 = vpop.xlane.xlu0 %1121
        %v1123 = vrcp.pop 32.0
        %v1124 = vmul.f32 32.0, %v1123
        %v1125 = vsub.f32 1.0, %v1124
        %v1126 = vmul.f32 %v1123, %v1125
        %v1127 = vadd.f32 %v1123, %v1126
        %vm1128 = vweird.f32 %v1123
        %v1129 = vsel %vm1128, %v1123, %v1127
        %v1130 = vmul.f32 %v1122, %v1129
        %v1131 = vsub.f32 %v1117, %v1130
        %v1132 = vmul.f32 %v1131, %v1131
        %v1133 = vsel %vm813, %v1132, 0.0
        %1134 = vadd.xlane.f32.xlu0 %v1133
        %v1135 = vpop.xlane.xlu0 %1134
        %v1136 = vmul.f32 %v1135, %v1129
        %v1137 = vadd.f32 %v1136, 1e-05
        %v1138 = vrsqrt.pop %v1137
        %v1139 = vmul.f32 %v1138, %v1137
        %v1140 = vmul.f32 %v1139, %v1138
        %v1141 = vmul.f32 0.5, %v1140
        %v1142 = vsub.f32 1.5, %v1141
        %v1143 = vmul.f32 %v1138, %v1142
        %vm1144 = vweird.f32 %v1137
        %vm1145 = vweird.f32 %v1138
        %vm1146 = vmor %vm1144, %vm1145
        %v1147 = vsel %vm1146, %v1138, %v1143
        %v1148 = vmul.f32 %v1131, %v1147
        %v1150 = vperm.slane %v1118, 0
        %v1152 = vmul.f32 %v1148, %v1150
        %v1154 = vperm.slane %v1119, 0
        %v1156 = vadd.f32 %v1152, %v1154
        %v1157 = vpack.c.bf16 %v1156, %v1156
        %v1158 = vld [vmem:[%s9] sm:$0xf]
        %v1159 = vld [vmem:[%s9 + $0x4] sm:$0xf]
        %v1160 = vld [vmem:[%s9 + $0x8] sm:$0xf]
        %v1161 = vld [vmem:[%s9 + $0xc] sm:$0xf]
        %v1162 = vld [vmem:[%s8] sm:$0xff]
        %v1167 = vunpack.c.l.b16 %v1158
        %v1168 = vunpack.c.l.b16 %v1159
        %v1169 = vunpack.c.l.b16 %v1160
        %v1170 = vunpack.c.l.b16 %v1161
        %v1171 = vpack.c.b16 %v1168, %v1167
        %v1172 = vpack.c.b16 %v1170, %v1169
        %v1176 = vsel %vm813, %v1157, 0
        %1178 = vmatpush.bf16.msra.mxu0 0
        %1179 = vmatpush.bf16.msra.mxu0 0
        %1180 = vmatpush.bf16.msra.mxu0 0
        %1181 = vmatpush.bf16.msra.mxu0 0
        %1182 = vmatpush.bf16.msra.mxu0 0
        %1183 = vmatpush.bf16.msra.mxu0 0
        %1184 = vmatpush.bf16.msra.mxu0 %v1172
        %1185 = vmatpush.bf16.msra.mxu0 %v1171
        %1186 = vmatmul.bf16.gmra.mxu0 %v1176
        %v1187 = vpop.f32.mrf.mxu0
        %v1188 = vadd.f32 %v1162, %v1187
        %v1189 = vpop.f32.mrf.mxu0
        %1190 = vdwg.mxu0
        %v1191 = vpack.c.bf16 %v794, %v793
        %v1192 = vld [vmem:[%s11] sm:$0xf]
        %v1193 = vld [vmem:[%s11 + $0x4] sm:$0xf]
        %v1194 = vld [vmem:[%s11 + $0x8] sm:$0xf]
        %v1195 = vld [vmem:[%s11 + $0xc] sm:$0xf]
        %v1196 = vld [vmem:[%s10] sm:$0xff]
        %v1197 = vld [vmem:[%s10 + $0x8] sm:$0xff]
        %v1202 = vunpack.c.l.b16 %v1192
        %v1203 = vunpack.c.l.b16 %v1193
        %v1204 = vunpack.c.l.b16 %v1194
        %v1205 = vunpack.c.l.b16 %v1195
        %v1206 = vpack.c.b16 %v1203, %v1202
        %v1207 = vpack.c.b16 %v1205, %v1204
        %v1211 = vsel %vm813, %v1191, 0
        %1213 = vmatpush.bf16.msra.mxu0 0
        %1214 = vmatpush.bf16.msra.mxu0 0
        %1215 = vmatpush.bf16.msra.mxu0 0
        %1216 = vmatpush.bf16.msra.mxu0 0
        %1217 = vmatpush.bf16.msra.mxu0 0
        %1218 = vmatpush.bf16.msra.mxu0 0
        %1219 = vmatpush.bf16.msra.mxu0 %v1207
        %1220 = vmatpush.bf16.msra.mxu0 %v1206
        %1221 = vmatmul.bf16.gmra.mxu0 %v1211
        %v1222 = vpop.f32.mrf.mxu0
        %v1223 = vadd.f32 %v1196, %v1222
        %v1224 = vpop.f32.mrf.mxu0
        %v1225 = vadd.f32 %v1197, %v1224
        %1226 = vdwg.mxu0
        %v1227 = vld [vmem:[%s13] sm:$0x1]
        %v1228 = vmul.f32 %v1188, 0.35355338
        %v1229 = vpack.c.bf16 %v1228, %v1228
        %v1230 = vpack.c.bf16 %v1223, %v1223
        %v1231 = vpack.c.bf16 %v1225, %v1225
        %v1234 = vunpack.c.l.b16 %v1230
        %v1235 = vunpack.c.l.b16 %v1231
        %v1236 = vpack.c.b16 %v1235, %v1234
        %v1238 = vsel %vm839, %v1229, 0
        %v1241 = vsel %vm839, %v1236, 0
        %1243 = vmatpush.bf16.xpose.msra.mxu0 0
        %1244 = vmatpush.bf16.xpose.msra.mxu0 0
        %1245 = vmatpush.bf16.xpose.msra.mxu0 0
        %1246 = vmatpush.bf16.xpose.msra.mxu0 0
        %1247 = vmatpush.bf16.xpose.msra.mxu0 0
        %1248 = vmatpush.bf16.xpose.msra.mxu0 0
        %1249 = vmatpush.bf16.xpose.msra.mxu0 0
        %1250 = vmatpush.bf16.xpose.msra.mxu0 %v1241
        %1251 = vmatmul.bf16.gmra.mxu0 %v1238
        %v1252 = vpop.f32.mrf.mxu0
        %v1253 = vadd.f32 0.0, %v1252
        %v1254 = vpop.f32.mrf.mxu0
        %1255 = vdwg.mxu0
        %v1256 = vsel %vm1077, %v1253, -inf
        %1257 = vmax.xlane.f32.xlu0 %v1256
        %v1258 = vpop.xlane.xlu0 %1257
        %v1259 = vsub.f32 %v1253, %v1258
        %v1260 = vmul.f32 %v1259, 1.442695
        %v1261 = vpow.pop %v1260
        %v1262 = vsel %vm1077, %v1261, 0.0
        %1263 = vadd.xlane.f32.xlu0 %v1262
        %v1264 = vpop.xlane.xlu0 %1263
        %v1265 = vrcp.pop %v1264
        %v1266 = vmul.f32 %v1261, %v1265
        %v1267 = vpack.c.bf16 %v1266, %v1266
        %1268 = vrot.lane.b32.xlu0 %v1236, 96
        %v1269 = vpop.permute.xlu0 %1268
        %v1272 = vsel %vm1077, %v1267, 0
        %1274 = vmatpush.bf16.msra.mxu0 0
        %1275 = vmatpush.bf16.msra.mxu0 0
        %1276 = vmatpush.bf16.msra.mxu0 0
        %1277 = vmatpush.bf16.msra.mxu0 0
        %1278 = vmatpush.bf16.msra.mxu0 0
        %1279 = vmatpush.bf16.msra.mxu0 0
        %1280 = vmatpush.bf16.msra.mxu0 0
        %1281 = vmatpush.bf16.msra.mxu0 %v1269
        %1282 = vmatmul.bf16.gmra.mxu0 %v1272
        %v1283 = vpop.f32.mrf.mxu0
        %v1284 = vadd.f32 0.0, %v1283
        %v1285 = vpop.f32.mrf.mxu0
        %1286 = vdwg.mxu0
        %v1288 = vunpack.c.l.b16 %v1229
        %v1289 = vpack.c.b16 %v1288, %v1288
        %1290 = vrot.lane.b32.xlu0 %v1289, 120
        %v1291 = vpop.permute.xlu0 %1290
        %1292 = vrot.lane.b32.xlu0 %v1236, 120
        %v1293 = vpop.permute.xlu0 %1292
        %v1295 = vsel %vm839, %v1291, 0
        %v1298 = vsel %vm839, %v1293, 0
        %1300 = vmatpush.bf16.xpose.msra.mxu0 0
        %1301 = vmatpush.bf16.xpose.msra.mxu0 0
        %1302 = vmatpush.bf16.xpose.msra.mxu0 0
        %1303 = vmatpush.bf16.xpose.msra.mxu0 0
        %1304 = vmatpush.bf16.xpose.msra.mxu0 0
        %1305 = vmatpush.bf16.xpose.msra.mxu0 0
        %1306 = vmatpush.bf16.xpose.msra.mxu0 0
        %1307 = vmatpush.bf16.xpose.msra.mxu0 %v1298
        %1308 = vmatmul.bf16.gmra.mxu0 %v1295
        %v1309 = vpop.f32.mrf.mxu0
        %v1310 = vadd.f32 0.0, %v1309
        %v1311 = vpop.f32.mrf.mxu0
        %1312 = vdwg.mxu0
        %v1313 = vsel %vm1077, %v1310, -inf
        %1314 = vmax.xlane.f32.xlu0 %v1313
        %v1315 = vpop.xlane.xlu0 %1314
        %v1316 = vsub.f32 %v1310, %v1315
        %v1317 = vmul.f32 %v1316, 1.442695
        %v1318 = vpow.pop %v1317
        %v1319 = vsel %vm1077, %v1318, 0.0
        %1320 = vadd.xlane.f32.xlu0 %v1319
        %v1321 = vpop.xlane.xlu0 %1320
        %v1322 = vrcp.pop %v1321
        %v1323 = vmul.f32 %v1318, %v1322
        %v1324 = vpack.c.bf16 %v1323, %v1323
        %1325 = vrot.lane.b32.xlu0 %v1236, 88
        %v1326 = vpop.permute.xlu0 %1325
        %v1329 = vsel %vm1077, %v1324, 0
        %1331 = vmatpush.bf16.msra.mxu0 0
        %1332 = vmatpush.bf16.msra.mxu0 0
        %1333 = vmatpush.bf16.msra.mxu0 0
        %1334 = vmatpush.bf16.msra.mxu0 0
        %1335 = vmatpush.bf16.msra.mxu0 0
        %1336 = vmatpush.bf16.msra.mxu0 0
        %1337 = vmatpush.bf16.msra.mxu0 0
        %1338 = vmatpush.bf16.msra.mxu0 %v1326
        %1339 = vmatmul.bf16.gmra.mxu0 %v1329
        %v1340 = vpop.f32.mrf.mxu0
        %v1341 = vadd.f32 0.0, %v1340
        %v1342 = vpop.f32.mrf.mxu0
        %1343 = vdwg.mxu0
        %1344 = vrot.lane.b32.xlu0 %v1289, 112
        %v1345 = vpop.permute.xlu0 %1344
        %1346 = vrot.lane.b32.xlu0 %v1236, 112
        %v1347 = vpop.permute.xlu0 %1346
        %v1349 = vsel %vm839, %v1345, 0
        %v1352 = vsel %vm839, %v1347, 0
        %1354 = vmatpush.bf16.xpose.msra.mxu0 0
        %1355 = vmatpush.bf16.xpose.msra.mxu0 0
        %1356 = vmatpush.bf16.xpose.msra.mxu0 0
        %1357 = vmatpush.bf16.xpose.msra.mxu0 0
        %1358 = vmatpush.bf16.xpose.msra.mxu0 0
        %1359 = vmatpush.bf16.xpose.msra.mxu0 0
        %1360 = vmatpush.bf16.xpose.msra.mxu0 0
        %1361 = vmatpush.bf16.xpose.msra.mxu0 %v1352
        %1362 = vmatmul.bf16.gmra.mxu0 %v1349
        %v1363 = vpop.f32.mrf.mxu0
        %v1364 = vadd.f32 0.0, %v1363
        %v1365 = vpop.f32.mrf.mxu0
        %1366 = vdwg.mxu0
        %v1367 = vsel %vm1077, %v1364, -inf
        %1368 = vmax.xlane.f32.xlu0 %v1367
        %v1369 = vpop.xlane.xlu0 %1368
        %v1370 = vsub.f32 %v1364, %v1369
        %v1371 = vmul.f32 %v1370, 1.442695
        %v1372 = vpow.pop %v1371
        %v1373 = vsel %vm1077, %v1372, 0.0
        %1374 = vadd.xlane.f32.xlu0 %v1373
        %v1375 = vpop.xlane.xlu0 %1374
        %v1376 = vrcp.pop %v1375
        %v1377 = vmul.f32 %v1372, %v1376
        %v1378 = vpack.c.bf16 %v1377, %v1377
        %1379 = vrot.lane.b32.xlu0 %v1236, 80
        %v1380 = vpop.permute.xlu0 %1379
        %v1383 = vsel %vm1077, %v1378, 0
        %1385 = vmatpush.bf16.msra.mxu0 0
        %1386 = vmatpush.bf16.msra.mxu0 0
        %1387 = vmatpush.bf16.msra.mxu0 0
        %1388 = vmatpush.bf16.msra.mxu0 0
        %1389 = vmatpush.bf16.msra.mxu0 0
        %1390 = vmatpush.bf16.msra.mxu0 0
        %1391 = vmatpush.bf16.msra.mxu0 0
        %1392 = vmatpush.bf16.msra.mxu0 %v1380
        %1393 = vmatmul.bf16.gmra.mxu0 %v1383
        %v1394 = vpop.f32.mrf.mxu0
        %v1395 = vadd.f32 0.0, %v1394
        %v1396 = vpop.f32.mrf.mxu0
        %1397 = vdwg.mxu0
        %1398 = vrot.lane.b32.xlu0 %v1289, 104
        %v1399 = vpop.permute.xlu0 %1398
        %1400 = vrot.lane.b32.xlu0 %v1236, 104
        %v1401 = vpop.permute.xlu0 %1400
        %v1403 = vsel %vm839, %v1399, 0
        %v1406 = vsel %vm839, %v1401, 0
        %1408 = vmatpush.bf16.xpose.msra.mxu0 0
        %1409 = vmatpush.bf16.xpose.msra.mxu0 0
        %1410 = vmatpush.bf16.xpose.msra.mxu0 0
        %1411 = vmatpush.bf16.xpose.msra.mxu0 0
        %1412 = vmatpush.bf16.xpose.msra.mxu0 0
        %1413 = vmatpush.bf16.xpose.msra.mxu0 0
        %1414 = vmatpush.bf16.xpose.msra.mxu0 0
        %1415 = vmatpush.bf16.xpose.msra.mxu0 %v1406
        %1416 = vmatmul.bf16.gmra.mxu0 %v1403
        %v1417 = vpop.f32.mrf.mxu0
        %v1418 = vadd.f32 0.0, %v1417
        %v1419 = vpop.f32.mrf.mxu0
        %1420 = vdwg.mxu0
        %v1421 = vsel %vm1077, %v1418, -inf
        %1422 = vmax.xlane.f32.xlu0 %v1421
        %v1423 = vpop.xlane.xlu0 %1422
        %v1424 = vsub.f32 %v1418, %v1423
        %v1425 = vmul.f32 %v1424, 1.442695
        %v1426 = vpow.pop %v1425
        %v1427 = vsel %vm1077, %v1426, 0.0
        %1428 = vadd.xlane.f32.xlu0 %v1427
        %v1429 = vpop.xlane.xlu0 %1428
        %v1430 = vrcp.pop %v1429
        %v1431 = vmul.f32 %v1426, %v1430
        %v1432 = vpack.c.bf16 %v1431, %v1431
        %1433 = vrot.lane.b32.xlu0 %v1236, 72
        %v1434 = vpop.permute.xlu0 %1433
        %v1437 = vsel %vm1077, %v1432, 0
        %1439 = vmatpush.bf16.msra.mxu0 0
        %1440 = vmatpush.bf16.msra.mxu0 0
        %1441 = vmatpush.bf16.msra.mxu0 0
        %1442 = vmatpush.bf16.msra.mxu0 0
        %1443 = vmatpush.bf16.msra.mxu0 0
        %1444 = vmatpush.bf16.msra.mxu0 0
        %1445 = vmatpush.bf16.msra.mxu0 0
        %1446 = vmatpush.bf16.msra.mxu0 %v1434
        %1447 = vmatmul.bf16.gmra.mxu0 %v1437
        %v1448 = vpop.f32.mrf.mxu0
        %v1449 = vadd.f32 0.0, %v1448
        %v1450 = vpop.f32.mrf.mxu0
        %1451 = vdwg.mxu0
        %1453 = vrot.lane.b32.xlu0 %v1341, 8
        %v1454 = vpop.permute.xlu0 %1453
        %1457 = vrot.lane.b32.xlu0 %v1395, 16
        %v1458 = vpop.permute.xlu0 %1457
        %1461 = vrot.lane.b32.xlu0 %v1449, 24
        %v1462 = vpop.permute.xlu0 %1461
        %v1464 = vsel %vm839, %v1284, %v1454
        %v1465 = vsel %vm1077, %v1464, %v1458
        %v1466 = vsel %vm1079, %v1465, %v1462
        %v1467 = vpack.c.bf16 %v1466, %v1466
        %v1468 = vld [vmem:[%s12] sm:$0xf]
        %v1469 = vld [vmem:[%s12 + $0x4] sm:$0xf]
        %v1470 = vld [vmem:[%s12 + $0x8] sm:$0xf]
        %v1471 = vld [vmem:[%s12 + $0xc] sm:$0xf]
        %v1473 = vperm.slane %v1227, 0
        %v1479 = vunpack.c.l.b16 %v1468
        %v1480 = vunpack.c.l.b16 %v1469
        %v1481 = vunpack.c.l.b16 %v1470
        %v1482 = vunpack.c.l.b16 %v1471
        %v1483 = vpack.c.b16 %v1480, %v1479
        %v1484 = vpack.c.b16 %v1482, %v1481
        %v1488 = vsel %vm813, %v1467, 0
        %1490 = vmatpush.bf16.msra.mxu0 0
        %1491 = vmatpush.bf16.msra.mxu0 0
        %1492 = vmatpush.bf16.msra.mxu0 0
        %1493 = vmatpush.bf16.msra.mxu0 0
        %1494 = vmatpush.bf16.msra.mxu0 0
        %1495 = vmatpush.bf16.msra.mxu0 0
        %1496 = vmatpush.bf16.msra.mxu0 %v1484
        %1497 = vmatpush.bf16.msra.mxu0 %v1483
        %1498 = vmatmul.bf16.gmra.mxu0 %v1488
        %v1499 = vpop.f32.mrf.mxu0
        %v1500 = vadd.f32 %v1473, %v1499
        %v1501 = vpop.f32.mrf.mxu0
        %1502 = vdwg.mxu0
        %v1503 = vadd.f32 %v1156, %v1500
        %v1504 = vld [vmem:[%s14] sm:$0x1]
        %v1505 = vld [vmem:[%s15] sm:$0x1]
        %v1506 = vsel %vm813, %v1503, 0.0
        %1507 = vadd.xlane.f32.xlu0 %v1506
        %v1508 = vpop.xlane.xlu0 %1507
        %v1509 = vmul.f32 %v1508, %v1129
        %v1510 = vsub.f32 %v1503, %v1509
        %v1511 = vmul.f32 %v1510, %v1510
        %v1512 = vsel %vm813, %v1511, 0.0
        %1513 = vadd.xlane.f32.xlu0 %v1512
        %v1514 = vpop.xlane.xlu0 %1513
        %v1515 = vmul.f32 %v1514, %v1129
        %v1516 = vadd.f32 %v1515, 1e-05
        %v1517 = vrsqrt.pop %v1516
        %v1518 = vmul.f32 %v1517, %v1516
        %v1519 = vmul.f32 %v1518, %v1517
        %v1520 = vmul.f32 0.5, %v1519
        %v1521 = vsub.f32 1.5, %v1520
        %v1522 = vmul.f32 %v1517, %v1521
        %vm1523 = vweird.f32 %v1516
        %vm1524 = vweird.f32 %v1517
        %vm1525 = vmor %vm1523, %vm1524
        %v1526 = vsel %vm1525, %v1517, %v1522
        %v1527 = vmul.f32 %v1510, %v1526
        %v1529 = vperm.slane %v1504, 0
        %v1531 = vmul.f32 %v1527, %v1529
        %v1533 = vperm.slane %v1505, 0
        %v1535 = vadd.f32 %v1531, %v1533
        %v1536 = vpack.c.bf16 %v1535, %v1535
        %v1537 = vld [vmem:[%s16] sm:$0xf]
        %v1538 = vld [vmem:[%s16 + $0x4] sm:$0xf]
        %v1539 = vld [vmem:[%s16 + $0x8] sm:$0xf]
        %v1540 = vld [vmem:[%s16 + $0xc] sm:$0xf]
        %v1541 = vld [vmem:[%s17] sm:$0x1]
        %v1543 = vperm.slane %v1541, 0
        %v1549 = vunpack.c.l.b16 %v1537
        %v1550 = vunpack.c.l.b16 %v1538
        %v1551 = vunpack.c.l.b16 %v1539
        %v1552 = vunpack.c.l.b16 %v1540
        %v1553 = vpack.c.b16 %v1550, %v1549
        %v1554 = vpack.c.b16 %v1552, %v1551
        %v1558 = vsel %vm813, %v1536, 0
        %1560 = vmatpush.bf16.msra.mxu0 0
        %1561 = vmatpush.bf16.msra.mxu0 0
        %1562 = vmatpush.bf16.msra.mxu0 0
        %1563 = vmatpush.bf16.msra.mxu0 0
        %1564 = vmatpush.bf16.msra.mxu0 0
        %1565 = vmatpush.bf16.msra.mxu0 0
        %1566 = vmatpush.bf16.msra.mxu0 %v1554
        %1567 = vmatpush.bf16.msra.mxu0 %v1553
        %1568 = vmatmul.bf16.gmra.mxu0 %v1558
        %v1569 = vpop.f32.mrf.mxu0
        %v1570 = vadd.f32 %v1543, %v1569
        %v1571 = vpop.f32.mrf.mxu0
        %1572 = vdwg.mxu0
        %v1573 = vmax.f32 %v1570, 0.0
        %v1574 = vpack.c.bf16 %v1573, %v1573
        %v1575 = vld [vmem:[%s18] sm:$0xf]
        %v1576 = vld [vmem:[%s18 + $0x4] sm:$0xf]
        %v1577 = vld [vmem:[%s18 + $0x8] sm:$0xf]
        %v1578 = vld [vmem:[%s18 + $0xc] sm:$0xf]
        %v1579 = vld [vmem:[%s18 + $0x10] sm:$0xf]
        %v1580 = vld [vmem:[%s18 + $0x14] sm:$0xf]
        %v1581 = vld [vmem:[%s18 + $0x18] sm:$0xf]
        %v1582 = vld [vmem:[%s18 + $0x1c] sm:$0xf]
        %v1583 = vld [vmem:[%s18 + $0x20] sm:$0xf]
        %v1584 = vld [vmem:[%s18 + $0x24] sm:$0xf]
        %v1585 = vld [vmem:[%s18 + $0x28] sm:$0xf]
        %v1586 = vld [vmem:[%s18 + $0x2c] sm:$0xf]
        %v1587 = vld [vmem:[%s18 + $0x30] sm:$0xf]
        %v1588 = vld [vmem:[%s18 + $0x34] sm:$0xf]
        %v1589 = vld [vmem:[%s18 + $0x38] sm:$0xf]
        %v1590 = vld [vmem:[%s18 + $0x3c] sm:$0xf]
        %v1591 = vld [vmem:[%s19] sm:$0x1]
        %v1593 = vperm.slane %v1591, 0
        %v1611 = vunpack.c.l.b16 %v1575
        %v1612 = vunpack.c.l.b16 %v1576
        %v1613 = vunpack.c.l.b16 %v1577
        %v1614 = vunpack.c.l.b16 %v1578
        %v1615 = vunpack.c.l.b16 %v1579
        %v1616 = vunpack.c.l.b16 %v1580
        %v1617 = vunpack.c.l.b16 %v1581
        %v1618 = vunpack.c.l.b16 %v1582
        %v1619 = vunpack.c.l.b16 %v1583
        %v1620 = vunpack.c.l.b16 %v1584
        %v1621 = vunpack.c.l.b16 %v1585
        %v1622 = vunpack.c.l.b16 %v1586
        %v1623 = vunpack.c.l.b16 %v1587
        %v1624 = vunpack.c.l.b16 %v1588
        %v1625 = vunpack.c.l.b16 %v1589
        %v1626 = vunpack.c.l.b16 %v1590
        %v1627 = vpack.c.b16 %v1612, %v1611
        %v1628 = vpack.c.b16 %v1614, %v1613
        %v1629 = vpack.c.b16 %v1616, %v1615
        %v1630 = vpack.c.b16 %v1618, %v1617
        %v1631 = vpack.c.b16 %v1620, %v1619
        %v1632 = vpack.c.b16 %v1622, %v1621
        %v1633 = vpack.c.b16 %v1624, %v1623
        %v1634 = vpack.c.b16 %v1626, %v1625
        %1643 = vmatpush.bf16.msra.mxu0 %v1634
        %1644 = vmatpush.bf16.msra.mxu0 %v1633
        %1645 = vmatpush.bf16.msra.mxu0 %v1632
        %1646 = vmatpush.bf16.msra.mxu0 %v1631
        %1647 = vmatpush.bf16.msra.mxu0 %v1630
        %1648 = vmatpush.bf16.msra.mxu0 %v1629
        %1649 = vmatpush.bf16.msra.mxu0 %v1628
        %1650 = vmatpush.bf16.msra.mxu0 %v1627
        %1651 = vmatmul.bf16.gmra.mxu0 %v1574
        %v1652 = vpop.f32.mrf.mxu0
        %v1653 = vadd.f32 %v1593, %v1652
        %v1654 = vpop.f32.mrf.mxu0
        %1655 = vdwg.mxu0
        %v1656 = vadd.f32 %v1535, %v1653
        %v1657 = vld [vmem:[%s20] sm:$0x1]
        %v1658 = vld [vmem:[%s21] sm:$0x1]
        %v1659 = vsel %vm813, %v1656, 0.0
        %1660 = vadd.xlane.f32.xlu0 %v1659
        %v1661 = vpop.xlane.xlu0 %1660
        %v1662 = vmul.f32 %v1661, %v1129
        %v1663 = vsub.f32 %v1656, %v1662
        %v1664 = vmul.f32 %v1663, %v1663
        %v1665 = vsel %vm813, %v1664, 0.0
        %1666 = vadd.xlane.f32.xlu0 %v1665
        %v1667 = vpop.xlane.xlu0 %1666
        %v1668 = vmul.f32 %v1667, %v1129
        %v1669 = vadd.f32 %v1668, 1e-05
        %v1670 = vrsqrt.pop %v1669
        %v1671 = vmul.f32 %v1670, %v1669
        %v1672 = vmul.f32 %v1671, %v1670
        %v1673 = vmul.f32 0.5, %v1672
        %v1674 = vsub.f32 1.5, %v1673
        %v1675 = vmul.f32 %v1670, %v1674
        %vm1676 = vweird.f32 %v1669
        %vm1677 = vweird.f32 %v1670
        %vm1678 = vmor %vm1676, %vm1677
        %v1679 = vsel %vm1678, %v1670, %v1675
        %v1680 = vmul.f32 %v1663, %v1679
        %v1682 = vperm.slane %v1657, 0
        %v1684 = vmul.f32 %v1680, %v1682
        %v1686 = vperm.slane %v1658, 0
        %v1688 = vadd.f32 %v1684, %v1686
        %1689 = vst.msk [vmem:[%s771] sm:$0xff] %vm813, %v1688
        %v1690 = vld [vmem:[%s22] sm:$0x1]
        %v1691 = vld [vmem:[%s23] sm:$0x1]
        %v1692 = vsel %vm813, %v1688, 0.0
        %1693 = vadd.xlane.f32.xlu0 %v1692
        %v1694 = vpop.xlane.xlu0 %1693
        %v1695 = vmul.f32 %v1694, %v1129
        %v1696 = vsub.f32 %v1688, %v1695
        %v1697 = vmul.f32 %v1696, %v1696
        %v1698 = vsel %vm813, %v1697, 0.0
        %1699 = vadd.xlane.f32.xlu0 %v1698
        %v1700 = vpop.xlane.xlu0 %1699
        %v1701 = vmul.f32 %v1700, %v1129
        %v1702 = vadd.f32 %v1701, 1e-05
        %v1703 = vrsqrt.pop %v1702
        %v1704 = vmul.f32 %v1703, %v1702
        %v1705 = vmul.f32 %v1704, %v1703
        %v1706 = vmul.f32 0.5, %v1705
        %v1707 = vsub.f32 1.5, %v1706
        %v1708 = vmul.f32 %v1703, %v1707
        %vm1709 = vweird.f32 %v1702
        %vm1710 = vweird.f32 %v1703
        %vm1711 = vmor %vm1709, %vm1710
        %v1712 = vsel %vm1711, %v1703, %v1708
        %v1713 = vmul.f32 %v1696, %v1712
        %v1715 = vperm.slane %v1690, 0
        %v1717 = vmul.f32 %v1713, %v1715
        %v1719 = vperm.slane %v1691, 0
        %v1721 = vadd.f32 %v1717, %v1719
        %1722 = vst.msk [vmem:[%s790] sm:$0xff] %vm813, %v1721
        %s1723 = sand.u32 %s562, 1
        %s1724 = scalar_lea.sflag [#allocation3], %s1723
        %s1725 = sand.u32 %s562, 1
        %s1726 = smul.addr %s1725, 8
        %s1727 = scalar_lea.vmem [#allocation2], %s1726
        %p1728 = scmp.lt.s32.totalorder %s40, 1
        %s1729 = scalar_select %p1728, %s40, 1
        %s1730 = smul.addr %s1729, 8
        %s1731 = scalar_lea.vmem %s25, %s1730
        // Predicated region
        $region117: #{rfdetr_forward.10} parent=115 // pred_check
          %p1732 = pneg %p572
        $region118: #{rfdetr_forward.10} parent=115 // pred_check_branch
          %1734 = sbr.rel (%p1732) target = $region120
        $region119: #{rfdetr_forward.10} parent=115 // pred_region
          %1736 = vsyncadd %s1724, 0
          %s1737 = smul.addr %s40, 8
          %s1738 = scalar_lea.hbm %s24, %s1737
          %s1740 = sshll.u32 %s1727, 4
          %s1741 = int_to_ptr.vmem [resolvable:$true] %s1740
          %s1742 = sshll.u32 %s1738, 4
          %s1743 = int_to_ptr.hbm [resolvable:$true] %s1742
          %1745 = dma.vmem_to_hbm [thread:$0]  %s1741, 128, %s1743, %s1724
        $region120: #{rfdetr_forward.10} parent=115 // pred_fallthru
          _
        // Predicated region
        $region121: #{rfdetr_forward.10} parent=115 // pred_check
          %p1746 = pneg %p598
        $region122: #{rfdetr_forward.10} parent=115 // pred_check_branch
          %1748 = sbr.rel (%p1746) target = $region124
        $region123: #{rfdetr_forward.10} parent=115 // pred_region
          _
        $region124: #{rfdetr_forward.10} parent=115 // pred_fallthru
          _
      $region116: #{rfdetr_forward.10} parent=5 // pred_fallthru
        _
      %p1749 = scmp.le.s32.totalorder 2, %s35
      // Predicated region
      $region125: #{rfdetr_forward.10} parent=5 // pred_check
        %p1750 = pneg %p1749
      $region126: #{rfdetr_forward.10} parent=5 // pred_check_branch
        %1752 = sbr.rel (%p1750) target = $region128
      $region127: #{rfdetr_forward.10} parent=5 // pred_region
        %s1753 = ssub.s32 %s35, 2
        // Predicated region
        $region129: #{rfdetr_forward.10} parent=127 // pred_check
          %p1754 = pneg %p578
        $region130: #{rfdetr_forward.10} parent=127 // pred_check_branch
          %1756 = sbr.rel (%p1754) target = $region132
        $region131: #{rfdetr_forward.10} parent=127 // pred_region
          %s1757 = sand.u32 %s563, 1
          %s1758 = scalar_lea.sflag [#allocation3], %s1757
          %s1759 = sand.u32 %s563, 1
          %s1760 = smul.addr %s1759, 8
          %s1761 = scalar_lea.vmem [#allocation2], %s1760
          %1763 = dma.done %s1758, 128
        $region132: #{rfdetr_forward.10} parent=127 // pred_fallthru
          _
        // Predicated region
        $region133: #{rfdetr_forward.10} parent=127 // pred_check
          %p1764 = pneg %p604
        $region134: #{rfdetr_forward.10} parent=127 // pred_check_branch
          %1766 = sbr.rel (%p1764) target = $region136
        $region135: #{rfdetr_forward.10} parent=127 // pred_region
          %p1767 = scmp.lt.s32.totalorder %s41, 1
          %s1768 = scalar_select %p1767, %s41, 1
          %s1769 = smul.addr %s1768, 8
          %s1770 = scalar_lea.vmem %s25, %s1769
        $region136: #{rfdetr_forward.10} parent=127 // pred_fallthru
          _
      $region128: #{rfdetr_forward.10} parent=5 // pred_fallthru
        _
    $region6: #{rfdetr_forward.10} parent=1 // loop_footer
      %s39 = sadd.s32 1, %s35
    $region7: #{rfdetr_forward.10} parent=1 // loop_footer_branch
      %34 = sbr.rel target = $region3
    $region8: #{rfdetr_forward.10} parent=1 // loop_exit
      _
    %1771 = vsyncpa [#allocation3], 1
    %s1772 = scalar_lea.sflag [#allocation3], 1
    %1773 = vsyncpa %s1772, 1

</llo_original>
